<compile_context>
chip_gen: v7x
topology: tpu7x:2x2x1
jax: 0.10.0
libtpu: 0.0.40
codegen_flags: <defaults>
</compile_context>

<pallas_src>
import functools

import jax
import jax.numpy as jnp
from jax import lax
from jax.experimental import pallas as pl
from jax.experimental.pallas import tpu as pltpu

EMBEDDIM = 768
HIDDENDIM_LSTM = 128
NUMLAYERS = 12
NUMCLASSES = 4
CPAD = 128   # lane-dense padding of the class dim for the FC / output store


# ----------------------------------------------------------------------------
# Pallas kernel: both LSTMs (interleaved recurrences) + FC in one program.
# ----------------------------------------------------------------------------
def fused_kernel(x1_ref, wih1_ref, whh1_ref, b1_ref,
                 x2_ref, wih2_ref, whh2_ref, b2_ref,
                 fcw_ref, fcb_ref, out_ref, xg1_ref, xg2_ref,
                 *, S1, S2, B, H):
    """x*: [S*B, E] bf16 time-major flat.  wih*: [E,4H] bf16.  whh*: [H,4H]
    bf16.  b*: [1,4H] f32 (b_ih+b_hh).  fcw: [2H,CPAD] bf16 (rows 0:H
    multiply h2, rows H:2H multiply h1).  fcb: [1,CPAD] f32.
    xg*: VMEM scratch [S*B,4H] f32 (all-timestep input projections)."""

    # Bulk input projections on the MXU (bf16 operands, f32 accumulate);
    # independent of the recurrence, so they sit off its critical path.
    xg1_ref[...] = jnp.dot(x1_ref[...], wih1_ref[...],
                           preferred_element_type=jnp.float32) + b1_ref[...]
    xg2_ref[...] = jnp.dot(x2_ref[...], wih2_ref[...],
                           preferred_element_type=jnp.float32) + b2_ref[...]

    def gates(g, c):
        # PyTorch gate order i, f, g, o ; H = 128 -> lane-aligned slices.
        i_g = jax.nn.sigmoid(g[:, 0 * H:1 * H])
        f_g = jax.nn.sigmoid(g[:, 1 * H:2 * H])
        g_g = jnp.tanh(g[:, 2 * H:3 * H])
        o_g = jax.nn.sigmoid(g[:, 3 * H:4 * H])
        c_new = f_g * c + i_g * g_g
        h_new = o_g * jnp.tanh(c_new)
        return h_new, c_new

    h1 = jnp.zeros((B, H), jnp.float32)
    c1 = jnp.zeros((B, H), jnp.float32)
    h2 = jnp.zeros((B, H), jnp.float32)
    c2 = jnp.zeros((B, H), jnp.float32)

    # Fully unrolled, statically indexed recurrence.  The two chains are
    # independent; interleaving their step bodies lets the scheduler overlap
    # one chain's MXU latency with the other's EUP/VPU gate work (this was
    # impossible with one chain per grid cell on single-TC chips).  Live
    # carried state is only h1,c1,h2,c2 (4 f32 vregs) + per-step temps, so
    # the full unroll stays well clear of vreg-spill territory; W_hh is
    # re-read from VMEM at each step's dot.
    for t in range(max(S1, S2)):
        if t < S2:
            g2 = xg2_ref[pl.ds(t * B, B), :] + jnp.dot(
                h2.astype(jnp.bfloat16), whh2_ref[...],
                preferred_element_type=jnp.float32)
        if t < S1:
            g1 = xg1_ref[pl.ds(t * B, B), :] + jnp.dot(
                h1.astype(jnp.bfloat16), whh1_ref[...],
                preferred_element_type=jnp.float32)
            h1, c1 = gates(g1, c1)
        if t < S2:
            h2, c2 = gates(g2, c2)

    # FC epilogue, done once in-kernel: torch does cat((out2, out1), 1) @
    # fc_w.T + fc_b.  bf16 operands (single-pass MXU), lane-dense 128-wide
    # padded output (unmasked store); wrapper slices back to NUMCLASSES.
    h_cat = jnp.concatenate([h2, h1], axis=1).astype(jnp.bfloat16)   # [B, 2H]
    y = jnp.dot(h_cat, fcw_ref[...],
                preferred_element_type=jnp.float32) + fcb_ref[...]
    out_ref[...] = y.astype(out_ref.dtype)


# ----------------------------------------------------------------------------
# Wrapper
# ----------------------------------------------------------------------------
def bert_lstm_forward(last_hidden_state, hidden_states, params):
    """Reproduces Bert_LSTM.forward() downstream of the BERT encoder.

    last_hidden_state : [B, S, E]
    hidden_states     : [NUMLAYERS, B, S, E]  (per-layer BERT hidden states)
    """
    B, S1, E = last_hidden_state.shape
    H, C, S2 = HIDDENDIM_LSTM, NUMCLASSES, NUMLAYERS

    # hidden_states = stack([hs[l][:, 0] for l in range(12)], -1).view(-1,12,768)
    cls_stack = jnp.stack([hidden_states[l][:, 0] for l in range(NUMLAYERS)],
                          axis=-1)                         # [B, E, 12]
    hs = cls_stack.reshape(-1, NUMLAYERS, EMBEDDIM)        # raw .view semantics

    # dropout(0.3) -> identity (eval)

    def prep_x(x_bse):
        # [B,S,E] -> time-major flat [S*B, E] in bf16 so the kernel can read
        # contiguous per-timestep row blocks with static slices.
        # TODO(synk): at realistic sizes replace this wrapper transpose with a
        #             time-gridded BlockSpec so the DMA delivers time-major
        #             tiles (no extra HBM round-trip).
        S = x_bse.shape[1]
        return jnp.transpose(x_bse.astype(jnp.bfloat16),
                             (1, 0, 2)).reshape(S * B, E)

    x1 = prep_x(last_hidden_state)                         # [S1*B, E]
    x2 = prep_x(hs)                                        # [S2*B, E]

    (w_ih1, w_hh1, b_ih1, b_hh1) = params["lstm1"]
    (w_ih2, w_hh2, b_ih2, b_hh2) = params["lstm2"]
    fc_w, fc_b = params["fc_w"], params["fc_b"]

    wih1 = w_ih1.T.astype(jnp.bfloat16)                    # [E, 4H]
    whh1 = w_hh1.T.astype(jnp.bfloat16)                    # [H, 4H]
    b1 = (b_ih1 + b_hh1).reshape(1, 4 * H).astype(jnp.float32)
    wih2 = w_ih2.T.astype(jnp.bfloat16)
    whh2 = w_hh2.T.astype(jnp.bfloat16)
    b2 = (b_ih2 + b_hh2).reshape(1, 4 * H).astype(jnp.float32)

    # torch: cat((out2, out1), 1) @ fc_w.T + fc_b
    #   -> kernel's h_cat is [h2 | h1], so fc_w.T maps directly; pad the
    #      class dim to CPAD lanes (zeros) for a lane-dense MXU N / store.
    fcw = jnp.zeros((2 * H, CPAD), jnp.bfloat16).at[:, :C].set(
        fc_w.T.astype(jnp.bfloat16))
    fcb = jnp.zeros((1, CPAD), jnp.float32).at[:, :C].set(
        fc_b.astype(jnp.float32))

    kernel = functools.partial(fused_kernel, S1=S1, S2=S2, B=B, H=H)

    def full2(shape):
        return pl.BlockSpec(tuple(shape), lambda i: (0, 0))

    out_pad = pl.pallas_call(
        kernel,
        out_shape=jax.ShapeDtypeStruct((B, CPAD), jnp.float32),
        grid=(1,),
        in_specs=[
            full2(x1.shape), full2(wih1.shape), full2(whh1.shape),
            full2(b1.shape),
            full2(x2.shape), full2(wih2.shape), full2(whh2.shape),
            full2(b2.shape),
            full2(fcw.shape), full2(fcb.shape),
        ],
        out_specs=full2((B, CPAD)),
        scratch_shapes=[pltpu.VMEM((S1 * B, 4 * H), jnp.float32),
                        pltpu.VMEM((S2 * B, 4 * H), jnp.float32)],
        compiler_params=pltpu.CompilerParams(
            dimension_semantics=("arbitrary",),
            vmem_limit_bytes=32 * 1024 * 1024),
    )(x1, wih1, whh1, b1, x2, wih2, whh2, b2, fcw, fcb)

    return out_pad[:, :C]


# ----------------------------------------------------------------------------
# Pure-JAX references (correctness checks)
# ----------------------------------------------------------------------------
def _lstm_last_hidden_ref(x_bse, w_ih, w_hh, b_ih, b_hh,
                          operand_dtype=jnp.float32):
    B, S, E = x_bse.shape
    H = w_hh.shape[1]
    b = (b_ih + b_hh).astype(jnp.float32)
    wih = w_ih.T.astype(operand_dtype)
    whh = w_hh.T.astype(operand_dtype)

    def step(carry, x_t):
        h, c = carry
        g = (jnp.dot(x_t.astype(operand_dtype), wih,
                     preferred_element_type=jnp.float32)
             + jnp.dot(h.astype(operand_dtype), whh,
                       preferred_element_type=jnp.float32) + b)
        i_g = jax.nn.sigmoid(g[:, 0 * H:1 * H])
        f_g = jax.nn.sigmoid(g[:, 1 * H:2 * H])
        g_g = jnp.tanh(g[:, 2 * H:3 * H])
        o_g = jax.nn.sigmoid(g[:, 3 * H:4 * H])
        c = f_g * c + i_g * g_g
        h = o_g * jnp.tanh(c)
        return (h, c), None

    (h, _), _ = lax.scan(
        step,
        (jnp.zeros((B, H), jnp.float32), jnp.zeros((B, H), jnp.float32)),
        jnp.transpose(x_bse, (1, 0, 2)).astype(jnp.float32))
    return h


def bert_lstm_forward_ref(last_hidden_state, hidden_states, params,
                          operand_dtype=jnp.float32):
    cls_stack = jnp.stack([hidden_states[l][:, 0] for l in range(NUMLAYERS)],
                          axis=-1)
    hs = cls_stack.reshape(-1, NUMLAYERS, EMBEDDIM)
    out1 = _lstm_last_hidden_ref(last_hidden_state, *params["lstm1"],
                                 operand_dtype=operand_dtype)
    out2 = _lstm_last_hidden_ref(hs, *params["lstm2"],
                                 operand_dtype=operand_dtype)
    out = jnp.concatenate([out2, out1], axis=1)
    # Same precision recipe as the kernel: FC operands in operand_dtype,
    # f32 accumulation, f32 bias add.
    return jnp.dot(out.astype(operand_dtype),
                   params["fc_w"].T.astype(operand_dtype),
                   preferred_element_type=jnp.float32) + params["fc_b"]


# ----------------------------------------------------------------------------
# Parameter init (matches torch nn.LSTM / nn.Linear shapes)
# ----------------------------------------------------------------------------
def init_params(key):
    H, E, C = HIDDENDIM_LSTM, EMBEDDIM, NUMCLASSES
    k = 1.0 / jnp.sqrt(jnp.float32(H))
    keys = jax.random.split(key, 10)

    def u(kk, shape, scale):
        return jax.random.uniform(kk, shape, jnp.float32, -scale, scale)

    lstm1 = (u(keys[0], (4 * H, E), k), u(keys[1], (4 * H, H), k),
             u(keys[2], (4 * H,), k), u(keys[3], (4 * H,), k))
    lstm2 = (u(keys[4], (4 * H, E), k), u(keys[5], (4 * H, H), k),
             u(keys[6], (4 * H,), k), u(keys[7], (4 * H,), k))
    kf = 1.0 / jnp.sqrt(jnp.float32(2 * H))
    fc_w = u(keys[8], (C, 2 * H), kf)
    fc_b = u(keys[9], (C,), kf)
    return {"lstm1": lstm1, "lstm2": lstm2, "fc_w": fc_w, "fc_b": fc_b}


# ----------------------------------------------------------------------------
if __name__ == "__main__":
    key = jax.random.PRNGKey(0)
    k_lhs, k_hs, k_par = jax.random.split(key, 3)

    B, S = 8, 8
    # Synthetic BERT outputs (stand-ins for the pretrained encoder).
    last_hidden_state = jax.random.normal(k_lhs, (B, S, EMBEDDIM), jnp.float32)
    hidden_states = jax.random.normal(k_hs, (NUMLAYERS, B, S, EMBEDDIM),
                                      jnp.float32)
    params = init_params(k_par)

    fwd = jax.jit(bert_lstm_forward)
    out = jax.block_until_ready(fwd(last_hidden_state, hidden_states, params))

    # Check vs a reference using the SAME precision recipe (bf16 matmul
    # operands incl. the FC, f32 accumulation / gate math).
    ref_matched = jax.block_until_ready(
        bert_lstm_forward_ref(last_hidden_state, hidden_states, params,
                              operand_dtype=jnp.bfloat16))
    # Sanity check vs the full-f32 reference (bf16 operands drift ~1e-2).
    ref_f32 = jax.block_until_ready(
        bert_lstm_forward_ref(last_hidden_state, hidden_states, params))

    assert out.shape == (B, NUMCLASSES), out.shape
    assert jnp.allclose(out, ref_matched, atol=5e-3, rtol=5e-3), (
        float(jnp.max(jnp.abs(out - ref_matched))))
    assert jnp.allclose(out, ref_f32, atol=3e-2, rtol=3e-2), (
        float(jnp.max(jnp.abs(out - ref_f32))))

    print("KERNEL_OK")
</pallas_src>

<mosaic_0001>
module attributes {stable_mosaic.version = 11 : i64} {
  func.func @fused_kernel(%arg0: i32, %arg1: memref<64x768xbf16, #tpu.memory_space<vmem>>, %arg2: memref<768x512xbf16, #tpu.memory_space<vmem>>, %arg3: memref<128x512xbf16, #tpu.memory_space<vmem>>, %arg4: memref<1x512xf32, #tpu.memory_space<vmem>>, %arg5: memref<96x768xbf16, #tpu.memory_space<vmem>>, %arg6: memref<768x512xbf16, #tpu.memory_space<vmem>>, %arg7: memref<128x512xbf16, #tpu.memory_space<vmem>>, %arg8: memref<1x512xf32, #tpu.memory_space<vmem>>, %arg9: memref<256x128xbf16, #tpu.memory_space<vmem>>, %arg10: memref<1x128xf32, #tpu.memory_space<vmem>>, %arg11: memref<8x128xf32, #tpu.memory_space<vmem>>, %arg12: memref<64x512xf32, #tpu.memory_space<vmem>>, %arg13: memref<96x512xf32, #tpu.memory_space<vmem>>) attributes {dimension_semantics = [#tpu.dimension_semantics<arbitrary>], iteration_bounds = array<i64: 1>, scalar_prefetch = 0 : i64, scratch_operands = 2 : i64, tpu.core_type = #tpu.core_type<tc>, window_params = [{pipeline_mode = #tpu.pipeline_mode<synchronous>, transform_indices = @transform_0, window_bounds = array<i64: 64, 768>}, {pipeline_mode = #tpu.pipeline_mode<synchronous>, transform_indices = @transform_1, window_bounds = array<i64: 768, 512>}, {pipeline_mode = #tpu.pipeline_mode<synchronous>, transform_indices = @transform_2, window_bounds = array<i64: 128, 512>}, {pipeline_mode = #tpu.pipeline_mode<synchronous>, transform_indices = @transform_3, window_bounds = array<i64: 1, 512>}, {pipeline_mode = #tpu.pipeline_mode<synchronous>, transform_indices = @transform_4, window_bounds = array<i64: 96, 768>}, {pipeline_mode = #tpu.pipeline_mode<synchronous>, transform_indices = @transform_5, window_bounds = array<i64: 768, 512>}, {pipeline_mode = #tpu.pipeline_mode<synchronous>, transform_indices = @transform_6, window_bounds = array<i64: 128, 512>}, {pipeline_mode = #tpu.pipeline_mode<synchronous>, transform_indices = @transform_7, window_bounds = array<i64: 1, 512>}, {pipeline_mode = #tpu.pipeline_mode<synchronous>, transform_indices = @transform_8, window_bounds = array<i64: 256, 128>}, {pipeline_mode = #tpu.pipeline_mode<synchronous>, transform_indices = @transform_9, window_bounds = array<i64: 1, 128>}, {pipeline_mode = #tpu.pipeline_mode<synchronous>, transform_indices = @transform_10, window_bounds = array<i64: 8, 128>}]} {
    %c0 = arith.constant 0 : index
    %c0_0 = arith.constant 0 : index
    %0 = vector.load %arg1[%c0, %c0_0] : memref<64x768xbf16, #tpu.memory_space<vmem>>, vector<64x768xbf16>
    %c0_1 = arith.constant 0 : index
    %c0_2 = arith.constant 0 : index
    %1 = vector.load %arg2[%c0_1, %c0_2] : memref<768x512xbf16, #tpu.memory_space<vmem>>, vector<768x512xbf16>
    %cst = arith.constant dense<0.000000e+00> : vector<64x512xf32>
    %2 = tpu.matmul %0, %1, %cst {dimension_numbers = #tpu.dot_dimension_numbers<[1], [0], [0], [1], [0, 0, 1, 1], [], []>} : vector<64x768xbf16>, vector<768x512xbf16>, vector<64x512xf32> -> vector<64x512xf32>
    %c0_3 = arith.constant 0 : index
    %c0_4 = arith.constant 0 : index
    %3 = vector.load %arg4[%c0_3, %c0_4] : memref<1x512xf32, #tpu.memory_space<vmem>>, vector<1x512xf32>
    %4 = vector.broadcast %3 : vector<1x512xf32> to vector<64x512xf32>
    %5 = arith.addf %2, %4 : vector<64x512xf32>
    %c0_5 = arith.constant 0 : index
    %c0_6 = arith.constant 0 : index
    %6 = vector.load %arg12[%c0_5, %c0_6] : memref<64x512xf32, #tpu.memory_space<vmem>>, vector<64x512xf32>
    tpu.vector_store %arg12[%c0_5, %c0_6], %5 {strides = array<i32>} : memref<64x512xf32, #tpu.memory_space<vmem>>, vector<64x512xf32>,
    %c0_7 = arith.constant 0 : index
    %c0_8 = arith.constant 0 : index
    %7 = vector.load %arg5[%c0_7, %c0_8] : memref<96x768xbf16, #tpu.memory_space<vmem>>, vector<96x768xbf16>
    %c0_9 = arith.constant 0 : index
    %c0_10 = arith.constant 0 : index
    %8 = vector.load %arg6[%c0_9, %c0_10] : memref<768x512xbf16, #tpu.memory_space<vmem>>, vector<768x512xbf16>
    %cst_11 = arith.constant dense<0.000000e+00> : vector<96x512xf32>
    %9 = tpu.matmul %7, %8, %cst_11 {dimension_numbers = #tpu.dot_dimension_numbers<[1], [0], [0], [1], [0, 0, 1, 1], [], []>} : vector<96x768xbf16>, vector<768x512xbf16>, vector<96x512xf32> -> vector<96x512xf32>
    %c0_12 = arith.constant 0 : index
    %c0_13 = arith.constant 0 : index
    %10 = vector.load %arg8[%c0_12, %c0_13] : memref<1x512xf32, #tpu.memory_space<vmem>>, vector<1x512xf32>
    %11 = vector.broadcast %10 : vector<1x512xf32> to vector<96x512xf32>
    %12 = arith.addf %9, %11 : vector<96x512xf32>
    %c0_14 = arith.constant 0 : index
    %c0_15 = arith.constant 0 : index
    %13 = vector.load %arg13[%c0_14, %c0_15] : memref<96x512xf32, #tpu.memory_space<vmem>>, vector<96x512xf32>
    tpu.vector_store %arg13[%c0_14, %c0_15], %12 {strides = array<i32>} : memref<96x512xf32, #tpu.memory_space<vmem>>, vector<96x512xf32>,
    %cst_16 = arith.constant 0.000000e+00 : f32
    %14 = vector.broadcast %cst_16 : f32 to vector<8x128xf32>
    %cst_17 = arith.constant 0.000000e+00 : f32
    %15 = vector.broadcast %cst_17 : f32 to vector<8x128xf32>
    %cst_18 = arith.constant 0.000000e+00 : f32
    %16 = vector.broadcast %cst_18 : f32 to vector<8x128xf32>
    %cst_19 = arith.constant 0.000000e+00 : f32
    %17 = vector.broadcast %cst_19 : f32 to vector<8x128xf32>
    %c0_20 = arith.constant 0 : index
    %c0_21 = arith.constant 0 : index
    %18 = vector.load %arg13[%c0_20, %c0_21] : memref<96x512xf32, #tpu.memory_space<vmem>>, vector<8x512xf32>
    %19 = arith.truncf %16 : vector<8x128xf32> to vector<8x128xbf16>
    %c0_22 = arith.constant 0 : index
    %c0_23 = arith.constant 0 : index
    %20 = vector.load %arg7[%c0_22, %c0_23] : memref<128x512xbf16, #tpu.memory_space<vmem>>, vector<128x512xbf16>
    %cst_24 = arith.constant dense<0.000000e+00> : vector<8x512xf32>
    %21 = tpu.matmul %19, %20, %cst_24 {dimension_numbers = #tpu.dot_dimension_numbers<[1], [0], [0], [1], [0, 0, 1, 1], [], []>} : vector<8x128xbf16>, vector<128x512xbf16>, vector<8x512xf32> -> vector<8x512xf32>
    %22 = arith.addf %18, %21 : vector<8x512xf32>
    %c0_25 = arith.constant 0 : index
    %c0_26 = arith.constant 0 : index
    %23 = vector.load %arg12[%c0_25, %c0_26] : memref<64x512xf32, #tpu.memory_space<vmem>>, vector<8x512xf32>
    %24 = arith.truncf %14 : vector<8x128xf32> to vector<8x128xbf16>
    %c0_27 = arith.constant 0 : index
    %c0_28 = arith.constant 0 : index
    %25 = vector.load %arg3[%c0_27, %c0_28] : memref<128x512xbf16, #tpu.memory_space<vmem>>, vector<128x512xbf16>
    %cst_29 = arith.constant dense<0.000000e+00> : vector<8x512xf32>
    %26 = tpu.matmul %24, %25, %cst_29 {dimension_numbers = #tpu.dot_dimension_numbers<[1], [0], [0], [1], [0, 0, 1, 1], [], []>} : vector<8x128xbf16>, vector<128x512xbf16>, vector<8x512xf32> -> vector<8x512xf32>
    %27 = arith.addf %23, %26 : vector<8x512xf32>
    %28 = vector.extract_strided_slice %27 {offsets = [0, 0], sizes = [8, 128], strides = [1, 1]} : vector<8x512xf32> to vector<8x128xf32>
    %29 = arith.negf %28 : vector<8x128xf32>
    %30 = math.exp %29 : vector<8x128xf32>
    %cst_30 = arith.constant 1.000000e+00 : f32
    %31 = vector.broadcast %cst_30 : f32 to vector<8x128xf32>
    %32 = arith.addf %31, %30 : vector<8x128xf32>
    %33 = arith.divf %31, %32 : vector<8x128xf32>
    %34 = vector.extract_strided_slice %27 {offsets = [0, 128], sizes = [8, 128], strides = [1, 1]} : vector<8x512xf32> to vector<8x128xf32>
    %35 = arith.negf %34 : vector<8x128xf32>
    %36 = math.exp %35 : vector<8x128xf32>
    %cst_31 = arith.constant 1.000000e+00 : f32
    %37 = vector.broadcast %cst_31 : f32 to vector<8x128xf32>
    %38 = arith.addf %37, %36 : vector<8x128xf32>
    %39 = arith.divf %37, %38 : vector<8x128xf32>
    %40 = vector.extract_strided_slice %27 {offsets = [0, 256], sizes = [8, 128], strides = [1, 1]} : vector<8x512xf32> to vector<8x128xf32>
    %41 = math.tanh %40 : vector<8x128xf32>
    %42 = vector.extract_strided_slice %27 {offsets = [0, 384], sizes = [8, 128], strides = [1, 1]} : vector<8x512xf32> to vector<8x128xf32>
    %43 = arith.negf %42 : vector<8x128xf32>
    %44 = math.exp %43 : vector<8x128xf32>
    %cst_32 = arith.constant 1.000000e+00 : f32
    %45 = vector.broadcast %cst_32 : f32 to vector<8x128xf32>
    %46 = arith.addf %45, %44 : vector<8x128xf32>
    %47 = arith.divf %45, %46 : vector<8x128xf32>
    %48 = arith.mulf %39, %15 : vector<8x128xf32>
    %49 = arith.mulf %33, %41 : vector<8x128xf32>
    %50 = arith.addf %48, %49 : vector<8x128xf32>
    %51 = math.tanh %50 : vector<8x128xf32>
    %52 = arith.mulf %47, %51 : vector<8x128xf32>
    %53 = vector.extract_strided_slice %22 {offsets = [0, 0], sizes = [8, 128], strides = [1, 1]} : vector<8x512xf32> to vector<8x128xf32>
    %54 = arith.negf %53 : vector<8x128xf32>
    %55 = math.exp %54 : vector<8x128xf32>
    %cst_33 = arith.constant 1.000000e+00 : f32
    %56 = vector.broadcast %cst_33 : f32 to vector<8x128xf32>
    %57 = arith.addf %56, %55 : vector<8x128xf32>
    %58 = arith.divf %56, %57 : vector<8x128xf32>
    %59 = vector.extract_strided_slice %22 {offsets = [0, 128], sizes = [8, 128], strides = [1, 1]} : vector<8x512xf32> to vector<8x128xf32>
    %60 = arith.negf %59 : vector<8x128xf32>
    %61 = math.exp %60 : vector<8x128xf32>
    %cst_34 = arith.constant 1.000000e+00 : f32
    %62 = vector.broadcast %cst_34 : f32 to vector<8x128xf32>
    %63 = arith.addf %62, %61 : vector<8x128xf32>
    %64 = arith.divf %62, %63 : vector<8x128xf32>
    %65 = vector.extract_strided_slice %22 {offsets = [0, 256], sizes = [8, 128], strides = [1, 1]} : vector<8x512xf32> to vector<8x128xf32>
    %66 = math.tanh %65 : vector<8x128xf32>
    %67 = vector.extract_strided_slice %22 {offsets = [0, 384], sizes = [8, 128], strides = [1, 1]} : vector<8x512xf32> to vector<8x128xf32>
    %68 = arith.negf %67 : vector<8x128xf32>
    %69 = math.exp %68 : vector<8x128xf32>
    %cst_35 = arith.constant 1.000000e+00 : f32
    %70 = vector.broadcast %cst_35 : f32 to vector<8x128xf32>
    %71 = arith.addf %70, %69 : vector<8x128xf32>
    %72 = arith.divf %70, %71 : vector<8x128xf32>
    %73 = arith.mulf %64, %17 : vector<8x128xf32>
    %74 = arith.mulf %58, %66 : vector<8x128xf32>
    %75 = arith.addf %73, %74 : vector<8x128xf32>
    %76 = math.tanh %75 : vector<8x128xf32>
    %77 = arith.mulf %72, %76 : vector<8x128xf32>
    %c8 = arith.constant 8 : index
    %c0_36 = arith.constant 0 : index
    %78 = vector.load %arg13[%c8, %c0_36] : memref<96x512xf32, #tpu.memory_space<vmem>>, vector<8x512xf32>
    %79 = arith.truncf %77 : vector<8x128xf32> to vector<8x128xbf16>
    %c0_37 = arith.constant 0 : index
    %c0_38 = arith.constant 0 : index
    %80 = vector.load %arg7[%c0_37, %c0_38] : memref<128x512xbf16, #tpu.memory_space<vmem>>, vector<128x512xbf16>
    %cst_39 = arith.constant dense<0.000000e+00> : vector<8x512xf32>
    %81 = tpu.matmul %79, %80, %cst_39 {dimension_numbers = #tpu.dot_dimension_numbers<[1], [0], [0], [1], [0, 0, 1, 1], [], []>} : vector<8x128xbf16>, vector<128x512xbf16>, vector<8x512xf32> -> vector<8x512xf32>
    %82 = arith.addf %78, %81 : vector<8x512xf32>
    %c8_40 = arith.constant 8 : index
    %c0_41 = arith.constant 0 : index
    %83 = vector.load %arg12[%c8_40, %c0_41] : memref<64x512xf32, #tpu.memory_space<vmem>>, vector<8x512xf32>
    %84 = arith.truncf %52 : vector<8x128xf32> to vector<8x128xbf16>
    %c0_42 = arith.constant 0 : index
    %c0_43 = arith.constant 0 : index
    %85 = vector.load %arg3[%c0_42, %c0_43] : memref<128x512xbf16, #tpu.memory_space<vmem>>, vector<128x512xbf16>
    %cst_44 = arith.constant dense<0.000000e+00> : vector<8x512xf32>
    %86 = tpu.matmul %84, %85, %cst_44 {dimension_numbers = #tpu.dot_dimension_numbers<[1], [0], [0], [1], [0, 0, 1, 1], [], []>} : vector<8x128xbf16>, vector<128x512xbf16>, vector<8x512xf32> -> vector<8x512xf32>
    %87 = arith.addf %83, %86 : vector<8x512xf32>
    %88 = vector.extract_strided_slice %87 {offsets = [0, 0], sizes = [8, 128], strides = [1, 1]} : vector<8x512xf32> to vector<8x128xf32>
    %89 = arith.negf %88 : vector<8x128xf32>
    %90 = math.exp %89 : vector<8x128xf32>
    %cst_45 = arith.constant 1.000000e+00 : f32
    %91 = vector.broadcast %cst_45 : f32 to vector<8x128xf32>
    %92 = arith.addf %91, %90 : vector<8x128xf32>
    %93 = arith.divf %91, %92 : vector<8x128xf32>
    %94 = vector.extract_strided_slice %87 {offsets = [0, 128], sizes = [8, 128], strides = [1, 1]} : vector<8x512xf32> to vector<8x128xf32>
    %95 = arith.negf %94 : vector<8x128xf32>
    %96 = math.exp %95 : vector<8x128xf32>
    %cst_46 = arith.constant 1.000000e+00 : f32
    %97 = vector.broadcast %cst_46 : f32 to vector<8x128xf32>
    %98 = arith.addf %97, %96 : vector<8x128xf32>
    %99 = arith.divf %97, %98 : vector<8x128xf32>
    %100 = vector.extract_strided_slice %87 {offsets = [0, 256], sizes = [8, 128], strides = [1, 1]} : vector<8x512xf32> to vector<8x128xf32>
    %101 = math.tanh %100 : vector<8x128xf32>
    %102 = vector.extract_strided_slice %87 {offsets = [0, 384], sizes = [8, 128], strides = [1, 1]} : vector<8x512xf32> to vector<8x128xf32>
    %103 = arith.negf %102 : vector<8x128xf32>
    %104 = math.exp %103 : vector<8x128xf32>
    %cst_47 = arith.constant 1.000000e+00 : f32
    %105 = vector.broadcast %cst_47 : f32 to vector<8x128xf32>
    %106 = arith.addf %105, %104 : vector<8x128xf32>
    %107 = arith.divf %105, %106 : vector<8x128xf32>
    %108 = arith.mulf %99, %50 : vector<8x128xf32>
    %109 = arith.mulf %93, %101 : vector<8x128xf32>
    %110 = arith.addf %108, %109 : vector<8x128xf32>
    %111 = math.tanh %110 : vector<8x128xf32>
    %112 = arith.mulf %107, %111 : vector<8x128xf32>
    %113 = vector.extract_strided_slice %82 {offsets = [0, 0], sizes = [8, 128], strides = [1, 1]} : vector<8x512xf32> to vector<8x128xf32>
    %114 = arith.negf %113 : vector<8x128xf32>
    %115 = math.exp %114 : vector<8x128xf32>
    %cst_48 = arith.constant 1.000000e+00 : f32
    %116 = vector.broadcast %cst_48 : f32 to vector<8x128xf32>
    %117 = arith.addf %116, %115 : vector<8x128xf32>
    %118 = arith.divf %116, %117 : vector<8x128xf32>
    %119 = vector.extract_strided_slice %82 {offsets = [0, 128], sizes = [8, 128], strides = [1, 1]} : vector<8x512xf32> to vector<8x128xf32>
    %120 = arith.negf %119 : vector<8x128xf32>
    %121 = math.exp %120 : vector<8x128xf32>
    %cst_49 = arith.constant 1.000000e+00 : f32
    %122 = vector.broadcast %cst_49 : f32 to vector<8x128xf32>
    %123 = arith.addf %122, %121 : vector<8x128xf32>
    %124 = arith.divf %122, %123 : vector<8x128xf32>
    %125 = vector.extract_strided_slice %82 {offsets = [0, 256], sizes = [8, 128], strides = [1, 1]} : vector<8x512xf32> to vector<8x128xf32>
    %126 = math.tanh %125 : vector<8x128xf32>
    %127 = vector.extract_strided_slice %82 {offsets = [0, 384], sizes = [8, 128], strides = [1, 1]} : vector<8x512xf32> to vector<8x128xf32>
    %128 = arith.negf %127 : vector<8x128xf32>
    %129 = math.exp %128 : vector<8x128xf32>
    %cst_50 = arith.constant 1.000000e+00 : f32
    %130 = vector.broadcast %cst_50 : f32 to vector<8x128xf32>
    %131 = arith.addf %130, %129 : vector<8x128xf32>
    %132 = arith.divf %130, %131 : vector<8x128xf32>
    %133 = arith.mulf %124, %75 : vector<8x128xf32>
    %134 = arith.mulf %118, %126 : vector<8x128xf32>
    %135 = arith.addf %133, %134 : vector<8x128xf32>
    %136 = math.tanh %135 : vector<8x128xf32>
    %137 = arith.mulf %132, %136 : vector<8x128xf32>
    %c16 = arith.constant 16 : index
    %c0_51 = arith.constant 0 : index
    %138 = vector.load %arg13[%c16, %c0_51] : memref<96x512xf32, #tpu.memory_space<vmem>>, vector<8x512xf32>
    %139 = arith.truncf %137 : vector<8x128xf32> to vector<8x128xbf16>
    %c0_52 = arith.constant 0 : index
    %c0_53 = arith.constant 0 : index
    %140 = vector.load %arg7[%c0_52, %c0_53] : memref<128x512xbf16, #tpu.memory_space<vmem>>, vector<128x512xbf16>
    %cst_54 = arith.constant dense<0.000000e+00> : vector<8x512xf32>
    %141 = tpu.matmul %139, %140, %cst_54 {dimension_numbers = #tpu.dot_dimension_numbers<[1], [0], [0], [1], [0, 0, 1, 1], [], []>} : vector<8x128xbf16>, vector<128x512xbf16>, vector<8x512xf32> -> vector<8x512xf32>
    %142 = arith.addf %138, %141 : vector<8x512xf32>
    %c16_55 = arith.constant 16 : index
    %c0_56 = arith.constant 0 : index
    %143 = vector.load %arg12[%c16_55, %c0_56] : memref<64x512xf32, #tpu.memory_space<vmem>>, vector<8x512xf32>
    %144 = arith.truncf %112 : vector<8x128xf32> to vector<8x128xbf16>
    %c0_57 = arith.constant 0 : index
    %c0_58 = arith.constant 0 : index
    %145 = vector.load %arg3[%c0_57, %c0_58] : memref<128x512xbf16, #tpu.memory_space<vmem>>, vector<128x512xbf16>
    %cst_59 = arith.constant dense<0.000000e+00> : vector<8x512xf32>
    %146 = tpu.matmul %144, %145, %cst_59 {dimension_numbers = #tpu.dot_dimension_numbers<[1], [0], [0], [1], [0, 0, 1, 1], [], []>} : vector<8x128xbf16>, vector<128x512xbf16>, vector<8x512xf32> -> vector<8x512xf32>
    %147 = arith.addf %143, %146 : vector<8x512xf32>
    %148 = vector.extract_strided_slice %147 {offsets = [0, 0], sizes = [8, 128], strides = [1, 1]} : vector<8x512xf32> to vector<8x128xf32>
    %149 = arith.negf %148 : vector<8x128xf32>
    %150 = math.exp %149 : vector<8x128xf32>
    %cst_60 = arith.constant 1.000000e+00 : f32
    %151 = vector.broadcast %cst_60 : f32 to vector<8x128xf32>
    %152 = arith.addf %151, %150 : vector<8x128xf32>
    %153 = arith.divf %151, %152 : vector<8x128xf32>
    %154 = vector.extract_strided_slice %147 {offsets = [0, 128], sizes = [8, 128], strides = [1, 1]} : vector<8x512xf32> to vector<8x128xf32>
    %155 = arith.negf %154 : vector<8x128xf32>
    %156 = math.exp %155 : vector<8x128xf32>
    %cst_61 = arith.constant 1.000000e+00 : f32
    %157 = vector.broadcast %cst_61 : f32 to vector<8x128xf32>
    %158 = arith.addf %157, %156 : vector<8x128xf32>
    %159 = arith.divf %157, %158 : vector<8x128xf32>
    %160 = vector.extract_strided_slice %147 {offsets = [0, 256], sizes = [8, 128], strides = [1, 1]} : vector<8x512xf32> to vector<8x128xf32>
    %161 = math.tanh %160 : vector<8x128xf32>
    %162 = vector.extract_strided_slice %147 {offsets = [0, 384], sizes = [8, 128], strides = [1, 1]} : vector<8x512xf32> to vector<8x128xf32>
    %163 = arith.negf %162 : vector<8x128xf32>
    %164 = math.exp %163 : vector<8x128xf32>
    %cst_62 = arith.constant 1.000000e+00 : f32
    %165 = vector.broadcast %cst_62 : f32 to vector<8x128xf32>
    %166 = arith.addf %165, %164 : vector<8x128xf32>
    %167 = arith.divf %165, %166 : vector<8x128xf32>
    %168 = arith.mulf %159, %110 : vector<8x128xf32>
    %169 = arith.mulf %153, %161 : vector<8x128xf32>
    %170 = arith.addf %168, %169 : vector<8x128xf32>
    %171 = math.tanh %170 : vector<8x128xf32>
    %172 = arith.mulf %167, %171 : vector<8x128xf32>
    %173 = vector.extract_strided_slice %142 {offsets = [0, 0], sizes = [8, 128], strides = [1, 1]} : vector<8x512xf32> to vector<8x128xf32>
    %174 = arith.negf %173 : vector<8x128xf32>
    %175 = math.exp %174 : vector<8x128xf32>
    %cst_63 = arith.constant 1.000000e+00 : f32
    %176 = vector.broadcast %cst_63 : f32 to vector<8x128xf32>
    %177 = arith.addf %176, %175 : vector<8x128xf32>
    %178 = arith.divf %176, %177 : vector<8x128xf32>
    %179 = vector.extract_strided_slice %142 {offsets = [0, 128], sizes = [8, 128], strides = [1, 1]} : vector<8x512xf32> to vector<8x128xf32>
    %180 = arith.negf %179 : vector<8x128xf32>
    %181 = math.exp %180 : vector<8x128xf32>
    %cst_64 = arith.constant 1.000000e+00 : f32
    %182 = vector.broadcast %cst_64 : f32 to vector<8x128xf32>
    %183 = arith.addf %182, %181 : vector<8x128xf32>
    %184 = arith.divf %182, %183 : vector<8x128xf32>
    %185 = vector.extract_strided_slice %142 {offsets = [0, 256], sizes = [8, 128], strides = [1, 1]} : vector<8x512xf32> to vector<8x128xf32>
    %186 = math.tanh %185 : vector<8x128xf32>
    %187 = vector.extract_strided_slice %142 {offsets = [0, 384], sizes = [8, 128], strides = [1, 1]} : vector<8x512xf32> to vector<8x128xf32>
    %188 = arith.negf %187 : vector<8x128xf32>
    %189 = math.exp %188 : vector<8x128xf32>
    %cst_65 = arith.constant 1.000000e+00 : f32
    %190 = vector.broadcast %cst_65 : f32 to vector<8x128xf32>
    %191 = arith.addf %190, %189 : vector<8x128xf32>
    %192 = arith.divf %190, %191 : vector<8x128xf32>
    %193 = arith.mulf %184, %135 : vector<8x128xf32>
    %194 = arith.mulf %178, %186 : vector<8x128xf32>
    %195 = arith.addf %193, %194 : vector<8x128xf32>
    %196 = math.tanh %195 : vector<8x128xf32>
    %197 = arith.mulf %192, %196 : vector<8x128xf32>
    %c24 = arith.constant 24 : index
    %c0_66 = arith.constant 0 : index
    %198 = vector.load %arg13[%c24, %c0_66] : memref<96x512xf32, #tpu.memory_space<vmem>>, vector<8x512xf32>
    %199 = arith.truncf %197 : vector<8x128xf32> to vector<8x128xbf16>
    %c0_67 = arith.constant 0 : index
    %c0_68 = arith.constant 0 : index
    %200 = vector.load %arg7[%c0_67, %c0_68] : memref<128x512xbf16, #tpu.memory_space<vmem>>, vector<128x512xbf16>
    %cst_69 = arith.constant dense<0.000000e+00> : vector<8x512xf32>
    %201 = tpu.matmul %199, %200, %cst_69 {dimension_numbers = #tpu.dot_dimension_numbers<[1], [0], [0], [1], [0, 0, 1, 1], [], []>} : vector<8x128xbf16>, vector<128x512xbf16>, vector<8x512xf32> -> vector<8x512xf32>
    %202 = arith.addf %198, %201 : vector<8x512xf32>
    %c24_70 = arith.constant 24 : index
    %c0_71 = arith.constant 0 : index
    %203 = vector.load %arg12[%c24_70, %c0_71] : memref<64x512xf32, #tpu.memory_space<vmem>>, vector<8x512xf32>
    %204 = arith.truncf %172 : vector<8x128xf32> to vector<8x128xbf16>
    %c0_72 = arith.constant 0 : index
    %c0_73 = arith.constant 0 : index
    %205 = vector.load %arg3[%c0_72, %c0_73] : memref<128x512xbf16, #tpu.memory_space<vmem>>, vector<128x512xbf16>
    %cst_74 = arith.constant dense<0.000000e+00> : vector<8x512xf32>
    %206 = tpu.matmul %204, %205, %cst_74 {dimension_numbers = #tpu.dot_dimension_numbers<[1], [0], [0], [1], [0, 0, 1, 1], [], []>} : vector<8x128xbf16>, vector<128x512xbf16>, vector<8x512xf32> -> vector<8x512xf32>
    %207 = arith.addf %203, %206 : vector<8x512xf32>
    %208 = vector.extract_strided_slice %207 {offsets = [0, 0], sizes = [8, 128], strides = [1, 1]} : vector<8x512xf32> to vector<8x128xf32>
    %209 = arith.negf %208 : vector<8x128xf32>
    %210 = math.exp %209 : vector<8x128xf32>
    %cst_75 = arith.constant 1.000000e+00 : f32
    %211 = vector.broadcast %cst_75 : f32 to vector<8x128xf32>
    %212 = arith.addf %211, %210 : vector<8x128xf32>
    %213 = arith.divf %211, %212 : vector<8x128xf32>
    %214 = vector.extract_strided_slice %207 {offsets = [0, 128], sizes = [8, 128], strides = [1, 1]} : vector<8x512xf32> to vector<8x128xf32>
    %215 = arith.negf %214 : vector<8x128xf32>
    %216 = math.exp %215 : vector<8x128xf32>
    %cst_76 = arith.constant 1.000000e+00 : f32
    %217 = vector.broadcast %cst_76 : f32 to vector<8x128xf32>
    %218 = arith.addf %217, %216 : vector<8x128xf32>
    %219 = arith.divf %217, %218 : vector<8x128xf32>
    %220 = vector.extract_strided_slice %207 {offsets = [0, 256], sizes = [8, 128], strides = [1, 1]} : vector<8x512xf32> to vector<8x128xf32>
    %221 = math.tanh %220 : vector<8x128xf32>
    %222 = vector.extract_strided_slice %207 {offsets = [0, 384], sizes = [8, 128], strides = [1, 1]} : vector<8x512xf32> to vector<8x128xf32>
    %223 = arith.negf %222 : vector<8x128xf32>
    %224 = math.exp %223 : vector<8x128xf32>
    %cst_77 = arith.constant 1.000000e+00 : f32
    %225 = vector.broadcast %cst_77 : f32 to vector<8x128xf32>
    %226 = arith.addf %225, %224 : vector<8x128xf32>
    %227 = arith.divf %225, %226 : vector<8x128xf32>
    %228 = arith.mulf %219, %170 : vector<8x128xf32>
    %229 = arith.mulf %213, %221 : vector<8x128xf32>
    %230 = arith.addf %228, %229 : vector<8x128xf32>
    %231 = math.tanh %230 : vector<8x128xf32>
    %232 = arith.mulf %227, %231 : vector<8x128xf32>
    %233 = vector.extract_strided_slice %202 {offsets = [0, 0], sizes = [8, 128], strides = [1, 1]} : vector<8x512xf32> to vector<8x128xf32>
    %234 = arith.negf %233 : vector<8x128xf32>
    %235 = math.exp %234 : vector<8x128xf32>
    %cst_78 = arith.constant 1.000000e+00 : f32
    %236 = vector.broadcast %cst_78 : f32 to vector<8x128xf32>
    %237 = arith.addf %236, %235 : vector<8x128xf32>
    %238 = arith.divf %236, %237 : vector<8x128xf32>
    %239 = vector.extract_strided_slice %202 {offsets = [0, 128], sizes = [8, 128], strides = [1, 1]} : vector<8x512xf32> to vector<8x128xf32>
    %240 = arith.negf %239 : vector<8x128xf32>
    %241 = math.exp %240 : vector<8x128xf32>
    %cst_79 = arith.constant 1.000000e+00 : f32
    %242 = vector.broadcast %cst_79 : f32 to vector<8x128xf32>
    %243 = arith.addf %242, %241 : vector<8x128xf32>
    %244 = arith.divf %242, %243 : vector<8x128xf32>
    %245 = vector.extract_strided_slice %202 {offsets = [0, 256], sizes = [8, 128], strides = [1, 1]} : vector<8x512xf32> to vector<8x128xf32>
    %246 = math.tanh %245 : vector<8x128xf32>
    %247 = vector.extract_strided_slice %202 {offsets = [0, 384], sizes = [8, 128], strides = [1, 1]} : vector<8x512xf32> to vector<8x128xf32>
    %248 = arith.negf %247 : vector<8x128xf32>
    %249 = math.exp %248 : vector<8x128xf32>
    %cst_80 = arith.constant 1.000000e+00 : f32
    %250 = vector.broadcast %cst_80 : f32 to vector<8x128xf32>
    %251 = arith.addf %250, %249 : vector<8x128xf32>
    %252 = arith.divf %250, %251 : vector<8x128xf32>
    %253 = arith.mulf %244, %195 : vector<8x128xf32>
    %254 = arith.mulf %238, %246 : vector<8x128xf32>
    %255 = arith.addf %253, %254 : vector<8x128xf32>
    %256 = math.tanh %255 : vector<8x128xf32>
    %257 = arith.mulf %252, %256 : vector<8x128xf32>
    %c32 = arith.constant 32 : index
    %c0_81 = arith.constant 0 : index
    %258 = vector.load %arg13[%c32, %c0_81] : memref<96x512xf32, #tpu.memory_space<vmem>>, vector<8x512xf32>
    %259 = arith.truncf %257 : vector<8x128xf32> to vector<8x128xbf16>
    %c0_82 = arith.constant 0 : index
    %c0_83 = arith.constant 0 : index
    %260 = vector.load %arg7[%c0_82, %c0_83] : memref<128x512xbf16, #tpu.memory_space<vmem>>, vector<128x512xbf16>
    %cst_84 = arith.constant dense<0.000000e+00> : vector<8x512xf32>
    %261 = tpu.matmul %259, %260, %cst_84 {dimension_numbers = #tpu.dot_dimension_numbers<[1], [0], [0], [1], [0, 0, 1, 1], [], []>} : vector<8x128xbf16>, vector<128x512xbf16>, vector<8x512xf32> -> vector<8x512xf32>
    %262 = arith.addf %258, %261 : vector<8x512xf32>
    %c32_85 = arith.constant 32 : index
    %c0_86 = arith.constant 0 : index
    %263 = vector.load %arg12[%c32_85, %c0_86] : memref<64x512xf32, #tpu.memory_space<vmem>>, vector<8x512xf32>
    %264 = arith.truncf %232 : vector<8x128xf32> to vector<8x128xbf16>
    %c0_87 = arith.constant 0 : index
    %c0_88 = arith.constant 0 : index
    %265 = vector.load %arg3[%c0_87, %c0_88] : memref<128x512xbf16, #tpu.memory_space<vmem>>, vector<128x512xbf16>
    %cst_89 = arith.constant dense<0.000000e+00> : vector<8x512xf32>
    %266 = tpu.matmul %264, %265, %cst_89 {dimension_numbers = #tpu.dot_dimension_numbers<[1], [0], [0], [1], [0, 0, 1, 1], [], []>} : vector<8x128xbf16>, vector<128x512xbf16>, vector<8x512xf32> -> vector<8x512xf32>
    %267 = arith.addf %263, %266 : vector<8x512xf32>
    %268 = vector.extract_strided_slice %267 {offsets = [0, 0], sizes = [8, 128], strides = [1, 1]} : vector<8x512xf32> to vector<8x128xf32>
    %269 = arith.negf %268 : vector<8x128xf32>
    %270 = math.exp %269 : vector<8x128xf32>
    %cst_90 = arith.constant 1.000000e+00 : f32
    %271 = vector.broadcast %cst_90 : f32 to vector<8x128xf32>
    %272 = arith.addf %271, %270 : vector<8x128xf32>
    %273 = arith.divf %271, %272 : vector<8x128xf32>
    %274 = vector.extract_strided_slice %267 {offsets = [0, 128], sizes = [8, 128], strides = [1, 1]} : vector<8x512xf32> to vector<8x128xf32>
    %275 = arith.negf %274 : vector<8x128xf32>
    %276 = math.exp %275 : vector<8x128xf32>
    %cst_91 = arith.constant 1.000000e+00 : f32
    %277 = vector.broadcast %cst_91 : f32 to vector<8x128xf32>
    %278 = arith.addf %277, %276 : vector<8x128xf32>
    %279 = arith.divf %277, %278 : vector<8x128xf32>
    %280 = vector.extract_strided_slice %267 {offsets = [0, 256], sizes = [8, 128], strides = [1, 1]} : vector<8x512xf32> to vector<8x128xf32>
    %281 = math.tanh %280 : vector<8x128xf32>
    %282 = vector.extract_strided_slice %267 {offsets = [0, 384], sizes = [8, 128], strides = [1, 1]} : vector<8x512xf32> to vector<8x128xf32>
    %283 = arith.negf %282 : vector<8x128xf32>
    %284 = math.exp %283 : vector<8x128xf32>
    %cst_92 = arith.constant 1.000000e+00 : f32
    %285 = vector.broadcast %cst_92 : f32 to vector<8x128xf32>
    %286 = arith.addf %285, %284 : vector<8x128xf32>
    %287 = arith.divf %285, %286 : vector<8x128xf32>
    %288 = arith.mulf %279, %230 : vector<8x128xf32>
    %289 = arith.mulf %273, %281 : vector<8x128xf32>
    %290 = arith.addf %288, %289 : vector<8x128xf32>
    %291 = math.tanh %290 : vector<8x128xf32>
    %292 = arith.mulf %287, %291 : vector<8x128xf32>
    %293 = vector.extract_strided_slice %262 {offsets = [0, 0], sizes = [8, 128], strides = [1, 1]} : vector<8x512xf32> to vector<8x128xf32>
    %294 = arith.negf %293 : vector<8x128xf32>
    %295 = math.exp %294 : vector<8x128xf32>
    %cst_93 = arith.constant 1.000000e+00 : f32
    %296 = vector.broadcast %cst_93 : f32 to vector<8x128xf32>
    %297 = arith.addf %296, %295 : vector<8x128xf32>
    %298 = arith.divf %296, %297 : vector<8x128xf32>
    %299 = vector.extract_strided_slice %262 {offsets = [0, 128], sizes = [8, 128], strides = [1, 1]} : vector<8x512xf32> to vector<8x128xf32>
    %300 = arith.negf %299 : vector<8x128xf32>
    %301 = math.exp %300 : vector<8x128xf32>
    %cst_94 = arith.constant 1.000000e+00 : f32
    %302 = vector.broadcast %cst_94 : f32 to vector<8x128xf32>
    %303 = arith.addf %302, %301 : vector<8x128xf32>
    %304 = arith.divf %302, %303 : vector<8x128xf32>
    %305 = vector.extract_strided_slice %262 {offsets = [0, 256], sizes = [8, 128], strides = [1, 1]} : vector<8x512xf32> to vector<8x128xf32>
    %306 = math.tanh %305 : vector<8x128xf32>
    %307 = vector.extract_strided_slice %262 {offsets = [0, 384], sizes = [8, 128], strides = [1, 1]} : vector<8x512xf32> to vector<8x128xf32>
    %308 = arith.negf %307 : vector<8x128xf32>
    %309 = math.exp %308 : vector<8x128xf32>
    %cst_95 = arith.constant 1.000000e+00 : f32
    %310 = vector.broadcast %cst_95 : f32 to vector<8x128xf32>
    %311 = arith.addf %310, %309 : vector<8x128xf32>
    %312 = arith.divf %310, %311 : vector<8x128xf32>
    %313 = arith.mulf %304, %255 : vector<8x128xf32>
    %314 = arith.mulf %298, %306 : vector<8x128xf32>
    %315 = arith.addf %313, %314 : vector<8x128xf32>
    %316 = math.tanh %315 : vector<8x128xf32>
    %317 = arith.mulf %312, %316 : vector<8x128xf32>
    %c40 = arith.constant 40 : index
    %c0_96 = arith.constant 0 : index
    %318 = vector.load %arg13[%c40, %c0_96] : memref<96x512xf32, #tpu.memory_space<vmem>>, vector<8x512xf32>
    %319 = arith.truncf %317 : vector<8x128xf32> to vector<8x128xbf16>
    %c0_97 = arith.constant 0 : index
    %c0_98 = arith.constant 0 : index
    %320 = vector.load %arg7[%c0_97, %c0_98] : memref<128x512xbf16, #tpu.memory_space<vmem>>, vector<128x512xbf16>
    %cst_99 = arith.constant dense<0.000000e+00> : vector<8x512xf32>
    %321 = tpu.matmul %319, %320, %cst_99 {dimension_numbers = #tpu.dot_dimension_numbers<[1], [0], [0], [1], [0, 0, 1, 1], [], []>} : vector<8x128xbf16>, vector<128x512xbf16>, vector<8x512xf32> -> vector<8x512xf32>
    %322 = arith.addf %318, %321 : vector<8x512xf32>
    %c40_100 = arith.constant 40 : index
    %c0_101 = arith.constant 0 : index
    %323 = vector.load %arg12[%c40_100, %c0_101] : memref<64x512xf32, #tpu.memory_space<vmem>>, vector<8x512xf32>
    %324 = arith.truncf %292 : vector<8x128xf32> to vector<8x128xbf16>
    %c0_102 = arith.constant 0 : index
    %c0_103 = arith.constant 0 : index
    %325 = vector.load %arg3[%c0_102, %c0_103] : memref<128x512xbf16, #tpu.memory_space<vmem>>, vector<128x512xbf16>
    %cst_104 = arith.constant dense<0.000000e+00> : vector<8x512xf32>
    %326 = tpu.matmul %324, %325, %cst_104 {dimension_numbers = #tpu.dot_dimension_numbers<[1], [0], [0], [1], [0, 0, 1, 1], [], []>} : vector<8x128xbf16>, vector<128x512xbf16>, vector<8x512xf32> -> vector<8x512xf32>
    %327 = arith.addf %323, %326 : vector<8x512xf32>
    %328 = vector.extract_strided_slice %327 {offsets = [0, 0], sizes = [8, 128], strides = [1, 1]} : vector<8x512xf32> to vector<8x128xf32>
    %329 = arith.negf %328 : vector<8x128xf32>
    %330 = math.exp %329 : vector<8x128xf32>
    %cst_105 = arith.constant 1.000000e+00 : f32
    %331 = vector.broadcast %cst_105 : f32 to vector<8x128xf32>
    %332 = arith.addf %331, %330 : vector<8x128xf32>
    %333 = arith.divf %331, %332 : vector<8x128xf32>
    %334 = vector.extract_strided_slice %327 {offsets = [0, 128], sizes = [8, 128], strides = [1, 1]} : vector<8x512xf32> to vector<8x128xf32>
    %335 = arith.negf %334 : vector<8x128xf32>
    %336 = math.exp %335 : vector<8x128xf32>
    %cst_106 = arith.constant 1.000000e+00 : f32
    %337 = vector.broadcast %cst_106 : f32 to vector<8x128xf32>
    %338 = arith.addf %337, %336 : vector<8x128xf32>
    %339 = arith.divf %337, %338 : vector<8x128xf32>
    %340 = vector.extract_strided_slice %327 {offsets = [0, 256], sizes = [8, 128], strides = [1, 1]} : vector<8x512xf32> to vector<8x128xf32>
    %341 = math.tanh %340 : vector<8x128xf32>
    %342 = vector.extract_strided_slice %327 {offsets = [0, 384], sizes = [8, 128], strides = [1, 1]} : vector<8x512xf32> to vector<8x128xf32>
    %343 = arith.negf %342 : vector<8x128xf32>
    %344 = math.exp %343 : vector<8x128xf32>
    %cst_107 = arith.constant 1.000000e+00 : f32
    %345 = vector.broadcast %cst_107 : f32 to vector<8x128xf32>
    %346 = arith.addf %345, %344 : vector<8x128xf32>
    %347 = arith.divf %345, %346 : vector<8x128xf32>
    %348 = arith.mulf %339, %290 : vector<8x128xf32>
    %349 = arith.mulf %333, %341 : vector<8x128xf32>
    %350 = arith.addf %348, %349 : vector<8x128xf32>
    %351 = math.tanh %350 : vector<8x128xf32>
    %352 = arith.mulf %347, %351 : vector<8x128xf32>
    %353 = vector.extract_strided_slice %322 {offsets = [0, 0], sizes = [8, 128], strides = [1, 1]} : vector<8x512xf32> to vector<8x128xf32>
    %354 = arith.negf %353 : vector<8x128xf32>
    %355 = math.exp %354 : vector<8x128xf32>
    %cst_108 = arith.constant 1.000000e+00 : f32
    %356 = vector.broadcast %cst_108 : f32 to vector<8x128xf32>
    %357 = arith.addf %356, %355 : vector<8x128xf32>
    %358 = arith.divf %356, %357 : vector<8x128xf32>
    %359 = vector.extract_strided_slice %322 {offsets = [0, 128], sizes = [8, 128], strides = [1, 1]} : vector<8x512xf32> to vector<8x128xf32>
    %360 = arith.negf %359 : vector<8x128xf32>
    %361 = math.exp %360 : vector<8x128xf32>
    %cst_109 = arith.constant 1.000000e+00 : f32
    %362 = vector.broadcast %cst_109 : f32 to vector<8x128xf32>
    %363 = arith.addf %362, %361 : vector<8x128xf32>
    %364 = arith.divf %362, %363 : vector<8x128xf32>
    %365 = vector.extract_strided_slice %322 {offsets = [0, 256], sizes = [8, 128], strides = [1, 1]} : vector<8x512xf32> to vector<8x128xf32>
    %366 = math.tanh %365 : vector<8x128xf32>
    %367 = vector.extract_strided_slice %322 {offsets = [0, 384], sizes = [8, 128], strides = [1, 1]} : vector<8x512xf32> to vector<8x128xf32>
    %368 = arith.negf %367 : vector<8x128xf32>
    %369 = math.exp %368 : vector<8x128xf32>
    %cst_110 = arith.constant 1.000000e+00 : f32
    %370 = vector.broadcast %cst_110 : f32 to vector<8x128xf32>
    %371 = arith.addf %370, %369 : vector<8x128xf32>
    %372 = arith.divf %370, %371 : vector<8x128xf32>
    %373 = arith.mulf %364, %315 : vector<8x128xf32>
    %374 = arith.mulf %358, %366 : vector<8x128xf32>
    %375 = arith.addf %373, %374 : vector<8x128xf32>
    %376 = math.tanh %375 : vector<8x128xf32>
    %377 = arith.mulf %372, %376 : vector<8x128xf32>
    %c48 = arith.constant 48 : index
    %c0_111 = arith.constant 0 : index
    %378 = vector.load %arg13[%c48, %c0_111] : memref<96x512xf32, #tpu.memory_space<vmem>>, vector<8x512xf32>
    %379 = arith.truncf %377 : vector<8x128xf32> to vector<8x128xbf16>
    %c0_112 = arith.constant 0 : index
    %c0_113 = arith.constant 0 : index
    %380 = vector.load %arg7[%c0_112, %c0_113] : memref<128x512xbf16, #tpu.memory_space<vmem>>, vector<128x512xbf16>
    %cst_114 = arith.constant dense<0.000000e+00> : vector<8x512xf32>
    %381 = tpu.matmul %379, %380, %cst_114 {dimension_numbers = #tpu.dot_dimension_numbers<[1], [0], [0], [1], [0, 0, 1, 1], [], []>} : vector<8x128xbf16>, vector<128x512xbf16>, vector<8x512xf32> -> vector<8x512xf32>
    %382 = arith.addf %378, %381 : vector<8x512xf32>
    %c48_115 = arith.constant 48 : index
    %c0_116 = arith.constant 0 : index
    %383 = vector.load %arg12[%c48_115, %c0_116] : memref<64x512xf32, #tpu.memory_space<vmem>>, vector<8x512xf32>
    %384 = arith.truncf %352 : vector<8x128xf32> to vector<8x128xbf16>
    %c0_117 = arith.constant 0 : index
    %c0_118 = arith.constant 0 : index
    %385 = vector.load %arg3[%c0_117, %c0_118] : memref<128x512xbf16, #tpu.memory_space<vmem>>, vector<128x512xbf16>
    %cst_119 = arith.constant dense<0.000000e+00> : vector<8x512xf32>
    %386 = tpu.matmul %384, %385, %cst_119 {dimension_numbers = #tpu.dot_dimension_numbers<[1], [0], [0], [1], [0, 0, 1, 1], [], []>} : vector<8x128xbf16>, vector<128x512xbf16>, vector<8x512xf32> -> vector<8x512xf32>
    %387 = arith.addf %383, %386 : vector<8x512xf32>
    %388 = vector.extract_strided_slice %387 {offsets = [0, 0], sizes = [8, 128], strides = [1, 1]} : vector<8x512xf32> to vector<8x128xf32>
    %389 = arith.negf %388 : vector<8x128xf32>
    %390 = math.exp %389 : vector<8x128xf32>
    %cst_120 = arith.constant 1.000000e+00 : f32
    %391 = vector.broadcast %cst_120 : f32 to vector<8x128xf32>
    %392 = arith.addf %391, %390 : vector<8x128xf32>
    %393 = arith.divf %391, %392 : vector<8x128xf32>
    %394 = vector.extract_strided_slice %387 {offsets = [0, 128], sizes = [8, 128], strides = [1, 1]} : vector<8x512xf32> to vector<8x128xf32>
    %395 = arith.negf %394 : vector<8x128xf32>
    %396 = math.exp %395 : vector<8x128xf32>
    %cst_121 = arith.constant 1.000000e+00 : f32
    %397 = vector.broadcast %cst_121 : f32 to vector<8x128xf32>
    %398 = arith.addf %397, %396 : vector<8x128xf32>
    %399 = arith.divf %397, %398 : vector<8x128xf32>
    %400 = vector.extract_strided_slice %387 {offsets = [0, 256], sizes = [8, 128], strides = [1, 1]} : vector<8x512xf32> to vector<8x128xf32>
    %401 = math.tanh %400 : vector<8x128xf32>
    %402 = vector.extract_strided_slice %387 {offsets = [0, 384], sizes = [8, 128], strides = [1, 1]} : vector<8x512xf32> to vector<8x128xf32>
    %403 = arith.negf %402 : vector<8x128xf32>
    %404 = math.exp %403 : vector<8x128xf32>
    %cst_122 = arith.constant 1.000000e+00 : f32
    %405 = vector.broadcast %cst_122 : f32 to vector<8x128xf32>
    %406 = arith.addf %405, %404 : vector<8x128xf32>
    %407 = arith.divf %405, %406 : vector<8x128xf32>
    %408 = arith.mulf %399, %350 : vector<8x128xf32>
    %409 = arith.mulf %393, %401 : vector<8x128xf32>
    %410 = arith.addf %408, %409 : vector<8x128xf32>
    %411 = math.tanh %410 : vector<8x128xf32>
    %412 = arith.mulf %407, %411 : vector<8x128xf32>
    %413 = vector.extract_strided_slice %382 {offsets = [0, 0], sizes = [8, 128], strides = [1, 1]} : vector<8x512xf32> to vector<8x128xf32>
    %414 = arith.negf %413 : vector<8x128xf32>
    %415 = math.exp %414 : vector<8x128xf32>
    %cst_123 = arith.constant 1.000000e+00 : f32
    %416 = vector.broadcast %cst_123 : f32 to vector<8x128xf32>
    %417 = arith.addf %416, %415 : vector<8x128xf32>
    %418 = arith.divf %416, %417 : vector<8x128xf32>
    %419 = vector.extract_strided_slice %382 {offsets = [0, 128], sizes = [8, 128], strides = [1, 1]} : vector<8x512xf32> to vector<8x128xf32>
    %420 = arith.negf %419 : vector<8x128xf32>
    %421 = math.exp %420 : vector<8x128xf32>
    %cst_124 = arith.constant 1.000000e+00 : f32
    %422 = vector.broadcast %cst_124 : f32 to vector<8x128xf32>
    %423 = arith.addf %422, %421 : vector<8x128xf32>
    %424 = arith.divf %422, %423 : vector<8x128xf32>
    %425 = vector.extract_strided_slice %382 {offsets = [0, 256], sizes = [8, 128], strides = [1, 1]} : vector<8x512xf32> to vector<8x128xf32>
    %426 = math.tanh %425 : vector<8x128xf32>
    %427 = vector.extract_strided_slice %382 {offsets = [0, 384], sizes = [8, 128], strides = [1, 1]} : vector<8x512xf32> to vector<8x128xf32>
    %428 = arith.negf %427 : vector<8x128xf32>
    %429 = math.exp %428 : vector<8x128xf32>
    %cst_125 = arith.constant 1.000000e+00 : f32
    %430 = vector.broadcast %cst_125 : f32 to vector<8x128xf32>
    %431 = arith.addf %430, %429 : vector<8x128xf32>
    %432 = arith.divf %430, %431 : vector<8x128xf32>
    %433 = arith.mulf %424, %375 : vector<8x128xf32>
    %434 = arith.mulf %418, %426 : vector<8x128xf32>
    %435 = arith.addf %433, %434 : vector<8x128xf32>
    %436 = math.tanh %435 : vector<8x128xf32>
    %437 = arith.mulf %432, %436 : vector<8x128xf32>
    %c56 = arith.constant 56 : index
    %c0_126 = arith.constant 0 : index
    %438 = vector.load %arg13[%c56, %c0_126] : memref<96x512xf32, #tpu.memory_space<vmem>>, vector<8x512xf32>
    %439 = arith.truncf %437 : vector<8x128xf32> to vector<8x128xbf16>
    %c0_127 = arith.constant 0 : index
    %c0_128 = arith.constant 0 : index
    %440 = vector.load %arg7[%c0_127, %c0_128] : memref<128x512xbf16, #tpu.memory_space<vmem>>, vector<128x512xbf16>
    %cst_129 = arith.constant dense<0.000000e+00> : vector<8x512xf32>
    %441 = tpu.matmul %439, %440, %cst_129 {dimension_numbers = #tpu.dot_dimension_numbers<[1], [0], [0], [1], [0, 0, 1, 1], [], []>} : vector<8x128xbf16>, vector<128x512xbf16>, vector<8x512xf32> -> vector<8x512xf32>
    %442 = arith.addf %438, %441 : vector<8x512xf32>
    %c56_130 = arith.constant 56 : index
    %c0_131 = arith.constant 0 : index
    %443 = vector.load %arg12[%c56_130, %c0_131] : memref<64x512xf32, #tpu.memory_space<vmem>>, vector<8x512xf32>
    %444 = arith.truncf %412 : vector<8x128xf32> to vector<8x128xbf16>
    %c0_132 = arith.constant 0 : index
    %c0_133 = arith.constant 0 : index
    %445 = vector.load %arg3[%c0_132, %c0_133] : memref<128x512xbf16, #tpu.memory_space<vmem>>, vector<128x512xbf16>
    %cst_134 = arith.constant dense<0.000000e+00> : vector<8x512xf32>
    %446 = tpu.matmul %444, %445, %cst_134 {dimension_numbers = #tpu.dot_dimension_numbers<[1], [0], [0], [1], [0, 0, 1, 1], [], []>} : vector<8x128xbf16>, vector<128x512xbf16>, vector<8x512xf32> -> vector<8x512xf32>
    %447 = arith.addf %443, %446 : vector<8x512xf32>
    %448 = vector.extract_strided_slice %447 {offsets = [0, 0], sizes = [8, 128], strides = [1, 1]} : vector<8x512xf32> to vector<8x128xf32>
    %449 = arith.negf %448 : vector<8x128xf32>
    %450 = math.exp %449 : vector<8x128xf32>
    %cst_135 = arith.constant 1.000000e+00 : f32
    %451 = vector.broadcast %cst_135 : f32 to vector<8x128xf32>
    %452 = arith.addf %451, %450 : vector<8x128xf32>
    %453 = arith.divf %451, %452 : vector<8x128xf32>
    %454 = vector.extract_strided_slice %447 {offsets = [0, 128], sizes = [8, 128], strides = [1, 1]} : vector<8x512xf32> to vector<8x128xf32>
    %455 = arith.negf %454 : vector<8x128xf32>
    %456 = math.exp %455 : vector<8x128xf32>
    %cst_136 = arith.constant 1.000000e+00 : f32
    %457 = vector.broadcast %cst_136 : f32 to vector<8x128xf32>
    %458 = arith.addf %457, %456 : vector<8x128xf32>
    %459 = arith.divf %457, %458 : vector<8x128xf32>
    %460 = vector.extract_strided_slice %447 {offsets = [0, 256], sizes = [8, 128], strides = [1, 1]} : vector<8x512xf32> to vector<8x128xf32>
    %461 = math.tanh %460 : vector<8x128xf32>
    %462 = vector.extract_strided_slice %447 {offsets = [0, 384], sizes = [8, 128], strides = [1, 1]} : vector<8x512xf32> to vector<8x128xf32>
    %463 = arith.negf %462 : vector<8x128xf32>
    %464 = math.exp %463 : vector<8x128xf32>
    %cst_137 = arith.constant 1.000000e+00 : f32
    %465 = vector.broadcast %cst_137 : f32 to vector<8x128xf32>
    %466 = arith.addf %465, %464 : vector<8x128xf32>
    %467 = arith.divf %465, %466 : vector<8x128xf32>
    %468 = arith.mulf %459, %410 : vector<8x128xf32>
    %469 = arith.mulf %453, %461 : vector<8x128xf32>
    %470 = arith.addf %468, %469 : vector<8x128xf32>
    %471 = math.tanh %470 : vector<8x128xf32>
    %472 = arith.mulf %467, %471 : vector<8x128xf32>
    %473 = vector.extract_strided_slice %442 {offsets = [0, 0], sizes = [8, 128], strides = [1, 1]} : vector<8x512xf32> to vector<8x128xf32>
    %474 = arith.negf %473 : vector<8x128xf32>
    %475 = math.exp %474 : vector<8x128xf32>
    %cst_138 = arith.constant 1.000000e+00 : f32
    %476 = vector.broadcast %cst_138 : f32 to vector<8x128xf32>
    %477 = arith.addf %476, %475 : vector<8x128xf32>
    %478 = arith.divf %476, %477 : vector<8x128xf32>
    %479 = vector.extract_strided_slice %442 {offsets = [0, 128], sizes = [8, 128], strides = [1, 1]} : vector<8x512xf32> to vector<8x128xf32>
    %480 = arith.negf %479 : vector<8x128xf32>
    %481 = math.exp %480 : vector<8x128xf32>
    %cst_139 = arith.constant 1.000000e+00 : f32
    %482 = vector.broadcast %cst_139 : f32 to vector<8x128xf32>
    %483 = arith.addf %482, %481 : vector<8x128xf32>
    %484 = arith.divf %482, %483 : vector<8x128xf32>
    %485 = vector.extract_strided_slice %442 {offsets = [0, 256], sizes = [8, 128], strides = [1, 1]} : vector<8x512xf32> to vector<8x128xf32>
    %486 = math.tanh %485 : vector<8x128xf32>
    %487 = vector.extract_strided_slice %442 {offsets = [0, 384], sizes = [8, 128], strides = [1, 1]} : vector<8x512xf32> to vector<8x128xf32>
    %488 = arith.negf %487 : vector<8x128xf32>
    %489 = math.exp %488 : vector<8x128xf32>
    %cst_140 = arith.constant 1.000000e+00 : f32
    %490 = vector.broadcast %cst_140 : f32 to vector<8x128xf32>
    %491 = arith.addf %490, %489 : vector<8x128xf32>
    %492 = arith.divf %490, %491 : vector<8x128xf32>
    %493 = arith.mulf %484, %435 : vector<8x128xf32>
    %494 = arith.mulf %478, %486 : vector<8x128xf32>
    %495 = arith.addf %493, %494 : vector<8x128xf32>
    %496 = math.tanh %495 : vector<8x128xf32>
    %497 = arith.mulf %492, %496 : vector<8x128xf32>
    %c64 = arith.constant 64 : index
    %c0_141 = arith.constant 0 : index
    %498 = vector.load %arg13[%c64, %c0_141] : memref<96x512xf32, #tpu.memory_space<vmem>>, vector<8x512xf32>
    %499 = arith.truncf %497 : vector<8x128xf32> to vector<8x128xbf16>
    %c0_142 = arith.constant 0 : index
    %c0_143 = arith.constant 0 : index
    %500 = vector.load %arg7[%c0_142, %c0_143] : memref<128x512xbf16, #tpu.memory_space<vmem>>, vector<128x512xbf16>
    %cst_144 = arith.constant dense<0.000000e+00> : vector<8x512xf32>
    %501 = tpu.matmul %499, %500, %cst_144 {dimension_numbers = #tpu.dot_dimension_numbers<[1], [0], [0], [1], [0, 0, 1, 1], [], []>} : vector<8x128xbf16>, vector<128x512xbf16>, vector<8x512xf32> -> vector<8x512xf32>
    %502 = arith.addf %498, %501 : vector<8x512xf32>
    %503 = vector.extract_strided_slice %502 {offsets = [0, 0], sizes = [8, 128], strides = [1, 1]} : vector<8x512xf32> to vector<8x128xf32>
    %504 = arith.negf %503 : vector<8x128xf32>
    %505 = math.exp %504 : vector<8x128xf32>
    %cst_145 = arith.constant 1.000000e+00 : f32
    %506 = vector.broadcast %cst_145 : f32 to vector<8x128xf32>
    %507 = arith.addf %506, %505 : vector<8x128xf32>
    %508 = arith.divf %506, %507 : vector<8x128xf32>
    %509 = vector.extract_strided_slice %502 {offsets = [0, 128], sizes = [8, 128], strides = [1, 1]} : vector<8x512xf32> to vector<8x128xf32>
    %510 = arith.negf %509 : vector<8x128xf32>
    %511 = math.exp %510 : vector<8x128xf32>
    %cst_146 = arith.constant 1.000000e+00 : f32
    %512 = vector.broadcast %cst_146 : f32 to vector<8x128xf32>
    %513 = arith.addf %512, %511 : vector<8x128xf32>
    %514 = arith.divf %512, %513 : vector<8x128xf32>
    %515 = vector.extract_strided_slice %502 {offsets = [0, 256], sizes = [8, 128], strides = [1, 1]} : vector<8x512xf32> to vector<8x128xf32>
    %516 = math.tanh %515 : vector<8x128xf32>
    %517 = vector.extract_strided_slice %502 {offsets = [0, 384], sizes = [8, 128], strides = [1, 1]} : vector<8x512xf32> to vector<8x128xf32>
    %518 = arith.negf %517 : vector<8x128xf32>
    %519 = math.exp %518 : vector<8x128xf32>
    %cst_147 = arith.constant 1.000000e+00 : f32
    %520 = vector.broadcast %cst_147 : f32 to vector<8x128xf32>
    %521 = arith.addf %520, %519 : vector<8x128xf32>
    %522 = arith.divf %520, %521 : vector<8x128xf32>
    %523 = arith.mulf %514, %495 : vector<8x128xf32>
    %524 = arith.mulf %508, %516 : vector<8x128xf32>
    %525 = arith.addf %523, %524 : vector<8x128xf32>
    %526 = math.tanh %525 : vector<8x128xf32>
    %527 = arith.mulf %522, %526 : vector<8x128xf32>
    %c72 = arith.constant 72 : index
    %c0_148 = arith.constant 0 : index
    %528 = vector.load %arg13[%c72, %c0_148] : memref<96x512xf32, #tpu.memory_space<vmem>>, vector<8x512xf32>
    %529 = arith.truncf %527 : vector<8x128xf32> to vector<8x128xbf16>
    %c0_149 = arith.constant 0 : index
    %c0_150 = arith.constant 0 : index
    %530 = vector.load %arg7[%c0_149, %c0_150] : memref<128x512xbf16, #tpu.memory_space<vmem>>, vector<128x512xbf16>
    %cst_151 = arith.constant dense<0.000000e+00> : vector<8x512xf32>
    %531 = tpu.matmul %529, %530, %cst_151 {dimension_numbers = #tpu.dot_dimension_numbers<[1], [0], [0], [1], [0, 0, 1, 1], [], []>} : vector<8x128xbf16>, vector<128x512xbf16>, vector<8x512xf32> -> vector<8x512xf32>
    %532 = arith.addf %528, %531 : vector<8x512xf32>
    %533 = vector.extract_strided_slice %532 {offsets = [0, 0], sizes = [8, 128], strides = [1, 1]} : vector<8x512xf32> to vector<8x128xf32>
    %534 = arith.negf %533 : vector<8x128xf32>
    %535 = math.exp %534 : vector<8x128xf32>
    %cst_152 = arith.constant 1.000000e+00 : f32
    %536 = vector.broadcast %cst_152 : f32 to vector<8x128xf32>
    %537 = arith.addf %536, %535 : vector<8x128xf32>
    %538 = arith.divf %536, %537 : vector<8x128xf32>
    %539 = vector.extract_strided_slice %532 {offsets = [0, 128], sizes = [8, 128], strides = [1, 1]} : vector<8x512xf32> to vector<8x128xf32>
    %540 = arith.negf %539 : vector<8x128xf32>
    %541 = math.exp %540 : vector<8x128xf32>
    %cst_153 = arith.constant 1.000000e+00 : f32
    %542 = vector.broadcast %cst_153 : f32 to vector<8x128xf32>
    %543 = arith.addf %542, %541 : vector<8x128xf32>
    %544 = arith.divf %542, %543 : vector<8x128xf32>
    %545 = vector.extract_strided_slice %532 {offsets = [0, 256], sizes = [8, 128], strides = [1, 1]} : vector<8x512xf32> to vector<8x128xf32>
    %546 = math.tanh %545 : vector<8x128xf32>
    %547 = vector.extract_strided_slice %532 {offsets = [0, 384], sizes = [8, 128], strides = [1, 1]} : vector<8x512xf32> to vector<8x128xf32>
    %548 = arith.negf %547 : vector<8x128xf32>
    %549 = math.exp %548 : vector<8x128xf32>
    %cst_154 = arith.constant 1.000000e+00 : f32
    %550 = vector.broadcast %cst_154 : f32 to vector<8x128xf32>
    %551 = arith.addf %550, %549 : vector<8x128xf32>
    %552 = arith.divf %550, %551 : vector<8x128xf32>
    %553 = arith.mulf %544, %525 : vector<8x128xf32>
    %554 = arith.mulf %538, %546 : vector<8x128xf32>
    %555 = arith.addf %553, %554 : vector<8x128xf32>
    %556 = math.tanh %555 : vector<8x128xf32>
    %557 = arith.mulf %552, %556 : vector<8x128xf32>
    %c80 = arith.constant 80 : index
    %c0_155 = arith.constant 0 : index
    %558 = vector.load %arg13[%c80, %c0_155] : memref<96x512xf32, #tpu.memory_space<vmem>>, vector<8x512xf32>
    %559 = arith.truncf %557 : vector<8x128xf32> to vector<8x128xbf16>
    %c0_156 = arith.constant 0 : index
    %c0_157 = arith.constant 0 : index
    %560 = vector.load %arg7[%c0_156, %c0_157] : memref<128x512xbf16, #tpu.memory_space<vmem>>, vector<128x512xbf16>
    %cst_158 = arith.constant dense<0.000000e+00> : vector<8x512xf32>
    %561 = tpu.matmul %559, %560, %cst_158 {dimension_numbers = #tpu.dot_dimension_numbers<[1], [0], [0], [1], [0, 0, 1, 1], [], []>} : vector<8x128xbf16>, vector<128x512xbf16>, vector<8x512xf32> -> vector<8x512xf32>
    %562 = arith.addf %558, %561 : vector<8x512xf32>
    %563 = vector.extract_strided_slice %562 {offsets = [0, 0], sizes = [8, 128], strides = [1, 1]} : vector<8x512xf32> to vector<8x128xf32>
    %564 = arith.negf %563 : vector<8x128xf32>
    %565 = math.exp %564 : vector<8x128xf32>
    %cst_159 = arith.constant 1.000000e+00 : f32
    %566 = vector.broadcast %cst_159 : f32 to vector<8x128xf32>
    %567 = arith.addf %566, %565 : vector<8x128xf32>
    %568 = arith.divf %566, %567 : vector<8x128xf32>
    %569 = vector.extract_strided_slice %562 {offsets = [0, 128], sizes = [8, 128], strides = [1, 1]} : vector<8x512xf32> to vector<8x128xf32>
    %570 = arith.negf %569 : vector<8x128xf32>
    %571 = math.exp %570 : vector<8x128xf32>
    %cst_160 = arith.constant 1.000000e+00 : f32
    %572 = vector.broadcast %cst_160 : f32 to vector<8x128xf32>
    %573 = arith.addf %572, %571 : vector<8x128xf32>
    %574 = arith.divf %572, %573 : vector<8x128xf32>
    %575 = vector.extract_strided_slice %562 {offsets = [0, 256], sizes = [8, 128], strides = [1, 1]} : vector<8x512xf32> to vector<8x128xf32>
    %576 = math.tanh %575 : vector<8x128xf32>
    %577 = vector.extract_strided_slice %562 {offsets = [0, 384], sizes = [8, 128], strides = [1, 1]} : vector<8x512xf32> to vector<8x128xf32>
    %578 = arith.negf %577 : vector<8x128xf32>
    %579 = math.exp %578 : vector<8x128xf32>
    %cst_161 = arith.constant 1.000000e+00 : f32
    %580 = vector.broadcast %cst_161 : f32 to vector<8x128xf32>
    %581 = arith.addf %580, %579 : vector<8x128xf32>
    %582 = arith.divf %580, %581 : vector<8x128xf32>
    %583 = arith.mulf %574, %555 : vector<8x128xf32>
    %584 = arith.mulf %568, %576 : vector<8x128xf32>
    %585 = arith.addf %583, %584 : vector<8x128xf32>
    %586 = math.tanh %585 : vector<8x128xf32>
    %587 = arith.mulf %582, %586 : vector<8x128xf32>
    %c88 = arith.constant 88 : index
    %c0_162 = arith.constant 0 : index
    %588 = vector.load %arg13[%c88, %c0_162] : memref<96x512xf32, #tpu.memory_space<vmem>>, vector<8x512xf32>
    %589 = arith.truncf %587 : vector<8x128xf32> to vector<8x128xbf16>
    %c0_163 = arith.constant 0 : index
    %c0_164 = arith.constant 0 : index
    %590 = vector.load %arg7[%c0_163, %c0_164] : memref<128x512xbf16, #tpu.memory_space<vmem>>, vector<128x512xbf16>
    %cst_165 = arith.constant dense<0.000000e+00> : vector<8x512xf32>
    %591 = tpu.matmul %589, %590, %cst_165 {dimension_numbers = #tpu.dot_dimension_numbers<[1], [0], [0], [1], [0, 0, 1, 1], [], []>} : vector<8x128xbf16>, vector<128x512xbf16>, vector<8x512xf32> -> vector<8x512xf32>
    %592 = arith.addf %588, %591 : vector<8x512xf32>
    %593 = vector.extract_strided_slice %592 {offsets = [0, 0], sizes = [8, 128], strides = [1, 1]} : vector<8x512xf32> to vector<8x128xf32>
    %594 = arith.negf %593 : vector<8x128xf32>
    %595 = math.exp %594 : vector<8x128xf32>
    %cst_166 = arith.constant 1.000000e+00 : f32
    %596 = vector.broadcast %cst_166 : f32 to vector<8x128xf32>
    %597 = arith.addf %596, %595 : vector<8x128xf32>
    %598 = arith.divf %596, %597 : vector<8x128xf32>
    %599 = vector.extract_strided_slice %592 {offsets = [0, 128], sizes = [8, 128], strides = [1, 1]} : vector<8x512xf32> to vector<8x128xf32>
    %600 = arith.negf %599 : vector<8x128xf32>
    %601 = math.exp %600 : vector<8x128xf32>
    %cst_167 = arith.constant 1.000000e+00 : f32
    %602 = vector.broadcast %cst_167 : f32 to vector<8x128xf32>
    %603 = arith.addf %602, %601 : vector<8x128xf32>
    %604 = arith.divf %602, %603 : vector<8x128xf32>
    %605 = vector.extract_strided_slice %592 {offsets = [0, 256], sizes = [8, 128], strides = [1, 1]} : vector<8x512xf32> to vector<8x128xf32>
    %606 = math.tanh %605 : vector<8x128xf32>
    %607 = vector.extract_strided_slice %592 {offsets = [0, 384], sizes = [8, 128], strides = [1, 1]} : vector<8x512xf32> to vector<8x128xf32>
    %608 = arith.negf %607 : vector<8x128xf32>
    %609 = math.exp %608 : vector<8x128xf32>
    %cst_168 = arith.constant 1.000000e+00 : f32
    %610 = vector.broadcast %cst_168 : f32 to vector<8x128xf32>
    %611 = arith.addf %610, %609 : vector<8x128xf32>
    %612 = arith.divf %610, %611 : vector<8x128xf32>
    %613 = arith.mulf %604, %585 : vector<8x128xf32>
    %614 = arith.mulf %598, %606 : vector<8x128xf32>
    %615 = arith.addf %613, %614 : vector<8x128xf32>
    %616 = math.tanh %615 : vector<8x128xf32>
    %617 = arith.mulf %612, %616 : vector<8x128xf32>
    %618 = tpu.concatenate %617, %472 in 1 : vector<8x128xf32>, vector<8x128xf32> -> vector<8x256xf32>
    %619 = arith.truncf %618 : vector<8x256xf32> to vector<8x256xbf16>
    %c0_169 = arith.constant 0 : index
    %c0_170 = arith.constant 0 : index
    %620 = vector.load %arg9[%c0_169, %c0_170] : memref<256x128xbf16, #tpu.memory_space<vmem>>, vector<256x128xbf16>
    %cst_171 = arith.constant dense<0.000000e+00> : vector<8x128xf32>
    %621 = tpu.matmul %619, %620, %cst_171 {dimension_numbers = #tpu.dot_dimension_numbers<[1], [0], [0], [1], [0, 0, 1, 1], [], []>} : vector<8x256xbf16>, vector<256x128xbf16>, vector<8x128xf32> -> vector<8x128xf32>
    %c0_172 = arith.constant 0 : index
    %c0_173 = arith.constant 0 : index
    %622 = vector.load %arg10[%c0_172, %c0_173] : memref<1x128xf32, #tpu.memory_space<vmem>>, vector<1x128xf32>
    %623 = vector.broadcast %622 : vector<1x128xf32> to vector<8x128xf32>
    %624 = arith.addf %621, %623 : vector<8x128xf32>
    %c0_174 = arith.constant 0 : index
    %c0_175 = arith.constant 0 : index
    %625 = vector.load %arg11[%c0_174, %c0_175] : memref<8x128xf32, #tpu.memory_space<vmem>>, vector<8x128xf32>
    tpu.vector_store %arg11[%c0_174, %c0_175], %624 {strides = array<i32>} : memref<8x128xf32, #tpu.memory_space<vmem>>, vector<8x128xf32>,
    return
  }
  func.func @transform_0(%arg0: i32) -> (i32, i32) {
    %c0_i32 = arith.constant 0 : i32
    %c0_i32_0 = arith.constant 0 : i32
    %c0_i32_1 = arith.constant 0 : i32
    return %c0_i32, %c0_i32_0 : i32, i32
  }
  func.func @transform_1(%arg0: i32) -> (i32, i32) {
    %c0_i32 = arith.constant 0 : i32
    %c0_i32_0 = arith.constant 0 : i32
    %c0_i32_1 = arith.constant 0 : i32
    return %c0_i32, %c0_i32_0 : i32, i32
  }
  func.func @transform_2(%arg0: i32) -> (i32, i32) {
    %c0_i32 = arith.constant 0 : i32
    %c0_i32_0 = arith.constant 0 : i32
    %c0_i32_1 = arith.constant 0 : i32
    return %c0_i32, %c0_i32_0 : i32, i32
  }
  func.func @transform_3(%arg0: i32) -> (i32, i32) {
    %c0_i32 = arith.constant 0 : i32
    %c0_i32_0 = arith.constant 0 : i32
    %c0_i32_1 = arith.constant 0 : i32
    return %c0_i32, %c0_i32_0 : i32, i32
  }
  func.func @transform_4(%arg0: i32) -> (i32, i32) {
    %c0_i32 = arith.constant 0 : i32
    %c0_i32_0 = arith.constant 0 : i32
    %c0_i32_1 = arith.constant 0 : i32
    return %c0_i32, %c0_i32_0 : i32, i32
  }
  func.func @transform_5(%arg0: i32) -> (i32, i32) {
    %c0_i32 = arith.constant 0 : i32
    %c0_i32_0 = arith.constant 0 : i32
    %c0_i32_1 = arith.constant 0 : i32
    return %c0_i32, %c0_i32_0 : i32, i32
  }
  func.func @transform_6(%arg0: i32) -> (i32, i32) {
    %c0_i32 = arith.constant 0 : i32
    %c0_i32_0 = arith.constant 0 : i32
    %c0_i32_1 = arith.constant 0 : i32
    return %c0_i32, %c0_i32_0 : i32, i32
  }
  func.func @transform_7(%arg0: i32) -> (i32, i32) {
    %c0_i32 = arith.constant 0 : i32
    %c0_i32_0 = arith.constant 0 : i32
    %c0_i32_1 = arith.constant 0 : i32
    return %c0_i32, %c0_i32_0 : i32, i32
  }
  func.func @transform_8(%arg0: i32) -> (i32, i32) {
    %c0_i32 = arith.constant 0 : i32
    %c0_i32_0 = arith.constant 0 : i32
    %c0_i32_1 = arith.constant 0 : i32
    return %c0_i32, %c0_i32_0 : i32, i32
  }
  func.func @transform_9(%arg0: i32) -> (i32, i32) {
    %c0_i32 = arith.constant 0 : i32
    %c0_i32_0 = arith.constant 0 : i32
    %c0_i32_1 = arith.constant 0 : i32
    return %c0_i32, %c0_i32_0 : i32, i32
  }
  func.func @transform_10(%arg0: i32) -> (i32, i32) {
    %c0_i32 = arith.constant 0 : i32
    %c0_i32_0 = arith.constant 0 : i32
    %c0_i32_1 = arith.constant 0 : i32
    return %c0_i32, %c0_i32_0 : i32, i32
  }
}

</mosaic_0001>

<llo_original>
// kernel: bert_lstm_forward.1
$region0: #{bert_lstm_forward.1}
  #allocation0 [shape = 'u32[]', space=smem, size = 0x4, offset = 0x4, fixed_abs, tag = 'smem constant byte address 0x4 - core index']
  #allocation1 [shape = 'u32[144,128]{1,0:T(1,128)}', space=vmem, size = 0x12000, scoped, tag = 'internal scratch']
  #allocation2 [shape = 'f32[64,512]{1,0:T(8,128)}', space=vmem, size = 0x20000, scoped, tag = 'scratch operand']
  #allocation3 [shape = 'f32[96,512]{1,0:T(8,128)}', space=vmem, size = 0x30000, scoped, tag = 'scratch operand']
  %s0 = inlined_call_operand.vmem [shape: bf16[64,768], index: 0, kind: input, shape index: {}]
  %s1 = inlined_call_operand.vmem [shape: bf16[768,512], index: 1, kind: input, shape index: {}]
  %s2 = inlined_call_operand.vmem [shape: bf16[128,512], index: 2, kind: input, shape index: {}]
  %s3 = inlined_call_operand.vmem [shape: f32[1,512], index: 3, kind: input, shape index: {}]
  %s4 = inlined_call_operand.vmem [shape: bf16[96,768], index: 4, kind: input, shape index: {}]
  %s5 = inlined_call_operand.vmem [shape: bf16[768,512], index: 5, kind: input, shape index: {}]
  %s6 = inlined_call_operand.vmem [shape: bf16[128,512], index: 6, kind: input, shape index: {}]
  %s7 = inlined_call_operand.vmem [shape: f32[1,512], index: 7, kind: input, shape index: {}]
  %s8 = inlined_call_operand.vmem [shape: bf16[256,128], index: 8, kind: input, shape index: {}]
  %s9 = inlined_call_operand.vmem [shape: f32[1,128], index: 9, kind: input, shape index: {}]
  %s10 = inlined_call_operand.vmem [shape: f32[8,128], index: 10, kind: output, shape index: {}]
  %s11 = sld [smem:[#allocation0]]
  $region50: #{bert_lstm_forward.1} parent=0
    _
  %s13 = ssub.s32 1, %s11
  %s14 = scalar_select 0, %s13, %s11
  // Predicated region
  $region2: #{bert_lstm_forward.1} parent=0 // pred_check
    _
  $region3: #{bert_lstm_forward.1} parent=0 // pred_check_branch
    %16 = sbr.rel (0) target = $region5
  $region4: #{bert_lstm_forward.1} parent=0 // pred_region
    _
  $region5: #{bert_lstm_forward.1} parent=0 // pred_fallthru
    _
  // Predicated region
  $region6: #{bert_lstm_forward.1} parent=0 // pred_check
    _
  $region7: #{bert_lstm_forward.1} parent=0 // pred_check_branch
    %18 = sbr.rel (0) target = $region9
  $region8: #{bert_lstm_forward.1} parent=0 // pred_region
    _
  $region9: #{bert_lstm_forward.1} parent=0 // pred_fallthru
    _
  // Predicated region
  $region10: #{bert_lstm_forward.1} parent=0 // pred_check
    _
  $region11: #{bert_lstm_forward.1} parent=0 // pred_check_branch
    %20 = sbr.rel (0) target = $region13
  $region12: #{bert_lstm_forward.1} parent=0 // pred_region
    _
  $region13: #{bert_lstm_forward.1} parent=0 // pred_fallthru
    _
  // Predicated region
  $region14: #{bert_lstm_forward.1} parent=0 // pred_check
    _
  $region15: #{bert_lstm_forward.1} parent=0 // pred_check_branch
    %22 = sbr.rel (0) target = $region17
  $region16: #{bert_lstm_forward.1} parent=0 // pred_region
    _
  $region17: #{bert_lstm_forward.1} parent=0 // pred_fallthru
    _
  // Predicated region
  $region18: #{bert_lstm_forward.1} parent=0 // pred_check
    _
  $region19: #{bert_lstm_forward.1} parent=0 // pred_check_branch
    %24 = sbr.rel (0) target = $region21
  $region20: #{bert_lstm_forward.1} parent=0 // pred_region
    _
  $region21: #{bert_lstm_forward.1} parent=0 // pred_fallthru
    _
  // Predicated region
  $region22: #{bert_lstm_forward.1} parent=0 // pred_check
    _
  $region23: #{bert_lstm_forward.1} parent=0 // pred_check_branch
    %26 = sbr.rel (0) target = $region25
  $region24: #{bert_lstm_forward.1} parent=0 // pred_region
    _
  $region25: #{bert_lstm_forward.1} parent=0 // pred_fallthru
    _
  // Predicated region
  $region26: #{bert_lstm_forward.1} parent=0 // pred_check
    _
  $region27: #{bert_lstm_forward.1} parent=0 // pred_check_branch
    %28 = sbr.rel (0) target = $region29
  $region28: #{bert_lstm_forward.1} parent=0 // pred_region
    _
  $region29: #{bert_lstm_forward.1} parent=0 // pred_fallthru
    _
  // Predicated region
  $region30: #{bert_lstm_forward.1} parent=0 // pred_check
    _
  $region31: #{bert_lstm_forward.1} parent=0 // pred_check_branch
    %30 = sbr.rel (0) target = $region33
  $region32: #{bert_lstm_forward.1} parent=0 // pred_region
    _
  $region33: #{bert_lstm_forward.1} parent=0 // pred_fallthru
    _
  // Predicated region
  $region34: #{bert_lstm_forward.1} parent=0 // pred_check
    _
  $region35: #{bert_lstm_forward.1} parent=0 // pred_check_branch
    %32 = sbr.rel (0) target = $region37
  $region36: #{bert_lstm_forward.1} parent=0 // pred_region
    _
  $region37: #{bert_lstm_forward.1} parent=0 // pred_fallthru
    _
  // Predicated region
  $region38: #{bert_lstm_forward.1} parent=0 // pred_check
    _
  $region39: #{bert_lstm_forward.1} parent=0 // pred_check_branch
    %34 = sbr.rel (0) target = $region41
  $region40: #{bert_lstm_forward.1} parent=0 // pred_region
    _
  $region41: #{bert_lstm_forward.1} parent=0 // pred_fallthru
    _
  %v36 = vld [vmem:[%s0] sm:$0xff]
  %v37 = vld [vmem:[%s0 + $0x8] sm:$0xff]
  %v38 = vld [vmem:[%s0 + $0x10] sm:$0xff]
  %v39 = vld [vmem:[%s0 + $0x18] sm:$0xff]
  %v40 = vld [vmem:[%s0 + $0x20] sm:$0xff]
  %v41 = vld [vmem:[%s0 + $0x28] sm:$0xff]
  %v42 = vld [vmem:[%s0 + $0x30] sm:$0xff]
  %v43 = vld [vmem:[%s0 + $0x38] sm:$0xff]
  %v44 = vld [vmem:[%s0 + $0x40] sm:$0xff]
  %v45 = vld [vmem:[%s0 + $0x48] sm:$0xff]
  %v46 = vld [vmem:[%s0 + $0x50] sm:$0xff]
  %v47 = vld [vmem:[%s0 + $0x58] sm:$0xff]
  %v48 = vld [vmem:[%s0 + $0x60] sm:$0xff]
  %v49 = vld [vmem:[%s0 + $0x68] sm:$0xff]
  %v50 = vld [vmem:[%s0 + $0x70] sm:$0xff]
  %v51 = vld [vmem:[%s0 + $0x78] sm:$0xff]
  %v52 = vld [vmem:[%s0 + $0x80] sm:$0xff]
  %v53 = vld [vmem:[%s0 + $0x88] sm:$0xff]
  %v54 = vld [vmem:[%s0 + $0x90] sm:$0xff]
  %v55 = vld [vmem:[%s0 + $0x98] sm:$0xff]
  %v56 = vld [vmem:[%s0 + $0xa0] sm:$0xff]
  %v57 = vld [vmem:[%s0 + $0xa8] sm:$0xff]
  %v58 = vld [vmem:[%s0 + $0xb0] sm:$0xff]
  %v59 = vld [vmem:[%s0 + $0xb8] sm:$0xff]
  %v60 = vld [vmem:[%s1] sm:$0xff]
  %v61 = vld [vmem:[%s1 + $0x8] sm:$0xff]
  %v62 = vld [vmem:[%s1 + $0x10] sm:$0xff]
  %v63 = vld [vmem:[%s1 + $0x18] sm:$0xff]
  %v64 = vld [vmem:[%s1 + $0x20] sm:$0xff]
  %v65 = vld [vmem:[%s1 + $0x28] sm:$0xff]
  %v66 = vld [vmem:[%s1 + $0x30] sm:$0xff]
  %v67 = vld [vmem:[%s1 + $0x38] sm:$0xff]
  %v68 = vld [vmem:[%s1 + $0x40] sm:$0xff]
  %v69 = vld [vmem:[%s1 + $0x48] sm:$0xff]
  %v70 = vld [vmem:[%s1 + $0x50] sm:$0xff]
  %v71 = vld [vmem:[%s1 + $0x58] sm:$0xff]
  %v72 = vld [vmem:[%s1 + $0x60] sm:$0xff]
  %v73 = vld [vmem:[%s1 + $0x68] sm:$0xff]
  %v74 = vld [vmem:[%s1 + $0x70] sm:$0xff]
  %v75 = vld [vmem:[%s1 + $0x78] sm:$0xff]
  %v76 = vld [vmem:[%s1 + $0x80] sm:$0xff]
  %v77 = vld [vmem:[%s1 + $0x88] sm:$0xff]
  %v78 = vld [vmem:[%s1 + $0x90] sm:$0xff]
  %v79 = vld [vmem:[%s1 + $0x98] sm:$0xff]
  %v80 = vld [vmem:[%s1 + $0xa0] sm:$0xff]
  %v81 = vld [vmem:[%s1 + $0xa8] sm:$0xff]
  %v82 = vld [vmem:[%s1 + $0xb0] sm:$0xff]
  %v83 = vld [vmem:[%s1 + $0xb8] sm:$0xff]
  %v84 = vld [vmem:[%s1 + $0xc0] sm:$0xff]
  %v85 = vld [vmem:[%s1 + $0xc8] sm:$0xff]
  %v86 = vld [vmem:[%s1 + $0xd0] sm:$0xff]
  %v87 = vld [vmem:[%s1 + $0xd8] sm:$0xff]
  %v88 = vld [vmem:[%s1 + $0xe0] sm:$0xff]
  %v89 = vld [vmem:[%s1 + $0xe8] sm:$0xff]
  %v90 = vld [vmem:[%s1 + $0xf0] sm:$0xff]
  %v91 = vld [vmem:[%s1 + $0xf8] sm:$0xff]
  %v92 = vld [vmem:[%s1 + $0x100] sm:$0xff]
  %v93 = vld [vmem:[%s1 + $0x108] sm:$0xff]
  %v94 = vld [vmem:[%s1 + $0x110] sm:$0xff]
  %v95 = vld [vmem:[%s1 + $0x118] sm:$0xff]
  %v96 = vld [vmem:[%s1 + $0x120] sm:$0xff]
  %v97 = vld [vmem:[%s1 + $0x128] sm:$0xff]
  %v98 = vld [vmem:[%s1 + $0x130] sm:$0xff]
  %v99 = vld [vmem:[%s1 + $0x138] sm:$0xff]
  %v100 = vld [vmem:[%s1 + $0x140] sm:$0xff]
  %v101 = vld [vmem:[%s1 + $0x148] sm:$0xff]
  %v102 = vld [vmem:[%s1 + $0x150] sm:$0xff]
  %v103 = vld [vmem:[%s1 + $0x158] sm:$0xff]
  %v104 = vld [vmem:[%s1 + $0x160] sm:$0xff]
  %v105 = vld [vmem:[%s1 + $0x168] sm:$0xff]
  %v106 = vld [vmem:[%s1 + $0x170] sm:$0xff]
  %v107 = vld [vmem:[%s1 + $0x178] sm:$0xff]
  %v108 = vld [vmem:[%s1 + $0x180] sm:$0xff]
  %v109 = vld [vmem:[%s1 + $0x188] sm:$0xff]
  %v110 = vld [vmem:[%s1 + $0x190] sm:$0xff]
  %v111 = vld [vmem:[%s1 + $0x198] sm:$0xff]
  %v112 = vld [vmem:[%s1 + $0x1a0] sm:$0xff]
  %v113 = vld [vmem:[%s1 + $0x1a8] sm:$0xff]
  %v114 = vld [vmem:[%s1 + $0x1b0] sm:$0xff]
  %v115 = vld [vmem:[%s1 + $0x1b8] sm:$0xff]
  %v116 = vld [vmem:[%s1 + $0x1c0] sm:$0xff]
  %v117 = vld [vmem:[%s1 + $0x1c8] sm:$0xff]
  %v118 = vld [vmem:[%s1 + $0x1d0] sm:$0xff]
  %v119 = vld [vmem:[%s1 + $0x1d8] sm:$0xff]
  %v120 = vld [vmem:[%s1 + $0x1e0] sm:$0xff]
  %v121 = vld [vmem:[%s1 + $0x1e8] sm:$0xff]
  %v122 = vld [vmem:[%s1 + $0x1f0] sm:$0xff]
  %v123 = vld [vmem:[%s1 + $0x1f8] sm:$0xff]
  %v124 = vld [vmem:[%s1 + $0x200] sm:$0xff]
  %v125 = vld [vmem:[%s1 + $0x208] sm:$0xff]
  %v126 = vld [vmem:[%s1 + $0x210] sm:$0xff]
  %v127 = vld [vmem:[%s1 + $0x218] sm:$0xff]
  %v128 = vld [vmem:[%s1 + $0x220] sm:$0xff]
  %v129 = vld [vmem:[%s1 + $0x228] sm:$0xff]
  %v130 = vld [vmem:[%s1 + $0x230] sm:$0xff]
  %v131 = vld [vmem:[%s1 + $0x238] sm:$0xff]
  %v132 = vld [vmem:[%s1 + $0x240] sm:$0xff]
  %v133 = vld [vmem:[%s1 + $0x248] sm:$0xff]
  %v134 = vld [vmem:[%s1 + $0x250] sm:$0xff]
  %v135 = vld [vmem:[%s1 + $0x258] sm:$0xff]
  %v136 = vld [vmem:[%s1 + $0x260] sm:$0xff]
  %v137 = vld [vmem:[%s1 + $0x268] sm:$0xff]
  %v138 = vld [vmem:[%s1 + $0x270] sm:$0xff]
  %v139 = vld [vmem:[%s1 + $0x278] sm:$0xff]
  %v140 = vld [vmem:[%s1 + $0x280] sm:$0xff]
  %v141 = vld [vmem:[%s1 + $0x288] sm:$0xff]
  %v142 = vld [vmem:[%s1 + $0x290] sm:$0xff]
  %v143 = vld [vmem:[%s1 + $0x298] sm:$0xff]
  %v144 = vld [vmem:[%s1 + $0x2a0] sm:$0xff]
  %v145 = vld [vmem:[%s1 + $0x2a8] sm:$0xff]
  %v146 = vld [vmem:[%s1 + $0x2b0] sm:$0xff]
  %v147 = vld [vmem:[%s1 + $0x2b8] sm:$0xff]
  %v148 = vld [vmem:[%s1 + $0x2c0] sm:$0xff]
  %v149 = vld [vmem:[%s1 + $0x2c8] sm:$0xff]
  %v150 = vld [vmem:[%s1 + $0x2d0] sm:$0xff]
  %v151 = vld [vmem:[%s1 + $0x2d8] sm:$0xff]
  %v152 = vld [vmem:[%s1 + $0x2e0] sm:$0xff]
  %v153 = vld [vmem:[%s1 + $0x2e8] sm:$0xff]
  %v154 = vld [vmem:[%s1 + $0x2f0] sm:$0xff]
  %v155 = vld [vmem:[%s1 + $0x2f8] sm:$0xff]
  %v156 = vld [vmem:[%s1 + $0x300] sm:$0xff]
  %v157 = vld [vmem:[%s1 + $0x308] sm:$0xff]
  %v158 = vld [vmem:[%s1 + $0x310] sm:$0xff]
  %v159 = vld [vmem:[%s1 + $0x318] sm:$0xff]
  %v160 = vld [vmem:[%s1 + $0x320] sm:$0xff]
  %v161 = vld [vmem:[%s1 + $0x328] sm:$0xff]
  %v162 = vld [vmem:[%s1 + $0x330] sm:$0xff]
  %v163 = vld [vmem:[%s1 + $0x338] sm:$0xff]
  %v164 = vld [vmem:[%s1 + $0x340] sm:$0xff]
  %v165 = vld [vmem:[%s1 + $0x348] sm:$0xff]
  %v166 = vld [vmem:[%s1 + $0x350] sm:$0xff]
  %v167 = vld [vmem:[%s1 + $0x358] sm:$0xff]
  %v168 = vld [vmem:[%s1 + $0x360] sm:$0xff]
  %v169 = vld [vmem:[%s1 + $0x368] sm:$0xff]
  %v170 = vld [vmem:[%s1 + $0x370] sm:$0xff]
  %v171 = vld [vmem:[%s1 + $0x378] sm:$0xff]
  %v172 = vld [vmem:[%s1 + $0x380] sm:$0xff]
  %v173 = vld [vmem:[%s1 + $0x388] sm:$0xff]
  %v174 = vld [vmem:[%s1 + $0x390] sm:$0xff]
  %v175 = vld [vmem:[%s1 + $0x398] sm:$0xff]
  %v176 = vld [vmem:[%s1 + $0x3a0] sm:$0xff]
  %v177 = vld [vmem:[%s1 + $0x3a8] sm:$0xff]
  %v178 = vld [vmem:[%s1 + $0x3b0] sm:$0xff]
  %v179 = vld [vmem:[%s1 + $0x3b8] sm:$0xff]
  %v180 = vld [vmem:[%s1 + $0x3c0] sm:$0xff]
  %v181 = vld [vmem:[%s1 + $0x3c8] sm:$0xff]
  %v182 = vld [vmem:[%s1 + $0x3d0] sm:$0xff]
  %v183 = vld [vmem:[%s1 + $0x3d8] sm:$0xff]
  %v184 = vld [vmem:[%s1 + $0x3e0] sm:$0xff]
  %v185 = vld [vmem:[%s1 + $0x3e8] sm:$0xff]
  %v186 = vld [vmem:[%s1 + $0x3f0] sm:$0xff]
  %v187 = vld [vmem:[%s1 + $0x3f8] sm:$0xff]
  %v188 = vld [vmem:[%s1 + $0x400] sm:$0xff]
  %v189 = vld [vmem:[%s1 + $0x408] sm:$0xff]
  %v190 = vld [vmem:[%s1 + $0x410] sm:$0xff]
  %v191 = vld [vmem:[%s1 + $0x418] sm:$0xff]
  %v192 = vld [vmem:[%s1 + $0x420] sm:$0xff]
  %v193 = vld [vmem:[%s1 + $0x428] sm:$0xff]
  %v194 = vld [vmem:[%s1 + $0x430] sm:$0xff]
  %v195 = vld [vmem:[%s1 + $0x438] sm:$0xff]
  %v196 = vld [vmem:[%s1 + $0x440] sm:$0xff]
  %v197 = vld [vmem:[%s1 + $0x448] sm:$0xff]
  %v198 = vld [vmem:[%s1 + $0x450] sm:$0xff]
  %v199 = vld [vmem:[%s1 + $0x458] sm:$0xff]
  %v200 = vld [vmem:[%s1 + $0x460] sm:$0xff]
  %v201 = vld [vmem:[%s1 + $0x468] sm:$0xff]
  %v202 = vld [vmem:[%s1 + $0x470] sm:$0xff]
  %v203 = vld [vmem:[%s1 + $0x478] sm:$0xff]
  %v204 = vld [vmem:[%s1 + $0x480] sm:$0xff]
  %v205 = vld [vmem:[%s1 + $0x488] sm:$0xff]
  %v206 = vld [vmem:[%s1 + $0x490] sm:$0xff]
  %v207 = vld [vmem:[%s1 + $0x498] sm:$0xff]
  %v208 = vld [vmem:[%s1 + $0x4a0] sm:$0xff]
  %v209 = vld [vmem:[%s1 + $0x4a8] sm:$0xff]
  %v210 = vld [vmem:[%s1 + $0x4b0] sm:$0xff]
  %v211 = vld [vmem:[%s1 + $0x4b8] sm:$0xff]
  %v212 = vld [vmem:[%s1 + $0x4c0] sm:$0xff]
  %v213 = vld [vmem:[%s1 + $0x4c8] sm:$0xff]
  %v214 = vld [vmem:[%s1 + $0x4d0] sm:$0xff]
  %v215 = vld [vmem:[%s1 + $0x4d8] sm:$0xff]
  %v216 = vld [vmem:[%s1 + $0x4e0] sm:$0xff]
  %v217 = vld [vmem:[%s1 + $0x4e8] sm:$0xff]
  %v218 = vld [vmem:[%s1 + $0x4f0] sm:$0xff]
  %v219 = vld [vmem:[%s1 + $0x4f8] sm:$0xff]
  %v220 = vld [vmem:[%s1 + $0x500] sm:$0xff]
  %v221 = vld [vmem:[%s1 + $0x508] sm:$0xff]
  %v222 = vld [vmem:[%s1 + $0x510] sm:$0xff]
  %v223 = vld [vmem:[%s1 + $0x518] sm:$0xff]
  %v224 = vld [vmem:[%s1 + $0x520] sm:$0xff]
  %v225 = vld [vmem:[%s1 + $0x528] sm:$0xff]
  %v226 = vld [vmem:[%s1 + $0x530] sm:$0xff]
  %v227 = vld [vmem:[%s1 + $0x538] sm:$0xff]
  %v228 = vld [vmem:[%s1 + $0x540] sm:$0xff]
  %v229 = vld [vmem:[%s1 + $0x548] sm:$0xff]
  %v230 = vld [vmem:[%s1 + $0x550] sm:$0xff]
  %v231 = vld [vmem:[%s1 + $0x558] sm:$0xff]
  %v232 = vld [vmem:[%s1 + $0x560] sm:$0xff]
  %v233 = vld [vmem:[%s1 + $0x568] sm:$0xff]
  %v234 = vld [vmem:[%s1 + $0x570] sm:$0xff]
  %v235 = vld [vmem:[%s1 + $0x578] sm:$0xff]
  %v236 = vld [vmem:[%s1 + $0x580] sm:$0xff]
  %v237 = vld [vmem:[%s1 + $0x588] sm:$0xff]
  %v238 = vld [vmem:[%s1 + $0x590] sm:$0xff]
  %v239 = vld [vmem:[%s1 + $0x598] sm:$0xff]
  %v240 = vld [vmem:[%s1 + $0x5a0] sm:$0xff]
  %v241 = vld [vmem:[%s1 + $0x5a8] sm:$0xff]
  %v242 = vld [vmem:[%s1 + $0x5b0] sm:$0xff]
  %v243 = vld [vmem:[%s1 + $0x5b8] sm:$0xff]
  %v244 = vld [vmem:[%s1 + $0x5c0] sm:$0xff]
  %v245 = vld [vmem:[%s1 + $0x5c8] sm:$0xff]
  %v246 = vld [vmem:[%s1 + $0x5d0] sm:$0xff]
  %v247 = vld [vmem:[%s1 + $0x5d8] sm:$0xff]
  %v248 = vld [vmem:[%s1 + $0x5e0] sm:$0xff]
  %v249 = vld [vmem:[%s1 + $0x5e8] sm:$0xff]
  %v250 = vld [vmem:[%s1 + $0x5f0] sm:$0xff]
  %v251 = vld [vmem:[%s1 + $0x5f8] sm:$0xff]
  %v252 = vld [vmem:[%s3] sm:$0xf]
  %v254 = vlaneseq
  %v255 = vshrl.u32 %v254, 7
  %v256 = vsub.s32 0, %v255
  %v257 = vrot.slane %v252, %v256
  %v258 = vlaneseq
  %v259 = vshrl.u32 %v258, 7
  %v260 = vsub.s32 1, %v259
  %v261 = vrot.slane %v252, %v260
  %v262 = vlaneseq
  %v263 = vshrl.u32 %v262, 7
  %v264 = vsub.s32 2, %v263
  %v265 = vrot.slane %v252, %v264
  %v266 = vlaneseq
  %v267 = vshrl.u32 %v266, 7
  %v268 = vsub.s32 3, %v267
  %v269 = vrot.slane %v252, %v268
  %v298 = vunpack.c.l.b16 %v36
  %v299 = vunpack.c.h.b16 %v36
  %v300 = vunpack.c.l.b16 %v37
  %v301 = vunpack.c.h.b16 %v37
  %v302 = vunpack.c.l.b16 %v38
  %v303 = vunpack.c.h.b16 %v38
  %v304 = vunpack.c.l.b16 %v39
  %v305 = vunpack.c.h.b16 %v39
  %v306 = vunpack.c.l.b16 %v40
  %v307 = vunpack.c.h.b16 %v40
  %v308 = vunpack.c.l.b16 %v41
  %v309 = vunpack.c.h.b16 %v41
  %v310 = vunpack.c.l.b16 %v42
  %v311 = vunpack.c.h.b16 %v42
  %v312 = vunpack.c.l.b16 %v43
  %v313 = vunpack.c.h.b16 %v43
  %v314 = vunpack.c.l.b16 %v44
  %v315 = vunpack.c.h.b16 %v44
  %v316 = vunpack.c.l.b16 %v45
  %v317 = vunpack.c.h.b16 %v45
  %v318 = vunpack.c.l.b16 %v46
  %v319 = vunpack.c.h.b16 %v46
  %v320 = vunpack.c.l.b16 %v47
  %v321 = vunpack.c.h.b16 %v47
  %v322 = vunpack.c.l.b16 %v48
  %v323 = vunpack.c.h.b16 %v48
  %v324 = vunpack.c.l.b16 %v49
  %v325 = vunpack.c.h.b16 %v49
  %v326 = vunpack.c.l.b16 %v50
  %v327 = vunpack.c.h.b16 %v50
  %v328 = vunpack.c.l.b16 %v51
  %v329 = vunpack.c.h.b16 %v51
  %v330 = vunpack.c.l.b16 %v52
  %v331 = vunpack.c.h.b16 %v52
  %v332 = vunpack.c.l.b16 %v53
  %v333 = vunpack.c.h.b16 %v53
  %v334 = vunpack.c.l.b16 %v54
  %v335 = vunpack.c.h.b16 %v54
  %v336 = vunpack.c.l.b16 %v55
  %v337 = vunpack.c.h.b16 %v55
  %v338 = vunpack.c.l.b16 %v56
  %v339 = vunpack.c.h.b16 %v56
  %v340 = vunpack.c.l.b16 %v57
  %v341 = vunpack.c.h.b16 %v57
  %v342 = vunpack.c.l.b16 %v58
  %v343 = vunpack.c.h.b16 %v58
  %v344 = vunpack.c.l.b16 %v59
  %v345 = vunpack.c.h.b16 %v59
  %v346 = vpack.c.b16 %v304, %v298
  %v347 = vpack.c.b16 %v305, %v299
  %v348 = vpack.c.b16 %v306, %v300
  %v349 = vpack.c.b16 %v307, %v301
  %v350 = vpack.c.b16 %v308, %v302
  %v351 = vpack.c.b16 %v309, %v303
  %v352 = vpack.c.b16 %v316, %v310
  %v353 = vpack.c.b16 %v317, %v311
  %v354 = vpack.c.b16 %v318, %v312
  %v355 = vpack.c.b16 %v319, %v313
  %v356 = vpack.c.b16 %v320, %v314
  %v357 = vpack.c.b16 %v321, %v315
  %v358 = vpack.c.b16 %v328, %v322
  %v359 = vpack.c.b16 %v329, %v323
  %v360 = vpack.c.b16 %v330, %v324
  %v361 = vpack.c.b16 %v331, %v325
  %v362 = vpack.c.b16 %v332, %v326
  %v363 = vpack.c.b16 %v333, %v327
  %v364 = vpack.c.b16 %v340, %v334
  %v365 = vpack.c.b16 %v341, %v335
  %v366 = vpack.c.b16 %v342, %v336
  %v367 = vpack.c.b16 %v343, %v337
  %v368 = vpack.c.b16 %v344, %v338
  %v369 = vpack.c.b16 %v345, %v339
  %v586 = vunpack.c.l.b16 %v60
  %v587 = vunpack.c.h.b16 %v60
  %v588 = vunpack.c.l.b16 %v61
  %v589 = vunpack.c.h.b16 %v61
  %v590 = vunpack.c.l.b16 %v62
  %v591 = vunpack.c.h.b16 %v62
  %v592 = vunpack.c.l.b16 %v63
  %v593 = vunpack.c.h.b16 %v63
  %v594 = vunpack.c.l.b16 %v64
  %v595 = vunpack.c.h.b16 %v64
  %v596 = vunpack.c.l.b16 %v65
  %v597 = vunpack.c.h.b16 %v65
  %v598 = vunpack.c.l.b16 %v66
  %v599 = vunpack.c.h.b16 %v66
  %v600 = vunpack.c.l.b16 %v67
  %v601 = vunpack.c.h.b16 %v67
  %v602 = vunpack.c.l.b16 %v68
  %v603 = vunpack.c.h.b16 %v68
  %v604 = vunpack.c.l.b16 %v69
  %v605 = vunpack.c.h.b16 %v69
  %v606 = vunpack.c.l.b16 %v70
  %v607 = vunpack.c.h.b16 %v70
  %v608 = vunpack.c.l.b16 %v71
  %v609 = vunpack.c.h.b16 %v71
  %v610 = vunpack.c.l.b16 %v72
  %v611 = vunpack.c.h.b16 %v72
  %v612 = vunpack.c.l.b16 %v73
  %v613 = vunpack.c.h.b16 %v73
  %v614 = vunpack.c.l.b16 %v74
  %v615 = vunpack.c.h.b16 %v74
  %v616 = vunpack.c.l.b16 %v75
  %v617 = vunpack.c.h.b16 %v75
  %v618 = vunpack.c.l.b16 %v76
  %v619 = vunpack.c.h.b16 %v76
  %v620 = vunpack.c.l.b16 %v77
  %v621 = vunpack.c.h.b16 %v77
  %v622 = vunpack.c.l.b16 %v78
  %v623 = vunpack.c.h.b16 %v78
  %v624 = vunpack.c.l.b16 %v79
  %v625 = vunpack.c.h.b16 %v79
  %v626 = vunpack.c.l.b16 %v80
  %v627 = vunpack.c.h.b16 %v80
  %v628 = vunpack.c.l.b16 %v81
  %v629 = vunpack.c.h.b16 %v81
  %v630 = vunpack.c.l.b16 %v82
  %v631 = vunpack.c.h.b16 %v82
  %v632 = vunpack.c.l.b16 %v83
  %v633 = vunpack.c.h.b16 %v83
  %v634 = vunpack.c.l.b16 %v84
  %v635 = vunpack.c.h.b16 %v84
  %v636 = vunpack.c.l.b16 %v85
  %v637 = vunpack.c.h.b16 %v85
  %v638 = vunpack.c.l.b16 %v86
  %v639 = vunpack.c.h.b16 %v86
  %v640 = vunpack.c.l.b16 %v87
  %v641 = vunpack.c.h.b16 %v87
  %v642 = vunpack.c.l.b16 %v88
  %v643 = vunpack.c.h.b16 %v88
  %v644 = vunpack.c.l.b16 %v89
  %v645 = vunpack.c.h.b16 %v89
  %v646 = vunpack.c.l.b16 %v90
  %v647 = vunpack.c.h.b16 %v90
  %v648 = vunpack.c.l.b16 %v91
  %v649 = vunpack.c.h.b16 %v91
  %v650 = vunpack.c.l.b16 %v92
  %v651 = vunpack.c.h.b16 %v92
  %v652 = vunpack.c.l.b16 %v93
  %v653 = vunpack.c.h.b16 %v93
  %v654 = vunpack.c.l.b16 %v94
  %v655 = vunpack.c.h.b16 %v94
  %v656 = vunpack.c.l.b16 %v95
  %v657 = vunpack.c.h.b16 %v95
  %v658 = vunpack.c.l.b16 %v96
  %v659 = vunpack.c.h.b16 %v96
  %v660 = vunpack.c.l.b16 %v97
  %v661 = vunpack.c.h.b16 %v97
  %v662 = vunpack.c.l.b16 %v98
  %v663 = vunpack.c.h.b16 %v98
  %v664 = vunpack.c.l.b16 %v99
  %v665 = vunpack.c.h.b16 %v99
  %v666 = vunpack.c.l.b16 %v100
  %v667 = vunpack.c.h.b16 %v100
  %v668 = vunpack.c.l.b16 %v101
  %v669 = vunpack.c.h.b16 %v101
  %v670 = vunpack.c.l.b16 %v102
  %v671 = vunpack.c.h.b16 %v102
  %v672 = vunpack.c.l.b16 %v103
  %v673 = vunpack.c.h.b16 %v103
  %v674 = vunpack.c.l.b16 %v104
  %v675 = vunpack.c.h.b16 %v104
  %v676 = vunpack.c.l.b16 %v105
  %v677 = vunpack.c.h.b16 %v105
  %v678 = vunpack.c.l.b16 %v106
  %v679 = vunpack.c.h.b16 %v106
  %v680 = vunpack.c.l.b16 %v107
  %v681 = vunpack.c.h.b16 %v107
  %v682 = vunpack.c.l.b16 %v108
  %v683 = vunpack.c.h.b16 %v108
  %v684 = vunpack.c.l.b16 %v109
  %v685 = vunpack.c.h.b16 %v109
  %v686 = vunpack.c.l.b16 %v110
  %v687 = vunpack.c.h.b16 %v110
  %v688 = vunpack.c.l.b16 %v111
  %v689 = vunpack.c.h.b16 %v111
  %v690 = vunpack.c.l.b16 %v112
  %v691 = vunpack.c.h.b16 %v112
  %v692 = vunpack.c.l.b16 %v113
  %v693 = vunpack.c.h.b16 %v113
  %v694 = vunpack.c.l.b16 %v114
  %v695 = vunpack.c.h.b16 %v114
  %v696 = vunpack.c.l.b16 %v115
  %v697 = vunpack.c.h.b16 %v115
  %v698 = vunpack.c.l.b16 %v116
  %v699 = vunpack.c.h.b16 %v116
  %v700 = vunpack.c.l.b16 %v117
  %v701 = vunpack.c.h.b16 %v117
  %v702 = vunpack.c.l.b16 %v118
  %v703 = vunpack.c.h.b16 %v118
  %v704 = vunpack.c.l.b16 %v119
  %v705 = vunpack.c.h.b16 %v119
  %v706 = vunpack.c.l.b16 %v120
  %v707 = vunpack.c.h.b16 %v120
  %v708 = vunpack.c.l.b16 %v121
  %v709 = vunpack.c.h.b16 %v121
  %v710 = vunpack.c.l.b16 %v122
  %v711 = vunpack.c.h.b16 %v122
  %v712 = vunpack.c.l.b16 %v123
  %v713 = vunpack.c.h.b16 %v123
  %v714 = vunpack.c.l.b16 %v124
  %v715 = vunpack.c.h.b16 %v124
  %v716 = vunpack.c.l.b16 %v125
  %v717 = vunpack.c.h.b16 %v125
  %v718 = vunpack.c.l.b16 %v126
  %v719 = vunpack.c.h.b16 %v126
  %v720 = vunpack.c.l.b16 %v127
  %v721 = vunpack.c.h.b16 %v127
  %v722 = vunpack.c.l.b16 %v128
  %v723 = vunpack.c.h.b16 %v128
  %v724 = vunpack.c.l.b16 %v129
  %v725 = vunpack.c.h.b16 %v129
  %v726 = vunpack.c.l.b16 %v130
  %v727 = vunpack.c.h.b16 %v130
  %v728 = vunpack.c.l.b16 %v131
  %v729 = vunpack.c.h.b16 %v131
  %v730 = vunpack.c.l.b16 %v132
  %v731 = vunpack.c.h.b16 %v132
  %v732 = vunpack.c.l.b16 %v133
  %v733 = vunpack.c.h.b16 %v133
  %v734 = vunpack.c.l.b16 %v134
  %v735 = vunpack.c.h.b16 %v134
  %v736 = vunpack.c.l.b16 %v135
  %v737 = vunpack.c.h.b16 %v135
  %v738 = vunpack.c.l.b16 %v136
  %v739 = vunpack.c.h.b16 %v136
  %v740 = vunpack.c.l.b16 %v137
  %v741 = vunpack.c.h.b16 %v137
  %v742 = vunpack.c.l.b16 %v138
  %v743 = vunpack.c.h.b16 %v138
  %v744 = vunpack.c.l.b16 %v139
  %v745 = vunpack.c.h.b16 %v139
  %v746 = vunpack.c.l.b16 %v140
  %v747 = vunpack.c.h.b16 %v140
  %v748 = vunpack.c.l.b16 %v141
  %v749 = vunpack.c.h.b16 %v141
  %v750 = vunpack.c.l.b16 %v142
  %v751 = vunpack.c.h.b16 %v142
  %v752 = vunpack.c.l.b16 %v143
  %v753 = vunpack.c.h.b16 %v143
  %v754 = vunpack.c.l.b16 %v144
  %v755 = vunpack.c.h.b16 %v144
  %v756 = vunpack.c.l.b16 %v145
  %v757 = vunpack.c.h.b16 %v145
  %v758 = vunpack.c.l.b16 %v146
  %v759 = vunpack.c.h.b16 %v146
  %v760 = vunpack.c.l.b16 %v147
  %v761 = vunpack.c.h.b16 %v147
  %v762 = vunpack.c.l.b16 %v148
  %v763 = vunpack.c.h.b16 %v148
  %v764 = vunpack.c.l.b16 %v149
  %v765 = vunpack.c.h.b16 %v149
  %v766 = vunpack.c.l.b16 %v150
  %v767 = vunpack.c.h.b16 %v150
  %v768 = vunpack.c.l.b16 %v151
  %v769 = vunpack.c.h.b16 %v151
  %v770 = vunpack.c.l.b16 %v152
  %v771 = vunpack.c.h.b16 %v152
  %v772 = vunpack.c.l.b16 %v153
  %v773 = vunpack.c.h.b16 %v153
  %v774 = vunpack.c.l.b16 %v154
  %v775 = vunpack.c.h.b16 %v154
  %v776 = vunpack.c.l.b16 %v155
  %v777 = vunpack.c.h.b16 %v155
  %v778 = vunpack.c.l.b16 %v156
  %v779 = vunpack.c.h.b16 %v156
  %v780 = vunpack.c.l.b16 %v157
  %v781 = vunpack.c.h.b16 %v157
  %v782 = vunpack.c.l.b16 %v158
  %v783 = vunpack.c.h.b16 %v158
  %v784 = vunpack.c.l.b16 %v159
  %v785 = vunpack.c.h.b16 %v159
  %v786 = vunpack.c.l.b16 %v160
  %v787 = vunpack.c.h.b16 %v160
  %v788 = vunpack.c.l.b16 %v161
  %v789 = vunpack.c.h.b16 %v161
  %v790 = vunpack.c.l.b16 %v162
  %v791 = vunpack.c.h.b16 %v162
  %v792 = vunpack.c.l.b16 %v163
  %v793 = vunpack.c.h.b16 %v163
  %v794 = vunpack.c.l.b16 %v164
  %v795 = vunpack.c.h.b16 %v164
  %v796 = vunpack.c.l.b16 %v165
  %v797 = vunpack.c.h.b16 %v165
  %v798 = vunpack.c.l.b16 %v166
  %v799 = vunpack.c.h.b16 %v166
  %v800 = vunpack.c.l.b16 %v167
  %v801 = vunpack.c.h.b16 %v167
  %v802 = vunpack.c.l.b16 %v168
  %v803 = vunpack.c.h.b16 %v168
  %v804 = vunpack.c.l.b16 %v169
  %v805 = vunpack.c.h.b16 %v169
  %v806 = vunpack.c.l.b16 %v170
  %v807 = vunpack.c.h.b16 %v170
  %v808 = vunpack.c.l.b16 %v171
  %v809 = vunpack.c.h.b16 %v171
  %v810 = vunpack.c.l.b16 %v172
  %v811 = vunpack.c.h.b16 %v172
  %v812 = vunpack.c.l.b16 %v173
  %v813 = vunpack.c.h.b16 %v173
  %v814 = vunpack.c.l.b16 %v174
  %v815 = vunpack.c.h.b16 %v174
  %v816 = vunpack.c.l.b16 %v175
  %v817 = vunpack.c.h.b16 %v175
  %v818 = vunpack.c.l.b16 %v176
  %v819 = vunpack.c.h.b16 %v176
  %v820 = vunpack.c.l.b16 %v177
  %v821 = vunpack.c.h.b16 %v177
  %v822 = vunpack.c.l.b16 %v178
  %v823 = vunpack.c.h.b16 %v178
  %v824 = vunpack.c.l.b16 %v179
  %v825 = vunpack.c.h.b16 %v179
  %v826 = vunpack.c.l.b16 %v180
  %v827 = vunpack.c.h.b16 %v180
  %v828 = vunpack.c.l.b16 %v181
  %v829 = vunpack.c.h.b16 %v181
  %v830 = vunpack.c.l.b16 %v182
  %v831 = vunpack.c.h.b16 %v182
  %v832 = vunpack.c.l.b16 %v183
  %v833 = vunpack.c.h.b16 %v183
  %v834 = vunpack.c.l.b16 %v184
  %v835 = vunpack.c.h.b16 %v184
  %v836 = vunpack.c.l.b16 %v185
  %v837 = vunpack.c.h.b16 %v185
  %v838 = vunpack.c.l.b16 %v186
  %v839 = vunpack.c.h.b16 %v186
  %v840 = vunpack.c.l.b16 %v187
  %v841 = vunpack.c.h.b16 %v187
  %v842 = vunpack.c.l.b16 %v188
  %v843 = vunpack.c.h.b16 %v188
  %v844 = vunpack.c.l.b16 %v189
  %v845 = vunpack.c.h.b16 %v189
  %v846 = vunpack.c.l.b16 %v190
  %v847 = vunpack.c.h.b16 %v190
  %v848 = vunpack.c.l.b16 %v191
  %v849 = vunpack.c.h.b16 %v191
  %v850 = vunpack.c.l.b16 %v192
  %v851 = vunpack.c.h.b16 %v192
  %v852 = vunpack.c.l.b16 %v193
  %v853 = vunpack.c.h.b16 %v193
  %v854 = vunpack.c.l.b16 %v194
  %v855 = vunpack.c.h.b16 %v194
  %v856 = vunpack.c.l.b16 %v195
  %v857 = vunpack.c.h.b16 %v195
  %v858 = vunpack.c.l.b16 %v196
  %v859 = vunpack.c.h.b16 %v196
  %v860 = vunpack.c.l.b16 %v197
  %v861 = vunpack.c.h.b16 %v197
  %v862 = vunpack.c.l.b16 %v198
  %v863 = vunpack.c.h.b16 %v198
  %v864 = vunpack.c.l.b16 %v199
  %v865 = vunpack.c.h.b16 %v199
  %v866 = vunpack.c.l.b16 %v200
  %v867 = vunpack.c.h.b16 %v200
  %v868 = vunpack.c.l.b16 %v201
  %v869 = vunpack.c.h.b16 %v201
  %v870 = vunpack.c.l.b16 %v202
  %v871 = vunpack.c.h.b16 %v202
  %v872 = vunpack.c.l.b16 %v203
  %v873 = vunpack.c.h.b16 %v203
  %v874 = vunpack.c.l.b16 %v204
  %v875 = vunpack.c.h.b16 %v204
  %v876 = vunpack.c.l.b16 %v205
  %v877 = vunpack.c.h.b16 %v205
  %v878 = vunpack.c.l.b16 %v206
  %v879 = vunpack.c.h.b16 %v206
  %v880 = vunpack.c.l.b16 %v207
  %v881 = vunpack.c.h.b16 %v207
  %v882 = vunpack.c.l.b16 %v208
  %v883 = vunpack.c.h.b16 %v208
  %v884 = vunpack.c.l.b16 %v209
  %v885 = vunpack.c.h.b16 %v209
  %v886 = vunpack.c.l.b16 %v210
  %v887 = vunpack.c.h.b16 %v210
  %v888 = vunpack.c.l.b16 %v211
  %v889 = vunpack.c.h.b16 %v211
  %v890 = vunpack.c.l.b16 %v212
  %v891 = vunpack.c.h.b16 %v212
  %v892 = vunpack.c.l.b16 %v213
  %v893 = vunpack.c.h.b16 %v213
  %v894 = vunpack.c.l.b16 %v214
  %v895 = vunpack.c.h.b16 %v214
  %v896 = vunpack.c.l.b16 %v215
  %v897 = vunpack.c.h.b16 %v215
  %v898 = vunpack.c.l.b16 %v216
  %v899 = vunpack.c.h.b16 %v216
  %v900 = vunpack.c.l.b16 %v217
  %v901 = vunpack.c.h.b16 %v217
  %v902 = vunpack.c.l.b16 %v218
  %v903 = vunpack.c.h.b16 %v218
  %v904 = vunpack.c.l.b16 %v219
  %v905 = vunpack.c.h.b16 %v219
  %v906 = vunpack.c.l.b16 %v220
  %v907 = vunpack.c.h.b16 %v220
  %v908 = vunpack.c.l.b16 %v221
  %v909 = vunpack.c.h.b16 %v221
  %v910 = vunpack.c.l.b16 %v222
  %v911 = vunpack.c.h.b16 %v222
  %v912 = vunpack.c.l.b16 %v223
  %v913 = vunpack.c.h.b16 %v223
  %v914 = vunpack.c.l.b16 %v224
  %v915 = vunpack.c.h.b16 %v224
  %v916 = vunpack.c.l.b16 %v225
  %v917 = vunpack.c.h.b16 %v225
  %v918 = vunpack.c.l.b16 %v226
  %v919 = vunpack.c.h.b16 %v226
  %v920 = vunpack.c.l.b16 %v227
  %v921 = vunpack.c.h.b16 %v227
  %v922 = vunpack.c.l.b16 %v228
  %v923 = vunpack.c.h.b16 %v228
  %v924 = vunpack.c.l.b16 %v229
  %v925 = vunpack.c.h.b16 %v229
  %v926 = vunpack.c.l.b16 %v230
  %v927 = vunpack.c.h.b16 %v230
  %v928 = vunpack.c.l.b16 %v231
  %v929 = vunpack.c.h.b16 %v231
  %v930 = vunpack.c.l.b16 %v232
  %v931 = vunpack.c.h.b16 %v232
  %v932 = vunpack.c.l.b16 %v233
  %v933 = vunpack.c.h.b16 %v233
  %v934 = vunpack.c.l.b16 %v234
  %v935 = vunpack.c.h.b16 %v234
  %v936 = vunpack.c.l.b16 %v235
  %v937 = vunpack.c.h.b16 %v235
  %v938 = vunpack.c.l.b16 %v236
  %v939 = vunpack.c.h.b16 %v236
  %v940 = vunpack.c.l.b16 %v237
  %v941 = vunpack.c.h.b16 %v237
  %v942 = vunpack.c.l.b16 %v238
  %v943 = vunpack.c.h.b16 %v238
  %v944 = vunpack.c.l.b16 %v239
  %v945 = vunpack.c.h.b16 %v239
  %v946 = vunpack.c.l.b16 %v240
  %v947 = vunpack.c.h.b16 %v240
  %v948 = vunpack.c.l.b16 %v241
  %v949 = vunpack.c.h.b16 %v241
  %v950 = vunpack.c.l.b16 %v242
  %v951 = vunpack.c.h.b16 %v242
  %v952 = vunpack.c.l.b16 %v243
  %v953 = vunpack.c.h.b16 %v243
  %v954 = vunpack.c.l.b16 %v244
  %v955 = vunpack.c.h.b16 %v244
  %v956 = vunpack.c.l.b16 %v245
  %v957 = vunpack.c.h.b16 %v245
  %v958 = vunpack.c.l.b16 %v246
  %v959 = vunpack.c.h.b16 %v246
  %v960 = vunpack.c.l.b16 %v247
  %v961 = vunpack.c.h.b16 %v247
  %v962 = vunpack.c.l.b16 %v248
  %v963 = vunpack.c.h.b16 %v248
  %v964 = vunpack.c.l.b16 %v249
  %v965 = vunpack.c.h.b16 %v249
  %v966 = vunpack.c.l.b16 %v250
  %v967 = vunpack.c.h.b16 %v250
  %v968 = vunpack.c.l.b16 %v251
  %v969 = vunpack.c.h.b16 %v251
  %v970 = vpack.c.b16 %v590, %v586
  %v971 = vpack.c.b16 %v591, %v587
  %v972 = vpack.c.b16 %v592, %v588
  %v973 = vpack.c.b16 %v593, %v589
  %v974 = vpack.c.b16 %v598, %v594
  %v975 = vpack.c.b16 %v599, %v595
  %v976 = vpack.c.b16 %v600, %v596
  %v977 = vpack.c.b16 %v601, %v597
  %v978 = vpack.c.b16 %v606, %v602
  %v979 = vpack.c.b16 %v607, %v603
  %v980 = vpack.c.b16 %v608, %v604
  %v981 = vpack.c.b16 %v609, %v605
  %v982 = vpack.c.b16 %v614, %v610
  %v983 = vpack.c.b16 %v615, %v611
  %v984 = vpack.c.b16 %v616, %v612
  %v985 = vpack.c.b16 %v617, %v613
  %v986 = vpack.c.b16 %v622, %v618
  %v987 = vpack.c.b16 %v623, %v619
  %v988 = vpack.c.b16 %v624, %v620
  %v989 = vpack.c.b16 %v625, %v621
  %v990 = vpack.c.b16 %v630, %v626
  %v991 = vpack.c.b16 %v631, %v627
  %v992 = vpack.c.b16 %v632, %v628
  %v993 = vpack.c.b16 %v633, %v629
  %v994 = vpack.c.b16 %v638, %v634
  %v995 = vpack.c.b16 %v639, %v635
  %v996 = vpack.c.b16 %v640, %v636
  %v997 = vpack.c.b16 %v641, %v637
  %v998 = vpack.c.b16 %v646, %v642
  %v999 = vpack.c.b16 %v647, %v643
  %v1000 = vpack.c.b16 %v648, %v644
  %v1001 = vpack.c.b16 %v649, %v645
  %v1002 = vpack.c.b16 %v654, %v650
  %v1003 = vpack.c.b16 %v655, %v651
  %v1004 = vpack.c.b16 %v656, %v652
  %v1005 = vpack.c.b16 %v657, %v653
  %v1006 = vpack.c.b16 %v662, %v658
  %v1007 = vpack.c.b16 %v663, %v659
  %v1008 = vpack.c.b16 %v664, %v660
  %v1009 = vpack.c.b16 %v665, %v661
  %v1010 = vpack.c.b16 %v670, %v666
  %v1011 = vpack.c.b16 %v671, %v667
  %v1012 = vpack.c.b16 %v672, %v668
  %v1013 = vpack.c.b16 %v673, %v669
  %v1014 = vpack.c.b16 %v678, %v674
  %v1015 = vpack.c.b16 %v679, %v675
  %v1016 = vpack.c.b16 %v680, %v676
  %v1017 = vpack.c.b16 %v681, %v677
  %v1018 = vpack.c.b16 %v686, %v682
  %v1019 = vpack.c.b16 %v687, %v683
  %v1020 = vpack.c.b16 %v688, %v684
  %v1021 = vpack.c.b16 %v689, %v685
  %v1022 = vpack.c.b16 %v694, %v690
  %v1023 = vpack.c.b16 %v695, %v691
  %v1024 = vpack.c.b16 %v696, %v692
  %v1025 = vpack.c.b16 %v697, %v693
  %v1026 = vpack.c.b16 %v702, %v698
  %v1027 = vpack.c.b16 %v703, %v699
  %v1028 = vpack.c.b16 %v704, %v700
  %v1029 = vpack.c.b16 %v705, %v701
  %v1030 = vpack.c.b16 %v710, %v706
  %v1031 = vpack.c.b16 %v711, %v707
  %v1032 = vpack.c.b16 %v712, %v708
  %v1033 = vpack.c.b16 %v713, %v709
  %v1034 = vpack.c.b16 %v718, %v714
  %v1035 = vpack.c.b16 %v719, %v715
  %v1036 = vpack.c.b16 %v720, %v716
  %v1037 = vpack.c.b16 %v721, %v717
  %v1038 = vpack.c.b16 %v726, %v722
  %v1039 = vpack.c.b16 %v727, %v723
  %v1040 = vpack.c.b16 %v728, %v724
  %v1041 = vpack.c.b16 %v729, %v725
  %v1042 = vpack.c.b16 %v734, %v730
  %v1043 = vpack.c.b16 %v735, %v731
  %v1044 = vpack.c.b16 %v736, %v732
  %v1045 = vpack.c.b16 %v737, %v733
  %v1046 = vpack.c.b16 %v742, %v738
  %v1047 = vpack.c.b16 %v743, %v739
  %v1048 = vpack.c.b16 %v744, %v740
  %v1049 = vpack.c.b16 %v745, %v741
  %v1050 = vpack.c.b16 %v750, %v746
  %v1051 = vpack.c.b16 %v751, %v747
  %v1052 = vpack.c.b16 %v752, %v748
  %v1053 = vpack.c.b16 %v753, %v749
  %v1054 = vpack.c.b16 %v758, %v754
  %v1055 = vpack.c.b16 %v759, %v755
  %v1056 = vpack.c.b16 %v760, %v756
  %v1057 = vpack.c.b16 %v761, %v757
  %v1058 = vpack.c.b16 %v766, %v762
  %v1059 = vpack.c.b16 %v767, %v763
  %v1060 = vpack.c.b16 %v768, %v764
  %v1061 = vpack.c.b16 %v769, %v765
  %v1062 = vpack.c.b16 %v774, %v770
  %v1063 = vpack.c.b16 %v775, %v771
  %v1064 = vpack.c.b16 %v776, %v772
  %v1065 = vpack.c.b16 %v777, %v773
  %v1066 = vpack.c.b16 %v782, %v778
  %v1067 = vpack.c.b16 %v783, %v779
  %v1068 = vpack.c.b16 %v784, %v780
  %v1069 = vpack.c.b16 %v785, %v781
  %v1070 = vpack.c.b16 %v790, %v786
  %v1071 = vpack.c.b16 %v791, %v787
  %v1072 = vpack.c.b16 %v792, %v788
  %v1073 = vpack.c.b16 %v793, %v789
  %v1074 = vpack.c.b16 %v798, %v794
  %v1075 = vpack.c.b16 %v799, %v795
  %v1076 = vpack.c.b16 %v800, %v796
  %v1077 = vpack.c.b16 %v801, %v797
  %v1078 = vpack.c.b16 %v806, %v802
  %v1079 = vpack.c.b16 %v807, %v803
  %v1080 = vpack.c.b16 %v808, %v804
  %v1081 = vpack.c.b16 %v809, %v805
  %v1082 = vpack.c.b16 %v814, %v810
  %v1083 = vpack.c.b16 %v815, %v811
  %v1084 = vpack.c.b16 %v816, %v812
  %v1085 = vpack.c.b16 %v817, %v813
  %v1086 = vpack.c.b16 %v822, %v818
  %v1087 = vpack.c.b16 %v823, %v819
  %v1088 = vpack.c.b16 %v824, %v820
  %v1089 = vpack.c.b16 %v825, %v821
  %v1090 = vpack.c.b16 %v830, %v826
  %v1091 = vpack.c.b16 %v831, %v827
  %v1092 = vpack.c.b16 %v832, %v828
  %v1093 = vpack.c.b16 %v833, %v829
  %v1094 = vpack.c.b16 %v838, %v834
  %v1095 = vpack.c.b16 %v839, %v835
  %v1096 = vpack.c.b16 %v840, %v836
  %v1097 = vpack.c.b16 %v841, %v837
  %v1098 = vpack.c.b16 %v846, %v842
  %v1099 = vpack.c.b16 %v847, %v843
  %v1100 = vpack.c.b16 %v848, %v844
  %v1101 = vpack.c.b16 %v849, %v845
  %v1102 = vpack.c.b16 %v854, %v850
  %v1103 = vpack.c.b16 %v855, %v851
  %v1104 = vpack.c.b16 %v856, %v852
  %v1105 = vpack.c.b16 %v857, %v853
  %v1106 = vpack.c.b16 %v862, %v858
  %v1107 = vpack.c.b16 %v863, %v859
  %v1108 = vpack.c.b16 %v864, %v860
  %v1109 = vpack.c.b16 %v865, %v861
  %v1110 = vpack.c.b16 %v870, %v866
  %v1111 = vpack.c.b16 %v871, %v867
  %v1112 = vpack.c.b16 %v872, %v868
  %v1113 = vpack.c.b16 %v873, %v869
  %v1114 = vpack.c.b16 %v878, %v874
  %v1115 = vpack.c.b16 %v879, %v875
  %v1116 = vpack.c.b16 %v880, %v876
  %v1117 = vpack.c.b16 %v881, %v877
  %v1118 = vpack.c.b16 %v886, %v882
  %v1119 = vpack.c.b16 %v887, %v883
  %v1120 = vpack.c.b16 %v888, %v884
  %v1121 = vpack.c.b16 %v889, %v885
  %v1122 = vpack.c.b16 %v894, %v890
  %v1123 = vpack.c.b16 %v895, %v891
  %v1124 = vpack.c.b16 %v896, %v892
  %v1125 = vpack.c.b16 %v897, %v893
  %v1126 = vpack.c.b16 %v902, %v898
  %v1127 = vpack.c.b16 %v903, %v899
  %v1128 = vpack.c.b16 %v904, %v900
  %v1129 = vpack.c.b16 %v905, %v901
  %v1130 = vpack.c.b16 %v910, %v906
  %v1131 = vpack.c.b16 %v911, %v907
  %v1132 = vpack.c.b16 %v912, %v908
  %v1133 = vpack.c.b16 %v913, %v909
  %v1134 = vpack.c.b16 %v918, %v914
  %v1135 = vpack.c.b16 %v919, %v915
  %v1136 = vpack.c.b16 %v920, %v916
  %v1137 = vpack.c.b16 %v921, %v917
  %v1138 = vpack.c.b16 %v926, %v922
  %v1139 = vpack.c.b16 %v927, %v923
  %v1140 = vpack.c.b16 %v928, %v924
  %v1141 = vpack.c.b16 %v929, %v925
  %v1142 = vpack.c.b16 %v934, %v930
  %v1143 = vpack.c.b16 %v935, %v931
  %v1144 = vpack.c.b16 %v936, %v932
  %v1145 = vpack.c.b16 %v937, %v933
  %v1146 = vpack.c.b16 %v942, %v938
  %v1147 = vpack.c.b16 %v943, %v939
  %v1148 = vpack.c.b16 %v944, %v940
  %v1149 = vpack.c.b16 %v945, %v941
  %v1150 = vpack.c.b16 %v950, %v946
  %v1151 = vpack.c.b16 %v951, %v947
  %v1152 = vpack.c.b16 %v952, %v948
  %v1153 = vpack.c.b16 %v953, %v949
  %v1154 = vpack.c.b16 %v958, %v954
  %v1155 = vpack.c.b16 %v959, %v955
  %v1156 = vpack.c.b16 %v960, %v956
  %v1157 = vpack.c.b16 %v961, %v957
  %v1158 = vpack.c.b16 %v966, %v962
  %v1159 = vpack.c.b16 %v967, %v963
  %v1160 = vpack.c.b16 %v968, %v964
  %v1161 = vpack.c.b16 %v969, %v965
  %1354 = vmatprep.subr.bf16.mxu0 %v971
  %1355 = vmatpush1.bf16.msra.mxu0 %v970
  %1356 = vmatprep.subr.bf16.mxu0 %v975
  %1357 = vmatpush1.bf16.msra.mxu0 %v974
  %1358 = vmatprep.subr.bf16.mxu0 %v979
  %1359 = vmatpush1.bf16.msra.mxu0 %v978
  %1360 = vmatprep.subr.bf16.mxu0 %v983
  %1361 = vmatpush1.bf16.msra.mxu0 %v982
  %1362 = vmatprep.subr.bf16.mxu0 %v987
  %1363 = vmatpush1.bf16.msra.mxu0 %v986
  %1364 = vmatprep.subr.bf16.mxu0 %v991
  %1365 = vmatpush1.bf16.msra.mxu0 %v990
  %1366 = vmatprep.subr.bf16.mxu0 %v995
  %1367 = vmatpush1.bf16.msra.mxu0 %v994
  %1368 = vmatprep.subr.bf16.mxu0 %v999
  %1369 = vmatpush1.bf16.msra.mxu0 %v998
  %1370 = vmatprep.subr.bf16.mxu0 %v1003
  %1371 = vmatpush1.bf16.msra.mxu0 %v1002
  %1372 = vmatprep.subr.bf16.mxu0 %v1007
  %1373 = vmatpush1.bf16.msra.mxu0 %v1006
  %1374 = vmatprep.subr.bf16.mxu0 %v1011
  %1375 = vmatpush1.bf16.msra.mxu0 %v1010
  %1376 = vmatprep.subr.bf16.mxu0 %v1015
  %1377 = vmatpush1.bf16.msra.mxu0 %v1014
  %1378 = vmatprep.subr.bf16.mxu0 %v1019
  %1379 = vmatpush1.bf16.msra.mxu0 %v1018
  %1380 = vmatprep.subr.bf16.mxu0 %v1023
  %1381 = vmatpush1.bf16.msra.mxu0 %v1022
  %1382 = vmatprep.subr.bf16.mxu0 %v1027
  %1383 = vmatpush1.bf16.msra.mxu0 %v1026
  %1384 = vmatprep.subr.bf16.mxu0 %v1031
  %1385 = vmatpush1.bf16.msra.mxu0 %v1030
  %1386 = vmatprep.mubr.bf16.mxu0 %v347
  %1387 = vmatmul.mubr.bf16.gmra.mrb[0].mxu0 %v346
  %v1388 = vpop.f32.mrb[0].mxu0
  %v1389 = vadd.f32 %v257, %v1388
  %v1390 = vpop.f32.mrb[0].mxu0
  %v1391 = vadd.f32 %v261, %v1390
  %v1392 = vpop.f32.mrb[0].mxu0
  %v1393 = vadd.f32 %v257, %v1392
  %v1394 = vpop.f32.mrb[0].mxu0
  %v1395 = vadd.f32 %v261, %v1394
  %1396 = vmatprep.mubr.bf16.mxu0 %v353
  %1397 = vmatmul.mubr.bf16.gmra.mrb[0].mxu0 %v352
  %v1398 = vpop.f32.mrb[0].mxu0
  %v1399 = vadd.f32 %v257, %v1398
  %v1400 = vpop.f32.mrb[0].mxu0
  %v1401 = vadd.f32 %v261, %v1400
  %v1402 = vpop.f32.mrb[0].mxu0
  %v1403 = vadd.f32 %v257, %v1402
  %v1404 = vpop.f32.mrb[0].mxu0
  %v1405 = vadd.f32 %v261, %v1404
  %1406 = vmatprep.mubr.bf16.mxu0 %v359
  %1407 = vmatmul.mubr.bf16.gmra.mrb[0].mxu0 %v358
  %v1408 = vpop.f32.mrb[0].mxu0
  %v1409 = vadd.f32 %v257, %v1408
  %v1410 = vpop.f32.mrb[0].mxu0
  %v1411 = vadd.f32 %v261, %v1410
  %v1412 = vpop.f32.mrb[0].mxu0
  %v1413 = vadd.f32 %v257, %v1412
  %v1414 = vpop.f32.mrb[0].mxu0
  %v1415 = vadd.f32 %v261, %v1414
  %1416 = vmatprep.mubr.bf16.mxu0 %v365
  %1417 = vmatmul.mubr.bf16.gmra.mrb[0].mxu0 %v364
  %v1418 = vpop.f32.mrb[0].mxu0
  %v1419 = vadd.f32 %v257, %v1418
  %v1420 = vpop.f32.mrb[0].mxu0
  %v1421 = vadd.f32 %v261, %v1420
  %v1422 = vpop.f32.mrb[0].mxu0
  %v1423 = vadd.f32 %v257, %v1422
  %v1424 = vpop.f32.mrb[0].mxu0
  %v1425 = vadd.f32 %v261, %v1424
  %1426 = vdwg.mxu0
  %1427 = vmatprep.subr.bf16.mxu0 %v1035
  %1428 = vmatpush1.bf16.msra.mxu0 %v1034
  %1429 = vmatprep.subr.bf16.mxu0 %v1039
  %1430 = vmatpush1.bf16.msra.mxu0 %v1038
  %1431 = vmatprep.subr.bf16.mxu0 %v1043
  %1432 = vmatpush1.bf16.msra.mxu0 %v1042
  %1433 = vmatprep.subr.bf16.mxu0 %v1047
  %1434 = vmatpush1.bf16.msra.mxu0 %v1046
  %1435 = vmatprep.subr.bf16.mxu0 %v1051
  %1436 = vmatpush1.bf16.msra.mxu0 %v1050
  %1437 = vmatprep.subr.bf16.mxu0 %v1055
  %1438 = vmatpush1.bf16.msra.mxu0 %v1054
  %1439 = vmatprep.subr.bf16.mxu0 %v1059
  %1440 = vmatpush1.bf16.msra.mxu0 %v1058
  %1441 = vmatprep.subr.bf16.mxu0 %v1063
  %1442 = vmatpush1.bf16.msra.mxu0 %v1062
  %1443 = vmatprep.subr.bf16.mxu0 %v1067
  %1444 = vmatpush1.bf16.msra.mxu0 %v1066
  %1445 = vmatprep.subr.bf16.mxu0 %v1071
  %1446 = vmatpush1.bf16.msra.mxu0 %v1070
  %1447 = vmatprep.subr.bf16.mxu0 %v1075
  %1448 = vmatpush1.bf16.msra.mxu0 %v1074
  %1449 = vmatprep.subr.bf16.mxu0 %v1079
  %1450 = vmatpush1.bf16.msra.mxu0 %v1078
  %1451 = vmatprep.subr.bf16.mxu0 %v1083
  %1452 = vmatpush1.bf16.msra.mxu0 %v1082
  %1453 = vmatprep.subr.bf16.mxu0 %v1087
  %1454 = vmatpush1.bf16.msra.mxu0 %v1086
  %1455 = vmatprep.subr.bf16.mxu0 %v1091
  %1456 = vmatpush1.bf16.msra.mxu0 %v1090
  %1457 = vmatprep.subr.bf16.mxu0 %v1095
  %1458 = vmatpush1.bf16.msra.mxu0 %v1094
  %1459 = vmatprep.mubr.bf16.mxu0 %v349
  %1460 = vmatmul.mubr.bf16.gmra.mrb[0].mxu0 %v348
  %v1461 = vpop.f32.mrb[0].mxu0
  %v1462 = vadd.f32 %v1389, %v1461
  %v1463 = vpop.f32.mrb[0].mxu0
  %v1464 = vadd.f32 %v1391, %v1463
  %v1465 = vpop.f32.mrb[0].mxu0
  %v1466 = vadd.f32 %v1393, %v1465
  %v1467 = vpop.f32.mrb[0].mxu0
  %v1468 = vadd.f32 %v1395, %v1467
  %1469 = vmatprep.mubr.bf16.mxu0 %v355
  %1470 = vmatmul.mubr.bf16.gmra.mrb[0].mxu0 %v354
  %v1471 = vpop.f32.mrb[0].mxu0
  %v1472 = vadd.f32 %v1399, %v1471
  %v1473 = vpop.f32.mrb[0].mxu0
  %v1474 = vadd.f32 %v1401, %v1473
  %v1475 = vpop.f32.mrb[0].mxu0
  %v1476 = vadd.f32 %v1403, %v1475
  %v1477 = vpop.f32.mrb[0].mxu0
  %v1478 = vadd.f32 %v1405, %v1477
  %1479 = vmatprep.mubr.bf16.mxu0 %v361
  %1480 = vmatmul.mubr.bf16.gmra.mrb[0].mxu0 %v360
  %v1481 = vpop.f32.mrb[0].mxu0
  %v1482 = vadd.f32 %v1409, %v1481
  %v1483 = vpop.f32.mrb[0].mxu0
  %v1484 = vadd.f32 %v1411, %v1483
  %v1485 = vpop.f32.mrb[0].mxu0
  %v1486 = vadd.f32 %v1413, %v1485
  %v1487 = vpop.f32.mrb[0].mxu0
  %v1488 = vadd.f32 %v1415, %v1487
  %1489 = vmatprep.mubr.bf16.mxu0 %v367
  %1490 = vmatmul.mubr.bf16.gmra.mrb[0].mxu0 %v366
  %v1491 = vpop.f32.mrb[0].mxu0
  %v1492 = vadd.f32 %v1419, %v1491
  %v1493 = vpop.f32.mrb[0].mxu0
  %v1494 = vadd.f32 %v1421, %v1493
  %v1495 = vpop.f32.mrb[0].mxu0
  %v1496 = vadd.f32 %v1423, %v1495
  %v1497 = vpop.f32.mrb[0].mxu0
  %v1498 = vadd.f32 %v1425, %v1497
  %1499 = vdwg.mxu0
  %1500 = vmatprep.subr.bf16.mxu0 %v1099
  %1501 = vmatpush1.bf16.msra.mxu0 %v1098
  %1502 = vmatprep.subr.bf16.mxu0 %v1103
  %1503 = vmatpush1.bf16.msra.mxu0 %v1102
  %1504 = vmatprep.subr.bf16.mxu0 %v1107
  %1505 = vmatpush1.bf16.msra.mxu0 %v1106
  %1506 = vmatprep.subr.bf16.mxu0 %v1111
  %1507 = vmatpush1.bf16.msra.mxu0 %v1110
  %1508 = vmatprep.subr.bf16.mxu0 %v1115
  %1509 = vmatpush1.bf16.msra.mxu0 %v1114
  %1510 = vmatprep.subr.bf16.mxu0 %v1119
  %1511 = vmatpush1.bf16.msra.mxu0 %v1118
  %1512 = vmatprep.subr.bf16.mxu0 %v1123
  %1513 = vmatpush1.bf16.msra.mxu0 %v1122
  %1514 = vmatprep.subr.bf16.mxu0 %v1127
  %1515 = vmatpush1.bf16.msra.mxu0 %v1126
  %1516 = vmatprep.subr.bf16.mxu0 %v1131
  %1517 = vmatpush1.bf16.msra.mxu0 %v1130
  %1518 = vmatprep.subr.bf16.mxu0 %v1135
  %1519 = vmatpush1.bf16.msra.mxu0 %v1134
  %1520 = vmatprep.subr.bf16.mxu0 %v1139
  %1521 = vmatpush1.bf16.msra.mxu0 %v1138
  %1522 = vmatprep.subr.bf16.mxu0 %v1143
  %1523 = vmatpush1.bf16.msra.mxu0 %v1142
  %1524 = vmatprep.subr.bf16.mxu0 %v1147
  %1525 = vmatpush1.bf16.msra.mxu0 %v1146
  %1526 = vmatprep.subr.bf16.mxu0 %v1151
  %1527 = vmatpush1.bf16.msra.mxu0 %v1150
  %1528 = vmatprep.subr.bf16.mxu0 %v1155
  %1529 = vmatpush1.bf16.msra.mxu0 %v1154
  %1530 = vmatprep.subr.bf16.mxu0 %v1159
  %1531 = vmatpush1.bf16.msra.mxu0 %v1158
  %1532 = vmatprep.mubr.bf16.mxu0 %v351
  %1533 = vmatmul.mubr.bf16.gmra.mrb[0].mxu0 %v350
  %v1534 = vpop.f32.mrb[0].mxu0
  %v1535 = vadd.f32 %v1462, %v1534
  %v1536 = vpop.f32.mrb[0].mxu0
  %v1537 = vadd.f32 %v1464, %v1536
  %v1538 = vpop.f32.mrb[0].mxu0
  %v1539 = vadd.f32 %v1466, %v1538
  %v1540 = vpop.f32.mrb[0].mxu0
  %v1541 = vadd.f32 %v1468, %v1540
  %1542 = vmatprep.mubr.bf16.mxu0 %v357
  %1543 = vmatmul.mubr.bf16.gmra.mrb[0].mxu0 %v356
  %v1544 = vpop.f32.mrb[0].mxu0
  %v1545 = vadd.f32 %v1472, %v1544
  %v1546 = vpop.f32.mrb[0].mxu0
  %v1547 = vadd.f32 %v1474, %v1546
  %v1548 = vpop.f32.mrb[0].mxu0
  %v1549 = vadd.f32 %v1476, %v1548
  %v1550 = vpop.f32.mrb[0].mxu0
  %v1551 = vadd.f32 %v1478, %v1550
  %1552 = vmatprep.mubr.bf16.mxu0 %v363
  %1553 = vmatmul.mubr.bf16.gmra.mrb[0].mxu0 %v362
  %v1554 = vpop.f32.mrb[0].mxu0
  %v1555 = vadd.f32 %v1482, %v1554
  %v1556 = vpop.f32.mrb[0].mxu0
  %v1557 = vadd.f32 %v1484, %v1556
  %v1558 = vpop.f32.mrb[0].mxu0
  %v1559 = vadd.f32 %v1486, %v1558
  %v1560 = vpop.f32.mrb[0].mxu0
  %v1561 = vadd.f32 %v1488, %v1560
  %1562 = vmatprep.mubr.bf16.mxu0 %v369
  %1563 = vmatmul.mubr.bf16.gmra.mrb[0].mxu0 %v368
  %v1564 = vpop.f32.mrb[0].mxu0
  %v1565 = vadd.f32 %v1492, %v1564
  %v1566 = vpop.f32.mrb[0].mxu0
  %v1567 = vadd.f32 %v1494, %v1566
  %v1568 = vpop.f32.mrb[0].mxu0
  %v1569 = vadd.f32 %v1496, %v1568
  %v1570 = vpop.f32.mrb[0].mxu0
  %v1571 = vadd.f32 %v1498, %v1570
  %1572 = vdwg.mxu0
  %1573 = vmatprep.subr.bf16.mxu0 %v973
  %1574 = vmatpush1.bf16.msra.mxu0 %v972
  %1575 = vmatprep.subr.bf16.mxu0 %v977
  %1576 = vmatpush1.bf16.msra.mxu0 %v976
  %1577 = vmatprep.subr.bf16.mxu0 %v981
  %1578 = vmatpush1.bf16.msra.mxu0 %v980
  %1579 = vmatprep.subr.bf16.mxu0 %v985
  %1580 = vmatpush1.bf16.msra.mxu0 %v984
  %1581 = vmatprep.subr.bf16.mxu0 %v989
  %1582 = vmatpush1.bf16.msra.mxu0 %v988
  %1583 = vmatprep.subr.bf16.mxu0 %v993
  %1584 = vmatpush1.bf16.msra.mxu0 %v992
  %1585 = vmatprep.subr.bf16.mxu0 %v997
  %1586 = vmatpush1.bf16.msra.mxu0 %v996
  %1587 = vmatprep.subr.bf16.mxu0 %v1001
  %1588 = vmatpush1.bf16.msra.mxu0 %v1000
  %1589 = vmatprep.subr.bf16.mxu0 %v1005
  %1590 = vmatpush1.bf16.msra.mxu0 %v1004
  %1591 = vmatprep.subr.bf16.mxu0 %v1009
  %1592 = vmatpush1.bf16.msra.mxu0 %v1008
  %1593 = vmatprep.subr.bf16.mxu0 %v1013
  %1594 = vmatpush1.bf16.msra.mxu0 %v1012
  %1595 = vmatprep.subr.bf16.mxu0 %v1017
  %1596 = vmatpush1.bf16.msra.mxu0 %v1016
  %1597 = vmatprep.subr.bf16.mxu0 %v1021
  %1598 = vmatpush1.bf16.msra.mxu0 %v1020
  %1599 = vmatprep.subr.bf16.mxu0 %v1025
  %1600 = vmatpush1.bf16.msra.mxu0 %v1024
  %1601 = vmatprep.subr.bf16.mxu0 %v1029
  %1602 = vmatpush1.bf16.msra.mxu0 %v1028
  %1603 = vmatprep.subr.bf16.mxu0 %v1033
  %1604 = vmatpush1.bf16.msra.mxu0 %v1032
  %1605 = vmatprep.mubr.bf16.mxu0 %v347
  %1606 = vmatmul.mubr.bf16.gmra.mrb[0].mxu0 %v346
  %v1607 = vpop.f32.mrb[0].mxu0
  %v1608 = vadd.f32 %v265, %v1607
  %v1609 = vpop.f32.mrb[0].mxu0
  %v1610 = vadd.f32 %v269, %v1609
  %v1611 = vpop.f32.mrb[0].mxu0
  %v1612 = vadd.f32 %v265, %v1611
  %v1613 = vpop.f32.mrb[0].mxu0
  %v1614 = vadd.f32 %v269, %v1613
  %1615 = vmatprep.mubr.bf16.mxu0 %v353
  %1616 = vmatmul.mubr.bf16.gmra.mrb[0].mxu0 %v352
  %v1617 = vpop.f32.mrb[0].mxu0
  %v1618 = vadd.f32 %v265, %v1617
  %v1619 = vpop.f32.mrb[0].mxu0
  %v1620 = vadd.f32 %v269, %v1619
  %v1621 = vpop.f32.mrb[0].mxu0
  %v1622 = vadd.f32 %v265, %v1621
  %v1623 = vpop.f32.mrb[0].mxu0
  %v1624 = vadd.f32 %v269, %v1623
  %1625 = vmatprep.mubr.bf16.mxu0 %v359
  %1626 = vmatmul.mubr.bf16.gmra.mrb[0].mxu0 %v358
  %v1627 = vpop.f32.mrb[0].mxu0
  %v1628 = vadd.f32 %v265, %v1627
  %v1629 = vpop.f32.mrb[0].mxu0
  %v1630 = vadd.f32 %v269, %v1629
  %v1631 = vpop.f32.mrb[0].mxu0
  %v1632 = vadd.f32 %v265, %v1631
  %v1633 = vpop.f32.mrb[0].mxu0
  %v1634 = vadd.f32 %v269, %v1633
  %1635 = vmatprep.mubr.bf16.mxu0 %v365
  %1636 = vmatmul.mubr.bf16.gmra.mrb[0].mxu0 %v364
  %v1637 = vpop.f32.mrb[0].mxu0
  %v1638 = vadd.f32 %v265, %v1637
  %v1639 = vpop.f32.mrb[0].mxu0
  %v1640 = vadd.f32 %v269, %v1639
  %v1641 = vpop.f32.mrb[0].mxu0
  %v1642 = vadd.f32 %v265, %v1641
  %v1643 = vpop.f32.mrb[0].mxu0
  %v1644 = vadd.f32 %v269, %v1643
  %1645 = vdwg.mxu0
  %1646 = vmatprep.subr.bf16.mxu0 %v1037
  %1647 = vmatpush1.bf16.msra.mxu0 %v1036
  %1648 = vmatprep.subr.bf16.mxu0 %v1041
  %1649 = vmatpush1.bf16.msra.mxu0 %v1040
  %1650 = vmatprep.subr.bf16.mxu0 %v1045
  %1651 = vmatpush1.bf16.msra.mxu0 %v1044
  %1652 = vmatprep.subr.bf16.mxu0 %v1049
  %1653 = vmatpush1.bf16.msra.mxu0 %v1048
  %1654 = vmatprep.subr.bf16.mxu0 %v1053
  %1655 = vmatpush1.bf16.msra.mxu0 %v1052
  %1656 = vmatprep.subr.bf16.mxu0 %v1057
  %1657 = vmatpush1.bf16.msra.mxu0 %v1056
  %1658 = vmatprep.subr.bf16.mxu0 %v1061
  %1659 = vmatpush1.bf16.msra.mxu0 %v1060
  %1660 = vmatprep.subr.bf16.mxu0 %v1065
  %1661 = vmatpush1.bf16.msra.mxu0 %v1064
  %1662 = vmatprep.subr.bf16.mxu0 %v1069
  %1663 = vmatpush1.bf16.msra.mxu0 %v1068
  %1664 = vmatprep.subr.bf16.mxu0 %v1073
  %1665 = vmatpush1.bf16.msra.mxu0 %v1072
  %1666 = vmatprep.subr.bf16.mxu0 %v1077
  %1667 = vmatpush1.bf16.msra.mxu0 %v1076
  %1668 = vmatprep.subr.bf16.mxu0 %v1081
  %1669 = vmatpush1.bf16.msra.mxu0 %v1080
  %1670 = vmatprep.subr.bf16.mxu0 %v1085
  %1671 = vmatpush1.bf16.msra.mxu0 %v1084
  %1672 = vmatprep.subr.bf16.mxu0 %v1089
  %1673 = vmatpush1.bf16.msra.mxu0 %v1088
  %1674 = vmatprep.subr.bf16.mxu0 %v1093
  %1675 = vmatpush1.bf16.msra.mxu0 %v1092
  %1676 = vmatprep.subr.bf16.mxu0 %v1097
  %1677 = vmatpush1.bf16.msra.mxu0 %v1096
  %1678 = vmatprep.mubr.bf16.mxu0 %v349
  %1679 = vmatmul.mubr.bf16.gmra.mrb[0].mxu0 %v348
  %v1680 = vpop.f32.mrb[0].mxu0
  %v1681 = vadd.f32 %v1608, %v1680
  %v1682 = vpop.f32.mrb[0].mxu0
  %v1683 = vadd.f32 %v1610, %v1682
  %v1684 = vpop.f32.mrb[0].mxu0
  %v1685 = vadd.f32 %v1612, %v1684
  %v1686 = vpop.f32.mrb[0].mxu0
  %v1687 = vadd.f32 %v1614, %v1686
  %1688 = vmatprep.mubr.bf16.mxu0 %v355
  %1689 = vmatmul.mubr.bf16.gmra.mrb[0].mxu0 %v354
  %v1690 = vpop.f32.mrb[0].mxu0
  %v1691 = vadd.f32 %v1618, %v1690
  %v1692 = vpop.f32.mrb[0].mxu0
  %v1693 = vadd.f32 %v1620, %v1692
  %v1694 = vpop.f32.mrb[0].mxu0
  %v1695 = vadd.f32 %v1622, %v1694
  %v1696 = vpop.f32.mrb[0].mxu0
  %v1697 = vadd.f32 %v1624, %v1696
  %1698 = vmatprep.mubr.bf16.mxu0 %v361
  %1699 = vmatmul.mubr.bf16.gmra.mrb[0].mxu0 %v360
  %v1700 = vpop.f32.mrb[0].mxu0
  %v1701 = vadd.f32 %v1628, %v1700
  %v1702 = vpop.f32.mrb[0].mxu0
  %v1703 = vadd.f32 %v1630, %v1702
  %v1704 = vpop.f32.mrb[0].mxu0
  %v1705 = vadd.f32 %v1632, %v1704
  %v1706 = vpop.f32.mrb[0].mxu0
  %v1707 = vadd.f32 %v1634, %v1706
  %1708 = vmatprep.mubr.bf16.mxu0 %v367
  %1709 = vmatmul.mubr.bf16.gmra.mrb[0].mxu0 %v366
  %v1710 = vpop.f32.mrb[0].mxu0
  %v1711 = vadd.f32 %v1638, %v1710
  %v1712 = vpop.f32.mrb[0].mxu0
  %v1713 = vadd.f32 %v1640, %v1712
  %v1714 = vpop.f32.mrb[0].mxu0
  %v1715 = vadd.f32 %v1642, %v1714
  %v1716 = vpop.f32.mrb[0].mxu0
  %v1717 = vadd.f32 %v1644, %v1716
  %1718 = vdwg.mxu0
  %1719 = vmatprep.subr.bf16.mxu0 %v1101
  %1720 = vmatpush1.bf16.msra.mxu0 %v1100
  %1721 = vmatprep.subr.bf16.mxu0 %v1105
  %1722 = vmatpush1.bf16.msra.mxu0 %v1104
  %1723 = vmatprep.subr.bf16.mxu0 %v1109
  %1724 = vmatpush1.bf16.msra.mxu0 %v1108
  %1725 = vmatprep.subr.bf16.mxu0 %v1113
  %1726 = vmatpush1.bf16.msra.mxu0 %v1112
  %1727 = vmatprep.subr.bf16.mxu0 %v1117
  %1728 = vmatpush1.bf16.msra.mxu0 %v1116
  %1729 = vmatprep.subr.bf16.mxu0 %v1121
  %1730 = vmatpush1.bf16.msra.mxu0 %v1120
  %1731 = vmatprep.subr.bf16.mxu0 %v1125
  %1732 = vmatpush1.bf16.msra.mxu0 %v1124
  %1733 = vmatprep.subr.bf16.mxu0 %v1129
  %1734 = vmatpush1.bf16.msra.mxu0 %v1128
  %1735 = vmatprep.subr.bf16.mxu0 %v1133
  %1736 = vmatpush1.bf16.msra.mxu0 %v1132
  %1737 = vmatprep.subr.bf16.mxu0 %v1137
  %1738 = vmatpush1.bf16.msra.mxu0 %v1136
  %1739 = vmatprep.subr.bf16.mxu0 %v1141
  %1740 = vmatpush1.bf16.msra.mxu0 %v1140
  %1741 = vmatprep.subr.bf16.mxu0 %v1145
  %1742 = vmatpush1.bf16.msra.mxu0 %v1144
  %1743 = vmatprep.subr.bf16.mxu0 %v1149
  %1744 = vmatpush1.bf16.msra.mxu0 %v1148
  %1745 = vmatprep.subr.bf16.mxu0 %v1153
  %1746 = vmatpush1.bf16.msra.mxu0 %v1152
  %1747 = vmatprep.subr.bf16.mxu0 %v1157
  %1748 = vmatpush1.bf16.msra.mxu0 %v1156
  %1749 = vmatprep.subr.bf16.mxu0 %v1161
  %1750 = vmatpush1.bf16.msra.mxu0 %v1160
  %1751 = vmatprep.mubr.bf16.mxu0 %v351
  %1752 = vmatmul.mubr.bf16.gmra.mrb[0].mxu0 %v350
  %v1753 = vpop.f32.mrb[0].mxu0
  %v1754 = vadd.f32 %v1681, %v1753
  %v1755 = vpop.f32.mrb[0].mxu0
  %v1756 = vadd.f32 %v1683, %v1755
  %v1757 = vpop.f32.mrb[0].mxu0
  %v1758 = vadd.f32 %v1685, %v1757
  %v1759 = vpop.f32.mrb[0].mxu0
  %v1760 = vadd.f32 %v1687, %v1759
  %1761 = vmatprep.mubr.bf16.mxu0 %v357
  %1762 = vmatmul.mubr.bf16.gmra.mrb[0].mxu0 %v356
  %v1763 = vpop.f32.mrb[0].mxu0
  %v1764 = vadd.f32 %v1691, %v1763
  %v1765 = vpop.f32.mrb[0].mxu0
  %v1766 = vadd.f32 %v1693, %v1765
  %v1767 = vpop.f32.mrb[0].mxu0
  %v1768 = vadd.f32 %v1695, %v1767
  %v1769 = vpop.f32.mrb[0].mxu0
  %v1770 = vadd.f32 %v1697, %v1769
  %1771 = vmatprep.mubr.bf16.mxu0 %v363
  %1772 = vmatmul.mubr.bf16.gmra.mrb[0].mxu0 %v362
  %v1773 = vpop.f32.mrb[0].mxu0
  %v1774 = vadd.f32 %v1701, %v1773
  %v1775 = vpop.f32.mrb[0].mxu0
  %v1776 = vadd.f32 %v1703, %v1775
  %v1777 = vpop.f32.mrb[0].mxu0
  %v1778 = vadd.f32 %v1705, %v1777
  %v1779 = vpop.f32.mrb[0].mxu0
  %v1780 = vadd.f32 %v1707, %v1779
  %1781 = vmatprep.mubr.bf16.mxu0 %v369
  %1782 = vmatmul.mubr.bf16.gmra.mrb[0].mxu0 %v368
  %v1783 = vpop.f32.mrb[0].mxu0
  %v1784 = vadd.f32 %v1711, %v1783
  %v1785 = vpop.f32.mrb[0].mxu0
  %v1786 = vadd.f32 %v1713, %v1785
  %v1787 = vpop.f32.mrb[0].mxu0
  %v1788 = vadd.f32 %v1715, %v1787
  %v1789 = vpop.f32.mrb[0].mxu0
  %v1790 = vadd.f32 %v1717, %v1789
  %1791 = vdwg.mxu0
  %1792 = vst [vmem:[#allocation2] sm:$0xff] %v1535
  %1793 = vst [vmem:[#allocation2 + $0x8] sm:$0xff] %v1537
  %1794 = vst [vmem:[#allocation2 + $0x10] sm:$0xff] %v1754
  %1795 = vst [vmem:[#allocation2 + $0x18] sm:$0xff] %v1756
  %1796 = vst [vmem:[#allocation2 + $0x20] sm:$0xff] %v1539
  %1797 = vst [vmem:[#allocation2 + $0x28] sm:$0xff] %v1541
  %1798 = vst [vmem:[#allocation2 + $0x30] sm:$0xff] %v1758
  %1799 = vst [vmem:[#allocation2 + $0x38] sm:$0xff] %v1760
  %1800 = vst [vmem:[#allocation2 + $0x40] sm:$0xff] %v1545
  %1801 = vst [vmem:[#allocation2 + $0x48] sm:$0xff] %v1547
  %1802 = vst [vmem:[#allocation2 + $0x50] sm:$0xff] %v1764
  %1803 = vst [vmem:[#allocation2 + $0x58] sm:$0xff] %v1766
  %1804 = vst [vmem:[#allocation2 + $0x60] sm:$0xff] %v1549
  %1805 = vst [vmem:[#allocation2 + $0x68] sm:$0xff] %v1551
  %1806 = vst [vmem:[#allocation2 + $0x70] sm:$0xff] %v1768
  %1807 = vst [vmem:[#allocation2 + $0x78] sm:$0xff] %v1770
  %1808 = vst [vmem:[#allocation2 + $0x80] sm:$0xff] %v1555
  %1809 = vst [vmem:[#allocation2 + $0x88] sm:$0xff] %v1557
  %1810 = vst [vmem:[#allocation2 + $0x90] sm:$0xff] %v1774
  %1811 = vst [vmem:[#allocation2 + $0x98] sm:$0xff] %v1776
  %1812 = vst [vmem:[#allocation2 + $0xa0] sm:$0xff] %v1559
  %1813 = vst [vmem:[#allocation2 + $0xa8] sm:$0xff] %v1561
  %1814 = vst [vmem:[#allocation2 + $0xb0] sm:$0xff] %v1778
  %1815 = vst [vmem:[#allocation2 + $0xb8] sm:$0xff] %v1780
  %1816 = vst [vmem:[#allocation2 + $0xc0] sm:$0xff] %v1565
  %1817 = vst [vmem:[#allocation2 + $0xc8] sm:$0xff] %v1567
  %1818 = vst [vmem:[#allocation2 + $0xd0] sm:$0xff] %v1784
  %1819 = vst [vmem:[#allocation2 + $0xd8] sm:$0xff] %v1786
  %1820 = vst [vmem:[#allocation2 + $0xe0] sm:$0xff] %v1569
  %1821 = vst [vmem:[#allocation2 + $0xe8] sm:$0xff] %v1571
  %1822 = vst [vmem:[#allocation2 + $0xf0] sm:$0xff] %v1788
  %1823 = vst [vmem:[#allocation2 + $0xf8] sm:$0xff] %v1790
  %v1824 = vld [vmem:[%s4] sm:$0xff]
  %v1825 = vld [vmem:[%s4 + $0x8] sm:$0xff]
  %v1826 = vld [vmem:[%s4 + $0x10] sm:$0xff]
  %v1827 = vld [vmem:[%s4 + $0x18] sm:$0xff]
  %v1828 = vld [vmem:[%s4 + $0x20] sm:$0xff]
  %v1829 = vld [vmem:[%s4 + $0x28] sm:$0xff]
  %v1830 = vld [vmem:[%s4 + $0x30] sm:$0xff]
  %v1831 = vld [vmem:[%s4 + $0x38] sm:$0xff]
  %v1832 = vld [vmem:[%s4 + $0x40] sm:$0xff]
  %v1833 = vld [vmem:[%s4 + $0x48] sm:$0xff]
  %v1834 = vld [vmem:[%s4 + $0x50] sm:$0xff]
  %v1835 = vld [vmem:[%s4 + $0x58] sm:$0xff]
  %v1836 = vld [vmem:[%s4 + $0x60] sm:$0xff]
  %v1837 = vld [vmem:[%s4 + $0x68] sm:$0xff]
  %v1838 = vld [vmem:[%s4 + $0x70] sm:$0xff]
  %v1839 = vld [vmem:[%s4 + $0x78] sm:$0xff]
  %v1840 = vld [vmem:[%s4 + $0x80] sm:$0xff]
  %v1841 = vld [vmem:[%s4 + $0x88] sm:$0xff]
  %v1842 = vld [vmem:[%s4 + $0x90] sm:$0xff]
  %v1843 = vld [vmem:[%s4 + $0x98] sm:$0xff]
  %v1844 = vld [vmem:[%s4 + $0xa0] sm:$0xff]
  %v1845 = vld [vmem:[%s4 + $0xa8] sm:$0xff]
  %v1846 = vld [vmem:[%s4 + $0xb0] sm:$0xff]
  %v1847 = vld [vmem:[%s4 + $0xb8] sm:$0xff]
  %v1848 = vld [vmem:[%s4 + $0xc0] sm:$0xff]
  %v1849 = vld [vmem:[%s4 + $0xc8] sm:$0xff]
  %v1850 = vld [vmem:[%s4 + $0xd0] sm:$0xff]
  %v1851 = vld [vmem:[%s4 + $0xd8] sm:$0xff]
  %v1852 = vld [vmem:[%s4 + $0xe0] sm:$0xff]
  %v1853 = vld [vmem:[%s4 + $0xe8] sm:$0xff]
  %v1854 = vld [vmem:[%s4 + $0xf0] sm:$0xff]
  %v1855 = vld [vmem:[%s4 + $0xf8] sm:$0xff]
  %v1856 = vld [vmem:[%s4 + $0x100] sm:$0xff]
  %v1857 = vld [vmem:[%s4 + $0x108] sm:$0xff]
  %v1858 = vld [vmem:[%s4 + $0x110] sm:$0xff]
  %v1859 = vld [vmem:[%s4 + $0x118] sm:$0xff]
  %v1860 = vld [vmem:[%s5] sm:$0xff]
  %v1861 = vld [vmem:[%s5 + $0x8] sm:$0xff]
  %v1862 = vld [vmem:[%s5 + $0x10] sm:$0xff]
  %v1863 = vld [vmem:[%s5 + $0x18] sm:$0xff]
  %v1864 = vld [vmem:[%s5 + $0x20] sm:$0xff]
  %v1865 = vld [vmem:[%s5 + $0x28] sm:$0xff]
  %v1866 = vld [vmem:[%s5 + $0x30] sm:$0xff]
  %v1867 = vld [vmem:[%s5 + $0x38] sm:$0xff]
  %v1868 = vld [vmem:[%s5 + $0x40] sm:$0xff]
  %v1869 = vld [vmem:[%s5 + $0x48] sm:$0xff]
  %v1870 = vld [vmem:[%s5 + $0x50] sm:$0xff]
  %v1871 = vld [vmem:[%s5 + $0x58] sm:$0xff]
  %v1872 = vld [vmem:[%s5 + $0x60] sm:$0xff]
  %v1873 = vld [vmem:[%s5 + $0x68] sm:$0xff]
  %v1874 = vld [vmem:[%s5 + $0x70] sm:$0xff]
  %v1875 = vld [vmem:[%s5 + $0x78] sm:$0xff]
  %v1876 = vld [vmem:[%s5 + $0x80] sm:$0xff]
  %v1877 = vld [vmem:[%s5 + $0x88] sm:$0xff]
  %v1878 = vld [vmem:[%s5 + $0x90] sm:$0xff]
  %v1879 = vld [vmem:[%s5 + $0x98] sm:$0xff]
  %v1880 = vld [vmem:[%s5 + $0xa0] sm:$0xff]
  %v1881 = vld [vmem:[%s5 + $0xa8] sm:$0xff]
  %v1882 = vld [vmem:[%s5 + $0xb0] sm:$0xff]
  %v1883 = vld [vmem:[%s5 + $0xb8] sm:$0xff]
  %v1884 = vld [vmem:[%s5 + $0xc0] sm:$0xff]
  %v1885 = vld [vmem:[%s5 + $0xc8] sm:$0xff]
  %v1886 = vld [vmem:[%s5 + $0xd0] sm:$0xff]
  %v1887 = vld [vmem:[%s5 + $0xd8] sm:$0xff]
  %v1888 = vld [vmem:[%s5 + $0xe0] sm:$0xff]
  %v1889 = vld [vmem:[%s5 + $0xe8] sm:$0xff]
  %v1890 = vld [vmem:[%s5 + $0xf0] sm:$0xff]
  %v1891 = vld [vmem:[%s5 + $0xf8] sm:$0xff]
  %v1892 = vld [vmem:[%s5 + $0x100] sm:$0xff]
  %v1893 = vld [vmem:[%s5 + $0x108] sm:$0xff]
  %v1894 = vld [vmem:[%s5 + $0x110] sm:$0xff]
  %v1895 = vld [vmem:[%s5 + $0x118] sm:$0xff]
  %v1896 = vld [vmem:[%s5 + $0x120] sm:$0xff]
  %v1897 = vld [vmem:[%s5 + $0x128] sm:$0xff]
  %v1898 = vld [vmem:[%s5 + $0x130] sm:$0xff]
  %v1899 = vld [vmem:[%s5 + $0x138] sm:$0xff]
  %v1900 = vld [vmem:[%s5 + $0x140] sm:$0xff]
  %v1901 = vld [vmem:[%s5 + $0x148] sm:$0xff]
  %v1902 = vld [vmem:[%s5 + $0x150] sm:$0xff]
  %v1903 = vld [vmem:[%s5 + $0x158] sm:$0xff]
  %v1904 = vld [vmem:[%s5 + $0x160] sm:$0xff]
  %v1905 = vld [vmem:[%s5 + $0x168] sm:$0xff]
  %v1906 = vld [vmem:[%s5 + $0x170] sm:$0xff]
  %v1907 = vld [vmem:[%s5 + $0x178] sm:$0xff]
  %v1908 = vld [vmem:[%s5 + $0x180] sm:$0xff]
  %v1909 = vld [vmem:[%s5 + $0x188] sm:$0xff]
  %v1910 = vld [vmem:[%s5 + $0x190] sm:$0xff]
  %v1911 = vld [vmem:[%s5 + $0x198] sm:$0xff]
  %v1912 = vld [vmem:[%s5 + $0x1a0] sm:$0xff]
  %v1913 = vld [vmem:[%s5 + $0x1a8] sm:$0xff]
  %v1914 = vld [vmem:[%s5 + $0x1b0] sm:$0xff]
  %v1915 = vld [vmem:[%s5 + $0x1b8] sm:$0xff]
  %v1916 = vld [vmem:[%s5 + $0x1c0] sm:$0xff]
  %v1917 = vld [vmem:[%s5 + $0x1c8] sm:$0xff]
  %v1918 = vld [vmem:[%s5 + $0x1d0] sm:$0xff]
  %v1919 = vld [vmem:[%s5 + $0x1d8] sm:$0xff]
  %v1920 = vld [vmem:[%s5 + $0x1e0] sm:$0xff]
  %v1921 = vld [vmem:[%s5 + $0x1e8] sm:$0xff]
  %v1922 = vld [vmem:[%s5 + $0x1f0] sm:$0xff]
  %v1923 = vld [vmem:[%s5 + $0x1f8] sm:$0xff]
  %v1924 = vld [vmem:[%s5 + $0x200] sm:$0xff]
  %v1925 = vld [vmem:[%s5 + $0x208] sm:$0xff]
  %v1926 = vld [vmem:[%s5 + $0x210] sm:$0xff]
  %v1927 = vld [vmem:[%s5 + $0x218] sm:$0xff]
  %v1928 = vld [vmem:[%s5 + $0x220] sm:$0xff]
  %v1929 = vld [vmem:[%s5 + $0x228] sm:$0xff]
  %v1930 = vld [vmem:[%s5 + $0x230] sm:$0xff]
  %v1931 = vld [vmem:[%s5 + $0x238] sm:$0xff]
  %v1932 = vld [vmem:[%s5 + $0x240] sm:$0xff]
  %v1933 = vld [vmem:[%s5 + $0x248] sm:$0xff]
  %v1934 = vld [vmem:[%s5 + $0x250] sm:$0xff]
  %v1935 = vld [vmem:[%s5 + $0x258] sm:$0xff]
  %v1936 = vld [vmem:[%s5 + $0x260] sm:$0xff]
  %v1937 = vld [vmem:[%s5 + $0x268] sm:$0xff]
  %v1938 = vld [vmem:[%s5 + $0x270] sm:$0xff]
  %v1939 = vld [vmem:[%s5 + $0x278] sm:$0xff]
  %v1940 = vld [vmem:[%s5 + $0x280] sm:$0xff]
  %v1941 = vld [vmem:[%s5 + $0x288] sm:$0xff]
  %v1942 = vld [vmem:[%s5 + $0x290] sm:$0xff]
  %v1943 = vld [vmem:[%s5 + $0x298] sm:$0xff]
  %v1944 = vld [vmem:[%s5 + $0x2a0] sm:$0xff]
  %v1945 = vld [vmem:[%s5 + $0x2a8] sm:$0xff]
  %v1946 = vld [vmem:[%s5 + $0x2b0] sm:$0xff]
  %v1947 = vld [vmem:[%s5 + $0x2b8] sm:$0xff]
  %v1948 = vld [vmem:[%s5 + $0x2c0] sm:$0xff]
  %v1949 = vld [vmem:[%s5 + $0x2c8] sm:$0xff]
  %v1950 = vld [vmem:[%s5 + $0x2d0] sm:$0xff]
  %v1951 = vld [vmem:[%s5 + $0x2d8] sm:$0xff]
  %v1952 = vld [vmem:[%s5 + $0x2e0] sm:$0xff]
  %v1953 = vld [vmem:[%s5 + $0x2e8] sm:$0xff]
  %v1954 = vld [vmem:[%s5 + $0x2f0] sm:$0xff]
  %v1955 = vld [vmem:[%s5 + $0x2f8] sm:$0xff]
  %v1956 = vld [vmem:[%s5 + $0x300] sm:$0xff]
  %v1957 = vld [vmem:[%s5 + $0x308] sm:$0xff]
  %v1958 = vld [vmem:[%s5 + $0x310] sm:$0xff]
  %v1959 = vld [vmem:[%s5 + $0x318] sm:$0xff]
  %v1960 = vld [vmem:[%s5 + $0x320] sm:$0xff]
  %v1961 = vld [vmem:[%s5 + $0x328] sm:$0xff]
  %v1962 = vld [vmem:[%s5 + $0x330] sm:$0xff]
  %v1963 = vld [vmem:[%s5 + $0x338] sm:$0xff]
  %v1964 = vld [vmem:[%s5 + $0x340] sm:$0xff]
  %v1965 = vld [vmem:[%s5 + $0x348] sm:$0xff]
  %v1966 = vld [vmem:[%s5 + $0x350] sm:$0xff]
  %v1967 = vld [vmem:[%s5 + $0x358] sm:$0xff]
  %v1968 = vld [vmem:[%s5 + $0x360] sm:$0xff]
  %v1969 = vld [vmem:[%s5 + $0x368] sm:$0xff]
  %v1970 = vld [vmem:[%s5 + $0x370] sm:$0xff]
  %v1971 = vld [vmem:[%s5 + $0x378] sm:$0xff]
  %v1972 = vld [vmem:[%s5 + $0x380] sm:$0xff]
  %v1973 = vld [vmem:[%s5 + $0x388] sm:$0xff]
  %v1974 = vld [vmem:[%s5 + $0x390] sm:$0xff]
  %v1975 = vld [vmem:[%s5 + $0x398] sm:$0xff]
  %v1976 = vld [vmem:[%s5 + $0x3a0] sm:$0xff]
  %v1977 = vld [vmem:[%s5 + $0x3a8] sm:$0xff]
  %v1978 = vld [vmem:[%s5 + $0x3b0] sm:$0xff]
  %v1979 = vld [vmem:[%s5 + $0x3b8] sm:$0xff]
  %v1980 = vld [vmem:[%s5 + $0x3c0] sm:$0xff]
  %v1981 = vld [vmem:[%s5 + $0x3c8] sm:$0xff]
  %v1982 = vld [vmem:[%s5 + $0x3d0] sm:$0xff]
  %v1983 = vld [vmem:[%s5 + $0x3d8] sm:$0xff]
  %v1984 = vld [vmem:[%s5 + $0x3e0] sm:$0xff]
  %v1985 = vld [vmem:[%s5 + $0x3e8] sm:$0xff]
  %v1986 = vld [vmem:[%s5 + $0x3f0] sm:$0xff]
  %v1987 = vld [vmem:[%s5 + $0x3f8] sm:$0xff]
  %v1988 = vld [vmem:[%s5 + $0x400] sm:$0xff]
  %v1989 = vld [vmem:[%s5 + $0x408] sm:$0xff]
  %v1990 = vld [vmem:[%s5 + $0x410] sm:$0xff]
  %v1991 = vld [vmem:[%s5 + $0x418] sm:$0xff]
  %v1992 = vld [vmem:[%s5 + $0x420] sm:$0xff]
  %v1993 = vld [vmem:[%s5 + $0x428] sm:$0xff]
  %v1994 = vld [vmem:[%s5 + $0x430] sm:$0xff]
  %v1995 = vld [vmem:[%s5 + $0x438] sm:$0xff]
  %v1996 = vld [vmem:[%s5 + $0x440] sm:$0xff]
  %v1997 = vld [vmem:[%s5 + $0x448] sm:$0xff]
  %v1998 = vld [vmem:[%s5 + $0x450] sm:$0xff]
  %v1999 = vld [vmem:[%s5 + $0x458] sm:$0xff]
  %v2000 = vld [vmem:[%s5 + $0x460] sm:$0xff]
  %v2001 = vld [vmem:[%s5 + $0x468] sm:$0xff]
  %v2002 = vld [vmem:[%s5 + $0x470] sm:$0xff]
  %v2003 = vld [vmem:[%s5 + $0x478] sm:$0xff]
  %v2004 = vld [vmem:[%s5 + $0x480] sm:$0xff]
  %v2005 = vld [vmem:[%s5 + $0x488] sm:$0xff]
  %v2006 = vld [vmem:[%s5 + $0x490] sm:$0xff]
  %v2007 = vld [vmem:[%s5 + $0x498] sm:$0xff]
  %v2008 = vld [vmem:[%s5 + $0x4a0] sm:$0xff]
  %v2009 = vld [vmem:[%s5 + $0x4a8] sm:$0xff]
  %v2010 = vld [vmem:[%s5 + $0x4b0] sm:$0xff]
  %v2011 = vld [vmem:[%s5 + $0x4b8] sm:$0xff]
  %v2012 = vld [vmem:[%s5 + $0x4c0] sm:$0xff]
  %v2013 = vld [vmem:[%s5 + $0x4c8] sm:$0xff]
  %v2014 = vld [vmem:[%s5 + $0x4d0] sm:$0xff]
  %v2015 = vld [vmem:[%s5 + $0x4d8] sm:$0xff]
  %v2016 = vld [vmem:[%s5 + $0x4e0] sm:$0xff]
  %v2017 = vld [vmem:[%s5 + $0x4e8] sm:$0xff]
  %v2018 = vld [vmem:[%s5 + $0x4f0] sm:$0xff]
  %v2019 = vld [vmem:[%s5 + $0x4f8] sm:$0xff]
  %v2020 = vld [vmem:[%s5 + $0x500] sm:$0xff]
  %v2021 = vld [vmem:[%s5 + $0x508] sm:$0xff]
  %v2022 = vld [vmem:[%s5 + $0x510] sm:$0xff]
  %v2023 = vld [vmem:[%s5 + $0x518] sm:$0xff]
  %v2024 = vld [vmem:[%s5 + $0x520] sm:$0xff]
  %v2025 = vld [vmem:[%s5 + $0x528] sm:$0xff]
  %v2026 = vld [vmem:[%s5 + $0x530] sm:$0xff]
  %v2027 = vld [vmem:[%s5 + $0x538] sm:$0xff]
  %v2028 = vld [vmem:[%s5 + $0x540] sm:$0xff]
  %v2029 = vld [vmem:[%s5 + $0x548] sm:$0xff]
  %v2030 = vld [vmem:[%s5 + $0x550] sm:$0xff]
  %v2031 = vld [vmem:[%s5 + $0x558] sm:$0xff]
  %v2032 = vld [vmem:[%s5 + $0x560] sm:$0xff]
  %v2033 = vld [vmem:[%s5 + $0x568] sm:$0xff]
  %v2034 = vld [vmem:[%s5 + $0x570] sm:$0xff]
  %v2035 = vld [vmem:[%s5 + $0x578] sm:$0xff]
  %v2036 = vld [vmem:[%s5 + $0x580] sm:$0xff]
  %v2037 = vld [vmem:[%s5 + $0x588] sm:$0xff]
  %v2038 = vld [vmem:[%s5 + $0x590] sm:$0xff]
  %v2039 = vld [vmem:[%s5 + $0x598] sm:$0xff]
  %v2040 = vld [vmem:[%s5 + $0x5a0] sm:$0xff]
  %v2041 = vld [vmem:[%s5 + $0x5a8] sm:$0xff]
  %v2042 = vld [vmem:[%s5 + $0x5b0] sm:$0xff]
  %v2043 = vld [vmem:[%s5 + $0x5b8] sm:$0xff]
  %v2044 = vld [vmem:[%s5 + $0x5c0] sm:$0xff]
  %v2045 = vld [vmem:[%s5 + $0x5c8] sm:$0xff]
  %v2046 = vld [vmem:[%s5 + $0x5d0] sm:$0xff]
  %v2047 = vld [vmem:[%s5 + $0x5d8] sm:$0xff]
  %v2048 = vld [vmem:[%s5 + $0x5e0] sm:$0xff]
  %v2049 = vld [vmem:[%s5 + $0x5e8] sm:$0xff]
  %v2050 = vld [vmem:[%s5 + $0x5f0] sm:$0xff]
  %v2051 = vld [vmem:[%s5 + $0x5f8] sm:$0xff]
  %v2052 = vld [vmem:[%s7] sm:$0xf]
  %v2054 = vlaneseq
  %v2055 = vshrl.u32 %v2054, 7
  %v2056 = vsub.s32 0, %v2055
  %v2057 = vrot.slane %v2052, %v2056
  %v2058 = vlaneseq
  %v2059 = vshrl.u32 %v2058, 7
  %v2060 = vsub.s32 1, %v2059
  %v2061 = vrot.slane %v2052, %v2060
  %v2062 = vlaneseq
  %v2063 = vshrl.u32 %v2062, 7
  %v2064 = vsub.s32 2, %v2063
  %v2065 = vrot.slane %v2052, %v2064
  %v2066 = vlaneseq
  %v2067 = vshrl.u32 %v2066, 7
  %v2068 = vsub.s32 3, %v2067
  %v2069 = vrot.slane %v2052, %v2068
  %v2110 = vunpack.c.l.b16 %v1824
  %v2111 = vunpack.c.h.b16 %v1824
  %v2112 = vunpack.c.l.b16 %v1825
  %v2113 = vunpack.c.h.b16 %v1825
  %v2114 = vunpack.c.l.b16 %v1826
  %v2115 = vunpack.c.h.b16 %v1826
  %v2116 = vunpack.c.l.b16 %v1827
  %v2117 = vunpack.c.h.b16 %v1827
  %v2118 = vunpack.c.l.b16 %v1828
  %v2119 = vunpack.c.h.b16 %v1828
  %v2120 = vunpack.c.l.b16 %v1829
  %v2121 = vunpack.c.h.b16 %v1829
  %v2122 = vunpack.c.l.b16 %v1830
  %v2123 = vunpack.c.h.b16 %v1830
  %v2124 = vunpack.c.l.b16 %v1831
  %v2125 = vunpack.c.h.b16 %v1831
  %v2126 = vunpack.c.l.b16 %v1832
  %v2127 = vunpack.c.h.b16 %v1832
  %v2128 = vunpack.c.l.b16 %v1833
  %v2129 = vunpack.c.h.b16 %v1833
  %v2130 = vunpack.c.l.b16 %v1834
  %v2131 = vunpack.c.h.b16 %v1834
  %v2132 = vunpack.c.l.b16 %v1835
  %v2133 = vunpack.c.h.b16 %v1835
  %v2134 = vunpack.c.l.b16 %v1836
  %v2135 = vunpack.c.h.b16 %v1836
  %v2136 = vunpack.c.l.b16 %v1837
  %v2137 = vunpack.c.h.b16 %v1837
  %v2138 = vunpack.c.l.b16 %v1838
  %v2139 = vunpack.c.h.b16 %v1838
  %v2140 = vunpack.c.l.b16 %v1839
  %v2141 = vunpack.c.h.b16 %v1839
  %v2142 = vunpack.c.l.b16 %v1840
  %v2143 = vunpack.c.h.b16 %v1840
  %v2144 = vunpack.c.l.b16 %v1841
  %v2145 = vunpack.c.h.b16 %v1841
  %v2146 = vunpack.c.l.b16 %v1842
  %v2147 = vunpack.c.h.b16 %v1842
  %v2148 = vunpack.c.l.b16 %v1843
  %v2149 = vunpack.c.h.b16 %v1843
  %v2150 = vunpack.c.l.b16 %v1844
  %v2151 = vunpack.c.h.b16 %v1844
  %v2152 = vunpack.c.l.b16 %v1845
  %v2153 = vunpack.c.h.b16 %v1845
  %v2154 = vunpack.c.l.b16 %v1846
  %v2155 = vunpack.c.h.b16 %v1846
  %v2156 = vunpack.c.l.b16 %v1847
  %v2157 = vunpack.c.h.b16 %v1847
  %v2158 = vunpack.c.l.b16 %v1848
  %v2159 = vunpack.c.h.b16 %v1848
  %v2160 = vunpack.c.l.b16 %v1849
  %v2161 = vunpack.c.h.b16 %v1849
  %v2162 = vunpack.c.l.b16 %v1850
  %v2163 = vunpack.c.h.b16 %v1850
  %v2164 = vunpack.c.l.b16 %v1851
  %v2165 = vunpack.c.h.b16 %v1851
  %v2166 = vunpack.c.l.b16 %v1852
  %v2167 = vunpack.c.h.b16 %v1852
  %v2168 = vunpack.c.l.b16 %v1853
  %v2169 = vunpack.c.h.b16 %v1853
  %v2170 = vunpack.c.l.b16 %v1854
  %v2171 = vunpack.c.h.b16 %v1854
  %v2172 = vunpack.c.l.b16 %v1855
  %v2173 = vunpack.c.h.b16 %v1855
  %v2174 = vunpack.c.l.b16 %v1856
  %v2175 = vunpack.c.h.b16 %v1856
  %v2176 = vunpack.c.l.b16 %v1857
  %v2177 = vunpack.c.h.b16 %v1857
  %v2178 = vunpack.c.l.b16 %v1858
  %v2179 = vunpack.c.h.b16 %v1858
  %v2180 = vunpack.c.l.b16 %v1859
  %v2181 = vunpack.c.h.b16 %v1859
  %v2182 = vpack.c.b16 %v2116, %v2110
  %v2183 = vpack.c.b16 %v2117, %v2111
  %v2184 = vpack.c.b16 %v2118, %v2112
  %v2185 = vpack.c.b16 %v2119, %v2113
  %v2186 = vpack.c.b16 %v2120, %v2114
  %v2187 = vpack.c.b16 %v2121, %v2115
  %v2188 = vpack.c.b16 %v2128, %v2122
  %v2189 = vpack.c.b16 %v2129, %v2123
  %v2190 = vpack.c.b16 %v2130, %v2124
  %v2191 = vpack.c.b16 %v2131, %v2125
  %v2192 = vpack.c.b16 %v2132, %v2126
  %v2193 = vpack.c.b16 %v2133, %v2127
  %v2194 = vpack.c.b16 %v2140, %v2134
  %v2195 = vpack.c.b16 %v2141, %v2135
  %v2196 = vpack.c.b16 %v2142, %v2136
  %v2197 = vpack.c.b16 %v2143, %v2137
  %v2198 = vpack.c.b16 %v2144, %v2138
  %v2199 = vpack.c.b16 %v2145, %v2139
  %v2200 = vpack.c.b16 %v2152, %v2146
  %v2201 = vpack.c.b16 %v2153, %v2147
  %v2202 = vpack.c.b16 %v2154, %v2148
  %v2203 = vpack.c.b16 %v2155, %v2149
  %v2204 = vpack.c.b16 %v2156, %v2150
  %v2205 = vpack.c.b16 %v2157, %v2151
  %v2206 = vpack.c.b16 %v2164, %v2158
  %v2207 = vpack.c.b16 %v2165, %v2159
  %v2208 = vpack.c.b16 %v2166, %v2160
  %v2209 = vpack.c.b16 %v2167, %v2161
  %v2210 = vpack.c.b16 %v2168, %v2162
  %v2211 = vpack.c.b16 %v2169, %v2163
  %v2212 = vpack.c.b16 %v2176, %v2170
  %v2213 = vpack.c.b16 %v2177, %v2171
  %v2214 = vpack.c.b16 %v2178, %v2172
  %v2215 = vpack.c.b16 %v2179, %v2173
  %v2216 = vpack.c.b16 %v2180, %v2174
  %v2217 = vpack.c.b16 %v2181, %v2175
  %v2446 = vunpack.c.l.b16 %v1860
  %v2447 = vunpack.c.h.b16 %v1860
  %v2448 = vunpack.c.l.b16 %v1861
  %v2449 = vunpack.c.h.b16 %v1861
  %v2450 = vunpack.c.l.b16 %v1862
  %v2451 = vunpack.c.h.b16 %v1862
  %v2452 = vunpack.c.l.b16 %v1863
  %v2453 = vunpack.c.h.b16 %v1863
  %v2454 = vunpack.c.l.b16 %v1864
  %v2455 = vunpack.c.h.b16 %v1864
  %v2456 = vunpack.c.l.b16 %v1865
  %v2457 = vunpack.c.h.b16 %v1865
  %v2458 = vunpack.c.l.b16 %v1866
  %v2459 = vunpack.c.h.b16 %v1866
  %v2460 = vunpack.c.l.b16 %v1867
  %v2461 = vunpack.c.h.b16 %v1867
  %v2462 = vunpack.c.l.b16 %v1868
  %v2463 = vunpack.c.h.b16 %v1868
  %v2464 = vunpack.c.l.b16 %v1869
  %v2465 = vunpack.c.h.b16 %v1869
  %v2466 = vunpack.c.l.b16 %v1870
  %v2467 = vunpack.c.h.b16 %v1870
  %v2468 = vunpack.c.l.b16 %v1871
  %v2469 = vunpack.c.h.b16 %v1871
  %v2470 = vunpack.c.l.b16 %v1872
  %v2471 = vunpack.c.h.b16 %v1872
  %v2472 = vunpack.c.l.b16 %v1873
  %v2473 = vunpack.c.h.b16 %v1873
  %v2474 = vunpack.c.l.b16 %v1874
  %v2475 = vunpack.c.h.b16 %v1874
  %v2476 = vunpack.c.l.b16 %v1875
  %v2477 = vunpack.c.h.b16 %v1875
  %v2478 = vunpack.c.l.b16 %v1876
  %v2479 = vunpack.c.h.b16 %v1876
  %v2480 = vunpack.c.l.b16 %v1877
  %v2481 = vunpack.c.h.b16 %v1877
  %v2482 = vunpack.c.l.b16 %v1878
  %v2483 = vunpack.c.h.b16 %v1878
  %v2484 = vunpack.c.l.b16 %v1879
  %v2485 = vunpack.c.h.b16 %v1879
  %v2486 = vunpack.c.l.b16 %v1880
  %v2487 = vunpack.c.h.b16 %v1880
  %v2488 = vunpack.c.l.b16 %v1881
  %v2489 = vunpack.c.h.b16 %v1881
  %v2490 = vunpack.c.l.b16 %v1882
  %v2491 = vunpack.c.h.b16 %v1882
  %v2492 = vunpack.c.l.b16 %v1883
  %v2493 = vunpack.c.h.b16 %v1883
  %v2494 = vunpack.c.l.b16 %v1884
  %v2495 = vunpack.c.h.b16 %v1884
  %v2496 = vunpack.c.l.b16 %v1885
  %v2497 = vunpack.c.h.b16 %v1885
  %v2498 = vunpack.c.l.b16 %v1886
  %v2499 = vunpack.c.h.b16 %v1886
  %v2500 = vunpack.c.l.b16 %v1887
  %v2501 = vunpack.c.h.b16 %v1887
  %v2502 = vunpack.c.l.b16 %v1888
  %v2503 = vunpack.c.h.b16 %v1888
  %v2504 = vunpack.c.l.b16 %v1889
  %v2505 = vunpack.c.h.b16 %v1889
  %v2506 = vunpack.c.l.b16 %v1890
  %v2507 = vunpack.c.h.b16 %v1890
  %v2508 = vunpack.c.l.b16 %v1891
  %v2509 = vunpack.c.h.b16 %v1891
  %v2510 = vunpack.c.l.b16 %v1892
  %v2511 = vunpack.c.h.b16 %v1892
  %v2512 = vunpack.c.l.b16 %v1893
  %v2513 = vunpack.c.h.b16 %v1893
  %v2514 = vunpack.c.l.b16 %v1894
  %v2515 = vunpack.c.h.b16 %v1894
  %v2516 = vunpack.c.l.b16 %v1895
  %v2517 = vunpack.c.h.b16 %v1895
  %v2518 = vunpack.c.l.b16 %v1896
  %v2519 = vunpack.c.h.b16 %v1896
  %v2520 = vunpack.c.l.b16 %v1897
  %v2521 = vunpack.c.h.b16 %v1897
  %v2522 = vunpack.c.l.b16 %v1898
  %v2523 = vunpack.c.h.b16 %v1898
  %v2524 = vunpack.c.l.b16 %v1899
  %v2525 = vunpack.c.h.b16 %v1899
  %v2526 = vunpack.c.l.b16 %v1900
  %v2527 = vunpack.c.h.b16 %v1900
  %v2528 = vunpack.c.l.b16 %v1901
  %v2529 = vunpack.c.h.b16 %v1901
  %v2530 = vunpack.c.l.b16 %v1902
  %v2531 = vunpack.c.h.b16 %v1902
  %v2532 = vunpack.c.l.b16 %v1903
  %v2533 = vunpack.c.h.b16 %v1903
  %v2534 = vunpack.c.l.b16 %v1904
  %v2535 = vunpack.c.h.b16 %v1904
  %v2536 = vunpack.c.l.b16 %v1905
  %v2537 = vunpack.c.h.b16 %v1905
  %v2538 = vunpack.c.l.b16 %v1906
  %v2539 = vunpack.c.h.b16 %v1906
  %v2540 = vunpack.c.l.b16 %v1907
  %v2541 = vunpack.c.h.b16 %v1907
  %v2542 = vunpack.c.l.b16 %v1908
  %v2543 = vunpack.c.h.b16 %v1908
  %v2544 = vunpack.c.l.b16 %v1909
  %v2545 = vunpack.c.h.b16 %v1909
  %v2546 = vunpack.c.l.b16 %v1910
  %v2547 = vunpack.c.h.b16 %v1910
  %v2548 = vunpack.c.l.b16 %v1911
  %v2549 = vunpack.c.h.b16 %v1911
  %v2550 = vunpack.c.l.b16 %v1912
  %v2551 = vunpack.c.h.b16 %v1912
  %v2552 = vunpack.c.l.b16 %v1913
  %v2553 = vunpack.c.h.b16 %v1913
  %v2554 = vunpack.c.l.b16 %v1914
  %v2555 = vunpack.c.h.b16 %v1914
  %v2556 = vunpack.c.l.b16 %v1915
  %v2557 = vunpack.c.h.b16 %v1915
  %v2558 = vunpack.c.l.b16 %v1916
  %v2559 = vunpack.c.h.b16 %v1916
  %v2560 = vunpack.c.l.b16 %v1917
  %v2561 = vunpack.c.h.b16 %v1917
  %v2562 = vunpack.c.l.b16 %v1918
  %v2563 = vunpack.c.h.b16 %v1918
  %v2564 = vunpack.c.l.b16 %v1919
  %v2565 = vunpack.c.h.b16 %v1919
  %v2566 = vunpack.c.l.b16 %v1920
  %v2567 = vunpack.c.h.b16 %v1920
  %v2568 = vunpack.c.l.b16 %v1921
  %v2569 = vunpack.c.h.b16 %v1921
  %v2570 = vunpack.c.l.b16 %v1922
  %v2571 = vunpack.c.h.b16 %v1922
  %v2572 = vunpack.c.l.b16 %v1923
  %v2573 = vunpack.c.h.b16 %v1923
  %v2574 = vunpack.c.l.b16 %v1924
  %v2575 = vunpack.c.h.b16 %v1924
  %v2576 = vunpack.c.l.b16 %v1925
  %v2577 = vunpack.c.h.b16 %v1925
  %v2578 = vunpack.c.l.b16 %v1926
  %v2579 = vunpack.c.h.b16 %v1926
  %v2580 = vunpack.c.l.b16 %v1927
  %v2581 = vunpack.c.h.b16 %v1927
  %v2582 = vunpack.c.l.b16 %v1928
  %v2583 = vunpack.c.h.b16 %v1928
  %v2584 = vunpack.c.l.b16 %v1929
  %v2585 = vunpack.c.h.b16 %v1929
  %v2586 = vunpack.c.l.b16 %v1930
  %v2587 = vunpack.c.h.b16 %v1930
  %v2588 = vunpack.c.l.b16 %v1931
  %v2589 = vunpack.c.h.b16 %v1931
  %v2590 = vunpack.c.l.b16 %v1932
  %v2591 = vunpack.c.h.b16 %v1932
  %v2592 = vunpack.c.l.b16 %v1933
  %v2593 = vunpack.c.h.b16 %v1933
  %v2594 = vunpack.c.l.b16 %v1934
  %v2595 = vunpack.c.h.b16 %v1934
  %v2596 = vunpack.c.l.b16 %v1935
  %v2597 = vunpack.c.h.b16 %v1935
  %v2598 = vunpack.c.l.b16 %v1936
  %v2599 = vunpack.c.h.b16 %v1936
  %v2600 = vunpack.c.l.b16 %v1937
  %v2601 = vunpack.c.h.b16 %v1937
  %v2602 = vunpack.c.l.b16 %v1938
  %v2603 = vunpack.c.h.b16 %v1938
  %v2604 = vunpack.c.l.b16 %v1939
  %v2605 = vunpack.c.h.b16 %v1939
  %v2606 = vunpack.c.l.b16 %v1940
  %v2607 = vunpack.c.h.b16 %v1940
  %v2608 = vunpack.c.l.b16 %v1941
  %v2609 = vunpack.c.h.b16 %v1941
  %v2610 = vunpack.c.l.b16 %v1942
  %v2611 = vunpack.c.h.b16 %v1942
  %v2612 = vunpack.c.l.b16 %v1943
  %v2613 = vunpack.c.h.b16 %v1943
  %v2614 = vunpack.c.l.b16 %v1944
  %v2615 = vunpack.c.h.b16 %v1944
  %v2616 = vunpack.c.l.b16 %v1945
  %v2617 = vunpack.c.h.b16 %v1945
  %v2618 = vunpack.c.l.b16 %v1946
  %v2619 = vunpack.c.h.b16 %v1946
  %v2620 = vunpack.c.l.b16 %v1947
  %v2621 = vunpack.c.h.b16 %v1947
  %v2622 = vunpack.c.l.b16 %v1948
  %v2623 = vunpack.c.h.b16 %v1948
  %v2624 = vunpack.c.l.b16 %v1949
  %v2625 = vunpack.c.h.b16 %v1949
  %v2626 = vunpack.c.l.b16 %v1950
  %v2627 = vunpack.c.h.b16 %v1950
  %v2628 = vunpack.c.l.b16 %v1951
  %v2629 = vunpack.c.h.b16 %v1951
  %v2630 = vunpack.c.l.b16 %v1952
  %v2631 = vunpack.c.h.b16 %v1952
  %v2632 = vunpack.c.l.b16 %v1953
  %v2633 = vunpack.c.h.b16 %v1953
  %v2634 = vunpack.c.l.b16 %v1954
  %v2635 = vunpack.c.h.b16 %v1954
  %v2636 = vunpack.c.l.b16 %v1955
  %v2637 = vunpack.c.h.b16 %v1955
  %v2638 = vunpack.c.l.b16 %v1956
  %v2639 = vunpack.c.h.b16 %v1956
  %v2640 = vunpack.c.l.b16 %v1957
  %v2641 = vunpack.c.h.b16 %v1957
  %v2642 = vunpack.c.l.b16 %v1958
  %v2643 = vunpack.c.h.b16 %v1958
  %v2644 = vunpack.c.l.b16 %v1959
  %v2645 = vunpack.c.h.b16 %v1959
  %v2646 = vunpack.c.l.b16 %v1960
  %v2647 = vunpack.c.h.b16 %v1960
  %v2648 = vunpack.c.l.b16 %v1961
  %v2649 = vunpack.c.h.b16 %v1961
  %v2650 = vunpack.c.l.b16 %v1962
  %v2651 = vunpack.c.h.b16 %v1962
  %v2652 = vunpack.c.l.b16 %v1963
  %v2653 = vunpack.c.h.b16 %v1963
  %v2654 = vunpack.c.l.b16 %v1964
  %v2655 = vunpack.c.h.b16 %v1964
  %v2656 = vunpack.c.l.b16 %v1965
  %v2657 = vunpack.c.h.b16 %v1965
  %v2658 = vunpack.c.l.b16 %v1966
  %v2659 = vunpack.c.h.b16 %v1966
  %v2660 = vunpack.c.l.b16 %v1967
  %v2661 = vunpack.c.h.b16 %v1967
  %v2662 = vunpack.c.l.b16 %v1968
  %v2663 = vunpack.c.h.b16 %v1968
  %v2664 = vunpack.c.l.b16 %v1969
  %v2665 = vunpack.c.h.b16 %v1969
  %v2666 = vunpack.c.l.b16 %v1970
  %v2667 = vunpack.c.h.b16 %v1970
  %v2668 = vunpack.c.l.b16 %v1971
  %v2669 = vunpack.c.h.b16 %v1971
  %v2670 = vunpack.c.l.b16 %v1972
  %v2671 = vunpack.c.h.b16 %v1972
  %v2672 = vunpack.c.l.b16 %v1973
  %v2673 = vunpack.c.h.b16 %v1973
  %v2674 = vunpack.c.l.b16 %v1974
  %v2675 = vunpack.c.h.b16 %v1974
  %v2676 = vunpack.c.l.b16 %v1975
  %v2677 = vunpack.c.h.b16 %v1975
  %v2678 = vunpack.c.l.b16 %v1976
  %v2679 = vunpack.c.h.b16 %v1976
  %v2680 = vunpack.c.l.b16 %v1977
  %v2681 = vunpack.c.h.b16 %v1977
  %v2682 = vunpack.c.l.b16 %v1978
  %v2683 = vunpack.c.h.b16 %v1978
  %v2684 = vunpack.c.l.b16 %v1979
  %v2685 = vunpack.c.h.b16 %v1979
  %v2686 = vunpack.c.l.b16 %v1980
  %v2687 = vunpack.c.h.b16 %v1980
  %v2688 = vunpack.c.l.b16 %v1981
  %v2689 = vunpack.c.h.b16 %v1981
  %v2690 = vunpack.c.l.b16 %v1982
  %v2691 = vunpack.c.h.b16 %v1982
  %v2692 = vunpack.c.l.b16 %v1983
  %v2693 = vunpack.c.h.b16 %v1983
  %v2694 = vunpack.c.l.b16 %v1984
  %v2695 = vunpack.c.h.b16 %v1984
  %v2696 = vunpack.c.l.b16 %v1985
  %v2697 = vunpack.c.h.b16 %v1985
  %v2698 = vunpack.c.l.b16 %v1986
  %v2699 = vunpack.c.h.b16 %v1986
  %v2700 = vunpack.c.l.b16 %v1987
  %v2701 = vunpack.c.h.b16 %v1987
  %v2702 = vunpack.c.l.b16 %v1988
  %v2703 = vunpack.c.h.b16 %v1988
  %v2704 = vunpack.c.l.b16 %v1989
  %v2705 = vunpack.c.h.b16 %v1989
  %v2706 = vunpack.c.l.b16 %v1990
  %v2707 = vunpack.c.h.b16 %v1990
  %v2708 = vunpack.c.l.b16 %v1991
  %v2709 = vunpack.c.h.b16 %v1991
  %v2710 = vunpack.c.l.b16 %v1992
  %v2711 = vunpack.c.h.b16 %v1992
  %v2712 = vunpack.c.l.b16 %v1993
  %v2713 = vunpack.c.h.b16 %v1993
  %v2714 = vunpack.c.l.b16 %v1994
  %v2715 = vunpack.c.h.b16 %v1994
  %v2716 = vunpack.c.l.b16 %v1995
  %v2717 = vunpack.c.h.b16 %v1995
  %v2718 = vunpack.c.l.b16 %v1996
  %v2719 = vunpack.c.h.b16 %v1996
  %v2720 = vunpack.c.l.b16 %v1997
  %v2721 = vunpack.c.h.b16 %v1997
  %v2722 = vunpack.c.l.b16 %v1998
  %v2723 = vunpack.c.h.b16 %v1998
  %v2724 = vunpack.c.l.b16 %v1999
  %v2725 = vunpack.c.h.b16 %v1999
  %v2726 = vunpack.c.l.b16 %v2000
  %v2727 = vunpack.c.h.b16 %v2000
  %v2728 = vunpack.c.l.b16 %v2001
  %v2729 = vunpack.c.h.b16 %v2001
  %v2730 = vunpack.c.l.b16 %v2002
  %v2731 = vunpack.c.h.b16 %v2002
  %v2732 = vunpack.c.l.b16 %v2003
  %v2733 = vunpack.c.h.b16 %v2003
  %v2734 = vunpack.c.l.b16 %v2004
  %v2735 = vunpack.c.h.b16 %v2004
  %v2736 = vunpack.c.l.b16 %v2005
  %v2737 = vunpack.c.h.b16 %v2005
  %v2738 = vunpack.c.l.b16 %v2006
  %v2739 = vunpack.c.h.b16 %v2006
  %v2740 = vunpack.c.l.b16 %v2007
  %v2741 = vunpack.c.h.b16 %v2007
  %v2742 = vunpack.c.l.b16 %v2008
  %v2743 = vunpack.c.h.b16 %v2008
  %v2744 = vunpack.c.l.b16 %v2009
  %v2745 = vunpack.c.h.b16 %v2009
  %v2746 = vunpack.c.l.b16 %v2010
  %v2747 = vunpack.c.h.b16 %v2010
  %v2748 = vunpack.c.l.b16 %v2011
  %v2749 = vunpack.c.h.b16 %v2011
  %v2750 = vunpack.c.l.b16 %v2012
  %v2751 = vunpack.c.h.b16 %v2012
  %v2752 = vunpack.c.l.b16 %v2013
  %v2753 = vunpack.c.h.b16 %v2013
  %v2754 = vunpack.c.l.b16 %v2014
  %v2755 = vunpack.c.h.b16 %v2014
  %v2756 = vunpack.c.l.b16 %v2015
  %v2757 = vunpack.c.h.b16 %v2015
  %v2758 = vunpack.c.l.b16 %v2016
  %v2759 = vunpack.c.h.b16 %v2016
  %v2760 = vunpack.c.l.b16 %v2017
  %v2761 = vunpack.c.h.b16 %v2017
  %v2762 = vunpack.c.l.b16 %v2018
  %v2763 = vunpack.c.h.b16 %v2018
  %v2764 = vunpack.c.l.b16 %v2019
  %v2765 = vunpack.c.h.b16 %v2019
  %v2766 = vunpack.c.l.b16 %v2020
  %v2767 = vunpack.c.h.b16 %v2020
  %v2768 = vunpack.c.l.b16 %v2021
  %v2769 = vunpack.c.h.b16 %v2021
  %v2770 = vunpack.c.l.b16 %v2022
  %v2771 = vunpack.c.h.b16 %v2022
  %v2772 = vunpack.c.l.b16 %v2023
  %v2773 = vunpack.c.h.b16 %v2023
  %v2774 = vunpack.c.l.b16 %v2024
  %v2775 = vunpack.c.h.b16 %v2024
  %v2776 = vunpack.c.l.b16 %v2025
  %v2777 = vunpack.c.h.b16 %v2025
  %v2778 = vunpack.c.l.b16 %v2026
  %v2779 = vunpack.c.h.b16 %v2026
  %v2780 = vunpack.c.l.b16 %v2027
  %v2781 = vunpack.c.h.b16 %v2027
  %v2782 = vunpack.c.l.b16 %v2028
  %v2783 = vunpack.c.h.b16 %v2028
  %v2784 = vunpack.c.l.b16 %v2029
  %v2785 = vunpack.c.h.b16 %v2029
  %v2786 = vunpack.c.l.b16 %v2030
  %v2787 = vunpack.c.h.b16 %v2030
  %v2788 = vunpack.c.l.b16 %v2031
  %v2789 = vunpack.c.h.b16 %v2031
  %v2790 = vunpack.c.l.b16 %v2032
  %v2791 = vunpack.c.h.b16 %v2032
  %v2792 = vunpack.c.l.b16 %v2033
  %v2793 = vunpack.c.h.b16 %v2033
  %v2794 = vunpack.c.l.b16 %v2034
  %v2795 = vunpack.c.h.b16 %v2034
  %v2796 = vunpack.c.l.b16 %v2035
  %v2797 = vunpack.c.h.b16 %v2035
  %v2798 = vunpack.c.l.b16 %v2036
  %v2799 = vunpack.c.h.b16 %v2036
  %v2800 = vunpack.c.l.b16 %v2037
  %v2801 = vunpack.c.h.b16 %v2037
  %v2802 = vunpack.c.l.b16 %v2038
  %v2803 = vunpack.c.h.b16 %v2038
  %v2804 = vunpack.c.l.b16 %v2039
  %v2805 = vunpack.c.h.b16 %v2039
  %v2806 = vunpack.c.l.b16 %v2040
  %v2807 = vunpack.c.h.b16 %v2040
  %v2808 = vunpack.c.l.b16 %v2041
  %v2809 = vunpack.c.h.b16 %v2041
  %v2810 = vunpack.c.l.b16 %v2042
  %v2811 = vunpack.c.h.b16 %v2042
  %v2812 = vunpack.c.l.b16 %v2043
  %v2813 = vunpack.c.h.b16 %v2043
  %v2814 = vunpack.c.l.b16 %v2044
  %v2815 = vunpack.c.h.b16 %v2044
  %v2816 = vunpack.c.l.b16 %v2045
  %v2817 = vunpack.c.h.b16 %v2045
  %v2818 = vunpack.c.l.b16 %v2046
  %v2819 = vunpack.c.h.b16 %v2046
  %v2820 = vunpack.c.l.b16 %v2047
  %v2821 = vunpack.c.h.b16 %v2047
  %v2822 = vunpack.c.l.b16 %v2048
  %v2823 = vunpack.c.h.b16 %v2048
  %v2824 = vunpack.c.l.b16 %v2049
  %v2825 = vunpack.c.h.b16 %v2049
  %v2826 = vunpack.c.l.b16 %v2050
  %v2827 = vunpack.c.h.b16 %v2050
  %v2828 = vunpack.c.l.b16 %v2051
  %v2829 = vunpack.c.h.b16 %v2051
  %v2830 = vpack.c.b16 %v2450, %v2446
  %v2831 = vpack.c.b16 %v2451, %v2447
  %v2832 = vpack.c.b16 %v2452, %v2448
  %v2833 = vpack.c.b16 %v2453, %v2449
  %v2834 = vpack.c.b16 %v2458, %v2454
  %v2835 = vpack.c.b16 %v2459, %v2455
  %v2836 = vpack.c.b16 %v2460, %v2456
  %v2837 = vpack.c.b16 %v2461, %v2457
  %v2838 = vpack.c.b16 %v2466, %v2462
  %v2839 = vpack.c.b16 %v2467, %v2463
  %v2840 = vpack.c.b16 %v2468, %v2464
  %v2841 = vpack.c.b16 %v2469, %v2465
  %v2842 = vpack.c.b16 %v2474, %v2470
  %v2843 = vpack.c.b16 %v2475, %v2471
  %v2844 = vpack.c.b16 %v2476, %v2472
  %v2845 = vpack.c.b16 %v2477, %v2473
  %v2846 = vpack.c.b16 %v2482, %v2478
  %v2847 = vpack.c.b16 %v2483, %v2479
  %v2848 = vpack.c.b16 %v2484, %v2480
  %v2849 = vpack.c.b16 %v2485, %v2481
  %v2850 = vpack.c.b16 %v2490, %v2486
  %v2851 = vpack.c.b16 %v2491, %v2487
  %v2852 = vpack.c.b16 %v2492, %v2488
  %v2853 = vpack.c.b16 %v2493, %v2489
  %v2854 = vpack.c.b16 %v2498, %v2494
  %v2855 = vpack.c.b16 %v2499, %v2495
  %v2856 = vpack.c.b16 %v2500, %v2496
  %v2857 = vpack.c.b16 %v2501, %v2497
  %v2858 = vpack.c.b16 %v2506, %v2502
  %v2859 = vpack.c.b16 %v2507, %v2503
  %v2860 = vpack.c.b16 %v2508, %v2504
  %v2861 = vpack.c.b16 %v2509, %v2505
  %v2862 = vpack.c.b16 %v2514, %v2510
  %v2863 = vpack.c.b16 %v2515, %v2511
  %v2864 = vpack.c.b16 %v2516, %v2512
  %v2865 = vpack.c.b16 %v2517, %v2513
  %v2866 = vpack.c.b16 %v2522, %v2518
  %v2867 = vpack.c.b16 %v2523, %v2519
  %v2868 = vpack.c.b16 %v2524, %v2520
  %v2869 = vpack.c.b16 %v2525, %v2521
  %v2870 = vpack.c.b16 %v2530, %v2526
  %v2871 = vpack.c.b16 %v2531, %v2527
  %v2872 = vpack.c.b16 %v2532, %v2528
  %v2873 = vpack.c.b16 %v2533, %v2529
  %v2874 = vpack.c.b16 %v2538, %v2534
  %v2875 = vpack.c.b16 %v2539, %v2535
  %v2876 = vpack.c.b16 %v2540, %v2536
  %v2877 = vpack.c.b16 %v2541, %v2537
  %v2878 = vpack.c.b16 %v2546, %v2542
  %v2879 = vpack.c.b16 %v2547, %v2543
  %v2880 = vpack.c.b16 %v2548, %v2544
  %v2881 = vpack.c.b16 %v2549, %v2545
  %v2882 = vpack.c.b16 %v2554, %v2550
  %v2883 = vpack.c.b16 %v2555, %v2551
  %v2884 = vpack.c.b16 %v2556, %v2552
  %v2885 = vpack.c.b16 %v2557, %v2553
  %v2886 = vpack.c.b16 %v2562, %v2558
  %v2887 = vpack.c.b16 %v2563, %v2559
  %v2888 = vpack.c.b16 %v2564, %v2560
  %v2889 = vpack.c.b16 %v2565, %v2561
  %v2890 = vpack.c.b16 %v2570, %v2566
  %v2891 = vpack.c.b16 %v2571, %v2567
  %v2892 = vpack.c.b16 %v2572, %v2568
  %v2893 = vpack.c.b16 %v2573, %v2569
  %v2894 = vpack.c.b16 %v2578, %v2574
  %v2895 = vpack.c.b16 %v2579, %v2575
  %v2896 = vpack.c.b16 %v2580, %v2576
  %v2897 = vpack.c.b16 %v2581, %v2577
  %v2898 = vpack.c.b16 %v2586, %v2582
  %v2899 = vpack.c.b16 %v2587, %v2583
  %v2900 = vpack.c.b16 %v2588, %v2584
  %v2901 = vpack.c.b16 %v2589, %v2585
  %v2902 = vpack.c.b16 %v2594, %v2590
  %v2903 = vpack.c.b16 %v2595, %v2591
  %v2904 = vpack.c.b16 %v2596, %v2592
  %v2905 = vpack.c.b16 %v2597, %v2593
  %v2906 = vpack.c.b16 %v2602, %v2598
  %v2907 = vpack.c.b16 %v2603, %v2599
  %v2908 = vpack.c.b16 %v2604, %v2600
  %v2909 = vpack.c.b16 %v2605, %v2601
  %v2910 = vpack.c.b16 %v2610, %v2606
  %v2911 = vpack.c.b16 %v2611, %v2607
  %v2912 = vpack.c.b16 %v2612, %v2608
  %v2913 = vpack.c.b16 %v2613, %v2609
  %v2914 = vpack.c.b16 %v2618, %v2614
  %v2915 = vpack.c.b16 %v2619, %v2615
  %v2916 = vpack.c.b16 %v2620, %v2616
  %v2917 = vpack.c.b16 %v2621, %v2617
  %v2918 = vpack.c.b16 %v2626, %v2622
  %v2919 = vpack.c.b16 %v2627, %v2623
  %v2920 = vpack.c.b16 %v2628, %v2624
  %v2921 = vpack.c.b16 %v2629, %v2625
  %v2922 = vpack.c.b16 %v2634, %v2630
  %v2923 = vpack.c.b16 %v2635, %v2631
  %v2924 = vpack.c.b16 %v2636, %v2632
  %v2925 = vpack.c.b16 %v2637, %v2633
  %v2926 = vpack.c.b16 %v2642, %v2638
  %v2927 = vpack.c.b16 %v2643, %v2639
  %v2928 = vpack.c.b16 %v2644, %v2640
  %v2929 = vpack.c.b16 %v2645, %v2641
  %v2930 = vpack.c.b16 %v2650, %v2646
  %v2931 = vpack.c.b16 %v2651, %v2647
  %v2932 = vpack.c.b16 %v2652, %v2648
  %v2933 = vpack.c.b16 %v2653, %v2649
  %v2934 = vpack.c.b16 %v2658, %v2654
  %v2935 = vpack.c.b16 %v2659, %v2655
  %v2936 = vpack.c.b16 %v2660, %v2656
  %v2937 = vpack.c.b16 %v2661, %v2657
  %v2938 = vpack.c.b16 %v2666, %v2662
  %v2939 = vpack.c.b16 %v2667, %v2663
  %v2940 = vpack.c.b16 %v2668, %v2664
  %v2941 = vpack.c.b16 %v2669, %v2665
  %v2942 = vpack.c.b16 %v2674, %v2670
  %v2943 = vpack.c.b16 %v2675, %v2671
  %v2944 = vpack.c.b16 %v2676, %v2672
  %v2945 = vpack.c.b16 %v2677, %v2673
  %v2946 = vpack.c.b16 %v2682, %v2678
  %v2947 = vpack.c.b16 %v2683, %v2679
  %v2948 = vpack.c.b16 %v2684, %v2680
  %v2949 = vpack.c.b16 %v2685, %v2681
  %v2950 = vpack.c.b16 %v2690, %v2686
  %v2951 = vpack.c.b16 %v2691, %v2687
  %v2952 = vpack.c.b16 %v2692, %v2688
  %v2953 = vpack.c.b16 %v2693, %v2689
  %v2954 = vpack.c.b16 %v2698, %v2694
  %v2955 = vpack.c.b16 %v2699, %v2695
  %v2956 = vpack.c.b16 %v2700, %v2696
  %v2957 = vpack.c.b16 %v2701, %v2697
  %v2958 = vpack.c.b16 %v2706, %v2702
  %v2959 = vpack.c.b16 %v2707, %v2703
  %v2960 = vpack.c.b16 %v2708, %v2704
  %v2961 = vpack.c.b16 %v2709, %v2705
  %v2962 = vpack.c.b16 %v2714, %v2710
  %v2963 = vpack.c.b16 %v2715, %v2711
  %v2964 = vpack.c.b16 %v2716, %v2712
  %v2965 = vpack.c.b16 %v2717, %v2713
  %v2966 = vpack.c.b16 %v2722, %v2718
  %v2967 = vpack.c.b16 %v2723, %v2719
  %v2968 = vpack.c.b16 %v2724, %v2720
  %v2969 = vpack.c.b16 %v2725, %v2721
  %v2970 = vpack.c.b16 %v2730, %v2726
  %v2971 = vpack.c.b16 %v2731, %v2727
  %v2972 = vpack.c.b16 %v2732, %v2728
  %v2973 = vpack.c.b16 %v2733, %v2729
  %v2974 = vpack.c.b16 %v2738, %v2734
  %v2975 = vpack.c.b16 %v2739, %v2735
  %v2976 = vpack.c.b16 %v2740, %v2736
  %v2977 = vpack.c.b16 %v2741, %v2737
  %v2978 = vpack.c.b16 %v2746, %v2742
  %v2979 = vpack.c.b16 %v2747, %v2743
  %v2980 = vpack.c.b16 %v2748, %v2744
  %v2981 = vpack.c.b16 %v2749, %v2745
  %v2982 = vpack.c.b16 %v2754, %v2750
  %v2983 = vpack.c.b16 %v2755, %v2751
  %v2984 = vpack.c.b16 %v2756, %v2752
  %v2985 = vpack.c.b16 %v2757, %v2753
  %v2986 = vpack.c.b16 %v2762, %v2758
  %v2987 = vpack.c.b16 %v2763, %v2759
  %v2988 = vpack.c.b16 %v2764, %v2760
  %v2989 = vpack.c.b16 %v2765, %v2761
  %v2990 = vpack.c.b16 %v2770, %v2766
  %v2991 = vpack.c.b16 %v2771, %v2767
  %v2992 = vpack.c.b16 %v2772, %v2768
  %v2993 = vpack.c.b16 %v2773, %v2769
  %v2994 = vpack.c.b16 %v2778, %v2774
  %v2995 = vpack.c.b16 %v2779, %v2775
  %v2996 = vpack.c.b16 %v2780, %v2776
  %v2997 = vpack.c.b16 %v2781, %v2777
  %v2998 = vpack.c.b16 %v2786, %v2782
  %v2999 = vpack.c.b16 %v2787, %v2783
  %v3000 = vpack.c.b16 %v2788, %v2784
  %v3001 = vpack.c.b16 %v2789, %v2785
  %v3002 = vpack.c.b16 %v2794, %v2790
  %v3003 = vpack.c.b16 %v2795, %v2791
  %v3004 = vpack.c.b16 %v2796, %v2792
  %v3005 = vpack.c.b16 %v2797, %v2793
  %v3006 = vpack.c.b16 %v2802, %v2798
  %v3007 = vpack.c.b16 %v2803, %v2799
  %v3008 = vpack.c.b16 %v2804, %v2800
  %v3009 = vpack.c.b16 %v2805, %v2801
  %v3010 = vpack.c.b16 %v2810, %v2806
  %v3011 = vpack.c.b16 %v2811, %v2807
  %v3012 = vpack.c.b16 %v2812, %v2808
  %v3013 = vpack.c.b16 %v2813, %v2809
  %v3014 = vpack.c.b16 %v2818, %v2814
  %v3015 = vpack.c.b16 %v2819, %v2815
  %v3016 = vpack.c.b16 %v2820, %v2816
  %v3017 = vpack.c.b16 %v2821, %v2817
  %v3018 = vpack.c.b16 %v2826, %v2822
  %v3019 = vpack.c.b16 %v2827, %v2823
  %v3020 = vpack.c.b16 %v2828, %v2824
  %v3021 = vpack.c.b16 %v2829, %v2825
  %3214 = vmatprep.subr.bf16.mxu0 %v2831
  %3215 = vmatpush1.bf16.msra.mxu0 %v2830
  %3216 = vmatprep.subr.bf16.mxu0 %v2835
  %3217 = vmatpush1.bf16.msra.mxu0 %v2834
  %3218 = vmatprep.subr.bf16.mxu0 %v2839
  %3219 = vmatpush1.bf16.msra.mxu0 %v2838
  %3220 = vmatprep.subr.bf16.mxu0 %v2843
  %3221 = vmatpush1.bf16.msra.mxu0 %v2842
  %3222 = vmatprep.subr.bf16.mxu0 %v2847
  %3223 = vmatpush1.bf16.msra.mxu0 %v2846
  %3224 = vmatprep.subr.bf16.mxu0 %v2851
  %3225 = vmatpush1.bf16.msra.mxu0 %v2850
  %3226 = vmatprep.subr.bf16.mxu0 %v2855
  %3227 = vmatpush1.bf16.msra.mxu0 %v2854
  %3228 = vmatprep.subr.bf16.mxu0 %v2859
  %3229 = vmatpush1.bf16.msra.mxu0 %v2858
  %3230 = vmatprep.subr.bf16.mxu0 %v2863
  %3231 = vmatpush1.bf16.msra.mxu0 %v2862
  %3232 = vmatprep.subr.bf16.mxu0 %v2867
  %3233 = vmatpush1.bf16.msra.mxu0 %v2866
  %3234 = vmatprep.subr.bf16.mxu0 %v2871
  %3235 = vmatpush1.bf16.msra.mxu0 %v2870
  %3236 = vmatprep.subr.bf16.mxu0 %v2875
  %3237 = vmatpush1.bf16.msra.mxu0 %v2874
  %3238 = vmatprep.subr.bf16.mxu0 %v2879
  %3239 = vmatpush1.bf16.msra.mxu0 %v2878
  %3240 = vmatprep.subr.bf16.mxu0 %v2883
  %3241 = vmatpush1.bf16.msra.mxu0 %v2882
  %3242 = vmatprep.subr.bf16.mxu0 %v2887
  %3243 = vmatpush1.bf16.msra.mxu0 %v2886
  %3244 = vmatprep.subr.bf16.mxu0 %v2891
  %3245 = vmatpush1.bf16.msra.mxu0 %v2890
  %3246 = vmatprep.mubr.bf16.mxu0 %v2183
  %3247 = vmatmul.mubr.bf16.gmra.mrb[0].mxu0 %v2182
  %v3248 = vpop.f32.mrb[0].mxu0
  %v3249 = vadd.f32 %v2057, %v3248
  %v3250 = vpop.f32.mrb[0].mxu0
  %v3251 = vadd.f32 %v2061, %v3250
  %v3252 = vpop.f32.mrb[0].mxu0
  %v3253 = vadd.f32 %v2057, %v3252
  %v3254 = vpop.f32.mrb[0].mxu0
  %v3255 = vadd.f32 %v2061, %v3254
  %3256 = vmatprep.mubr.bf16.mxu0 %v2189
  %3257 = vmatmul.mubr.bf16.gmra.mrb[0].mxu0 %v2188
  %v3258 = vpop.f32.mrb[0].mxu0
  %v3259 = vadd.f32 %v2057, %v3258
  %v3260 = vpop.f32.mrb[0].mxu0
  %v3261 = vadd.f32 %v2061, %v3260
  %v3262 = vpop.f32.mrb[0].mxu0
  %v3263 = vadd.f32 %v2057, %v3262
  %v3264 = vpop.f32.mrb[0].mxu0
  %v3265 = vadd.f32 %v2061, %v3264
  %3266 = vmatprep.mubr.bf16.mxu0 %v2195
  %3267 = vmatmul.mubr.bf16.gmra.mrb[0].mxu0 %v2194
  %v3268 = vpop.f32.mrb[0].mxu0
  %v3269 = vadd.f32 %v2057, %v3268
  %v3270 = vpop.f32.mrb[0].mxu0
  %v3271 = vadd.f32 %v2061, %v3270
  %v3272 = vpop.f32.mrb[0].mxu0
  %v3273 = vadd.f32 %v2057, %v3272
  %v3274 = vpop.f32.mrb[0].mxu0
  %v3275 = vadd.f32 %v2061, %v3274
  %3276 = vmatprep.mubr.bf16.mxu0 %v2201
  %3277 = vmatmul.mubr.bf16.gmra.mrb[0].mxu0 %v2200
  %v3278 = vpop.f32.mrb[0].mxu0
  %v3279 = vadd.f32 %v2057, %v3278
  %v3280 = vpop.f32.mrb[0].mxu0
  %v3281 = vadd.f32 %v2061, %v3280
  %v3282 = vpop.f32.mrb[0].mxu0
  %v3283 = vadd.f32 %v2057, %v3282
  %v3284 = vpop.f32.mrb[0].mxu0
  %v3285 = vadd.f32 %v2061, %v3284
  %3286 = vmatprep.mubr.bf16.mxu0 %v2207
  %3287 = vmatmul.mubr.bf16.gmra.mrb[0].mxu0 %v2206
  %v3288 = vpop.f32.mrb[0].mxu0
  %v3289 = vadd.f32 %v2057, %v3288
  %v3290 = vpop.f32.mrb[0].mxu0
  %v3291 = vadd.f32 %v2061, %v3290
  %v3292 = vpop.f32.mrb[0].mxu0
  %v3293 = vadd.f32 %v2057, %v3292
  %v3294 = vpop.f32.mrb[0].mxu0
  %v3295 = vadd.f32 %v2061, %v3294
  %3296 = vmatprep.mubr.bf16.mxu0 %v2213
  %3297 = vmatmul.mubr.bf16.gmra.mrb[0].mxu0 %v2212
  %v3298 = vpop.f32.mrb[0].mxu0
  %v3299 = vadd.f32 %v2057, %v3298
  %v3300 = vpop.f32.mrb[0].mxu0
  %v3301 = vadd.f32 %v2061, %v3300
  %v3302 = vpop.f32.mrb[0].mxu0
  %v3303 = vadd.f32 %v2057, %v3302
  %v3304 = vpop.f32.mrb[0].mxu0
  %v3305 = vadd.f32 %v2061, %v3304
  %3306 = vdwg.mxu0
  %3307 = vmatprep.subr.bf16.mxu0 %v2895
  %3308 = vmatpush1.bf16.msra.mxu0 %v2894
  %3309 = vmatprep.subr.bf16.mxu0 %v2899
  %3310 = vmatpush1.bf16.msra.mxu0 %v2898
  %3311 = vmatprep.subr.bf16.mxu0 %v2903
  %3312 = vmatpush1.bf16.msra.mxu0 %v2902
  %3313 = vmatprep.subr.bf16.mxu0 %v2907
  %3314 = vmatpush1.bf16.msra.mxu0 %v2906
  %3315 = vmatprep.subr.bf16.mxu0 %v2911
  %3316 = vmatpush1.bf16.msra.mxu0 %v2910
  %3317 = vmatprep.subr.bf16.mxu0 %v2915
  %3318 = vmatpush1.bf16.msra.mxu0 %v2914
  %3319 = vmatprep.subr.bf16.mxu0 %v2919
  %3320 = vmatpush1.bf16.msra.mxu0 %v2918
  %3321 = vmatprep.subr.bf16.mxu0 %v2923
  %3322 = vmatpush1.bf16.msra.mxu0 %v2922
  %3323 = vmatprep.subr.bf16.mxu0 %v2927
  %3324 = vmatpush1.bf16.msra.mxu0 %v2926
  %3325 = vmatprep.subr.bf16.mxu0 %v2931
  %3326 = vmatpush1.bf16.msra.mxu0 %v2930
  %3327 = vmatprep.subr.bf16.mxu0 %v2935
  %3328 = vmatpush1.bf16.msra.mxu0 %v2934
  %3329 = vmatprep.subr.bf16.mxu0 %v2939
  %3330 = vmatpush1.bf16.msra.mxu0 %v2938
  %3331 = vmatprep.subr.bf16.mxu0 %v2943
  %3332 = vmatpush1.bf16.msra.mxu0 %v2942
  %3333 = vmatprep.subr.bf16.mxu0 %v2947
  %3334 = vmatpush1.bf16.msra.mxu0 %v2946
  %3335 = vmatprep.subr.bf16.mxu0 %v2951
  %3336 = vmatpush1.bf16.msra.mxu0 %v2950
  %3337 = vmatprep.subr.bf16.mxu0 %v2955
  %3338 = vmatpush1.bf16.msra.mxu0 %v2954
  %3339 = vmatprep.mubr.bf16.mxu0 %v2185
  %3340 = vmatmul.mubr.bf16.gmra.mrb[0].mxu0 %v2184
  %v3341 = vpop.f32.mrb[0].mxu0
  %v3342 = vadd.f32 %v3249, %v3341
  %v3343 = vpop.f32.mrb[0].mxu0
  %v3344 = vadd.f32 %v3251, %v3343
  %v3345 = vpop.f32.mrb[0].mxu0
  %v3346 = vadd.f32 %v3253, %v3345
  %v3347 = vpop.f32.mrb[0].mxu0
  %v3348 = vadd.f32 %v3255, %v3347
  %3349 = vmatprep.mubr.bf16.mxu0 %v2191
  %3350 = vmatmul.mubr.bf16.gmra.mrb[0].mxu0 %v2190
  %v3351 = vpop.f32.mrb[0].mxu0
  %v3352 = vadd.f32 %v3259, %v3351
  %v3353 = vpop.f32.mrb[0].mxu0
  %v3354 = vadd.f32 %v3261, %v3353
  %v3355 = vpop.f32.mrb[0].mxu0
  %v3356 = vadd.f32 %v3263, %v3355
  %v3357 = vpop.f32.mrb[0].mxu0
  %v3358 = vadd.f32 %v3265, %v3357
  %3359 = vmatprep.mubr.bf16.mxu0 %v2197
  %3360 = vmatmul.mubr.bf16.gmra.mrb[0].mxu0 %v2196
  %v3361 = vpop.f32.mrb[0].mxu0
  %v3362 = vadd.f32 %v3269, %v3361
  %v3363 = vpop.f32.mrb[0].mxu0
  %v3364 = vadd.f32 %v3271, %v3363
  %v3365 = vpop.f32.mrb[0].mxu0
  %v3366 = vadd.f32 %v3273, %v3365
  %v3367 = vpop.f32.mrb[0].mxu0
  %v3368 = vadd.f32 %v3275, %v3367
  %3369 = vmatprep.mubr.bf16.mxu0 %v2203
  %3370 = vmatmul.mubr.bf16.gmra.mrb[0].mxu0 %v2202
  %v3371 = vpop.f32.mrb[0].mxu0
  %v3372 = vadd.f32 %v3279, %v3371
  %v3373 = vpop.f32.mrb[0].mxu0
  %v3374 = vadd.f32 %v3281, %v3373
  %v3375 = vpop.f32.mrb[0].mxu0
  %v3376 = vadd.f32 %v3283, %v3375
  %v3377 = vpop.f32.mrb[0].mxu0
  %v3378 = vadd.f32 %v3285, %v3377
  %3379 = vmatprep.mubr.bf16.mxu0 %v2209
  %3380 = vmatmul.mubr.bf16.gmra.mrb[0].mxu0 %v2208
  %v3381 = vpop.f32.mrb[0].mxu0
  %v3382 = vadd.f32 %v3289, %v3381
  %v3383 = vpop.f32.mrb[0].mxu0
  %v3384 = vadd.f32 %v3291, %v3383
  %v3385 = vpop.f32.mrb[0].mxu0
  %v3386 = vadd.f32 %v3293, %v3385
  %v3387 = vpop.f32.mrb[0].mxu0
  %v3388 = vadd.f32 %v3295, %v3387
  %3389 = vmatprep.mubr.bf16.mxu0 %v2215
  %3390 = vmatmul.mubr.bf16.gmra.mrb[0].mxu0 %v2214
  %v3391 = vpop.f32.mrb[0].mxu0
  %v3392 = vadd.f32 %v3299, %v3391
  %v3393 = vpop.f32.mrb[0].mxu0
  %v3394 = vadd.f32 %v3301, %v3393
  %v3395 = vpop.f32.mrb[0].mxu0
  %v3396 = vadd.f32 %v3303, %v3395
  %v3397 = vpop.f32.mrb[0].mxu0
  %v3398 = vadd.f32 %v3305, %v3397
  %3399 = vdwg.mxu0
  %3400 = vmatprep.subr.bf16.mxu0 %v2959
  %3401 = vmatpush1.bf16.msra.mxu0 %v2958
  %3402 = vmatprep.subr.bf16.mxu0 %v2963
  %3403 = vmatpush1.bf16.msra.mxu0 %v2962
  %3404 = vmatprep.subr.bf16.mxu0 %v2967
  %3405 = vmatpush1.bf16.msra.mxu0 %v2966
  %3406 = vmatprep.subr.bf16.mxu0 %v2971
  %3407 = vmatpush1.bf16.msra.mxu0 %v2970
  %3408 = vmatprep.subr.bf16.mxu0 %v2975
  %3409 = vmatpush1.bf16.msra.mxu0 %v2974
  %3410 = vmatprep.subr.bf16.mxu0 %v2979
  %3411 = vmatpush1.bf16.msra.mxu0 %v2978
  %3412 = vmatprep.subr.bf16.mxu0 %v2983
  %3413 = vmatpush1.bf16.msra.mxu0 %v2982
  %3414 = vmatprep.subr.bf16.mxu0 %v2987
  %3415 = vmatpush1.bf16.msra.mxu0 %v2986
  %3416 = vmatprep.subr.bf16.mxu0 %v2991
  %3417 = vmatpush1.bf16.msra.mxu0 %v2990
  %3418 = vmatprep.subr.bf16.mxu0 %v2995
  %3419 = vmatpush1.bf16.msra.mxu0 %v2994
  %3420 = vmatprep.subr.bf16.mxu0 %v2999
  %3421 = vmatpush1.bf16.msra.mxu0 %v2998
  %3422 = vmatprep.subr.bf16.mxu0 %v3003
  %3423 = vmatpush1.bf16.msra.mxu0 %v3002
  %3424 = vmatprep.subr.bf16.mxu0 %v3007
  %3425 = vmatpush1.bf16.msra.mxu0 %v3006
  %3426 = vmatprep.subr.bf16.mxu0 %v3011
  %3427 = vmatpush1.bf16.msra.mxu0 %v3010
  %3428 = vmatprep.subr.bf16.mxu0 %v3015
  %3429 = vmatpush1.bf16.msra.mxu0 %v3014
  %3430 = vmatprep.subr.bf16.mxu0 %v3019
  %3431 = vmatpush1.bf16.msra.mxu0 %v3018
  %3432 = vmatprep.mubr.bf16.mxu0 %v2187
  %3433 = vmatmul.mubr.bf16.gmra.mrb[0].mxu0 %v2186
  %v3434 = vpop.f32.mrb[0].mxu0
  %v3435 = vadd.f32 %v3342, %v3434
  %v3436 = vpop.f32.mrb[0].mxu0
  %v3437 = vadd.f32 %v3344, %v3436
  %v3438 = vpop.f32.mrb[0].mxu0
  %v3439 = vadd.f32 %v3346, %v3438
  %v3440 = vpop.f32.mrb[0].mxu0
  %v3441 = vadd.f32 %v3348, %v3440
  %3442 = vmatprep.mubr.bf16.mxu0 %v2193
  %3443 = vmatmul.mubr.bf16.gmra.mrb[0].mxu0 %v2192
  %v3444 = vpop.f32.mrb[0].mxu0
  %v3445 = vadd.f32 %v3352, %v3444
  %v3446 = vpop.f32.mrb[0].mxu0
  %v3447 = vadd.f32 %v3354, %v3446
  %v3448 = vpop.f32.mrb[0].mxu0
  %v3449 = vadd.f32 %v3356, %v3448
  %v3450 = vpop.f32.mrb[0].mxu0
  %v3451 = vadd.f32 %v3358, %v3450
  %3452 = vmatprep.mubr.bf16.mxu0 %v2199
  %3453 = vmatmul.mubr.bf16.gmra.mrb[0].mxu0 %v2198
  %v3454 = vpop.f32.mrb[0].mxu0
  %v3455 = vadd.f32 %v3362, %v3454
  %v3456 = vpop.f32.mrb[0].mxu0
  %v3457 = vadd.f32 %v3364, %v3456
  %v3458 = vpop.f32.mrb[0].mxu0
  %v3459 = vadd.f32 %v3366, %v3458
  %v3460 = vpop.f32.mrb[0].mxu0
  %v3461 = vadd.f32 %v3368, %v3460
  %3462 = vmatprep.mubr.bf16.mxu0 %v2205
  %3463 = vmatmul.mubr.bf16.gmra.mrb[0].mxu0 %v2204
  %v3464 = vpop.f32.mrb[0].mxu0
  %v3465 = vadd.f32 %v3372, %v3464
  %v3466 = vpop.f32.mrb[0].mxu0
  %v3467 = vadd.f32 %v3374, %v3466
  %v3468 = vpop.f32.mrb[0].mxu0
  %v3469 = vadd.f32 %v3376, %v3468
  %v3470 = vpop.f32.mrb[0].mxu0
  %v3471 = vadd.f32 %v3378, %v3470
  %3472 = vmatprep.mubr.bf16.mxu0 %v2211
  %3473 = vmatmul.mubr.bf16.gmra.mrb[0].mxu0 %v2210
  %v3474 = vpop.f32.mrb[0].mxu0
  %v3475 = vadd.f32 %v3382, %v3474
  %v3476 = vpop.f32.mrb[0].mxu0
  %v3477 = vadd.f32 %v3384, %v3476
  %v3478 = vpop.f32.mrb[0].mxu0
  %v3479 = vadd.f32 %v3386, %v3478
  %v3480 = vpop.f32.mrb[0].mxu0
  %v3481 = vadd.f32 %v3388, %v3480
  %3482 = vmatprep.mubr.bf16.mxu0 %v2217
  %3483 = vmatmul.mubr.bf16.gmra.mrb[0].mxu0 %v2216
  %v3484 = vpop.f32.mrb[0].mxu0
  %v3485 = vadd.f32 %v3392, %v3484
  %v3486 = vpop.f32.mrb[0].mxu0
  %v3487 = vadd.f32 %v3394, %v3486
  %v3488 = vpop.f32.mrb[0].mxu0
  %v3489 = vadd.f32 %v3396, %v3488
  %v3490 = vpop.f32.mrb[0].mxu0
  %v3491 = vadd.f32 %v3398, %v3490
  %3492 = vdwg.mxu0
  %3493 = vmatprep.subr.bf16.mxu0 %v2833
  %3494 = vmatpush1.bf16.msra.mxu0 %v2832
  %3495 = vmatprep.subr.bf16.mxu0 %v2837
  %3496 = vmatpush1.bf16.msra.mxu0 %v2836
  %3497 = vmatprep.subr.bf16.mxu0 %v2841
  %3498 = vmatpush1.bf16.msra.mxu0 %v2840
  %3499 = vmatprep.subr.bf16.mxu0 %v2845
  %3500 = vmatpush1.bf16.msra.mxu0 %v2844
  %3501 = vmatprep.subr.bf16.mxu0 %v2849
  %3502 = vmatpush1.bf16.msra.mxu0 %v2848
  %3503 = vmatprep.subr.bf16.mxu0 %v2853
  %3504 = vmatpush1.bf16.msra.mxu0 %v2852
  %3505 = vmatprep.subr.bf16.mxu0 %v2857
  %3506 = vmatpush1.bf16.msra.mxu0 %v2856
  %3507 = vmatprep.subr.bf16.mxu0 %v2861
  %3508 = vmatpush1.bf16.msra.mxu0 %v2860
  %3509 = vmatprep.subr.bf16.mxu0 %v2865
  %3510 = vmatpush1.bf16.msra.mxu0 %v2864
  %3511 = vmatprep.subr.bf16.mxu0 %v2869
  %3512 = vmatpush1.bf16.msra.mxu0 %v2868
  %3513 = vmatprep.subr.bf16.mxu0 %v2873
  %3514 = vmatpush1.bf16.msra.mxu0 %v2872
  %3515 = vmatprep.subr.bf16.mxu0 %v2877
  %3516 = vmatpush1.bf16.msra.mxu0 %v2876
  %3517 = vmatprep.subr.bf16.mxu0 %v2881
  %3518 = vmatpush1.bf16.msra.mxu0 %v2880
  %3519 = vmatprep.subr.bf16.mxu0 %v2885
  %3520 = vmatpush1.bf16.msra.mxu0 %v2884
  %3521 = vmatprep.subr.bf16.mxu0 %v2889
  %3522 = vmatpush1.bf16.msra.mxu0 %v2888
  %3523 = vmatprep.subr.bf16.mxu0 %v2893
  %3524 = vmatpush1.bf16.msra.mxu0 %v2892
  %3525 = vmatprep.mubr.bf16.mxu0 %v2183
  %3526 = vmatmul.mubr.bf16.gmra.mrb[0].mxu0 %v2182
  %v3527 = vpop.f32.mrb[0].mxu0
  %v3528 = vadd.f32 %v2065, %v3527
  %v3529 = vpop.f32.mrb[0].mxu0
  %v3530 = vadd.f32 %v2069, %v3529
  %v3531 = vpop.f32.mrb[0].mxu0
  %v3532 = vadd.f32 %v2065, %v3531
  %v3533 = vpop.f32.mrb[0].mxu0
  %v3534 = vadd.f32 %v2069, %v3533
  %3535 = vmatprep.mubr.bf16.mxu0 %v2189
  %3536 = vmatmul.mubr.bf16.gmra.mrb[0].mxu0 %v2188
  %v3537 = vpop.f32.mrb[0].mxu0
  %v3538 = vadd.f32 %v2065, %v3537
  %v3539 = vpop.f32.mrb[0].mxu0
  %v3540 = vadd.f32 %v2069, %v3539
  %v3541 = vpop.f32.mrb[0].mxu0
  %v3542 = vadd.f32 %v2065, %v3541
  %v3543 = vpop.f32.mrb[0].mxu0
  %v3544 = vadd.f32 %v2069, %v3543
  %3545 = vmatprep.mubr.bf16.mxu0 %v2195
  %3546 = vmatmul.mubr.bf16.gmra.mrb[0].mxu0 %v2194
  %v3547 = vpop.f32.mrb[0].mxu0
  %v3548 = vadd.f32 %v2065, %v3547
  %v3549 = vpop.f32.mrb[0].mxu0
  %v3550 = vadd.f32 %v2069, %v3549
  %v3551 = vpop.f32.mrb[0].mxu0
  %v3552 = vadd.f32 %v2065, %v3551
  %v3553 = vpop.f32.mrb[0].mxu0
  %v3554 = vadd.f32 %v2069, %v3553
  %3555 = vmatprep.mubr.bf16.mxu0 %v2201
  %3556 = vmatmul.mubr.bf16.gmra.mrb[0].mxu0 %v2200
  %v3557 = vpop.f32.mrb[0].mxu0
  %v3558 = vadd.f32 %v2065, %v3557
  %v3559 = vpop.f32.mrb[0].mxu0
  %v3560 = vadd.f32 %v2069, %v3559
  %v3561 = vpop.f32.mrb[0].mxu0
  %v3562 = vadd.f32 %v2065, %v3561
  %v3563 = vpop.f32.mrb[0].mxu0
  %v3564 = vadd.f32 %v2069, %v3563
  %3565 = vmatprep.mubr.bf16.mxu0 %v2207
  %3566 = vmatmul.mubr.bf16.gmra.mrb[0].mxu0 %v2206
  %v3567 = vpop.f32.mrb[0].mxu0
  %v3568 = vadd.f32 %v2065, %v3567
  %v3569 = vpop.f32.mrb[0].mxu0
  %v3570 = vadd.f32 %v2069, %v3569
  %v3571 = vpop.f32.mrb[0].mxu0
  %v3572 = vadd.f32 %v2065, %v3571
  %v3573 = vpop.f32.mrb[0].mxu0
  %v3574 = vadd.f32 %v2069, %v3573
  %3575 = vmatprep.mubr.bf16.mxu0 %v2213
  %3576 = vmatmul.mubr.bf16.gmra.mrb[0].mxu0 %v2212
  %v3577 = vpop.f32.mrb[0].mxu0
  %v3578 = vadd.f32 %v2065, %v3577
  %v3579 = vpop.f32.mrb[0].mxu0
  %v3580 = vadd.f32 %v2069, %v3579
  %v3581 = vpop.f32.mrb[0].mxu0
  %v3582 = vadd.f32 %v2065, %v3581
  %v3583 = vpop.f32.mrb[0].mxu0
  %v3584 = vadd.f32 %v2069, %v3583
  %3585 = vdwg.mxu0
  %3586 = vmatprep.subr.bf16.mxu0 %v2897
  %3587 = vmatpush1.bf16.msra.mxu0 %v2896
  %3588 = vmatprep.subr.bf16.mxu0 %v2901
  %3589 = vmatpush1.bf16.msra.mxu0 %v2900
  %3590 = vmatprep.subr.bf16.mxu0 %v2905
  %3591 = vmatpush1.bf16.msra.mxu0 %v2904
  %3592 = vmatprep.subr.bf16.mxu0 %v2909
  %3593 = vmatpush1.bf16.msra.mxu0 %v2908
  %3594 = vmatprep.subr.bf16.mxu0 %v2913
  %3595 = vmatpush1.bf16.msra.mxu0 %v2912
  %3596 = vmatprep.subr.bf16.mxu0 %v2917
  %3597 = vmatpush1.bf16.msra.mxu0 %v2916
  %3598 = vmatprep.subr.bf16.mxu0 %v2921
  %3599 = vmatpush1.bf16.msra.mxu0 %v2920
  %3600 = vmatprep.subr.bf16.mxu0 %v2925
  %3601 = vmatpush1.bf16.msra.mxu0 %v2924
  %3602 = vmatprep.subr.bf16.mxu0 %v2929
  %3603 = vmatpush1.bf16.msra.mxu0 %v2928
  %3604 = vmatprep.subr.bf16.mxu0 %v2933
  %3605 = vmatpush1.bf16.msra.mxu0 %v2932
  %3606 = vmatprep.subr.bf16.mxu0 %v2937
  %3607 = vmatpush1.bf16.msra.mxu0 %v2936
  %3608 = vmatprep.subr.bf16.mxu0 %v2941
  %3609 = vmatpush1.bf16.msra.mxu0 %v2940
  %3610 = vmatprep.subr.bf16.mxu0 %v2945
  %3611 = vmatpush1.bf16.msra.mxu0 %v2944
  %3612 = vmatprep.subr.bf16.mxu0 %v2949
  %3613 = vmatpush1.bf16.msra.mxu0 %v2948
  %3614 = vmatprep.subr.bf16.mxu0 %v2953
  %3615 = vmatpush1.bf16.msra.mxu0 %v2952
  %3616 = vmatprep.subr.bf16.mxu0 %v2957
  %3617 = vmatpush1.bf16.msra.mxu0 %v2956
  %3618 = vmatprep.mubr.bf16.mxu0 %v2185
  %3619 = vmatmul.mubr.bf16.gmra.mrb[0].mxu0 %v2184
  %v3620 = vpop.f32.mrb[0].mxu0
  %v3621 = vadd.f32 %v3528, %v3620
  %v3622 = vpop.f32.mrb[0].mxu0
  %v3623 = vadd.f32 %v3530, %v3622
  %v3624 = vpop.f32.mrb[0].mxu0
  %v3625 = vadd.f32 %v3532, %v3624
  %v3626 = vpop.f32.mrb[0].mxu0
  %v3627 = vadd.f32 %v3534, %v3626
  %3628 = vmatprep.mubr.bf16.mxu0 %v2191
  %3629 = vmatmul.mubr.bf16.gmra.mrb[0].mxu0 %v2190
  %v3630 = vpop.f32.mrb[0].mxu0
  %v3631 = vadd.f32 %v3538, %v3630
  %v3632 = vpop.f32.mrb[0].mxu0
  %v3633 = vadd.f32 %v3540, %v3632
  %v3634 = vpop.f32.mrb[0].mxu0
  %v3635 = vadd.f32 %v3542, %v3634
  %v3636 = vpop.f32.mrb[0].mxu0
  %v3637 = vadd.f32 %v3544, %v3636
  %3638 = vmatprep.mubr.bf16.mxu0 %v2197
  %3639 = vmatmul.mubr.bf16.gmra.mrb[0].mxu0 %v2196
  %v3640 = vpop.f32.mrb[0].mxu0
  %v3641 = vadd.f32 %v3548, %v3640
  %v3642 = vpop.f32.mrb[0].mxu0
  %v3643 = vadd.f32 %v3550, %v3642
  %v3644 = vpop.f32.mrb[0].mxu0
  %v3645 = vadd.f32 %v3552, %v3644
  %v3646 = vpop.f32.mrb[0].mxu0
  %v3647 = vadd.f32 %v3554, %v3646
  %3648 = vmatprep.mubr.bf16.mxu0 %v2203
  %3649 = vmatmul.mubr.bf16.gmra.mrb[0].mxu0 %v2202
  %v3650 = vpop.f32.mrb[0].mxu0
  %v3651 = vadd.f32 %v3558, %v3650
  %v3652 = vpop.f32.mrb[0].mxu0
  %v3653 = vadd.f32 %v3560, %v3652
  %v3654 = vpop.f32.mrb[0].mxu0
  %v3655 = vadd.f32 %v3562, %v3654
  %v3656 = vpop.f32.mrb[0].mxu0
  %v3657 = vadd.f32 %v3564, %v3656
  %3658 = vmatprep.mubr.bf16.mxu0 %v2209
  %3659 = vmatmul.mubr.bf16.gmra.mrb[0].mxu0 %v2208
  %v3660 = vpop.f32.mrb[0].mxu0
  %v3661 = vadd.f32 %v3568, %v3660
  %v3662 = vpop.f32.mrb[0].mxu0
  %v3663 = vadd.f32 %v3570, %v3662
  %v3664 = vpop.f32.mrb[0].mxu0
  %v3665 = vadd.f32 %v3572, %v3664
  %v3666 = vpop.f32.mrb[0].mxu0
  %v3667 = vadd.f32 %v3574, %v3666
  %3668 = vmatprep.mubr.bf16.mxu0 %v2215
  %3669 = vmatmul.mubr.bf16.gmra.mrb[0].mxu0 %v2214
  %v3670 = vpop.f32.mrb[0].mxu0
  %v3671 = vadd.f32 %v3578, %v3670
  %v3672 = vpop.f32.mrb[0].mxu0
  %v3673 = vadd.f32 %v3580, %v3672
  %v3674 = vpop.f32.mrb[0].mxu0
  %v3675 = vadd.f32 %v3582, %v3674
  %v3676 = vpop.f32.mrb[0].mxu0
  %v3677 = vadd.f32 %v3584, %v3676
  %3678 = vdwg.mxu0
  %3679 = vmatprep.subr.bf16.mxu0 %v2961
  %3680 = vmatpush1.bf16.msra.mxu0 %v2960
  %3681 = vmatprep.subr.bf16.mxu0 %v2965
  %3682 = vmatpush1.bf16.msra.mxu0 %v2964
  %3683 = vmatprep.subr.bf16.mxu0 %v2969
  %3684 = vmatpush1.bf16.msra.mxu0 %v2968
  %3685 = vmatprep.subr.bf16.mxu0 %v2973
  %3686 = vmatpush1.bf16.msra.mxu0 %v2972
  %3687 = vmatprep.subr.bf16.mxu0 %v2977
  %3688 = vmatpush1.bf16.msra.mxu0 %v2976
  %3689 = vmatprep.subr.bf16.mxu0 %v2981
  %3690 = vmatpush1.bf16.msra.mxu0 %v2980
  %3691 = vmatprep.subr.bf16.mxu0 %v2985
  %3692 = vmatpush1.bf16.msra.mxu0 %v2984
  %3693 = vmatprep.subr.bf16.mxu0 %v2989
  %3694 = vmatpush1.bf16.msra.mxu0 %v2988
  %3695 = vmatprep.subr.bf16.mxu0 %v2993
  %3696 = vmatpush1.bf16.msra.mxu0 %v2992
  %3697 = vmatprep.subr.bf16.mxu0 %v2997
  %3698 = vmatpush1.bf16.msra.mxu0 %v2996
  %3699 = vmatprep.subr.bf16.mxu0 %v3001
  %3700 = vmatpush1.bf16.msra.mxu0 %v3000
  %3701 = vmatprep.subr.bf16.mxu0 %v3005
  %3702 = vmatpush1.bf16.msra.mxu0 %v3004
  %3703 = vmatprep.subr.bf16.mxu0 %v3009
  %3704 = vmatpush1.bf16.msra.mxu0 %v3008
  %3705 = vmatprep.subr.bf16.mxu0 %v3013
  %3706 = vmatpush1.bf16.msra.mxu0 %v3012
  %3707 = vmatprep.subr.bf16.mxu0 %v3017
  %3708 = vmatpush1.bf16.msra.mxu0 %v3016
  %3709 = vmatprep.subr.bf16.mxu0 %v3021
  %3710 = vmatpush1.bf16.msra.mxu0 %v3020
  %3711 = vmatprep.mubr.bf16.mxu0 %v2187
  %3712 = vmatmul.mubr.bf16.gmra.mrb[0].mxu0 %v2186
  %v3713 = vpop.f32.mrb[0].mxu0
  %v3714 = vadd.f32 %v3621, %v3713
  %v3715 = vpop.f32.mrb[0].mxu0
  %v3716 = vadd.f32 %v3623, %v3715
  %v3717 = vpop.f32.mrb[0].mxu0
  %v3718 = vadd.f32 %v3625, %v3717
  %v3719 = vpop.f32.mrb[0].mxu0
  %v3720 = vadd.f32 %v3627, %v3719
  %3721 = vmatprep.mubr.bf16.mxu0 %v2193
  %3722 = vmatmul.mubr.bf16.gmra.mrb[0].mxu0 %v2192
  %v3723 = vpop.f32.mrb[0].mxu0
  %v3724 = vadd.f32 %v3631, %v3723
  %v3725 = vpop.f32.mrb[0].mxu0
  %v3726 = vadd.f32 %v3633, %v3725
  %v3727 = vpop.f32.mrb[0].mxu0
  %v3728 = vadd.f32 %v3635, %v3727
  %v3729 = vpop.f32.mrb[0].mxu0
  %v3730 = vadd.f32 %v3637, %v3729
  %3731 = vmatprep.mubr.bf16.mxu0 %v2199
  %3732 = vmatmul.mubr.bf16.gmra.mrb[0].mxu0 %v2198
  %v3733 = vpop.f32.mrb[0].mxu0
  %v3734 = vadd.f32 %v3641, %v3733
  %v3735 = vpop.f32.mrb[0].mxu0
  %v3736 = vadd.f32 %v3643, %v3735
  %v3737 = vpop.f32.mrb[0].mxu0
  %v3738 = vadd.f32 %v3645, %v3737
  %v3739 = vpop.f32.mrb[0].mxu0
  %v3740 = vadd.f32 %v3647, %v3739
  %3741 = vmatprep.mubr.bf16.mxu0 %v2205
  %3742 = vmatmul.mubr.bf16.gmra.mrb[0].mxu0 %v2204
  %v3743 = vpop.f32.mrb[0].mxu0
  %v3744 = vadd.f32 %v3651, %v3743
  %v3745 = vpop.f32.mrb[0].mxu0
  %v3746 = vadd.f32 %v3653, %v3745
  %v3747 = vpop.f32.mrb[0].mxu0
  %v3748 = vadd.f32 %v3655, %v3747
  %v3749 = vpop.f32.mrb[0].mxu0
  %v3750 = vadd.f32 %v3657, %v3749
  %3751 = vmatprep.mubr.bf16.mxu0 %v2211
  %3752 = vmatmul.mubr.bf16.gmra.mrb[0].mxu0 %v2210
  %v3753 = vpop.f32.mrb[0].mxu0
  %v3754 = vadd.f32 %v3661, %v3753
  %v3755 = vpop.f32.mrb[0].mxu0
  %v3756 = vadd.f32 %v3663, %v3755
  %v3757 = vpop.f32.mrb[0].mxu0
  %v3758 = vadd.f32 %v3665, %v3757
  %v3759 = vpop.f32.mrb[0].mxu0
  %v3760 = vadd.f32 %v3667, %v3759
  %3761 = vmatprep.mubr.bf16.mxu0 %v2217
  %3762 = vmatmul.mubr.bf16.gmra.mrb[0].mxu0 %v2216
  %v3763 = vpop.f32.mrb[0].mxu0
  %v3764 = vadd.f32 %v3671, %v3763
  %v3765 = vpop.f32.mrb[0].mxu0
  %v3766 = vadd.f32 %v3673, %v3765
  %v3767 = vpop.f32.mrb[0].mxu0
  %v3768 = vadd.f32 %v3675, %v3767
  %v3769 = vpop.f32.mrb[0].mxu0
  %v3770 = vadd.f32 %v3677, %v3769
  %3771 = vdwg.mxu0
  %3772 = vst [vmem:[#allocation3] sm:$0xff] %v3435
  %3773 = vst [vmem:[#allocation3 + $0x8] sm:$0xff] %v3437
  %3774 = vst [vmem:[#allocation3 + $0x10] sm:$0xff] %v3714
  %3775 = vst [vmem:[#allocation3 + $0x18] sm:$0xff] %v3716
  %3776 = vst [vmem:[#allocation3 + $0x20] sm:$0xff] %v3439
  %3777 = vst [vmem:[#allocation3 + $0x28] sm:$0xff] %v3441
  %3778 = vst [vmem:[#allocation3 + $0x30] sm:$0xff] %v3718
  %3779 = vst [vmem:[#allocation3 + $0x38] sm:$0xff] %v3720
  %3780 = vst [vmem:[#allocation3 + $0x40] sm:$0xff] %v3445
  %3781 = vst [vmem:[#allocation3 + $0x48] sm:$0xff] %v3447
  %3782 = vst [vmem:[#allocation3 + $0x50] sm:$0xff] %v3724
  %3783 = vst [vmem:[#allocation3 + $0x58] sm:$0xff] %v3726
  %3784 = vst [vmem:[#allocation3 + $0x60] sm:$0xff] %v3449
  %3785 = vst [vmem:[#allocation3 + $0x68] sm:$0xff] %v3451
  %3786 = vst [vmem:[#allocation3 + $0x70] sm:$0xff] %v3728
  %3787 = vst [vmem:[#allocation3 + $0x78] sm:$0xff] %v3730
  %3788 = vst [vmem:[#allocation3 + $0x80] sm:$0xff] %v3455
  %3789 = vst [vmem:[#allocation3 + $0x88] sm:$0xff] %v3457
  %3790 = vst [vmem:[#allocation3 + $0x90] sm:$0xff] %v3734
  %3791 = vst [vmem:[#allocation3 + $0x98] sm:$0xff] %v3736
  %3792 = vst [vmem:[#allocation3 + $0xa0] sm:$0xff] %v3459
  %3793 = vst [vmem:[#allocation3 + $0xa8] sm:$0xff] %v3461
  %3794 = vst [vmem:[#allocation3 + $0xb0] sm:$0xff] %v3738
  %3795 = vst [vmem:[#allocation3 + $0xb8] sm:$0xff] %v3740
  %3796 = vst [vmem:[#allocation3 + $0xc0] sm:$0xff] %v3465
  %3797 = vst [vmem:[#allocation3 + $0xc8] sm:$0xff] %v3467
  %3798 = vst [vmem:[#allocation3 + $0xd0] sm:$0xff] %v3744
  %3799 = vst [vmem:[#allocation3 + $0xd8] sm:$0xff] %v3746
  %3800 = vst [vmem:[#allocation3 + $0xe0] sm:$0xff] %v3469
  %3801 = vst [vmem:[#allocation3 + $0xe8] sm:$0xff] %v3471
  %3802 = vst [vmem:[#allocation3 + $0xf0] sm:$0xff] %v3748
  %3803 = vst [vmem:[#allocation3 + $0xf8] sm:$0xff] %v3750
  %3804 = vst [vmem:[#allocation3 + $0x100] sm:$0xff] %v3475
  %3805 = vst [vmem:[#allocation3 + $0x108] sm:$0xff] %v3477
  %3806 = vst [vmem:[#allocation3 + $0x110] sm:$0xff] %v3754
  %3807 = vst [vmem:[#allocation3 + $0x118] sm:$0xff] %v3756
  %3808 = vst [vmem:[#allocation3 + $0x120] sm:$0xff] %v3479
  %3809 = vst [vmem:[#allocation3 + $0x128] sm:$0xff] %v3481
  %3810 = vst [vmem:[#allocation3 + $0x130] sm:$0xff] %v3758
  %3811 = vst [vmem:[#allocation3 + $0x138] sm:$0xff] %v3760
  %3812 = vst [vmem:[#allocation3 + $0x140] sm:$0xff] %v3485
  %3813 = vst [vmem:[#allocation3 + $0x148] sm:$0xff] %v3487
  %3814 = vst [vmem:[#allocation3 + $0x150] sm:$0xff] %v3764
  %3815 = vst [vmem:[#allocation3 + $0x158] sm:$0xff] %v3766
  %3816 = vst [vmem:[#allocation3 + $0x160] sm:$0xff] %v3489
  %3817 = vst [vmem:[#allocation3 + $0x168] sm:$0xff] %v3491
  %3818 = vst [vmem:[#allocation3 + $0x170] sm:$0xff] %v3768
  %3819 = vst [vmem:[#allocation3 + $0x178] sm:$0xff] %v3770
  %v3820 = vld [vmem:[#allocation3] sm:$0xff]
  %v3821 = vld [vmem:[#allocation3 + $0x8] sm:$0xff]
  %v3822 = vld [vmem:[#allocation3 + $0x10] sm:$0xff]
  %v3823 = vld [vmem:[#allocation3 + $0x18] sm:$0xff]
  %v3824 = vld [vmem:[%s6] sm:$0xff]
  %v3825 = vld [vmem:[%s6 + $0x8] sm:$0xff]
  %v3826 = vld [vmem:[%s6 + $0x10] sm:$0xff]
  %v3827 = vld [vmem:[%s6 + $0x18] sm:$0xff]
  %v3828 = vld [vmem:[%s6 + $0x20] sm:$0xff]
  %v3829 = vld [vmem:[%s6 + $0x28] sm:$0xff]
  %v3830 = vld [vmem:[%s6 + $0x30] sm:$0xff]
  %v3831 = vld [vmem:[%s6 + $0x38] sm:$0xff]
  %v3832 = vld [vmem:[%s6 + $0x40] sm:$0xff]
  %v3833 = vld [vmem:[%s6 + $0x48] sm:$0xff]
  %v3834 = vld [vmem:[%s6 + $0x50] sm:$0xff]
  %v3835 = vld [vmem:[%s6 + $0x58] sm:$0xff]
  %v3836 = vld [vmem:[%s6 + $0x60] sm:$0xff]
  %v3837 = vld [vmem:[%s6 + $0x68] sm:$0xff]
  %v3838 = vld [vmem:[%s6 + $0x70] sm:$0xff]
  %v3839 = vld [vmem:[%s6 + $0x78] sm:$0xff]
  %v3840 = vld [vmem:[%s6 + $0x80] sm:$0xff]
  %v3841 = vld [vmem:[%s6 + $0x88] sm:$0xff]
  %v3842 = vld [vmem:[%s6 + $0x90] sm:$0xff]
  %v3843 = vld [vmem:[%s6 + $0x98] sm:$0xff]
  %v3844 = vld [vmem:[%s6 + $0xa0] sm:$0xff]
  %v3845 = vld [vmem:[%s6 + $0xa8] sm:$0xff]
  %v3846 = vld [vmem:[%s6 + $0xb0] sm:$0xff]
  %v3847 = vld [vmem:[%s6 + $0xb8] sm:$0xff]
  %v3848 = vld [vmem:[%s6 + $0xc0] sm:$0xff]
  %v3849 = vld [vmem:[%s6 + $0xc8] sm:$0xff]
  %v3850 = vld [vmem:[%s6 + $0xd0] sm:$0xff]
  %v3851 = vld [vmem:[%s6 + $0xd8] sm:$0xff]
  %v3852 = vld [vmem:[%s6 + $0xe0] sm:$0xff]
  %v3853 = vld [vmem:[%s6 + $0xe8] sm:$0xff]
  %v3854 = vld [vmem:[%s6 + $0xf0] sm:$0xff]
  %v3855 = vld [vmem:[%s6 + $0xf8] sm:$0xff]
  %v3888 = vunpack.c.l.b16 %v3824
  %v3889 = vunpack.c.h.b16 %v3824
  %v3890 = vunpack.c.l.b16 %v3825
  %v3891 = vunpack.c.h.b16 %v3825
  %v3892 = vunpack.c.l.b16 %v3826
  %v3893 = vunpack.c.h.b16 %v3826
  %v3894 = vunpack.c.l.b16 %v3827
  %v3895 = vunpack.c.h.b16 %v3827
  %v3896 = vunpack.c.l.b16 %v3828
  %v3897 = vunpack.c.h.b16 %v3828
  %v3898 = vunpack.c.l.b16 %v3829
  %v3899 = vunpack.c.h.b16 %v3829
  %v3900 = vunpack.c.l.b16 %v3830
  %v3901 = vunpack.c.h.b16 %v3830
  %v3902 = vunpack.c.l.b16 %v3831
  %v3903 = vunpack.c.h.b16 %v3831
  %v3904 = vunpack.c.l.b16 %v3832
  %v3905 = vunpack.c.h.b16 %v3832
  %v3906 = vunpack.c.l.b16 %v3833
  %v3907 = vunpack.c.h.b16 %v3833
  %v3908 = vunpack.c.l.b16 %v3834
  %v3909 = vunpack.c.h.b16 %v3834
  %v3910 = vunpack.c.l.b16 %v3835
  %v3911 = vunpack.c.h.b16 %v3835
  %v3912 = vunpack.c.l.b16 %v3836
  %v3913 = vunpack.c.h.b16 %v3836
  %v3914 = vunpack.c.l.b16 %v3837
  %v3915 = vunpack.c.h.b16 %v3837
  %v3916 = vunpack.c.l.b16 %v3838
  %v3917 = vunpack.c.h.b16 %v3838
  %v3918 = vunpack.c.l.b16 %v3839
  %v3919 = vunpack.c.h.b16 %v3839
  %v3920 = vunpack.c.l.b16 %v3840
  %v3921 = vunpack.c.h.b16 %v3840
  %v3922 = vunpack.c.l.b16 %v3841
  %v3923 = vunpack.c.h.b16 %v3841
  %v3924 = vunpack.c.l.b16 %v3842
  %v3925 = vunpack.c.h.b16 %v3842
  %v3926 = vunpack.c.l.b16 %v3843
  %v3927 = vunpack.c.h.b16 %v3843
  %v3928 = vunpack.c.l.b16 %v3844
  %v3929 = vunpack.c.h.b16 %v3844
  %v3930 = vunpack.c.l.b16 %v3845
  %v3931 = vunpack.c.h.b16 %v3845
  %v3932 = vunpack.c.l.b16 %v3846
  %v3933 = vunpack.c.h.b16 %v3846
  %v3934 = vunpack.c.l.b16 %v3847
  %v3935 = vunpack.c.h.b16 %v3847
  %v3936 = vunpack.c.l.b16 %v3848
  %v3937 = vunpack.c.h.b16 %v3848
  %v3938 = vunpack.c.l.b16 %v3849
  %v3939 = vunpack.c.h.b16 %v3849
  %v3940 = vunpack.c.l.b16 %v3850
  %v3941 = vunpack.c.h.b16 %v3850
  %v3942 = vunpack.c.l.b16 %v3851
  %v3943 = vunpack.c.h.b16 %v3851
  %v3944 = vunpack.c.l.b16 %v3852
  %v3945 = vunpack.c.h.b16 %v3852
  %v3946 = vunpack.c.l.b16 %v3853
  %v3947 = vunpack.c.h.b16 %v3853
  %v3948 = vunpack.c.l.b16 %v3854
  %v3949 = vunpack.c.h.b16 %v3854
  %v3950 = vunpack.c.l.b16 %v3855
  %v3951 = vunpack.c.h.b16 %v3855
  %v3952 = vpack.c.b16 %v3892, %v3888
  %v3953 = vpack.c.b16 %v3893, %v3889
  %v3954 = vpack.c.b16 %v3894, %v3890
  %v3955 = vpack.c.b16 %v3895, %v3891
  %v3956 = vpack.c.b16 %v3900, %v3896
  %v3957 = vpack.c.b16 %v3901, %v3897
  %v3958 = vpack.c.b16 %v3902, %v3898
  %v3959 = vpack.c.b16 %v3903, %v3899
  %v3960 = vpack.c.b16 %v3908, %v3904
  %v3961 = vpack.c.b16 %v3909, %v3905
  %v3962 = vpack.c.b16 %v3910, %v3906
  %v3963 = vpack.c.b16 %v3911, %v3907
  %v3964 = vpack.c.b16 %v3916, %v3912
  %v3965 = vpack.c.b16 %v3917, %v3913
  %v3966 = vpack.c.b16 %v3918, %v3914
  %v3967 = vpack.c.b16 %v3919, %v3915
  %v3968 = vpack.c.b16 %v3924, %v3920
  %v3969 = vpack.c.b16 %v3925, %v3921
  %v3970 = vpack.c.b16 %v3926, %v3922
  %v3971 = vpack.c.b16 %v3927, %v3923
  %v3972 = vpack.c.b16 %v3932, %v3928
  %v3973 = vpack.c.b16 %v3933, %v3929
  %v3974 = vpack.c.b16 %v3934, %v3930
  %v3975 = vpack.c.b16 %v3935, %v3931
  %v3976 = vpack.c.b16 %v3940, %v3936
  %v3977 = vpack.c.b16 %v3941, %v3937
  %v3978 = vpack.c.b16 %v3942, %v3938
  %v3979 = vpack.c.b16 %v3943, %v3939
  %v3980 = vpack.c.b16 %v3948, %v3944
  %v3981 = vpack.c.b16 %v3949, %v3945
  %v3982 = vpack.c.b16 %v3950, %v3946
  %v3983 = vpack.c.b16 %v3951, %v3947
  %4016 = vmatprep.subr.bf16.mxu0 %v3953
  %4017 = vmatpush1.bf16.msra.mxu0 %v3952
  %4018 = vmatprep.subr.bf16.mxu0 %v3957
  %4019 = vmatpush1.bf16.msra.mxu0 %v3956
  %4020 = vmatprep.subr.bf16.mxu0 %v3961
  %4021 = vmatpush1.bf16.msra.mxu0 %v3960
  %4022 = vmatprep.subr.bf16.mxu0 %v3965
  %4023 = vmatpush1.bf16.msra.mxu0 %v3964
  %4024 = vmatprep.subr.bf16.mxu0 %v3969
  %4025 = vmatpush1.bf16.msra.mxu0 %v3968
  %4026 = vmatprep.subr.bf16.mxu0 %v3973
  %4027 = vmatpush1.bf16.msra.mxu0 %v3972
  %4028 = vmatprep.subr.bf16.mxu0 %v3977
  %4029 = vmatpush1.bf16.msra.mxu0 %v3976
  %4030 = vmatprep.subr.bf16.mxu0 %v3981
  %4031 = vmatpush1.bf16.msra.mxu0 %v3980
  %4032 = vmatprep.subr.bf16.mxu0 0
  %4033 = vmatpush1.bf16.msra.mxu0 0
  %4034 = vmatprep.subr.bf16.mxu0 0
  %4035 = vmatpush1.bf16.msra.mxu0 0
  %4036 = vmatprep.subr.bf16.mxu0 0
  %4037 = vmatpush1.bf16.msra.mxu0 0
  %4038 = vmatprep.subr.bf16.mxu0 0
  %4039 = vmatpush1.bf16.msra.mxu0 0
  %4040 = vmatprep.subr.bf16.mxu0 0
  %4041 = vmatpush1.bf16.msra.mxu0 0
  %4042 = vmatprep.subr.bf16.mxu0 0
  %4043 = vmatpush1.bf16.msra.mxu0 0
  %4044 = vmatprep.subr.bf16.mxu0 0
  %4045 = vmatpush1.bf16.msra.mxu0 0
  %4046 = vmatprep.subr.bf16.mxu0 0
  %4047 = vmatpush1.bf16.msra.mxu0 0
  %4048 = vmatprep.mubr.bf16.mxu0 0
  %4049 = vmatmul.mubr.bf16.gmra.mrb[0].mxu0 0
  %v4050 = vpop.f32.mrb[0].mxu0
  %v4051 = vadd.f32 0.0, %v4050
  %v4052 = vpop.f32.mrb[0].mxu0
  %v4053 = vadd.f32 0.0, %v4052
  %v4054 = vpop.f32.mrb[0].mxu0
  %v4055 = vpop.f32.mrb[0].mxu0
  %4056 = vdwg.mxu0
  %4057 = vmatprep.subr.bf16.mxu0 %v3955
  %4058 = vmatpush1.bf16.msra.mxu0 %v3954
  %4059 = vmatprep.subr.bf16.mxu0 %v3959
  %4060 = vmatpush1.bf16.msra.mxu0 %v3958
  %4061 = vmatprep.subr.bf16.mxu0 %v3963
  %4062 = vmatpush1.bf16.msra.mxu0 %v3962
  %4063 = vmatprep.subr.bf16.mxu0 %v3967
  %4064 = vmatpush1.bf16.msra.mxu0 %v3966
  %4065 = vmatprep.subr.bf16.mxu0 %v3971
  %4066 = vmatpush1.bf16.msra.mxu0 %v3970
  %4067 = vmatprep.subr.bf16.mxu0 %v3975
  %4068 = vmatpush1.bf16.msra.mxu0 %v3974
  %4069 = vmatprep.subr.bf16.mxu0 %v3979
  %4070 = vmatpush1.bf16.msra.mxu0 %v3978
  %4071 = vmatprep.subr.bf16.mxu0 %v3983
  %4072 = vmatpush1.bf16.msra.mxu0 %v3982
  %4073 = vmatprep.subr.bf16.mxu0 0
  %4074 = vmatpush1.bf16.msra.mxu0 0
  %4075 = vmatprep.subr.bf16.mxu0 0
  %4076 = vmatpush1.bf16.msra.mxu0 0
  %4077 = vmatprep.subr.bf16.mxu0 0
  %4078 = vmatpush1.bf16.msra.mxu0 0
  %4079 = vmatprep.subr.bf16.mxu0 0
  %4080 = vmatpush1.bf16.msra.mxu0 0
  %4081 = vmatprep.subr.bf16.mxu0 0
  %4082 = vmatpush1.bf16.msra.mxu0 0
  %4083 = vmatprep.subr.bf16.mxu0 0
  %4084 = vmatpush1.bf16.msra.mxu0 0
  %4085 = vmatprep.subr.bf16.mxu0 0
  %4086 = vmatpush1.bf16.msra.mxu0 0
  %4087 = vmatprep.subr.bf16.mxu0 0
  %4088 = vmatpush1.bf16.msra.mxu0 0
  %4089 = vmatprep.mubr.bf16.mxu0 0
  %4090 = vmatmul.mubr.bf16.gmra.mrb[0].mxu0 0
  %v4091 = vpop.f32.mrb[0].mxu0
  %v4092 = vadd.f32 0.0, %v4091
  %v4093 = vpop.f32.mrb[0].mxu0
  %v4094 = vadd.f32 0.0, %v4093
  %v4095 = vpop.f32.mrb[0].mxu0
  %v4096 = vpop.f32.mrb[0].mxu0
  %4097 = vdwg.mxu0
  %v4098 = vadd.f32 %v3820, %v4051
  %v4099 = vadd.f32 %v3821, %v4053
  %v4100 = vadd.f32 %v3822, %v4092
  %v4101 = vadd.f32 %v3823, %v4094
  %v4102 = vld [vmem:[#allocation2] sm:$0xff]
  %v4103 = vld [vmem:[#allocation2 + $0x8] sm:$0xff]
  %v4104 = vld [vmem:[#allocation2 + $0x10] sm:$0xff]
  %v4105 = vld [vmem:[#allocation2 + $0x18] sm:$0xff]
  %v4106 = vld [vmem:[%s2] sm:$0xff]
  %v4107 = vld [vmem:[%s2 + $0x8] sm:$0xff]
  %v4108 = vld [vmem:[%s2 + $0x10] sm:$0xff]
  %v4109 = vld [vmem:[%s2 + $0x18] sm:$0xff]
  %v4110 = vld [vmem:[%s2 + $0x20] sm:$0xff]
  %v4111 = vld [vmem:[%s2 + $0x28] sm:$0xff]
  %v4112 = vld [vmem:[%s2 + $0x30] sm:$0xff]
  %v4113 = vld [vmem:[%s2 + $0x38] sm:$0xff]
  %v4114 = vld [vmem:[%s2 + $0x40] sm:$0xff]
  %v4115 = vld [vmem:[%s2 + $0x48] sm:$0xff]
  %v4116 = vld [vmem:[%s2 + $0x50] sm:$0xff]
  %v4117 = vld [vmem:[%s2 + $0x58] sm:$0xff]
  %v4118 = vld [vmem:[%s2 + $0x60] sm:$0xff]
  %v4119 = vld [vmem:[%s2 + $0x68] sm:$0xff]
  %v4120 = vld [vmem:[%s2 + $0x70] sm:$0xff]
  %v4121 = vld [vmem:[%s2 + $0x78] sm:$0xff]
  %v4122 = vld [vmem:[%s2 + $0x80] sm:$0xff]
  %v4123 = vld [vmem:[%s2 + $0x88] sm:$0xff]
  %v4124 = vld [vmem:[%s2 + $0x90] sm:$0xff]
  %v4125 = vld [vmem:[%s2 + $0x98] sm:$0xff]
  %v4126 = vld [vmem:[%s2 + $0xa0] sm:$0xff]
  %v4127 = vld [vmem:[%s2 + $0xa8] sm:$0xff]
  %v4128 = vld [vmem:[%s2 + $0xb0] sm:$0xff]
  %v4129 = vld [vmem:[%s2 + $0xb8] sm:$0xff]
  %v4130 = vld [vmem:[%s2 + $0xc0] sm:$0xff]
  %v4131 = vld [vmem:[%s2 + $0xc8] sm:$0xff]
  %v4132 = vld [vmem:[%s2 + $0xd0] sm:$0xff]
  %v4133 = vld [vmem:[%s2 + $0xd8] sm:$0xff]
  %v4134 = vld [vmem:[%s2 + $0xe0] sm:$0xff]
  %v4135 = vld [vmem:[%s2 + $0xe8] sm:$0xff]
  %v4136 = vld [vmem:[%s2 + $0xf0] sm:$0xff]
  %v4137 = vld [vmem:[%s2 + $0xf8] sm:$0xff]
  %v4170 = vunpack.c.l.b16 %v4106
  %v4171 = vunpack.c.h.b16 %v4106
  %v4172 = vunpack.c.l.b16 %v4107
  %v4173 = vunpack.c.h.b16 %v4107
  %v4174 = vunpack.c.l.b16 %v4108
  %v4175 = vunpack.c.h.b16 %v4108
  %v4176 = vunpack.c.l.b16 %v4109
  %v4177 = vunpack.c.h.b16 %v4109
  %v4178 = vunpack.c.l.b16 %v4110
  %v4179 = vunpack.c.h.b16 %v4110
  %v4180 = vunpack.c.l.b16 %v4111
  %v4181 = vunpack.c.h.b16 %v4111
  %v4182 = vunpack.c.l.b16 %v4112
  %v4183 = vunpack.c.h.b16 %v4112
  %v4184 = vunpack.c.l.b16 %v4113
  %v4185 = vunpack.c.h.b16 %v4113
  %v4186 = vunpack.c.l.b16 %v4114
  %v4187 = vunpack.c.h.b16 %v4114
  %v4188 = vunpack.c.l.b16 %v4115
  %v4189 = vunpack.c.h.b16 %v4115
  %v4190 = vunpack.c.l.b16 %v4116
  %v4191 = vunpack.c.h.b16 %v4116
  %v4192 = vunpack.c.l.b16 %v4117
  %v4193 = vunpack.c.h.b16 %v4117
  %v4194 = vunpack.c.l.b16 %v4118
  %v4195 = vunpack.c.h.b16 %v4118
  %v4196 = vunpack.c.l.b16 %v4119
  %v4197 = vunpack.c.h.b16 %v4119
  %v4198 = vunpack.c.l.b16 %v4120
  %v4199 = vunpack.c.h.b16 %v4120
  %v4200 = vunpack.c.l.b16 %v4121
  %v4201 = vunpack.c.h.b16 %v4121
  %v4202 = vunpack.c.l.b16 %v4122
  %v4203 = vunpack.c.h.b16 %v4122
  %v4204 = vunpack.c.l.b16 %v4123
  %v4205 = vunpack.c.h.b16 %v4123
  %v4206 = vunpack.c.l.b16 %v4124
  %v4207 = vunpack.c.h.b16 %v4124
  %v4208 = vunpack.c.l.b16 %v4125
  %v4209 = vunpack.c.h.b16 %v4125
  %v4210 = vunpack.c.l.b16 %v4126
  %v4211 = vunpack.c.h.b16 %v4126
  %v4212 = vunpack.c.l.b16 %v4127
  %v4213 = vunpack.c.h.b16 %v4127
  %v4214 = vunpack.c.l.b16 %v4128
  %v4215 = vunpack.c.h.b16 %v4128
  %v4216 = vunpack.c.l.b16 %v4129
  %v4217 = vunpack.c.h.b16 %v4129
  %v4218 = vunpack.c.l.b16 %v4130
  %v4219 = vunpack.c.h.b16 %v4130
  %v4220 = vunpack.c.l.b16 %v4131
  %v4221 = vunpack.c.h.b16 %v4131
  %v4222 = vunpack.c.l.b16 %v4132
  %v4223 = vunpack.c.h.b16 %v4132
  %v4224 = vunpack.c.l.b16 %v4133
  %v4225 = vunpack.c.h.b16 %v4133
  %v4226 = vunpack.c.l.b16 %v4134
  %v4227 = vunpack.c.h.b16 %v4134
  %v4228 = vunpack.c.l.b16 %v4135
  %v4229 = vunpack.c.h.b16 %v4135
  %v4230 = vunpack.c.l.b16 %v4136
  %v4231 = vunpack.c.h.b16 %v4136
  %v4232 = vunpack.c.l.b16 %v4137
  %v4233 = vunpack.c.h.b16 %v4137
  %v4234 = vpack.c.b16 %v4174, %v4170
  %v4235 = vpack.c.b16 %v4175, %v4171
  %v4236 = vpack.c.b16 %v4176, %v4172
  %v4237 = vpack.c.b16 %v4177, %v4173
  %v4238 = vpack.c.b16 %v4182, %v4178
  %v4239 = vpack.c.b16 %v4183, %v4179
  %v4240 = vpack.c.b16 %v4184, %v4180
  %v4241 = vpack.c.b16 %v4185, %v4181
  %v4242 = vpack.c.b16 %v4190, %v4186
  %v4243 = vpack.c.b16 %v4191, %v4187
  %v4244 = vpack.c.b16 %v4192, %v4188
  %v4245 = vpack.c.b16 %v4193, %v4189
  %v4246 = vpack.c.b16 %v4198, %v4194
  %v4247 = vpack.c.b16 %v4199, %v4195
  %v4248 = vpack.c.b16 %v4200, %v4196
  %v4249 = vpack.c.b16 %v4201, %v4197
  %v4250 = vpack.c.b16 %v4206, %v4202
  %v4251 = vpack.c.b16 %v4207, %v4203
  %v4252 = vpack.c.b16 %v4208, %v4204
  %v4253 = vpack.c.b16 %v4209, %v4205
  %v4254 = vpack.c.b16 %v4214, %v4210
  %v4255 = vpack.c.b16 %v4215, %v4211
  %v4256 = vpack.c.b16 %v4216, %v4212
  %v4257 = vpack.c.b16 %v4217, %v4213
  %v4258 = vpack.c.b16 %v4222, %v4218
  %v4259 = vpack.c.b16 %v4223, %v4219
  %v4260 = vpack.c.b16 %v4224, %v4220
  %v4261 = vpack.c.b16 %v4225, %v4221
  %v4262 = vpack.c.b16 %v4230, %v4226
  %v4263 = vpack.c.b16 %v4231, %v4227
  %v4264 = vpack.c.b16 %v4232, %v4228
  %v4265 = vpack.c.b16 %v4233, %v4229
  %4298 = vmatprep.subr.bf16.mxu0 %v4235
  %4299 = vmatpush1.bf16.msra.mxu0 %v4234
  %4300 = vmatprep.subr.bf16.mxu0 %v4239
  %4301 = vmatpush1.bf16.msra.mxu0 %v4238
  %4302 = vmatprep.subr.bf16.mxu0 %v4243
  %4303 = vmatpush1.bf16.msra.mxu0 %v4242
  %4304 = vmatprep.subr.bf16.mxu0 %v4247
  %4305 = vmatpush1.bf16.msra.mxu0 %v4246
  %4306 = vmatprep.subr.bf16.mxu0 %v4251
  %4307 = vmatpush1.bf16.msra.mxu0 %v4250
  %4308 = vmatprep.subr.bf16.mxu0 %v4255
  %4309 = vmatpush1.bf16.msra.mxu0 %v4254
  %4310 = vmatprep.subr.bf16.mxu0 %v4259
  %4311 = vmatpush1.bf16.msra.mxu0 %v4258
  %4312 = vmatprep.subr.bf16.mxu0 %v4263
  %4313 = vmatpush1.bf16.msra.mxu0 %v4262
  %4314 = vmatprep.subr.bf16.mxu0 0
  %4315 = vmatpush1.bf16.msra.mxu0 0
  %4316 = vmatprep.subr.bf16.mxu0 0
  %4317 = vmatpush1.bf16.msra.mxu0 0
  %4318 = vmatprep.subr.bf16.mxu0 0
  %4319 = vmatpush1.bf16.msra.mxu0 0
  %4320 = vmatprep.subr.bf16.mxu0 0
  %4321 = vmatpush1.bf16.msra.mxu0 0
  %4322 = vmatprep.subr.bf16.mxu0 0
  %4323 = vmatpush1.bf16.msra.mxu0 0
  %4324 = vmatprep.subr.bf16.mxu0 0
  %4325 = vmatpush1.bf16.msra.mxu0 0
  %4326 = vmatprep.subr.bf16.mxu0 0
  %4327 = vmatpush1.bf16.msra.mxu0 0
  %4328 = vmatprep.subr.bf16.mxu0 0
  %4329 = vmatpush1.bf16.msra.mxu0 0
  %4330 = vmatprep.mubr.bf16.mxu0 0
  %4331 = vmatmul.mubr.bf16.gmra.mrb[0].mxu0 0
  %v4332 = vpop.f32.mrb[0].mxu0
  %v4333 = vadd.f32 0.0, %v4332
  %v4334 = vpop.f32.mrb[0].mxu0
  %v4335 = vadd.f32 0.0, %v4334
  %v4336 = vpop.f32.mrb[0].mxu0
  %v4337 = vpop.f32.mrb[0].mxu0
  %4338 = vdwg.mxu0
  %4339 = vmatprep.subr.bf16.mxu0 %v4237
  %4340 = vmatpush1.bf16.msra.mxu0 %v4236
  %4341 = vmatprep.subr.bf16.mxu0 %v4241
  %4342 = vmatpush1.bf16.msra.mxu0 %v4240
  %4343 = vmatprep.subr.bf16.mxu0 %v4245
  %4344 = vmatpush1.bf16.msra.mxu0 %v4244
  %4345 = vmatprep.subr.bf16.mxu0 %v4249
  %4346 = vmatpush1.bf16.msra.mxu0 %v4248
  %4347 = vmatprep.subr.bf16.mxu0 %v4253
  %4348 = vmatpush1.bf16.msra.mxu0 %v4252
  %4349 = vmatprep.subr.bf16.mxu0 %v4257
  %4350 = vmatpush1.bf16.msra.mxu0 %v4256
  %4351 = vmatprep.subr.bf16.mxu0 %v4261
  %4352 = vmatpush1.bf16.msra.mxu0 %v4260
  %4353 = vmatprep.subr.bf16.mxu0 %v4265
  %4354 = vmatpush1.bf16.msra.mxu0 %v4264
  %4355 = vmatprep.subr.bf16.mxu0 0
  %4356 = vmatpush1.bf16.msra.mxu0 0
  %4357 = vmatprep.subr.bf16.mxu0 0
  %4358 = vmatpush1.bf16.msra.mxu0 0
  %4359 = vmatprep.subr.bf16.mxu0 0
  %4360 = vmatpush1.bf16.msra.mxu0 0
  %4361 = vmatprep.subr.bf16.mxu0 0
  %4362 = vmatpush1.bf16.msra.mxu0 0
  %4363 = vmatprep.subr.bf16.mxu0 0
  %4364 = vmatpush1.bf16.msra.mxu0 0
  %4365 = vmatprep.subr.bf16.mxu0 0
  %4366 = vmatpush1.bf16.msra.mxu0 0
  %4367 = vmatprep.subr.bf16.mxu0 0
  %4368 = vmatpush1.bf16.msra.mxu0 0
  %4369 = vmatprep.subr.bf16.mxu0 0
  %4370 = vmatpush1.bf16.msra.mxu0 0
  %4371 = vmatprep.mubr.bf16.mxu0 0
  %4372 = vmatmul.mubr.bf16.gmra.mrb[0].mxu0 0
  %v4373 = vpop.f32.mrb[0].mxu0
  %v4374 = vadd.f32 0.0, %v4373
  %v4375 = vpop.f32.mrb[0].mxu0
  %v4376 = vadd.f32 0.0, %v4375
  %v4377 = vpop.f32.mrb[0].mxu0
  %v4378 = vpop.f32.mrb[0].mxu0
  %4379 = vdwg.mxu0
  %v4380 = vadd.f32 %v4102, %v4333
  %v4381 = vadd.f32 %v4103, %v4335
  %v4382 = vadd.f32 %v4104, %v4374
  %v4383 = vadd.f32 %v4105, %v4376
  %v4384 = vxor.u32 %v4380, 2147483648
  %v4385 = vmul.f32 %v4384, 1.442695
  %v4386 = vpow.pop %v4385
  %v4387 = vadd.f32 %v4386, 1.0
  %v4388 = vrcp.pop %v4387
  %v4389 = vmul.f32 1.0, %v4388
  %v4390 = vxor.u32 %v4381, 2147483648
  %v4391 = vmul.f32 %v4390, 1.442695
  %v4392 = vpow.pop %v4391
  %v4393 = vadd.f32 %v4392, 1.0
  %v4394 = vrcp.pop %v4393
  %v4395 = vmul.f32 1.0, %v4394
  %v4396 = vtanh.pop %v4382
  %v4397 = vxor.u32 %v4383, 2147483648
  %v4398 = vmul.f32 %v4397, 1.442695
  %v4399 = vpow.pop %v4398
  %v4400 = vadd.f32 %v4399, 1.0
  %v4401 = vrcp.pop %v4400
  %v4402 = vmul.f32 1.0, %v4401
  %v4403 = vmul.f32 %v4395, 0.0
  %v4404 = vmul.f32 %v4389, %v4396
  %v4405 = vadd.f32 %v4403, %v4404
  %v4406 = vtanh.pop %v4405
  %v4407 = vmul.f32 %v4402, %v4406
  %v4408 = vxor.u32 %v4098, 2147483648
  %v4409 = vmul.f32 %v4408, 1.442695
  %v4410 = vpow.pop %v4409
  %v4411 = vadd.f32 %v4410, 1.0
  %v4412 = vrcp.pop %v4411
  %v4413 = vmul.f32 1.0, %v4412
  %v4414 = vxor.u32 %v4099, 2147483648
  %v4415 = vmul.f32 %v4414, 1.442695
  %v4416 = vpow.pop %v4415
  %v4417 = vadd.f32 %v4416, 1.0
  %v4418 = vrcp.pop %v4417
  %v4419 = vmul.f32 1.0, %v4418
  %v4420 = vtanh.pop %v4100
  %v4421 = vxor.u32 %v4101, 2147483648
  %v4422 = vmul.f32 %v4421, 1.442695
  %v4423 = vpow.pop %v4422
  %v4424 = vadd.f32 %v4423, 1.0
  %v4425 = vrcp.pop %v4424
  %v4426 = vmul.f32 1.0, %v4425
  %v4427 = vmul.f32 %v4419, 0.0
  %v4428 = vmul.f32 %v4413, %v4420
  %v4429 = vadd.f32 %v4427, %v4428
  %v4430 = vtanh.pop %v4429
  %v4431 = vmul.f32 %v4426, %v4430
  %v4432 = vld [vmem:[#allocation3 + $0x20] sm:$0xff]
  %v4433 = vld [vmem:[#allocation3 + $0x28] sm:$0xff]
  %v4434 = vld [vmem:[#allocation3 + $0x30] sm:$0xff]
  %v4435 = vld [vmem:[#allocation3 + $0x38] sm:$0xff]
  %v4436 = vpack.c.bf16 %v4431, %v4431
  %4437 = vmatprep.subr.bf16.mxu0 %v3953
  %4438 = vmatpush1.bf16.msra.mxu0 %v3952
  %4439 = vmatprep.subr.bf16.mxu0 %v3957
  %4440 = vmatpush1.bf16.msra.mxu0 %v3956
  %4441 = vmatprep.subr.bf16.mxu0 %v3961
  %4442 = vmatpush1.bf16.msra.mxu0 %v3960
  %4443 = vmatprep.subr.bf16.mxu0 %v3965
  %4444 = vmatpush1.bf16.msra.mxu0 %v3964
  %4445 = vmatprep.subr.bf16.mxu0 %v3969
  %4446 = vmatpush1.bf16.msra.mxu0 %v3968
  %4447 = vmatprep.subr.bf16.mxu0 %v3973
  %4448 = vmatpush1.bf16.msra.mxu0 %v3972
  %4449 = vmatprep.subr.bf16.mxu0 %v3977
  %4450 = vmatpush1.bf16.msra.mxu0 %v3976
  %4451 = vmatprep.subr.bf16.mxu0 %v3981
  %4452 = vmatpush1.bf16.msra.mxu0 %v3980
  %4453 = vmatprep.subr.bf16.mxu0 0
  %4454 = vmatpush1.bf16.msra.mxu0 0
  %4455 = vmatprep.subr.bf16.mxu0 0
  %4456 = vmatpush1.bf16.msra.mxu0 0
  %4457 = vmatprep.subr.bf16.mxu0 0
  %4458 = vmatpush1.bf16.msra.mxu0 0
  %4459 = vmatprep.subr.bf16.mxu0 0
  %4460 = vmatpush1.bf16.msra.mxu0 0
  %4461 = vmatprep.subr.bf16.mxu0 0
  %4462 = vmatpush1.bf16.msra.mxu0 0
  %4463 = vmatprep.subr.bf16.mxu0 0
  %4464 = vmatpush1.bf16.msra.mxu0 0
  %4465 = vmatprep.subr.bf16.mxu0 0
  %4466 = vmatpush1.bf16.msra.mxu0 0
  %4467 = vmatprep.subr.bf16.mxu0 0
  %4468 = vmatpush1.bf16.msra.mxu0 0
  %4469 = vmatprep.mubr.bf16.mxu0 0
  %4470 = vmatmul.mubr.bf16.gmra.mrb[0].mxu0 %v4436
  %v4471 = vpop.f32.mrb[0].mxu0
  %v4472 = vadd.f32 0.0, %v4471
  %v4473 = vpop.f32.mrb[0].mxu0
  %v4474 = vadd.f32 0.0, %v4473
  %v4475 = vpop.f32.mrb[0].mxu0
  %v4476 = vpop.f32.mrb[0].mxu0
  %4477 = vdwg.mxu0
  %4478 = vmatprep.subr.bf16.mxu0 %v3955
  %4479 = vmatpush1.bf16.msra.mxu0 %v3954
  %4480 = vmatprep.subr.bf16.mxu0 %v3959
  %4481 = vmatpush1.bf16.msra.mxu0 %v3958
  %4482 = vmatprep.subr.bf16.mxu0 %v3963
  %4483 = vmatpush1.bf16.msra.mxu0 %v3962
  %4484 = vmatprep.subr.bf16.mxu0 %v3967
  %4485 = vmatpush1.bf16.msra.mxu0 %v3966
  %4486 = vmatprep.subr.bf16.mxu0 %v3971
  %4487 = vmatpush1.bf16.msra.mxu0 %v3970
  %4488 = vmatprep.subr.bf16.mxu0 %v3975
  %4489 = vmatpush1.bf16.msra.mxu0 %v3974
  %4490 = vmatprep.subr.bf16.mxu0 %v3979
  %4491 = vmatpush1.bf16.msra.mxu0 %v3978
  %4492 = vmatprep.subr.bf16.mxu0 %v3983
  %4493 = vmatpush1.bf16.msra.mxu0 %v3982
  %4494 = vmatprep.subr.bf16.mxu0 0
  %4495 = vmatpush1.bf16.msra.mxu0 0
  %4496 = vmatprep.subr.bf16.mxu0 0
  %4497 = vmatpush1.bf16.msra.mxu0 0
  %4498 = vmatprep.subr.bf16.mxu0 0
  %4499 = vmatpush1.bf16.msra.mxu0 0
  %4500 = vmatprep.subr.bf16.mxu0 0
  %4501 = vmatpush1.bf16.msra.mxu0 0
  %4502 = vmatprep.subr.bf16.mxu0 0
  %4503 = vmatpush1.bf16.msra.mxu0 0
  %4504 = vmatprep.subr.bf16.mxu0 0
  %4505 = vmatpush1.bf16.msra.mxu0 0
  %4506 = vmatprep.subr.bf16.mxu0 0
  %4507 = vmatpush1.bf16.msra.mxu0 0
  %4508 = vmatprep.subr.bf16.mxu0 0
  %4509 = vmatpush1.bf16.msra.mxu0 0
  %4510 = vmatprep.mubr.bf16.mxu0 0
  %4511 = vmatmul.mubr.bf16.gmra.mrb[0].mxu0 %v4436
  %v4512 = vpop.f32.mrb[0].mxu0
  %v4513 = vadd.f32 0.0, %v4512
  %v4514 = vpop.f32.mrb[0].mxu0
  %v4515 = vadd.f32 0.0, %v4514
  %v4516 = vpop.f32.mrb[0].mxu0
  %v4517 = vpop.f32.mrb[0].mxu0
  %4518 = vdwg.mxu0
  %v4519 = vadd.f32 %v4432, %v4472
  %v4520 = vadd.f32 %v4433, %v4474
  %v4521 = vadd.f32 %v4434, %v4513
  %v4522 = vadd.f32 %v4435, %v4515
  %v4523 = vld [vmem:[#allocation2 + $0x20] sm:$0xff]
  %v4524 = vld [vmem:[#allocation2 + $0x28] sm:$0xff]
  %v4525 = vld [vmem:[#allocation2 + $0x30] sm:$0xff]
  %v4526 = vld [vmem:[#allocation2 + $0x38] sm:$0xff]
  %v4527 = vpack.c.bf16 %v4407, %v4407
  %4528 = vmatprep.subr.bf16.mxu0 %v4235
  %4529 = vmatpush1.bf16.msra.mxu0 %v4234
  %4530 = vmatprep.subr.bf16.mxu0 %v4239
  %4531 = vmatpush1.bf16.msra.mxu0 %v4238
  %4532 = vmatprep.subr.bf16.mxu0 %v4243
  %4533 = vmatpush1.bf16.msra.mxu0 %v4242
  %4534 = vmatprep.subr.bf16.mxu0 %v4247
  %4535 = vmatpush1.bf16.msra.mxu0 %v4246
  %4536 = vmatprep.subr.bf16.mxu0 %v4251
  %4537 = vmatpush1.bf16.msra.mxu0 %v4250
  %4538 = vmatprep.subr.bf16.mxu0 %v4255
  %4539 = vmatpush1.bf16.msra.mxu0 %v4254
  %4540 = vmatprep.subr.bf16.mxu0 %v4259
  %4541 = vmatpush1.bf16.msra.mxu0 %v4258
  %4542 = vmatprep.subr.bf16.mxu0 %v4263
  %4543 = vmatpush1.bf16.msra.mxu0 %v4262
  %4544 = vmatprep.subr.bf16.mxu0 0
  %4545 = vmatpush1.bf16.msra.mxu0 0
  %4546 = vmatprep.subr.bf16.mxu0 0
  %4547 = vmatpush1.bf16.msra.mxu0 0
  %4548 = vmatprep.subr.bf16.mxu0 0
  %4549 = vmatpush1.bf16.msra.mxu0 0
  %4550 = vmatprep.subr.bf16.mxu0 0
  %4551 = vmatpush1.bf16.msra.mxu0 0
  %4552 = vmatprep.subr.bf16.mxu0 0
  %4553 = vmatpush1.bf16.msra.mxu0 0
  %4554 = vmatprep.subr.bf16.mxu0 0
  %4555 = vmatpush1.bf16.msra.mxu0 0
  %4556 = vmatprep.subr.bf16.mxu0 0
  %4557 = vmatpush1.bf16.msra.mxu0 0
  %4558 = vmatprep.subr.bf16.mxu0 0
  %4559 = vmatpush1.bf16.msra.mxu0 0
  %4560 = vmatprep.mubr.bf16.mxu0 0
  %4561 = vmatmul.mubr.bf16.gmra.mrb[0].mxu0 %v4527
  %v4562 = vpop.f32.mrb[0].mxu0
  %v4563 = vadd.f32 0.0, %v4562
  %v4564 = vpop.f32.mrb[0].mxu0
  %v4565 = vadd.f32 0.0, %v4564
  %v4566 = vpop.f32.mrb[0].mxu0
  %v4567 = vpop.f32.mrb[0].mxu0
  %4568 = vdwg.mxu0
  %4569 = vmatprep.subr.bf16.mxu0 %v4237
  %4570 = vmatpush1.bf16.msra.mxu0 %v4236
  %4571 = vmatprep.subr.bf16.mxu0 %v4241
  %4572 = vmatpush1.bf16.msra.mxu0 %v4240
  %4573 = vmatprep.subr.bf16.mxu0 %v4245
  %4574 = vmatpush1.bf16.msra.mxu0 %v4244
  %4575 = vmatprep.subr.bf16.mxu0 %v4249
  %4576 = vmatpush1.bf16.msra.mxu0 %v4248
  %4577 = vmatprep.subr.bf16.mxu0 %v4253
  %4578 = vmatpush1.bf16.msra.mxu0 %v4252
  %4579 = vmatprep.subr.bf16.mxu0 %v4257
  %4580 = vmatpush1.bf16.msra.mxu0 %v4256
  %4581 = vmatprep.subr.bf16.mxu0 %v4261
  %4582 = vmatpush1.bf16.msra.mxu0 %v4260
  %4583 = vmatprep.subr.bf16.mxu0 %v4265
  %4584 = vmatpush1.bf16.msra.mxu0 %v4264
  %4585 = vmatprep.subr.bf16.mxu0 0
  %4586 = vmatpush1.bf16.msra.mxu0 0
  %4587 = vmatprep.subr.bf16.mxu0 0
  %4588 = vmatpush1.bf16.msra.mxu0 0
  %4589 = vmatprep.subr.bf16.mxu0 0
  %4590 = vmatpush1.bf16.msra.mxu0 0
  %4591 = vmatprep.subr.bf16.mxu0 0
  %4592 = vmatpush1.bf16.msra.mxu0 0
  %4593 = vmatprep.subr.bf16.mxu0 0
  %4594 = vmatpush1.bf16.msra.mxu0 0
  %4595 = vmatprep.subr.bf16.mxu0 0
  %4596 = vmatpush1.bf16.msra.mxu0 0
  %4597 = vmatprep.subr.bf16.mxu0 0
  %4598 = vmatpush1.bf16.msra.mxu0 0
  %4599 = vmatprep.subr.bf16.mxu0 0
  %4600 = vmatpush1.bf16.msra.mxu0 0
  %4601 = vmatprep.mubr.bf16.mxu0 0
  %4602 = vmatmul.mubr.bf16.gmra.mrb[0].mxu0 %v4527
  %v4603 = vpop.f32.mrb[0].mxu0
  %v4604 = vadd.f32 0.0, %v4603
  %v4605 = vpop.f32.mrb[0].mxu0
  %v4606 = vadd.f32 0.0, %v4605
  %v4607 = vpop.f32.mrb[0].mxu0
  %v4608 = vpop.f32.mrb[0].mxu0
  %4609 = vdwg.mxu0
  %v4610 = vadd.f32 %v4523, %v4563
  %v4611 = vadd.f32 %v4524, %v4565
  %v4612 = vadd.f32 %v4525, %v4604
  %v4613 = vadd.f32 %v4526, %v4606
  %v4614 = vxor.u32 %v4610, 2147483648
  %v4615 = vmul.f32 %v4614, 1.442695
  %v4616 = vpow.pop %v4615
  %v4617 = vadd.f32 %v4616, 1.0
  %v4618 = vrcp.pop %v4617
  %v4619 = vmul.f32 1.0, %v4618
  %v4620 = vxor.u32 %v4611, 2147483648
  %v4621 = vmul.f32 %v4620, 1.442695
  %v4622 = vpow.pop %v4621
  %v4623 = vadd.f32 %v4622, 1.0
  %v4624 = vrcp.pop %v4623
  %v4625 = vmul.f32 1.0, %v4624
  %v4626 = vtanh.pop %v4612
  %v4627 = vxor.u32 %v4613, 2147483648
  %v4628 = vmul.f32 %v4627, 1.442695
  %v4629 = vpow.pop %v4628
  %v4630 = vadd.f32 %v4629, 1.0
  %v4631 = vrcp.pop %v4630
  %v4632 = vmul.f32 1.0, %v4631
  %v4633 = vmul.f32 %v4625, %v4405
  %v4634 = vmul.f32 %v4619, %v4626
  %v4635 = vadd.f32 %v4633, %v4634
  %v4636 = vtanh.pop %v4635
  %v4637 = vmul.f32 %v4632, %v4636
  %v4638 = vxor.u32 %v4519, 2147483648
  %v4639 = vmul.f32 %v4638, 1.442695
  %v4640 = vpow.pop %v4639
  %v4641 = vadd.f32 %v4640, 1.0
  %v4642 = vrcp.pop %v4641
  %v4643 = vmul.f32 1.0, %v4642
  %v4644 = vxor.u32 %v4520, 2147483648
  %v4645 = vmul.f32 %v4644, 1.442695
  %v4646 = vpow.pop %v4645
  %v4647 = vadd.f32 %v4646, 1.0
  %v4648 = vrcp.pop %v4647
  %v4649 = vmul.f32 1.0, %v4648
  %v4650 = vtanh.pop %v4521
  %v4651 = vxor.u32 %v4522, 2147483648
  %v4652 = vmul.f32 %v4651, 1.442695
  %v4653 = vpow.pop %v4652
  %v4654 = vadd.f32 %v4653, 1.0
  %v4655 = vrcp.pop %v4654
  %v4656 = vmul.f32 1.0, %v4655
  %v4657 = vmul.f32 %v4649, %v4429
  %v4658 = vmul.f32 %v4643, %v4650
  %v4659 = vadd.f32 %v4657, %v4658
  %v4660 = vtanh.pop %v4659
  %v4661 = vmul.f32 %v4656, %v4660
  %v4662 = vld [vmem:[#allocation3 + $0x40] sm:$0xff]
  %v4663 = vld [vmem:[#allocation3 + $0x48] sm:$0xff]
  %v4664 = vld [vmem:[#allocation3 + $0x50] sm:$0xff]
  %v4665 = vld [vmem:[#allocation3 + $0x58] sm:$0xff]
  %v4666 = vpack.c.bf16 %v4661, %v4661
  %4667 = vmatprep.subr.bf16.mxu0 %v3953
  %4668 = vmatpush1.bf16.msra.mxu0 %v3952
  %4669 = vmatprep.subr.bf16.mxu0 %v3957
  %4670 = vmatpush1.bf16.msra.mxu0 %v3956
  %4671 = vmatprep.subr.bf16.mxu0 %v3961
  %4672 = vmatpush1.bf16.msra.mxu0 %v3960
  %4673 = vmatprep.subr.bf16.mxu0 %v3965
  %4674 = vmatpush1.bf16.msra.mxu0 %v3964
  %4675 = vmatprep.subr.bf16.mxu0 %v3969
  %4676 = vmatpush1.bf16.msra.mxu0 %v3968
  %4677 = vmatprep.subr.bf16.mxu0 %v3973
  %4678 = vmatpush1.bf16.msra.mxu0 %v3972
  %4679 = vmatprep.subr.bf16.mxu0 %v3977
  %4680 = vmatpush1.bf16.msra.mxu0 %v3976
  %4681 = vmatprep.subr.bf16.mxu0 %v3981
  %4682 = vmatpush1.bf16.msra.mxu0 %v3980
  %4683 = vmatprep.subr.bf16.mxu0 0
  %4684 = vmatpush1.bf16.msra.mxu0 0
  %4685 = vmatprep.subr.bf16.mxu0 0
  %4686 = vmatpush1.bf16.msra.mxu0 0
  %4687 = vmatprep.subr.bf16.mxu0 0
  %4688 = vmatpush1.bf16.msra.mxu0 0
  %4689 = vmatprep.subr.bf16.mxu0 0
  %4690 = vmatpush1.bf16.msra.mxu0 0
  %4691 = vmatprep.subr.bf16.mxu0 0
  %4692 = vmatpush1.bf16.msra.mxu0 0
  %4693 = vmatprep.subr.bf16.mxu0 0
  %4694 = vmatpush1.bf16.msra.mxu0 0
  %4695 = vmatprep.subr.bf16.mxu0 0
  %4696 = vmatpush1.bf16.msra.mxu0 0
  %4697 = vmatprep.subr.bf16.mxu0 0
  %4698 = vmatpush1.bf16.msra.mxu0 0
  %4699 = vmatprep.mubr.bf16.mxu0 0
  %4700 = vmatmul.mubr.bf16.gmra.mrb[0].mxu0 %v4666
  %v4701 = vpop.f32.mrb[0].mxu0
  %v4702 = vadd.f32 0.0, %v4701
  %v4703 = vpop.f32.mrb[0].mxu0
  %v4704 = vadd.f32 0.0, %v4703
  %v4705 = vpop.f32.mrb[0].mxu0
  %v4706 = vpop.f32.mrb[0].mxu0
  %4707 = vdwg.mxu0
  %4708 = vmatprep.subr.bf16.mxu0 %v3955
  %4709 = vmatpush1.bf16.msra.mxu0 %v3954
  %4710 = vmatprep.subr.bf16.mxu0 %v3959
  %4711 = vmatpush1.bf16.msra.mxu0 %v3958
  %4712 = vmatprep.subr.bf16.mxu0 %v3963
  %4713 = vmatpush1.bf16.msra.mxu0 %v3962
  %4714 = vmatprep.subr.bf16.mxu0 %v3967
  %4715 = vmatpush1.bf16.msra.mxu0 %v3966
  %4716 = vmatprep.subr.bf16.mxu0 %v3971
  %4717 = vmatpush1.bf16.msra.mxu0 %v3970
  %4718 = vmatprep.subr.bf16.mxu0 %v3975
  %4719 = vmatpush1.bf16.msra.mxu0 %v3974
  %4720 = vmatprep.subr.bf16.mxu0 %v3979
  %4721 = vmatpush1.bf16.msra.mxu0 %v3978
  %4722 = vmatprep.subr.bf16.mxu0 %v3983
  %4723 = vmatpush1.bf16.msra.mxu0 %v3982
  %4724 = vmatprep.subr.bf16.mxu0 0
  %4725 = vmatpush1.bf16.msra.mxu0 0
  %4726 = vmatprep.subr.bf16.mxu0 0
  %4727 = vmatpush1.bf16.msra.mxu0 0
  %4728 = vmatprep.subr.bf16.mxu0 0
  %4729 = vmatpush1.bf16.msra.mxu0 0
  %4730 = vmatprep.subr.bf16.mxu0 0
  %4731 = vmatpush1.bf16.msra.mxu0 0
  %4732 = vmatprep.subr.bf16.mxu0 0
  %4733 = vmatpush1.bf16.msra.mxu0 0
  %4734 = vmatprep.subr.bf16.mxu0 0
  %4735 = vmatpush1.bf16.msra.mxu0 0
  %4736 = vmatprep.subr.bf16.mxu0 0
  %4737 = vmatpush1.bf16.msra.mxu0 0
  %4738 = vmatprep.subr.bf16.mxu0 0
  %4739 = vmatpush1.bf16.msra.mxu0 0
  %4740 = vmatprep.mubr.bf16.mxu0 0
  %4741 = vmatmul.mubr.bf16.gmra.mrb[0].mxu0 %v4666
  %v4742 = vpop.f32.mrb[0].mxu0
  %v4743 = vadd.f32 0.0, %v4742
  %v4744 = vpop.f32.mrb[0].mxu0
  %v4745 = vadd.f32 0.0, %v4744
  %v4746 = vpop.f32.mrb[0].mxu0
  %v4747 = vpop.f32.mrb[0].mxu0
  %4748 = vdwg.mxu0
  %v4749 = vadd.f32 %v4662, %v4702
  %v4750 = vadd.f32 %v4663, %v4704
  %v4751 = vadd.f32 %v4664, %v4743
  %v4752 = vadd.f32 %v4665, %v4745
  %v4753 = vld [vmem:[#allocation2 + $0x40] sm:$0xff]
  %v4754 = vld [vmem:[#allocation2 + $0x48] sm:$0xff]
  %v4755 = vld [vmem:[#allocation2 + $0x50] sm:$0xff]
  %v4756 = vld [vmem:[#allocation2 + $0x58] sm:$0xff]
  %v4757 = vpack.c.bf16 %v4637, %v4637
  %4758 = vmatprep.subr.bf16.mxu0 %v4235
  %4759 = vmatpush1.bf16.msra.mxu0 %v4234
  %4760 = vmatprep.subr.bf16.mxu0 %v4239
  %4761 = vmatpush1.bf16.msra.mxu0 %v4238
  %4762 = vmatprep.subr.bf16.mxu0 %v4243
  %4763 = vmatpush1.bf16.msra.mxu0 %v4242
  %4764 = vmatprep.subr.bf16.mxu0 %v4247
  %4765 = vmatpush1.bf16.msra.mxu0 %v4246
  %4766 = vmatprep.subr.bf16.mxu0 %v4251
  %4767 = vmatpush1.bf16.msra.mxu0 %v4250
  %4768 = vmatprep.subr.bf16.mxu0 %v4255
  %4769 = vmatpush1.bf16.msra.mxu0 %v4254
  %4770 = vmatprep.subr.bf16.mxu0 %v4259
  %4771 = vmatpush1.bf16.msra.mxu0 %v4258
  %4772 = vmatprep.subr.bf16.mxu0 %v4263
  %4773 = vmatpush1.bf16.msra.mxu0 %v4262
  %4774 = vmatprep.subr.bf16.mxu0 0
  %4775 = vmatpush1.bf16.msra.mxu0 0
  %4776 = vmatprep.subr.bf16.mxu0 0
  %4777 = vmatpush1.bf16.msra.mxu0 0
  %4778 = vmatprep.subr.bf16.mxu0 0
  %4779 = vmatpush1.bf16.msra.mxu0 0
  %4780 = vmatprep.subr.bf16.mxu0 0
  %4781 = vmatpush1.bf16.msra.mxu0 0
  %4782 = vmatprep.subr.bf16.mxu0 0
  %4783 = vmatpush1.bf16.msra.mxu0 0
  %4784 = vmatprep.subr.bf16.mxu0 0
  %4785 = vmatpush1.bf16.msra.mxu0 0
  %4786 = vmatprep.subr.bf16.mxu0 0
  %4787 = vmatpush1.bf16.msra.mxu0 0
  %4788 = vmatprep.subr.bf16.mxu0 0
  %4789 = vmatpush1.bf16.msra.mxu0 0
  %4790 = vmatprep.mubr.bf16.mxu0 0
  %4791 = vmatmul.mubr.bf16.gmra.mrb[0].mxu0 %v4757
  %v4792 = vpop.f32.mrb[0].mxu0
  %v4793 = vadd.f32 0.0, %v4792
  %v4794 = vpop.f32.mrb[0].mxu0
  %v4795 = vadd.f32 0.0, %v4794
  %v4796 = vpop.f32.mrb[0].mxu0
  %v4797 = vpop.f32.mrb[0].mxu0
  %4798 = vdwg.mxu0
  %4799 = vmatprep.subr.bf16.mxu0 %v4237
  %4800 = vmatpush1.bf16.msra.mxu0 %v4236
  %4801 = vmatprep.subr.bf16.mxu0 %v4241
  %4802 = vmatpush1.bf16.msra.mxu0 %v4240
  %4803 = vmatprep.subr.bf16.mxu0 %v4245
  %4804 = vmatpush1.bf16.msra.mxu0 %v4244
  %4805 = vmatprep.subr.bf16.mxu0 %v4249
  %4806 = vmatpush1.bf16.msra.mxu0 %v4248
  %4807 = vmatprep.subr.bf16.mxu0 %v4253
  %4808 = vmatpush1.bf16.msra.mxu0 %v4252
  %4809 = vmatprep.subr.bf16.mxu0 %v4257
  %4810 = vmatpush1.bf16.msra.mxu0 %v4256
  %4811 = vmatprep.subr.bf16.mxu0 %v4261
  %4812 = vmatpush1.bf16.msra.mxu0 %v4260
  %4813 = vmatprep.subr.bf16.mxu0 %v4265
  %4814 = vmatpush1.bf16.msra.mxu0 %v4264
  %4815 = vmatprep.subr.bf16.mxu0 0
  %4816 = vmatpush1.bf16.msra.mxu0 0
  %4817 = vmatprep.subr.bf16.mxu0 0
  %4818 = vmatpush1.bf16.msra.mxu0 0
  %4819 = vmatprep.subr.bf16.mxu0 0
  %4820 = vmatpush1.bf16.msra.mxu0 0
  %4821 = vmatprep.subr.bf16.mxu0 0
  %4822 = vmatpush1.bf16.msra.mxu0 0
  %4823 = vmatprep.subr.bf16.mxu0 0
  %4824 = vmatpush1.bf16.msra.mxu0 0
  %4825 = vmatprep.subr.bf16.mxu0 0
  %4826 = vmatpush1.bf16.msra.mxu0 0
  %4827 = vmatprep.subr.bf16.mxu0 0
  %4828 = vmatpush1.bf16.msra.mxu0 0
  %4829 = vmatprep.subr.bf16.mxu0 0
  %4830 = vmatpush1.bf16.msra.mxu0 0
  %4831 = vmatprep.mubr.bf16.mxu0 0
  %4832 = vmatmul.mubr.bf16.gmra.mrb[0].mxu0 %v4757
  %v4833 = vpop.f32.mrb[0].mxu0
  %v4834 = vadd.f32 0.0, %v4833
  %v4835 = vpop.f32.mrb[0].mxu0
  %v4836 = vadd.f32 0.0, %v4835
  %v4837 = vpop.f32.mrb[0].mxu0
  %v4838 = vpop.f32.mrb[0].mxu0
  %4839 = vdwg.mxu0
  %v4840 = vadd.f32 %v4753, %v4793
  %v4841 = vadd.f32 %v4754, %v4795
  %v4842 = vadd.f32 %v4755, %v4834
  %v4843 = vadd.f32 %v4756, %v4836
  %v4844 = vxor.u32 %v4840, 2147483648
  %v4845 = vmul.f32 %v4844, 1.442695
  %v4846 = vpow.pop %v4845
  %v4847 = vadd.f32 %v4846, 1.0
  %v4848 = vrcp.pop %v4847
  %v4849 = vmul.f32 1.0, %v4848
  %v4850 = vxor.u32 %v4841, 2147483648
  %v4851 = vmul.f32 %v4850, 1.442695
  %v4852 = vpow.pop %v4851
  %v4853 = vadd.f32 %v4852, 1.0
  %v4854 = vrcp.pop %v4853
  %v4855 = vmul.f32 1.0, %v4854
  %v4856 = vtanh.pop %v4842
  %v4857 = vxor.u32 %v4843, 2147483648
  %v4858 = vmul.f32 %v4857, 1.442695
  %v4859 = vpow.pop %v4858
  %v4860 = vadd.f32 %v4859, 1.0
  %v4861 = vrcp.pop %v4860
  %v4862 = vmul.f32 1.0, %v4861
  %v4863 = vmul.f32 %v4855, %v4635
  %v4864 = vmul.f32 %v4849, %v4856
  %v4865 = vadd.f32 %v4863, %v4864
  %v4866 = vtanh.pop %v4865
  %v4867 = vmul.f32 %v4862, %v4866
  %v4868 = vxor.u32 %v4749, 2147483648
  %v4869 = vmul.f32 %v4868, 1.442695
  %v4870 = vpow.pop %v4869
  %v4871 = vadd.f32 %v4870, 1.0
  %v4872 = vrcp.pop %v4871
  %v4873 = vmul.f32 1.0, %v4872
  %v4874 = vxor.u32 %v4750, 2147483648
  %v4875 = vmul.f32 %v4874, 1.442695
  %v4876 = vpow.pop %v4875
  %v4877 = vadd.f32 %v4876, 1.0
  %v4878 = vrcp.pop %v4877
  %v4879 = vmul.f32 1.0, %v4878
  %v4880 = vtanh.pop %v4751
  %v4881 = vxor.u32 %v4752, 2147483648
  %v4882 = vmul.f32 %v4881, 1.442695
  %v4883 = vpow.pop %v4882
  %v4884 = vadd.f32 %v4883, 1.0
  %v4885 = vrcp.pop %v4884
  %v4886 = vmul.f32 1.0, %v4885
  %v4887 = vmul.f32 %v4879, %v4659
  %v4888 = vmul.f32 %v4873, %v4880
  %v4889 = vadd.f32 %v4887, %v4888
  %v4890 = vtanh.pop %v4889
  %v4891 = vmul.f32 %v4886, %v4890
  %v4892 = vld [vmem:[#allocation3 + $0x60] sm:$0xff]
  %v4893 = vld [vmem:[#allocation3 + $0x68] sm:$0xff]
  %v4894 = vld [vmem:[#allocation3 + $0x70] sm:$0xff]
  %v4895 = vld [vmem:[#allocation3 + $0x78] sm:$0xff]
  %v4896 = vpack.c.bf16 %v4891, %v4891
  %4897 = vmatprep.subr.bf16.mxu0 %v3953
  %4898 = vmatpush1.bf16.msra.mxu0 %v3952
  %4899 = vmatprep.subr.bf16.mxu0 %v3957
  %4900 = vmatpush1.bf16.msra.mxu0 %v3956
  %4901 = vmatprep.subr.bf16.mxu0 %v3961
  %4902 = vmatpush1.bf16.msra.mxu0 %v3960
  %4903 = vmatprep.subr.bf16.mxu0 %v3965
  %4904 = vmatpush1.bf16.msra.mxu0 %v3964
  %4905 = vmatprep.subr.bf16.mxu0 %v3969
  %4906 = vmatpush1.bf16.msra.mxu0 %v3968
  %4907 = vmatprep.subr.bf16.mxu0 %v3973
  %4908 = vmatpush1.bf16.msra.mxu0 %v3972
  %4909 = vmatprep.subr.bf16.mxu0 %v3977
  %4910 = vmatpush1.bf16.msra.mxu0 %v3976
  %4911 = vmatprep.subr.bf16.mxu0 %v3981
  %4912 = vmatpush1.bf16.msra.mxu0 %v3980
  %4913 = vmatprep.subr.bf16.mxu0 0
  %4914 = vmatpush1.bf16.msra.mxu0 0
  %4915 = vmatprep.subr.bf16.mxu0 0
  %4916 = vmatpush1.bf16.msra.mxu0 0
  %4917 = vmatprep.subr.bf16.mxu0 0
  %4918 = vmatpush1.bf16.msra.mxu0 0
  %4919 = vmatprep.subr.bf16.mxu0 0
  %4920 = vmatpush1.bf16.msra.mxu0 0
  %4921 = vmatprep.subr.bf16.mxu0 0
  %4922 = vmatpush1.bf16.msra.mxu0 0
  %4923 = vmatprep.subr.bf16.mxu0 0
  %4924 = vmatpush1.bf16.msra.mxu0 0
  %4925 = vmatprep.subr.bf16.mxu0 0
  %4926 = vmatpush1.bf16.msra.mxu0 0
  %4927 = vmatprep.subr.bf16.mxu0 0
  %4928 = vmatpush1.bf16.msra.mxu0 0
  %4929 = vmatprep.mubr.bf16.mxu0 0
  %4930 = vmatmul.mubr.bf16.gmra.mrb[0].mxu0 %v4896
  %v4931 = vpop.f32.mrb[0].mxu0
  %v4932 = vadd.f32 0.0, %v4931
  %v4933 = vpop.f32.mrb[0].mxu0
  %v4934 = vadd.f32 0.0, %v4933
  %v4935 = vpop.f32.mrb[0].mxu0
  %v4936 = vpop.f32.mrb[0].mxu0
  %4937 = vdwg.mxu0
  %4938 = vmatprep.subr.bf16.mxu0 %v3955
  %4939 = vmatpush1.bf16.msra.mxu0 %v3954
  %4940 = vmatprep.subr.bf16.mxu0 %v3959
  %4941 = vmatpush1.bf16.msra.mxu0 %v3958
  %4942 = vmatprep.subr.bf16.mxu0 %v3963
  %4943 = vmatpush1.bf16.msra.mxu0 %v3962
  %4944 = vmatprep.subr.bf16.mxu0 %v3967
  %4945 = vmatpush1.bf16.msra.mxu0 %v3966
  %4946 = vmatprep.subr.bf16.mxu0 %v3971
  %4947 = vmatpush1.bf16.msra.mxu0 %v3970
  %4948 = vmatprep.subr.bf16.mxu0 %v3975
  %4949 = vmatpush1.bf16.msra.mxu0 %v3974
  %4950 = vmatprep.subr.bf16.mxu0 %v3979
  %4951 = vmatpush1.bf16.msra.mxu0 %v3978
  %4952 = vmatprep.subr.bf16.mxu0 %v3983
  %4953 = vmatpush1.bf16.msra.mxu0 %v3982
  %4954 = vmatprep.subr.bf16.mxu0 0
  %4955 = vmatpush1.bf16.msra.mxu0 0
  %4956 = vmatprep.subr.bf16.mxu0 0
  %4957 = vmatpush1.bf16.msra.mxu0 0
  %4958 = vmatprep.subr.bf16.mxu0 0
  %4959 = vmatpush1.bf16.msra.mxu0 0
  %4960 = vmatprep.subr.bf16.mxu0 0
  %4961 = vmatpush1.bf16.msra.mxu0 0
  %4962 = vmatprep.subr.bf16.mxu0 0
  %4963 = vmatpush1.bf16.msra.mxu0 0
  %4964 = vmatprep.subr.bf16.mxu0 0
  %4965 = vmatpush1.bf16.msra.mxu0 0
  %4966 = vmatprep.subr.bf16.mxu0 0
  %4967 = vmatpush1.bf16.msra.mxu0 0
  %4968 = vmatprep.subr.bf16.mxu0 0
  %4969 = vmatpush1.bf16.msra.mxu0 0
  %4970 = vmatprep.mubr.bf16.mxu0 0
  %4971 = vmatmul.mubr.bf16.gmra.mrb[0].mxu0 %v4896
  %v4972 = vpop.f32.mrb[0].mxu0
  %v4973 = vadd.f32 0.0, %v4972
  %v4974 = vpop.f32.mrb[0].mxu0
  %v4975 = vadd.f32 0.0, %v4974
  %v4976 = vpop.f32.mrb[0].mxu0
  %v4977 = vpop.f32.mrb[0].mxu0
  %4978 = vdwg.mxu0
  %v4979 = vadd.f32 %v4892, %v4932
  %v4980 = vadd.f32 %v4893, %v4934
  %v4981 = vadd.f32 %v4894, %v4973
  %v4982 = vadd.f32 %v4895, %v4975
  %v4983 = vld [vmem:[#allocation2 + $0x60] sm:$0xff]
  %v4984 = vld [vmem:[#allocation2 + $0x68] sm:$0xff]
  %v4985 = vld [vmem:[#allocation2 + $0x70] sm:$0xff]
  %v4986 = vld [vmem:[#allocation2 + $0x78] sm:$0xff]
  %v4987 = vpack.c.bf16 %v4867, %v4867
  %4988 = vmatprep.subr.bf16.mxu0 %v4235
  %4989 = vmatpush1.bf16.msra.mxu0 %v4234
  %4990 = vmatprep.subr.bf16.mxu0 %v4239
  %4991 = vmatpush1.bf16.msra.mxu0 %v4238
  %4992 = vmatprep.subr.bf16.mxu0 %v4243
  %4993 = vmatpush1.bf16.msra.mxu0 %v4242
  %4994 = vmatprep.subr.bf16.mxu0 %v4247
  %4995 = vmatpush1.bf16.msra.mxu0 %v4246
  %4996 = vmatprep.subr.bf16.mxu0 %v4251
  %4997 = vmatpush1.bf16.msra.mxu0 %v4250
  %4998 = vmatprep.subr.bf16.mxu0 %v4255
  %4999 = vmatpush1.bf16.msra.mxu0 %v4254
  %5000 = vmatprep.subr.bf16.mxu0 %v4259
  %5001 = vmatpush1.bf16.msra.mxu0 %v4258
  %5002 = vmatprep.subr.bf16.mxu0 %v4263
  %5003 = vmatpush1.bf16.msra.mxu0 %v4262
  %5004 = vmatprep.subr.bf16.mxu0 0
  %5005 = vmatpush1.bf16.msra.mxu0 0
  %5006 = vmatprep.subr.bf16.mxu0 0
  %5007 = vmatpush1.bf16.msra.mxu0 0
  %5008 = vmatprep.subr.bf16.mxu0 0
  %5009 = vmatpush1.bf16.msra.mxu0 0
  %5010 = vmatprep.subr.bf16.mxu0 0
  %5011 = vmatpush1.bf16.msra.mxu0 0
  %5012 = vmatprep.subr.bf16.mxu0 0
  %5013 = vmatpush1.bf16.msra.mxu0 0
  %5014 = vmatprep.subr.bf16.mxu0 0
  %5015 = vmatpush1.bf16.msra.mxu0 0
  %5016 = vmatprep.subr.bf16.mxu0 0
  %5017 = vmatpush1.bf16.msra.mxu0 0
  %5018 = vmatprep.subr.bf16.mxu0 0
  %5019 = vmatpush1.bf16.msra.mxu0 0
  %5020 = vmatprep.mubr.bf16.mxu0 0
  %5021 = vmatmul.mubr.bf16.gmra.mrb[0].mxu0 %v4987
  %v5022 = vpop.f32.mrb[0].mxu0
  %v5023 = vadd.f32 0.0, %v5022
  %v5024 = vpop.f32.mrb[0].mxu0
  %v5025 = vadd.f32 0.0, %v5024
  %v5026 = vpop.f32.mrb[0].mxu0
  %v5027 = vpop.f32.mrb[0].mxu0
  %5028 = vdwg.mxu0
  %5029 = vmatprep.subr.bf16.mxu0 %v4237
  %5030 = vmatpush1.bf16.msra.mxu0 %v4236
  %5031 = vmatprep.subr.bf16.mxu0 %v4241
  %5032 = vmatpush1.bf16.msra.mxu0 %v4240
  %5033 = vmatprep.subr.bf16.mxu0 %v4245
  %5034 = vmatpush1.bf16.msra.mxu0 %v4244
  %5035 = vmatprep.subr.bf16.mxu0 %v4249
  %5036 = vmatpush1.bf16.msra.mxu0 %v4248
  %5037 = vmatprep.subr.bf16.mxu0 %v4253
  %5038 = vmatpush1.bf16.msra.mxu0 %v4252
  %5039 = vmatprep.subr.bf16.mxu0 %v4257
  %5040 = vmatpush1.bf16.msra.mxu0 %v4256
  %5041 = vmatprep.subr.bf16.mxu0 %v4261
  %5042 = vmatpush1.bf16.msra.mxu0 %v4260
  %5043 = vmatprep.subr.bf16.mxu0 %v4265
  %5044 = vmatpush1.bf16.msra.mxu0 %v4264
  %5045 = vmatprep.subr.bf16.mxu0 0
  %5046 = vmatpush1.bf16.msra.mxu0 0
  %5047 = vmatprep.subr.bf16.mxu0 0
  %5048 = vmatpush1.bf16.msra.mxu0 0
  %5049 = vmatprep.subr.bf16.mxu0 0
  %5050 = vmatpush1.bf16.msra.mxu0 0
  %5051 = vmatprep.subr.bf16.mxu0 0
  %5052 = vmatpush1.bf16.msra.mxu0 0
  %5053 = vmatprep.subr.bf16.mxu0 0
  %5054 = vmatpush1.bf16.msra.mxu0 0
  %5055 = vmatprep.subr.bf16.mxu0 0
  %5056 = vmatpush1.bf16.msra.mxu0 0
  %5057 = vmatprep.subr.bf16.mxu0 0
  %5058 = vmatpush1.bf16.msra.mxu0 0
  %5059 = vmatprep.subr.bf16.mxu0 0
  %5060 = vmatpush1.bf16.msra.mxu0 0
  %5061 = vmatprep.mubr.bf16.mxu0 0
  %5062 = vmatmul.mubr.bf16.gmra.mrb[0].mxu0 %v4987
  %v5063 = vpop.f32.mrb[0].mxu0
  %v5064 = vadd.f32 0.0, %v5063
  %v5065 = vpop.f32.mrb[0].mxu0
  %v5066 = vadd.f32 0.0, %v5065
  %v5067 = vpop.f32.mrb[0].mxu0
  %v5068 = vpop.f32.mrb[0].mxu0
  %5069 = vdwg.mxu0
  %v5070 = vadd.f32 %v4983, %v5023
  %v5071 = vadd.f32 %v4984, %v5025
  %v5072 = vadd.f32 %v4985, %v5064
  %v5073 = vadd.f32 %v4986, %v5066
  %v5074 = vxor.u32 %v5070, 2147483648
  %v5075 = vmul.f32 %v5074, 1.442695
  %v5076 = vpow.pop %v5075
  %v5077 = vadd.f32 %v5076, 1.0
  %v5078 = vrcp.pop %v5077
  %v5079 = vmul.f32 1.0, %v5078
  %v5080 = vxor.u32 %v5071, 2147483648
  %v5081 = vmul.f32 %v5080, 1.442695
  %v5082 = vpow.pop %v5081
  %v5083 = vadd.f32 %v5082, 1.0
  %v5084 = vrcp.pop %v5083
  %v5085 = vmul.f32 1.0, %v5084
  %v5086 = vtanh.pop %v5072
  %v5087 = vxor.u32 %v5073, 2147483648
  %v5088 = vmul.f32 %v5087, 1.442695
  %v5089 = vpow.pop %v5088
  %v5090 = vadd.f32 %v5089, 1.0
  %v5091 = vrcp.pop %v5090
  %v5092 = vmul.f32 1.0, %v5091
  %v5093 = vmul.f32 %v5085, %v4865
  %v5094 = vmul.f32 %v5079, %v5086
  %v5095 = vadd.f32 %v5093, %v5094
  %v5096 = vtanh.pop %v5095
  %v5097 = vmul.f32 %v5092, %v5096
  %v5098 = vxor.u32 %v4979, 2147483648
  %v5099 = vmul.f32 %v5098, 1.442695
  %v5100 = vpow.pop %v5099
  %v5101 = vadd.f32 %v5100, 1.0
  %v5102 = vrcp.pop %v5101
  %v5103 = vmul.f32 1.0, %v5102
  %v5104 = vxor.u32 %v4980, 2147483648
  %v5105 = vmul.f32 %v5104, 1.442695
  %v5106 = vpow.pop %v5105
  %v5107 = vadd.f32 %v5106, 1.0
  %v5108 = vrcp.pop %v5107
  %v5109 = vmul.f32 1.0, %v5108
  %v5110 = vtanh.pop %v4981
  %v5111 = vxor.u32 %v4982, 2147483648
  %v5112 = vmul.f32 %v5111, 1.442695
  %v5113 = vpow.pop %v5112
  %v5114 = vadd.f32 %v5113, 1.0
  %v5115 = vrcp.pop %v5114
  %v5116 = vmul.f32 1.0, %v5115
  %v5117 = vmul.f32 %v5109, %v4889
  %v5118 = vmul.f32 %v5103, %v5110
  %v5119 = vadd.f32 %v5117, %v5118
  %v5120 = vtanh.pop %v5119
  %v5121 = vmul.f32 %v5116, %v5120
  %v5122 = vld [vmem:[#allocation3 + $0x80] sm:$0xff]
  %v5123 = vld [vmem:[#allocation3 + $0x88] sm:$0xff]
  %v5124 = vld [vmem:[#allocation3 + $0x90] sm:$0xff]
  %v5125 = vld [vmem:[#allocation3 + $0x98] sm:$0xff]
  %v5126 = vpack.c.bf16 %v5121, %v5121
  %5127 = vmatprep.subr.bf16.mxu0 %v3953
  %5128 = vmatpush1.bf16.msra.mxu0 %v3952
  %5129 = vmatprep.subr.bf16.mxu0 %v3957
  %5130 = vmatpush1.bf16.msra.mxu0 %v3956
  %5131 = vmatprep.subr.bf16.mxu0 %v3961
  %5132 = vmatpush1.bf16.msra.mxu0 %v3960
  %5133 = vmatprep.subr.bf16.mxu0 %v3965
  %5134 = vmatpush1.bf16.msra.mxu0 %v3964
  %5135 = vmatprep.subr.bf16.mxu0 %v3969
  %5136 = vmatpush1.bf16.msra.mxu0 %v3968
  %5137 = vmatprep.subr.bf16.mxu0 %v3973
  %5138 = vmatpush1.bf16.msra.mxu0 %v3972
  %5139 = vmatprep.subr.bf16.mxu0 %v3977
  %5140 = vmatpush1.bf16.msra.mxu0 %v3976
  %5141 = vmatprep.subr.bf16.mxu0 %v3981
  %5142 = vmatpush1.bf16.msra.mxu0 %v3980
  %5143 = vmatprep.subr.bf16.mxu0 0
  %5144 = vmatpush1.bf16.msra.mxu0 0
  %5145 = vmatprep.subr.bf16.mxu0 0
  %5146 = vmatpush1.bf16.msra.mxu0 0
  %5147 = vmatprep.subr.bf16.mxu0 0
  %5148 = vmatpush1.bf16.msra.mxu0 0
  %5149 = vmatprep.subr.bf16.mxu0 0
  %5150 = vmatpush1.bf16.msra.mxu0 0
  %5151 = vmatprep.subr.bf16.mxu0 0
  %5152 = vmatpush1.bf16.msra.mxu0 0
  %5153 = vmatprep.subr.bf16.mxu0 0
  %5154 = vmatpush1.bf16.msra.mxu0 0
  %5155 = vmatprep.subr.bf16.mxu0 0
  %5156 = vmatpush1.bf16.msra.mxu0 0
  %5157 = vmatprep.subr.bf16.mxu0 0
  %5158 = vmatpush1.bf16.msra.mxu0 0
  %5159 = vmatprep.mubr.bf16.mxu0 0
  %5160 = vmatmul.mubr.bf16.gmra.mrb[0].mxu0 %v5126
  %v5161 = vpop.f32.mrb[0].mxu0
  %v5162 = vadd.f32 0.0, %v5161
  %v5163 = vpop.f32.mrb[0].mxu0
  %v5164 = vadd.f32 0.0, %v5163
  %v5165 = vpop.f32.mrb[0].mxu0
  %v5166 = vpop.f32.mrb[0].mxu0
  %5167 = vdwg.mxu0
  %5168 = vmatprep.subr.bf16.mxu0 %v3955
  %5169 = vmatpush1.bf16.msra.mxu0 %v3954
  %5170 = vmatprep.subr.bf16.mxu0 %v3959
  %5171 = vmatpush1.bf16.msra.mxu0 %v3958
  %5172 = vmatprep.subr.bf16.mxu0 %v3963
  %5173 = vmatpush1.bf16.msra.mxu0 %v3962
  %5174 = vmatprep.subr.bf16.mxu0 %v3967
  %5175 = vmatpush1.bf16.msra.mxu0 %v3966
  %5176 = vmatprep.subr.bf16.mxu0 %v3971
  %5177 = vmatpush1.bf16.msra.mxu0 %v3970
  %5178 = vmatprep.subr.bf16.mxu0 %v3975
  %5179 = vmatpush1.bf16.msra.mxu0 %v3974
  %5180 = vmatprep.subr.bf16.mxu0 %v3979
  %5181 = vmatpush1.bf16.msra.mxu0 %v3978
  %5182 = vmatprep.subr.bf16.mxu0 %v3983
  %5183 = vmatpush1.bf16.msra.mxu0 %v3982
  %5184 = vmatprep.subr.bf16.mxu0 0
  %5185 = vmatpush1.bf16.msra.mxu0 0
  %5186 = vmatprep.subr.bf16.mxu0 0
  %5187 = vmatpush1.bf16.msra.mxu0 0
  %5188 = vmatprep.subr.bf16.mxu0 0
  %5189 = vmatpush1.bf16.msra.mxu0 0
  %5190 = vmatprep.subr.bf16.mxu0 0
  %5191 = vmatpush1.bf16.msra.mxu0 0
  %5192 = vmatprep.subr.bf16.mxu0 0
  %5193 = vmatpush1.bf16.msra.mxu0 0
  %5194 = vmatprep.subr.bf16.mxu0 0
  %5195 = vmatpush1.bf16.msra.mxu0 0
  %5196 = vmatprep.subr.bf16.mxu0 0
  %5197 = vmatpush1.bf16.msra.mxu0 0
  %5198 = vmatprep.subr.bf16.mxu0 0
  %5199 = vmatpush1.bf16.msra.mxu0 0
  %5200 = vmatprep.mubr.bf16.mxu0 0
  %5201 = vmatmul.mubr.bf16.gmra.mrb[0].mxu0 %v5126
  %v5202 = vpop.f32.mrb[0].mxu0
  %v5203 = vadd.f32 0.0, %v5202
  %v5204 = vpop.f32.mrb[0].mxu0
  %v5205 = vadd.f32 0.0, %v5204
  %v5206 = vpop.f32.mrb[0].mxu0
  %v5207 = vpop.f32.mrb[0].mxu0
  %5208 = vdwg.mxu0
  %v5209 = vadd.f32 %v5122, %v5162
  %v5210 = vadd.f32 %v5123, %v5164
  %v5211 = vadd.f32 %v5124, %v5203
  %v5212 = vadd.f32 %v5125, %v5205
  %v5213 = vld [vmem:[#allocation2 + $0x80] sm:$0xff]
  %v5214 = vld [vmem:[#allocation2 + $0x88] sm:$0xff]
  %v5215 = vld [vmem:[#allocation2 + $0x90] sm:$0xff]
  %v5216 = vld [vmem:[#allocation2 + $0x98] sm:$0xff]
  %v5217 = vpack.c.bf16 %v5097, %v5097
  %5218 = vmatprep.subr.bf16.mxu0 %v4235
  %5219 = vmatpush1.bf16.msra.mxu0 %v4234
  %5220 = vmatprep.subr.bf16.mxu0 %v4239
  %5221 = vmatpush1.bf16.msra.mxu0 %v4238
  %5222 = vmatprep.subr.bf16.mxu0 %v4243
  %5223 = vmatpush1.bf16.msra.mxu0 %v4242
  %5224 = vmatprep.subr.bf16.mxu0 %v4247
  %5225 = vmatpush1.bf16.msra.mxu0 %v4246
  %5226 = vmatprep.subr.bf16.mxu0 %v4251
  %5227 = vmatpush1.bf16.msra.mxu0 %v4250
  %5228 = vmatprep.subr.bf16.mxu0 %v4255
  %5229 = vmatpush1.bf16.msra.mxu0 %v4254
  %5230 = vmatprep.subr.bf16.mxu0 %v4259
  %5231 = vmatpush1.bf16.msra.mxu0 %v4258
  %5232 = vmatprep.subr.bf16.mxu0 %v4263
  %5233 = vmatpush1.bf16.msra.mxu0 %v4262
  %5234 = vmatprep.subr.bf16.mxu0 0
  %5235 = vmatpush1.bf16.msra.mxu0 0
  %5236 = vmatprep.subr.bf16.mxu0 0
  %5237 = vmatpush1.bf16.msra.mxu0 0
  %5238 = vmatprep.subr.bf16.mxu0 0
  %5239 = vmatpush1.bf16.msra.mxu0 0
  %5240 = vmatprep.subr.bf16.mxu0 0
  %5241 = vmatpush1.bf16.msra.mxu0 0
  %5242 = vmatprep.subr.bf16.mxu0 0
  %5243 = vmatpush1.bf16.msra.mxu0 0
  %5244 = vmatprep.subr.bf16.mxu0 0
  %5245 = vmatpush1.bf16.msra.mxu0 0
  %5246 = vmatprep.subr.bf16.mxu0 0
  %5247 = vmatpush1.bf16.msra.mxu0 0
  %5248 = vmatprep.subr.bf16.mxu0 0
  %5249 = vmatpush1.bf16.msra.mxu0 0
  %5250 = vmatprep.mubr.bf16.mxu0 0
  %5251 = vmatmul.mubr.bf16.gmra.mrb[0].mxu0 %v5217
  %v5252 = vpop.f32.mrb[0].mxu0
  %v5253 = vadd.f32 0.0, %v5252
  %v5254 = vpop.f32.mrb[0].mxu0
  %v5255 = vadd.f32 0.0, %v5254
  %v5256 = vpop.f32.mrb[0].mxu0
  %v5257 = vpop.f32.mrb[0].mxu0
  %5258 = vdwg.mxu0
  %5259 = vmatprep.subr.bf16.mxu0 %v4237
  %5260 = vmatpush1.bf16.msra.mxu0 %v4236
  %5261 = vmatprep.subr.bf16.mxu0 %v4241
  %5262 = vmatpush1.bf16.msra.mxu0 %v4240
  %5263 = vmatprep.subr.bf16.mxu0 %v4245
  %5264 = vmatpush1.bf16.msra.mxu0 %v4244
  %5265 = vmatprep.subr.bf16.mxu0 %v4249
  %5266 = vmatpush1.bf16.msra.mxu0 %v4248
  %5267 = vmatprep.subr.bf16.mxu0 %v4253
  %5268 = vmatpush1.bf16.msra.mxu0 %v4252
  %5269 = vmatprep.subr.bf16.mxu0 %v4257
  %5270 = vmatpush1.bf16.msra.mxu0 %v4256
  %5271 = vmatprep.subr.bf16.mxu0 %v4261
  %5272 = vmatpush1.bf16.msra.mxu0 %v4260
  %5273 = vmatprep.subr.bf16.mxu0 %v4265
  %5274 = vmatpush1.bf16.msra.mxu0 %v4264
  %5275 = vmatprep.subr.bf16.mxu0 0
  %5276 = vmatpush1.bf16.msra.mxu0 0
  %5277 = vmatprep.subr.bf16.mxu0 0
  %5278 = vmatpush1.bf16.msra.mxu0 0
  %5279 = vmatprep.subr.bf16.mxu0 0
  %5280 = vmatpush1.bf16.msra.mxu0 0
  %5281 = vmatprep.subr.bf16.mxu0 0
  %5282 = vmatpush1.bf16.msra.mxu0 0
  %5283 = vmatprep.subr.bf16.mxu0 0
  %5284 = vmatpush1.bf16.msra.mxu0 0
  %5285 = vmatprep.subr.bf16.mxu0 0
  %5286 = vmatpush1.bf16.msra.mxu0 0
  %5287 = vmatprep.subr.bf16.mxu0 0
  %5288 = vmatpush1.bf16.msra.mxu0 0
  %5289 = vmatprep.subr.bf16.mxu0 0
  %5290 = vmatpush1.bf16.msra.mxu0 0
  %5291 = vmatprep.mubr.bf16.mxu0 0
  %5292 = vmatmul.mubr.bf16.gmra.mrb[0].mxu0 %v5217
  %v5293 = vpop.f32.mrb[0].mxu0
  %v5294 = vadd.f32 0.0, %v5293
  %v5295 = vpop.f32.mrb[0].mxu0
  %v5296 = vadd.f32 0.0, %v5295
  %v5297 = vpop.f32.mrb[0].mxu0
  %v5298 = vpop.f32.mrb[0].mxu0
  %5299 = vdwg.mxu0
  %v5300 = vadd.f32 %v5213, %v5253
  %v5301 = vadd.f32 %v5214, %v5255
  %v5302 = vadd.f32 %v5215, %v5294
  %v5303 = vadd.f32 %v5216, %v5296
  %v5304 = vxor.u32 %v5300, 2147483648
  %v5305 = vmul.f32 %v5304, 1.442695
  %v5306 = vpow.pop %v5305
  %v5307 = vadd.f32 %v5306, 1.0
  %v5308 = vrcp.pop %v5307
  %v5309 = vmul.f32 1.0, %v5308
  %v5310 = vxor.u32 %v5301, 2147483648
  %v5311 = vmul.f32 %v5310, 1.442695
  %v5312 = vpow.pop %v5311
  %v5313 = vadd.f32 %v5312, 1.0
  %v5314 = vrcp.pop %v5313
  %v5315 = vmul.f32 1.0, %v5314
  %v5316 = vtanh.pop %v5302
  %v5317 = vxor.u32 %v5303, 2147483648
  %v5318 = vmul.f32 %v5317, 1.442695
  %v5319 = vpow.pop %v5318
  %v5320 = vadd.f32 %v5319, 1.0
  %v5321 = vrcp.pop %v5320
  %v5322 = vmul.f32 1.0, %v5321
  %v5323 = vmul.f32 %v5315, %v5095
  %v5324 = vmul.f32 %v5309, %v5316
  %v5325 = vadd.f32 %v5323, %v5324
  %v5326 = vtanh.pop %v5325
  %v5327 = vmul.f32 %v5322, %v5326
  %v5328 = vxor.u32 %v5209, 2147483648
  %v5329 = vmul.f32 %v5328, 1.442695
  %v5330 = vpow.pop %v5329
  %v5331 = vadd.f32 %v5330, 1.0
  %v5332 = vrcp.pop %v5331
  %v5333 = vmul.f32 1.0, %v5332
  %v5334 = vxor.u32 %v5210, 2147483648
  %v5335 = vmul.f32 %v5334, 1.442695
  %v5336 = vpow.pop %v5335
  %v5337 = vadd.f32 %v5336, 1.0
  %v5338 = vrcp.pop %v5337
  %v5339 = vmul.f32 1.0, %v5338
  %v5340 = vtanh.pop %v5211
  %v5341 = vxor.u32 %v5212, 2147483648
  %v5342 = vmul.f32 %v5341, 1.442695
  %v5343 = vpow.pop %v5342
  %v5344 = vadd.f32 %v5343, 1.0
  %v5345 = vrcp.pop %v5344
  %v5346 = vmul.f32 1.0, %v5345
  %v5347 = vmul.f32 %v5339, %v5119
  %v5348 = vmul.f32 %v5333, %v5340
  %v5349 = vadd.f32 %v5347, %v5348
  %v5350 = vtanh.pop %v5349
  %v5351 = vmul.f32 %v5346, %v5350
  %v5352 = vld [vmem:[#allocation3 + $0xa0] sm:$0xff]
  %v5353 = vld [vmem:[#allocation3 + $0xa8] sm:$0xff]
  %v5354 = vld [vmem:[#allocation3 + $0xb0] sm:$0xff]
  %v5355 = vld [vmem:[#allocation3 + $0xb8] sm:$0xff]
  %v5356 = vpack.c.bf16 %v5351, %v5351
  %5357 = vmatprep.subr.bf16.mxu0 %v3953
  %5358 = vmatpush1.bf16.msra.mxu0 %v3952
  %5359 = vmatprep.subr.bf16.mxu0 %v3957
  %5360 = vmatpush1.bf16.msra.mxu0 %v3956
  %5361 = vmatprep.subr.bf16.mxu0 %v3961
  %5362 = vmatpush1.bf16.msra.mxu0 %v3960
  %5363 = vmatprep.subr.bf16.mxu0 %v3965
  %5364 = vmatpush1.bf16.msra.mxu0 %v3964
  %5365 = vmatprep.subr.bf16.mxu0 %v3969
  %5366 = vmatpush1.bf16.msra.mxu0 %v3968
  %5367 = vmatprep.subr.bf16.mxu0 %v3973
  %5368 = vmatpush1.bf16.msra.mxu0 %v3972
  %5369 = vmatprep.subr.bf16.mxu0 %v3977
  %5370 = vmatpush1.bf16.msra.mxu0 %v3976
  %5371 = vmatprep.subr.bf16.mxu0 %v3981
  %5372 = vmatpush1.bf16.msra.mxu0 %v3980
  %5373 = vmatprep.subr.bf16.mxu0 0
  %5374 = vmatpush1.bf16.msra.mxu0 0
  %5375 = vmatprep.subr.bf16.mxu0 0
  %5376 = vmatpush1.bf16.msra.mxu0 0
  %5377 = vmatprep.subr.bf16.mxu0 0
  %5378 = vmatpush1.bf16.msra.mxu0 0
  %5379 = vmatprep.subr.bf16.mxu0 0
  %5380 = vmatpush1.bf16.msra.mxu0 0
  %5381 = vmatprep.subr.bf16.mxu0 0
  %5382 = vmatpush1.bf16.msra.mxu0 0
  %5383 = vmatprep.subr.bf16.mxu0 0
  %5384 = vmatpush1.bf16.msra.mxu0 0
  %5385 = vmatprep.subr.bf16.mxu0 0
  %5386 = vmatpush1.bf16.msra.mxu0 0
  %5387 = vmatprep.subr.bf16.mxu0 0
  %5388 = vmatpush1.bf16.msra.mxu0 0
  %5389 = vmatprep.mubr.bf16.mxu0 0
  %5390 = vmatmul.mubr.bf16.gmra.mrb[0].mxu0 %v5356
  %v5391 = vpop.f32.mrb[0].mxu0
  %v5392 = vadd.f32 0.0, %v5391
  %v5393 = vpop.f32.mrb[0].mxu0
  %v5394 = vadd.f32 0.0, %v5393
  %v5395 = vpop.f32.mrb[0].mxu0
  %v5396 = vpop.f32.mrb[0].mxu0
  %5397 = vdwg.mxu0
  %5398 = vmatprep.subr.bf16.mxu0 %v3955
  %5399 = vmatpush1.bf16.msra.mxu0 %v3954
  %5400 = vmatprep.subr.bf16.mxu0 %v3959
  %5401 = vmatpush1.bf16.msra.mxu0 %v3958
  %5402 = vmatprep.subr.bf16.mxu0 %v3963
  %5403 = vmatpush1.bf16.msra.mxu0 %v3962
  %5404 = vmatprep.subr.bf16.mxu0 %v3967
  %5405 = vmatpush1.bf16.msra.mxu0 %v3966
  %5406 = vmatprep.subr.bf16.mxu0 %v3971
  %5407 = vmatpush1.bf16.msra.mxu0 %v3970
  %5408 = vmatprep.subr.bf16.mxu0 %v3975
  %5409 = vmatpush1.bf16.msra.mxu0 %v3974
  %5410 = vmatprep.subr.bf16.mxu0 %v3979
  %5411 = vmatpush1.bf16.msra.mxu0 %v3978
  %5412 = vmatprep.subr.bf16.mxu0 %v3983
  %5413 = vmatpush1.bf16.msra.mxu0 %v3982
  %5414 = vmatprep.subr.bf16.mxu0 0
  %5415 = vmatpush1.bf16.msra.mxu0 0
  %5416 = vmatprep.subr.bf16.mxu0 0
  %5417 = vmatpush1.bf16.msra.mxu0 0
  %5418 = vmatprep.subr.bf16.mxu0 0
  %5419 = vmatpush1.bf16.msra.mxu0 0
  %5420 = vmatprep.subr.bf16.mxu0 0
  %5421 = vmatpush1.bf16.msra.mxu0 0
  %5422 = vmatprep.subr.bf16.mxu0 0
  %5423 = vmatpush1.bf16.msra.mxu0 0
  %5424 = vmatprep.subr.bf16.mxu0 0
  %5425 = vmatpush1.bf16.msra.mxu0 0
  %5426 = vmatprep.subr.bf16.mxu0 0
  %5427 = vmatpush1.bf16.msra.mxu0 0
  %5428 = vmatprep.subr.bf16.mxu0 0
  %5429 = vmatpush1.bf16.msra.mxu0 0
  %5430 = vmatprep.mubr.bf16.mxu0 0
  %5431 = vmatmul.mubr.bf16.gmra.mrb[0].mxu0 %v5356
  %v5432 = vpop.f32.mrb[0].mxu0
  %v5433 = vadd.f32 0.0, %v5432
  %v5434 = vpop.f32.mrb[0].mxu0
  %v5435 = vadd.f32 0.0, %v5434
  %v5436 = vpop.f32.mrb[0].mxu0
  %v5437 = vpop.f32.mrb[0].mxu0
  %5438 = vdwg.mxu0
  %v5439 = vadd.f32 %v5352, %v5392
  %v5440 = vadd.f32 %v5353, %v5394
  %v5441 = vadd.f32 %v5354, %v5433
  %v5442 = vadd.f32 %v5355, %v5435
  %v5443 = vld [vmem:[#allocation2 + $0xa0] sm:$0xff]
  %v5444 = vld [vmem:[#allocation2 + $0xa8] sm:$0xff]
  %v5445 = vld [vmem:[#allocation2 + $0xb0] sm:$0xff]
  %v5446 = vld [vmem:[#allocation2 + $0xb8] sm:$0xff]
  %v5447 = vpack.c.bf16 %v5327, %v5327
  %5448 = vmatprep.subr.bf16.mxu0 %v4235
  %5449 = vmatpush1.bf16.msra.mxu0 %v4234
  %5450 = vmatprep.subr.bf16.mxu0 %v4239
  %5451 = vmatpush1.bf16.msra.mxu0 %v4238
  %5452 = vmatprep.subr.bf16.mxu0 %v4243
  %5453 = vmatpush1.bf16.msra.mxu0 %v4242
  %5454 = vmatprep.subr.bf16.mxu0 %v4247
  %5455 = vmatpush1.bf16.msra.mxu0 %v4246
  %5456 = vmatprep.subr.bf16.mxu0 %v4251
  %5457 = vmatpush1.bf16.msra.mxu0 %v4250
  %5458 = vmatprep.subr.bf16.mxu0 %v4255
  %5459 = vmatpush1.bf16.msra.mxu0 %v4254
  %5460 = vmatprep.subr.bf16.mxu0 %v4259
  %5461 = vmatpush1.bf16.msra.mxu0 %v4258
  %5462 = vmatprep.subr.bf16.mxu0 %v4263
  %5463 = vmatpush1.bf16.msra.mxu0 %v4262
  %5464 = vmatprep.subr.bf16.mxu0 0
  %5465 = vmatpush1.bf16.msra.mxu0 0
  %5466 = vmatprep.subr.bf16.mxu0 0
  %5467 = vmatpush1.bf16.msra.mxu0 0
  %5468 = vmatprep.subr.bf16.mxu0 0
  %5469 = vmatpush1.bf16.msra.mxu0 0
  %5470 = vmatprep.subr.bf16.mxu0 0
  %5471 = vmatpush1.bf16.msra.mxu0 0
  %5472 = vmatprep.subr.bf16.mxu0 0
  %5473 = vmatpush1.bf16.msra.mxu0 0
  %5474 = vmatprep.subr.bf16.mxu0 0
  %5475 = vmatpush1.bf16.msra.mxu0 0
  %5476 = vmatprep.subr.bf16.mxu0 0
  %5477 = vmatpush1.bf16.msra.mxu0 0
  %5478 = vmatprep.subr.bf16.mxu0 0
  %5479 = vmatpush1.bf16.msra.mxu0 0
  %5480 = vmatprep.mubr.bf16.mxu0 0
  %5481 = vmatmul.mubr.bf16.gmra.mrb[0].mxu0 %v5447
  %v5482 = vpop.f32.mrb[0].mxu0
  %v5483 = vadd.f32 0.0, %v5482
  %v5484 = vpop.f32.mrb[0].mxu0
  %v5485 = vadd.f32 0.0, %v5484
  %v5486 = vpop.f32.mrb[0].mxu0
  %v5487 = vpop.f32.mrb[0].mxu0
  %5488 = vdwg.mxu0
  %5489 = vmatprep.subr.bf16.mxu0 %v4237
  %5490 = vmatpush1.bf16.msra.mxu0 %v4236
  %5491 = vmatprep.subr.bf16.mxu0 %v4241
  %5492 = vmatpush1.bf16.msra.mxu0 %v4240
  %5493 = vmatprep.subr.bf16.mxu0 %v4245
  %5494 = vmatpush1.bf16.msra.mxu0 %v4244
  %5495 = vmatprep.subr.bf16.mxu0 %v4249
  %5496 = vmatpush1.bf16.msra.mxu0 %v4248
  %5497 = vmatprep.subr.bf16.mxu0 %v4253
  %5498 = vmatpush1.bf16.msra.mxu0 %v4252
  %5499 = vmatprep.subr.bf16.mxu0 %v4257
  %5500 = vmatpush1.bf16.msra.mxu0 %v4256
  %5501 = vmatprep.subr.bf16.mxu0 %v4261
  %5502 = vmatpush1.bf16.msra.mxu0 %v4260
  %5503 = vmatprep.subr.bf16.mxu0 %v4265
  %5504 = vmatpush1.bf16.msra.mxu0 %v4264
  %5505 = vmatprep.subr.bf16.mxu0 0
  %5506 = vmatpush1.bf16.msra.mxu0 0
  %5507 = vmatprep.subr.bf16.mxu0 0
  %5508 = vmatpush1.bf16.msra.mxu0 0
  %5509 = vmatprep.subr.bf16.mxu0 0
  %5510 = vmatpush1.bf16.msra.mxu0 0
  %5511 = vmatprep.subr.bf16.mxu0 0
  %5512 = vmatpush1.bf16.msra.mxu0 0
  %5513 = vmatprep.subr.bf16.mxu0 0
  %5514 = vmatpush1.bf16.msra.mxu0 0
  %5515 = vmatprep.subr.bf16.mxu0 0
  %5516 = vmatpush1.bf16.msra.mxu0 0
  %5517 = vmatprep.subr.bf16.mxu0 0
  %5518 = vmatpush1.bf16.msra.mxu0 0
  %5519 = vmatprep.subr.bf16.mxu0 0
  %5520 = vmatpush1.bf16.msra.mxu0 0
  %5521 = vmatprep.mubr.bf16.mxu0 0
  %5522 = vmatmul.mubr.bf16.gmra.mrb[0].mxu0 %v5447
  %v5523 = vpop.f32.mrb[0].mxu0
  %v5524 = vadd.f32 0.0, %v5523
  %v5525 = vpop.f32.mrb[0].mxu0
  %v5526 = vadd.f32 0.0, %v5525
  %v5527 = vpop.f32.mrb[0].mxu0
  %v5528 = vpop.f32.mrb[0].mxu0
  %5529 = vdwg.mxu0
  %v5530 = vadd.f32 %v5443, %v5483
  %v5531 = vadd.f32 %v5444, %v5485
  %v5532 = vadd.f32 %v5445, %v5524
  %v5533 = vadd.f32 %v5446, %v5526
  %v5534 = vxor.u32 %v5530, 2147483648
  %v5535 = vmul.f32 %v5534, 1.442695
  %v5536 = vpow.pop %v5535
  %v5537 = vadd.f32 %v5536, 1.0
  %v5538 = vrcp.pop %v5537
  %v5539 = vmul.f32 1.0, %v5538
  %v5540 = vxor.u32 %v5531, 2147483648
  %v5541 = vmul.f32 %v5540, 1.442695
  %v5542 = vpow.pop %v5541
  %v5543 = vadd.f32 %v5542, 1.0
  %v5544 = vrcp.pop %v5543
  %v5545 = vmul.f32 1.0, %v5544
  %v5546 = vtanh.pop %v5532
  %v5547 = vxor.u32 %v5533, 2147483648
  %v5548 = vmul.f32 %v5547, 1.442695
  %v5549 = vpow.pop %v5548
  %v5550 = vadd.f32 %v5549, 1.0
  %v5551 = vrcp.pop %v5550
  %v5552 = vmul.f32 1.0, %v5551
  %v5553 = vmul.f32 %v5545, %v5325
  %v5554 = vmul.f32 %v5539, %v5546
  %v5555 = vadd.f32 %v5553, %v5554
  %v5556 = vtanh.pop %v5555
  %v5557 = vmul.f32 %v5552, %v5556
  %v5558 = vxor.u32 %v5439, 2147483648
  %v5559 = vmul.f32 %v5558, 1.442695
  %v5560 = vpow.pop %v5559
  %v5561 = vadd.f32 %v5560, 1.0
  %v5562 = vrcp.pop %v5561
  %v5563 = vmul.f32 1.0, %v5562
  %v5564 = vxor.u32 %v5440, 2147483648
  %v5565 = vmul.f32 %v5564, 1.442695
  %v5566 = vpow.pop %v5565
  %v5567 = vadd.f32 %v5566, 1.0
  %v5568 = vrcp.pop %v5567
  %v5569 = vmul.f32 1.0, %v5568
  %v5570 = vtanh.pop %v5441
  %v5571 = vxor.u32 %v5442, 2147483648
  %v5572 = vmul.f32 %v5571, 1.442695
  %v5573 = vpow.pop %v5572
  %v5574 = vadd.f32 %v5573, 1.0
  %v5575 = vrcp.pop %v5574
  %v5576 = vmul.f32 1.0, %v5575
  %v5577 = vmul.f32 %v5569, %v5349
  %v5578 = vmul.f32 %v5563, %v5570
  %v5579 = vadd.f32 %v5577, %v5578
  %v5580 = vtanh.pop %v5579
  %v5581 = vmul.f32 %v5576, %v5580
  %v5582 = vld [vmem:[#allocation3 + $0xc0] sm:$0xff]
  %v5583 = vld [vmem:[#allocation3 + $0xc8] sm:$0xff]
  %v5584 = vld [vmem:[#allocation3 + $0xd0] sm:$0xff]
  %v5585 = vld [vmem:[#allocation3 + $0xd8] sm:$0xff]
  %v5586 = vpack.c.bf16 %v5581, %v5581
  %5587 = vmatprep.subr.bf16.mxu0 %v3953
  %5588 = vmatpush1.bf16.msra.mxu0 %v3952
  %5589 = vmatprep.subr.bf16.mxu0 %v3957
  %5590 = vmatpush1.bf16.msra.mxu0 %v3956
  %5591 = vmatprep.subr.bf16.mxu0 %v3961
  %5592 = vmatpush1.bf16.msra.mxu0 %v3960
  %5593 = vmatprep.subr.bf16.mxu0 %v3965
  %5594 = vmatpush1.bf16.msra.mxu0 %v3964
  %5595 = vmatprep.subr.bf16.mxu0 %v3969
  %5596 = vmatpush1.bf16.msra.mxu0 %v3968
  %5597 = vmatprep.subr.bf16.mxu0 %v3973
  %5598 = vmatpush1.bf16.msra.mxu0 %v3972
  %5599 = vmatprep.subr.bf16.mxu0 %v3977
  %5600 = vmatpush1.bf16.msra.mxu0 %v3976
  %5601 = vmatprep.subr.bf16.mxu0 %v3981
  %5602 = vmatpush1.bf16.msra.mxu0 %v3980
  %5603 = vmatprep.subr.bf16.mxu0 0
  %5604 = vmatpush1.bf16.msra.mxu0 0
  %5605 = vmatprep.subr.bf16.mxu0 0
  %5606 = vmatpush1.bf16.msra.mxu0 0
  %5607 = vmatprep.subr.bf16.mxu0 0
  %5608 = vmatpush1.bf16.msra.mxu0 0
  %5609 = vmatprep.subr.bf16.mxu0 0
  %5610 = vmatpush1.bf16.msra.mxu0 0
  %5611 = vmatprep.subr.bf16.mxu0 0
  %5612 = vmatpush1.bf16.msra.mxu0 0
  %5613 = vmatprep.subr.bf16.mxu0 0
  %5614 = vmatpush1.bf16.msra.mxu0 0
  %5615 = vmatprep.subr.bf16.mxu0 0
  %5616 = vmatpush1.bf16.msra.mxu0 0
  %5617 = vmatprep.subr.bf16.mxu0 0
  %5618 = vmatpush1.bf16.msra.mxu0 0
  %5619 = vmatprep.mubr.bf16.mxu0 0
  %5620 = vmatmul.mubr.bf16.gmra.mrb[0].mxu0 %v5586
  %v5621 = vpop.f32.mrb[0].mxu0
  %v5622 = vadd.f32 0.0, %v5621
  %v5623 = vpop.f32.mrb[0].mxu0
  %v5624 = vadd.f32 0.0, %v5623
  %v5625 = vpop.f32.mrb[0].mxu0
  %v5626 = vpop.f32.mrb[0].mxu0
  %5627 = vdwg.mxu0
  %5628 = vmatprep.subr.bf16.mxu0 %v3955
  %5629 = vmatpush1.bf16.msra.mxu0 %v3954
  %5630 = vmatprep.subr.bf16.mxu0 %v3959
  %5631 = vmatpush1.bf16.msra.mxu0 %v3958
  %5632 = vmatprep.subr.bf16.mxu0 %v3963
  %5633 = vmatpush1.bf16.msra.mxu0 %v3962
  %5634 = vmatprep.subr.bf16.mxu0 %v3967
  %5635 = vmatpush1.bf16.msra.mxu0 %v3966
  %5636 = vmatprep.subr.bf16.mxu0 %v3971
  %5637 = vmatpush1.bf16.msra.mxu0 %v3970
  %5638 = vmatprep.subr.bf16.mxu0 %v3975
  %5639 = vmatpush1.bf16.msra.mxu0 %v3974
  %5640 = vmatprep.subr.bf16.mxu0 %v3979
  %5641 = vmatpush1.bf16.msra.mxu0 %v3978
  %5642 = vmatprep.subr.bf16.mxu0 %v3983
  %5643 = vmatpush1.bf16.msra.mxu0 %v3982
  %5644 = vmatprep.subr.bf16.mxu0 0
  %5645 = vmatpush1.bf16.msra.mxu0 0
  %5646 = vmatprep.subr.bf16.mxu0 0
  %5647 = vmatpush1.bf16.msra.mxu0 0
  %5648 = vmatprep.subr.bf16.mxu0 0
  %5649 = vmatpush1.bf16.msra.mxu0 0
  %5650 = vmatprep.subr.bf16.mxu0 0
  %5651 = vmatpush1.bf16.msra.mxu0 0
  %5652 = vmatprep.subr.bf16.mxu0 0
  %5653 = vmatpush1.bf16.msra.mxu0 0
  %5654 = vmatprep.subr.bf16.mxu0 0
  %5655 = vmatpush1.bf16.msra.mxu0 0
  %5656 = vmatprep.subr.bf16.mxu0 0
  %5657 = vmatpush1.bf16.msra.mxu0 0
  %5658 = vmatprep.subr.bf16.mxu0 0
  %5659 = vmatpush1.bf16.msra.mxu0 0
  %5660 = vmatprep.mubr.bf16.mxu0 0
  %5661 = vmatmul.mubr.bf16.gmra.mrb[0].mxu0 %v5586
  %v5662 = vpop.f32.mrb[0].mxu0
  %v5663 = vadd.f32 0.0, %v5662
  %v5664 = vpop.f32.mrb[0].mxu0
  %v5665 = vadd.f32 0.0, %v5664
  %v5666 = vpop.f32.mrb[0].mxu0
  %v5667 = vpop.f32.mrb[0].mxu0
  %5668 = vdwg.mxu0
  %v5669 = vadd.f32 %v5582, %v5622
  %v5670 = vadd.f32 %v5583, %v5624
  %v5671 = vadd.f32 %v5584, %v5663
  %v5672 = vadd.f32 %v5585, %v5665
  %v5673 = vld [vmem:[#allocation2 + $0xc0] sm:$0xff]
  %v5674 = vld [vmem:[#allocation2 + $0xc8] sm:$0xff]
  %v5675 = vld [vmem:[#allocation2 + $0xd0] sm:$0xff]
  %v5676 = vld [vmem:[#allocation2 + $0xd8] sm:$0xff]
  %v5677 = vpack.c.bf16 %v5557, %v5557
  %5678 = vmatprep.subr.bf16.mxu0 %v4235
  %5679 = vmatpush1.bf16.msra.mxu0 %v4234
  %5680 = vmatprep.subr.bf16.mxu0 %v4239
  %5681 = vmatpush1.bf16.msra.mxu0 %v4238
  %5682 = vmatprep.subr.bf16.mxu0 %v4243
  %5683 = vmatpush1.bf16.msra.mxu0 %v4242
  %5684 = vmatprep.subr.bf16.mxu0 %v4247
  %5685 = vmatpush1.bf16.msra.mxu0 %v4246
  %5686 = vmatprep.subr.bf16.mxu0 %v4251
  %5687 = vmatpush1.bf16.msra.mxu0 %v4250
  %5688 = vmatprep.subr.bf16.mxu0 %v4255
  %5689 = vmatpush1.bf16.msra.mxu0 %v4254
  %5690 = vmatprep.subr.bf16.mxu0 %v4259
  %5691 = vmatpush1.bf16.msra.mxu0 %v4258
  %5692 = vmatprep.subr.bf16.mxu0 %v4263
  %5693 = vmatpush1.bf16.msra.mxu0 %v4262
  %5694 = vmatprep.subr.bf16.mxu0 0
  %5695 = vmatpush1.bf16.msra.mxu0 0
  %5696 = vmatprep.subr.bf16.mxu0 0
  %5697 = vmatpush1.bf16.msra.mxu0 0
  %5698 = vmatprep.subr.bf16.mxu0 0
  %5699 = vmatpush1.bf16.msra.mxu0 0
  %5700 = vmatprep.subr.bf16.mxu0 0
  %5701 = vmatpush1.bf16.msra.mxu0 0
  %5702 = vmatprep.subr.bf16.mxu0 0
  %5703 = vmatpush1.bf16.msra.mxu0 0
  %5704 = vmatprep.subr.bf16.mxu0 0
  %5705 = vmatpush1.bf16.msra.mxu0 0
  %5706 = vmatprep.subr.bf16.mxu0 0
  %5707 = vmatpush1.bf16.msra.mxu0 0
  %5708 = vmatprep.subr.bf16.mxu0 0
  %5709 = vmatpush1.bf16.msra.mxu0 0
  %5710 = vmatprep.mubr.bf16.mxu0 0
  %5711 = vmatmul.mubr.bf16.gmra.mrb[0].mxu0 %v5677
  %v5712 = vpop.f32.mrb[0].mxu0
  %v5713 = vadd.f32 0.0, %v5712
  %v5714 = vpop.f32.mrb[0].mxu0
  %v5715 = vadd.f32 0.0, %v5714
  %v5716 = vpop.f32.mrb[0].mxu0
  %v5717 = vpop.f32.mrb[0].mxu0
  %5718 = vdwg.mxu0
  %5719 = vmatprep.subr.bf16.mxu0 %v4237
  %5720 = vmatpush1.bf16.msra.mxu0 %v4236
  %5721 = vmatprep.subr.bf16.mxu0 %v4241
  %5722 = vmatpush1.bf16.msra.mxu0 %v4240
  %5723 = vmatprep.subr.bf16.mxu0 %v4245
  %5724 = vmatpush1.bf16.msra.mxu0 %v4244
  %5725 = vmatprep.subr.bf16.mxu0 %v4249
  %5726 = vmatpush1.bf16.msra.mxu0 %v4248
  %5727 = vmatprep.subr.bf16.mxu0 %v4253
  %5728 = vmatpush1.bf16.msra.mxu0 %v4252
  %5729 = vmatprep.subr.bf16.mxu0 %v4257
  %5730 = vmatpush1.bf16.msra.mxu0 %v4256
  %5731 = vmatprep.subr.bf16.mxu0 %v4261
  %5732 = vmatpush1.bf16.msra.mxu0 %v4260
  %5733 = vmatprep.subr.bf16.mxu0 %v4265
  %5734 = vmatpush1.bf16.msra.mxu0 %v4264
  %5735 = vmatprep.subr.bf16.mxu0 0
  %5736 = vmatpush1.bf16.msra.mxu0 0
  %5737 = vmatprep.subr.bf16.mxu0 0
  %5738 = vmatpush1.bf16.msra.mxu0 0
  %5739 = vmatprep.subr.bf16.mxu0 0
  %5740 = vmatpush1.bf16.msra.mxu0 0
  %5741 = vmatprep.subr.bf16.mxu0 0
  %5742 = vmatpush1.bf16.msra.mxu0 0
  %5743 = vmatprep.subr.bf16.mxu0 0
  %5744 = vmatpush1.bf16.msra.mxu0 0
  %5745 = vmatprep.subr.bf16.mxu0 0
  %5746 = vmatpush1.bf16.msra.mxu0 0
  %5747 = vmatprep.subr.bf16.mxu0 0
  %5748 = vmatpush1.bf16.msra.mxu0 0
  %5749 = vmatprep.subr.bf16.mxu0 0
  %5750 = vmatpush1.bf16.msra.mxu0 0
  %5751 = vmatprep.mubr.bf16.mxu0 0
  %5752 = vmatmul.mubr.bf16.gmra.mrb[0].mxu0 %v5677
  %v5753 = vpop.f32.mrb[0].mxu0
  %v5754 = vadd.f32 0.0, %v5753
  %v5755 = vpop.f32.mrb[0].mxu0
  %v5756 = vadd.f32 0.0, %v5755
  %v5757 = vpop.f32.mrb[0].mxu0
  %v5758 = vpop.f32.mrb[0].mxu0
  %5759 = vdwg.mxu0
  %v5760 = vadd.f32 %v5673, %v5713
  %v5761 = vadd.f32 %v5674, %v5715
  %v5762 = vadd.f32 %v5675, %v5754
  %v5763 = vadd.f32 %v5676, %v5756
  %v5764 = vxor.u32 %v5760, 2147483648
  %v5765 = vmul.f32 %v5764, 1.442695
  %v5766 = vpow.pop %v5765
  %v5767 = vadd.f32 %v5766, 1.0
  %v5768 = vrcp.pop %v5767
  %v5769 = vmul.f32 1.0, %v5768
  %v5770 = vxor.u32 %v5761, 2147483648
  %v5771 = vmul.f32 %v5770, 1.442695
  %v5772 = vpow.pop %v5771
  %v5773 = vadd.f32 %v5772, 1.0
  %v5774 = vrcp.pop %v5773
  %v5775 = vmul.f32 1.0, %v5774
  %v5776 = vtanh.pop %v5762
  %v5777 = vxor.u32 %v5763, 2147483648
  %v5778 = vmul.f32 %v5777, 1.442695
  %v5779 = vpow.pop %v5778
  %v5780 = vadd.f32 %v5779, 1.0
  %v5781 = vrcp.pop %v5780
  %v5782 = vmul.f32 1.0, %v5781
  %v5783 = vmul.f32 %v5775, %v5555
  %v5784 = vmul.f32 %v5769, %v5776
  %v5785 = vadd.f32 %v5783, %v5784
  %v5786 = vtanh.pop %v5785
  %v5787 = vmul.f32 %v5782, %v5786
  %v5788 = vxor.u32 %v5669, 2147483648
  %v5789 = vmul.f32 %v5788, 1.442695
  %v5790 = vpow.pop %v5789
  %v5791 = vadd.f32 %v5790, 1.0
  %v5792 = vrcp.pop %v5791
  %v5793 = vmul.f32 1.0, %v5792
  %v5794 = vxor.u32 %v5670, 2147483648
  %v5795 = vmul.f32 %v5794, 1.442695
  %v5796 = vpow.pop %v5795
  %v5797 = vadd.f32 %v5796, 1.0
  %v5798 = vrcp.pop %v5797
  %v5799 = vmul.f32 1.0, %v5798
  %v5800 = vtanh.pop %v5671
  %v5801 = vxor.u32 %v5672, 2147483648
  %v5802 = vmul.f32 %v5801, 1.442695
  %v5803 = vpow.pop %v5802
  %v5804 = vadd.f32 %v5803, 1.0
  %v5805 = vrcp.pop %v5804
  %v5806 = vmul.f32 1.0, %v5805
  %v5807 = vmul.f32 %v5799, %v5579
  %v5808 = vmul.f32 %v5793, %v5800
  %v5809 = vadd.f32 %v5807, %v5808
  %v5810 = vtanh.pop %v5809
  %v5811 = vmul.f32 %v5806, %v5810
  %v5812 = vld [vmem:[#allocation3 + $0xe0] sm:$0xff]
  %v5813 = vld [vmem:[#allocation3 + $0xe8] sm:$0xff]
  %v5814 = vld [vmem:[#allocation3 + $0xf0] sm:$0xff]
  %v5815 = vld [vmem:[#allocation3 + $0xf8] sm:$0xff]
  %v5816 = vpack.c.bf16 %v5811, %v5811
  %5817 = vmatprep.subr.bf16.mxu0 %v3953
  %5818 = vmatpush1.bf16.msra.mxu0 %v3952
  %5819 = vmatprep.subr.bf16.mxu0 %v3957
  %5820 = vmatpush1.bf16.msra.mxu0 %v3956
  %5821 = vmatprep.subr.bf16.mxu0 %v3961
  %5822 = vmatpush1.bf16.msra.mxu0 %v3960
  %5823 = vmatprep.subr.bf16.mxu0 %v3965
  %5824 = vmatpush1.bf16.msra.mxu0 %v3964
  %5825 = vmatprep.subr.bf16.mxu0 %v3969
  %5826 = vmatpush1.bf16.msra.mxu0 %v3968
  %5827 = vmatprep.subr.bf16.mxu0 %v3973
  %5828 = vmatpush1.bf16.msra.mxu0 %v3972
  %5829 = vmatprep.subr.bf16.mxu0 %v3977
  %5830 = vmatpush1.bf16.msra.mxu0 %v3976
  %5831 = vmatprep.subr.bf16.mxu0 %v3981
  %5832 = vmatpush1.bf16.msra.mxu0 %v3980
  %5833 = vmatprep.subr.bf16.mxu0 0
  %5834 = vmatpush1.bf16.msra.mxu0 0
  %5835 = vmatprep.subr.bf16.mxu0 0
  %5836 = vmatpush1.bf16.msra.mxu0 0
  %5837 = vmatprep.subr.bf16.mxu0 0
  %5838 = vmatpush1.bf16.msra.mxu0 0
  %5839 = vmatprep.subr.bf16.mxu0 0
  %5840 = vmatpush1.bf16.msra.mxu0 0
  %5841 = vmatprep.subr.bf16.mxu0 0
  %5842 = vmatpush1.bf16.msra.mxu0 0
  %5843 = vmatprep.subr.bf16.mxu0 0
  %5844 = vmatpush1.bf16.msra.mxu0 0
  %5845 = vmatprep.subr.bf16.mxu0 0
  %5846 = vmatpush1.bf16.msra.mxu0 0
  %5847 = vmatprep.subr.bf16.mxu0 0
  %5848 = vmatpush1.bf16.msra.mxu0 0
  %5849 = vmatprep.mubr.bf16.mxu0 0
  %5850 = vmatmul.mubr.bf16.gmra.mrb[0].mxu0 %v5816
  %v5851 = vpop.f32.mrb[0].mxu0
  %v5852 = vadd.f32 0.0, %v5851
  %v5853 = vpop.f32.mrb[0].mxu0
  %v5854 = vadd.f32 0.0, %v5853
  %v5855 = vpop.f32.mrb[0].mxu0
  %v5856 = vpop.f32.mrb[0].mxu0
  %5857 = vdwg.mxu0
  %5858 = vmatprep.subr.bf16.mxu0 %v3955
  %5859 = vmatpush1.bf16.msra.mxu0 %v3954
  %5860 = vmatprep.subr.bf16.mxu0 %v3959
  %5861 = vmatpush1.bf16.msra.mxu0 %v3958
  %5862 = vmatprep.subr.bf16.mxu0 %v3963
  %5863 = vmatpush1.bf16.msra.mxu0 %v3962
  %5864 = vmatprep.subr.bf16.mxu0 %v3967
  %5865 = vmatpush1.bf16.msra.mxu0 %v3966
  %5866 = vmatprep.subr.bf16.mxu0 %v3971
  %5867 = vmatpush1.bf16.msra.mxu0 %v3970
  %5868 = vmatprep.subr.bf16.mxu0 %v3975
  %5869 = vmatpush1.bf16.msra.mxu0 %v3974
  %5870 = vmatprep.subr.bf16.mxu0 %v3979
  %5871 = vmatpush1.bf16.msra.mxu0 %v3978
  %5872 = vmatprep.subr.bf16.mxu0 %v3983
  %5873 = vmatpush1.bf16.msra.mxu0 %v3982
  %5874 = vmatprep.subr.bf16.mxu0 0
  %5875 = vmatpush1.bf16.msra.mxu0 0
  %5876 = vmatprep.subr.bf16.mxu0 0
  %5877 = vmatpush1.bf16.msra.mxu0 0
  %5878 = vmatprep.subr.bf16.mxu0 0
  %5879 = vmatpush1.bf16.msra.mxu0 0
  %5880 = vmatprep.subr.bf16.mxu0 0
  %5881 = vmatpush1.bf16.msra.mxu0 0
  %5882 = vmatprep.subr.bf16.mxu0 0
  %5883 = vmatpush1.bf16.msra.mxu0 0
  %5884 = vmatprep.subr.bf16.mxu0 0
  %5885 = vmatpush1.bf16.msra.mxu0 0
  %5886 = vmatprep.subr.bf16.mxu0 0
  %5887 = vmatpush1.bf16.msra.mxu0 0
  %5888 = vmatprep.subr.bf16.mxu0 0
  %5889 = vmatpush1.bf16.msra.mxu0 0
  %5890 = vmatprep.mubr.bf16.mxu0 0
  %5891 = vmatmul.mubr.bf16.gmra.mrb[0].mxu0 %v5816
  %v5892 = vpop.f32.mrb[0].mxu0
  %v5893 = vadd.f32 0.0, %v5892
  %v5894 = vpop.f32.mrb[0].mxu0
  %v5895 = vadd.f32 0.0, %v5894
  %v5896 = vpop.f32.mrb[0].mxu0
  %v5897 = vpop.f32.mrb[0].mxu0
  %5898 = vdwg.mxu0
  %v5899 = vadd.f32 %v5812, %v5852
  %v5900 = vadd.f32 %v5813, %v5854
  %v5901 = vadd.f32 %v5814, %v5893
  %v5902 = vadd.f32 %v5815, %v5895
  %v5903 = vld [vmem:[#allocation2 + $0xe0] sm:$0xff]
  %v5904 = vld [vmem:[#allocation2 + $0xe8] sm:$0xff]
  %v5905 = vld [vmem:[#allocation2 + $0xf0] sm:$0xff]
  %v5906 = vld [vmem:[#allocation2 + $0xf8] sm:$0xff]
  %v5907 = vpack.c.bf16 %v5787, %v5787
  %5908 = vmatprep.subr.bf16.mxu0 %v4235
  %5909 = vmatpush1.bf16.msra.mxu0 %v4234
  %5910 = vmatprep.subr.bf16.mxu0 %v4239
  %5911 = vmatpush1.bf16.msra.mxu0 %v4238
  %5912 = vmatprep.subr.bf16.mxu0 %v4243
  %5913 = vmatpush1.bf16.msra.mxu0 %v4242
  %5914 = vmatprep.subr.bf16.mxu0 %v4247
  %5915 = vmatpush1.bf16.msra.mxu0 %v4246
  %5916 = vmatprep.subr.bf16.mxu0 %v4251
  %5917 = vmatpush1.bf16.msra.mxu0 %v4250
  %5918 = vmatprep.subr.bf16.mxu0 %v4255
  %5919 = vmatpush1.bf16.msra.mxu0 %v4254
  %5920 = vmatprep.subr.bf16.mxu0 %v4259
  %5921 = vmatpush1.bf16.msra.mxu0 %v4258
  %5922 = vmatprep.subr.bf16.mxu0 %v4263
  %5923 = vmatpush1.bf16.msra.mxu0 %v4262
  %5924 = vmatprep.subr.bf16.mxu0 0
  %5925 = vmatpush1.bf16.msra.mxu0 0
  %5926 = vmatprep.subr.bf16.mxu0 0
  %5927 = vmatpush1.bf16.msra.mxu0 0
  %5928 = vmatprep.subr.bf16.mxu0 0
  %5929 = vmatpush1.bf16.msra.mxu0 0
  %5930 = vmatprep.subr.bf16.mxu0 0
  %5931 = vmatpush1.bf16.msra.mxu0 0
  %5932 = vmatprep.subr.bf16.mxu0 0
  %5933 = vmatpush1.bf16.msra.mxu0 0
  %5934 = vmatprep.subr.bf16.mxu0 0
  %5935 = vmatpush1.bf16.msra.mxu0 0
  %5936 = vmatprep.subr.bf16.mxu0 0
  %5937 = vmatpush1.bf16.msra.mxu0 0
  %5938 = vmatprep.subr.bf16.mxu0 0
  %5939 = vmatpush1.bf16.msra.mxu0 0
  %5940 = vmatprep.mubr.bf16.mxu0 0
  %5941 = vmatmul.mubr.bf16.gmra.mrb[0].mxu0 %v5907
  %v5942 = vpop.f32.mrb[0].mxu0
  %v5943 = vadd.f32 0.0, %v5942
  %v5944 = vpop.f32.mrb[0].mxu0
  %v5945 = vadd.f32 0.0, %v5944
  %v5946 = vpop.f32.mrb[0].mxu0
  %v5947 = vpop.f32.mrb[0].mxu0
  %5948 = vdwg.mxu0
  %5949 = vmatprep.subr.bf16.mxu0 %v4237
  %5950 = vmatpush1.bf16.msra.mxu0 %v4236
  %5951 = vmatprep.subr.bf16.mxu0 %v4241
  %5952 = vmatpush1.bf16.msra.mxu0 %v4240
  %5953 = vmatprep.subr.bf16.mxu0 %v4245
  %5954 = vmatpush1.bf16.msra.mxu0 %v4244
  %5955 = vmatprep.subr.bf16.mxu0 %v4249
  %5956 = vmatpush1.bf16.msra.mxu0 %v4248
  %5957 = vmatprep.subr.bf16.mxu0 %v4253
  %5958 = vmatpush1.bf16.msra.mxu0 %v4252
  %5959 = vmatprep.subr.bf16.mxu0 %v4257
  %5960 = vmatpush1.bf16.msra.mxu0 %v4256
  %5961 = vmatprep.subr.bf16.mxu0 %v4261
  %5962 = vmatpush1.bf16.msra.mxu0 %v4260
  %5963 = vmatprep.subr.bf16.mxu0 %v4265
  %5964 = vmatpush1.bf16.msra.mxu0 %v4264
  %5965 = vmatprep.subr.bf16.mxu0 0
  %5966 = vmatpush1.bf16.msra.mxu0 0
  %5967 = vmatprep.subr.bf16.mxu0 0
  %5968 = vmatpush1.bf16.msra.mxu0 0
  %5969 = vmatprep.subr.bf16.mxu0 0
  %5970 = vmatpush1.bf16.msra.mxu0 0
  %5971 = vmatprep.subr.bf16.mxu0 0
  %5972 = vmatpush1.bf16.msra.mxu0 0
  %5973 = vmatprep.subr.bf16.mxu0 0
  %5974 = vmatpush1.bf16.msra.mxu0 0
  %5975 = vmatprep.subr.bf16.mxu0 0
  %5976 = vmatpush1.bf16.msra.mxu0 0
  %5977 = vmatprep.subr.bf16.mxu0 0
  %5978 = vmatpush1.bf16.msra.mxu0 0
  %5979 = vmatprep.subr.bf16.mxu0 0
  %5980 = vmatpush1.bf16.msra.mxu0 0
  %5981 = vmatprep.mubr.bf16.mxu0 0
  %5982 = vmatmul.mubr.bf16.gmra.mrb[0].mxu0 %v5907
  %v5983 = vpop.f32.mrb[0].mxu0
  %v5984 = vadd.f32 0.0, %v5983
  %v5985 = vpop.f32.mrb[0].mxu0
  %v5986 = vadd.f32 0.0, %v5985
  %v5987 = vpop.f32.mrb[0].mxu0
  %v5988 = vpop.f32.mrb[0].mxu0
  %5989 = vdwg.mxu0
  %v5990 = vadd.f32 %v5903, %v5943
  %v5991 = vadd.f32 %v5904, %v5945
  %v5992 = vadd.f32 %v5905, %v5984
  %v5993 = vadd.f32 %v5906, %v5986
  %v5994 = vxor.u32 %v5990, 2147483648
  %v5995 = vmul.f32 %v5994, 1.442695
  %v5996 = vpow.pop %v5995
  %v5997 = vadd.f32 %v5996, 1.0
  %v5998 = vrcp.pop %v5997
  %v5999 = vmul.f32 1.0, %v5998
  %v6000 = vxor.u32 %v5991, 2147483648
  %v6001 = vmul.f32 %v6000, 1.442695
  %v6002 = vpow.pop %v6001
  %v6003 = vadd.f32 %v6002, 1.0
  %v6004 = vrcp.pop %v6003
  %v6005 = vmul.f32 1.0, %v6004
  %v6006 = vtanh.pop %v5992
  %v6007 = vxor.u32 %v5993, 2147483648
  %v6008 = vmul.f32 %v6007, 1.442695
  %v6009 = vpow.pop %v6008
  %v6010 = vadd.f32 %v6009, 1.0
  %v6011 = vrcp.pop %v6010
  %v6012 = vmul.f32 1.0, %v6011
  %v6013 = vmul.f32 %v6005, %v5785
  %v6014 = vmul.f32 %v5999, %v6006
  %v6015 = vadd.f32 %v6013, %v6014
  %v6016 = vtanh.pop %v6015
  %v6017 = vmul.f32 %v6012, %v6016
  %v6018 = vxor.u32 %v5899, 2147483648
  %v6019 = vmul.f32 %v6018, 1.442695
  %v6020 = vpow.pop %v6019
  %v6021 = vadd.f32 %v6020, 1.0
  %v6022 = vrcp.pop %v6021
  %v6023 = vmul.f32 1.0, %v6022
  %v6024 = vxor.u32 %v5900, 2147483648
  %v6025 = vmul.f32 %v6024, 1.442695
  %v6026 = vpow.pop %v6025
  %v6027 = vadd.f32 %v6026, 1.0
  %v6028 = vrcp.pop %v6027
  %v6029 = vmul.f32 1.0, %v6028
  %v6030 = vtanh.pop %v5901
  %v6031 = vxor.u32 %v5902, 2147483648
  %v6032 = vmul.f32 %v6031, 1.442695
  %v6033 = vpow.pop %v6032
  %v6034 = vadd.f32 %v6033, 1.0
  %v6035 = vrcp.pop %v6034
  %v6036 = vmul.f32 1.0, %v6035
  %v6037 = vmul.f32 %v6029, %v5809
  %v6038 = vmul.f32 %v6023, %v6030
  %v6039 = vadd.f32 %v6037, %v6038
  %v6040 = vtanh.pop %v6039
  %v6041 = vmul.f32 %v6036, %v6040
  %v6042 = vld [vmem:[#allocation3 + $0x100] sm:$0xff]
  %v6043 = vld [vmem:[#allocation3 + $0x108] sm:$0xff]
  %v6044 = vld [vmem:[#allocation3 + $0x110] sm:$0xff]
  %v6045 = vld [vmem:[#allocation3 + $0x118] sm:$0xff]
  %v6046 = vpack.c.bf16 %v6041, %v6041
  %6047 = vmatprep.subr.bf16.mxu0 %v3953
  %6048 = vmatpush1.bf16.msra.mxu0 %v3952
  %6049 = vmatprep.subr.bf16.mxu0 %v3957
  %6050 = vmatpush1.bf16.msra.mxu0 %v3956
  %6051 = vmatprep.subr.bf16.mxu0 %v3961
  %6052 = vmatpush1.bf16.msra.mxu0 %v3960
  %6053 = vmatprep.subr.bf16.mxu0 %v3965
  %6054 = vmatpush1.bf16.msra.mxu0 %v3964
  %6055 = vmatprep.subr.bf16.mxu0 %v3969
  %6056 = vmatpush1.bf16.msra.mxu0 %v3968
  %6057 = vmatprep.subr.bf16.mxu0 %v3973
  %6058 = vmatpush1.bf16.msra.mxu0 %v3972
  %6059 = vmatprep.subr.bf16.mxu0 %v3977
  %6060 = vmatpush1.bf16.msra.mxu0 %v3976
  %6061 = vmatprep.subr.bf16.mxu0 %v3981
  %6062 = vmatpush1.bf16.msra.mxu0 %v3980
  %6063 = vmatprep.subr.bf16.mxu0 0
  %6064 = vmatpush1.bf16.msra.mxu0 0
  %6065 = vmatprep.subr.bf16.mxu0 0
  %6066 = vmatpush1.bf16.msra.mxu0 0
  %6067 = vmatprep.subr.bf16.mxu0 0
  %6068 = vmatpush1.bf16.msra.mxu0 0
  %6069 = vmatprep.subr.bf16.mxu0 0
  %6070 = vmatpush1.bf16.msra.mxu0 0
  %6071 = vmatprep.subr.bf16.mxu0 0
  %6072 = vmatpush1.bf16.msra.mxu0 0
  %6073 = vmatprep.subr.bf16.mxu0 0
  %6074 = vmatpush1.bf16.msra.mxu0 0
  %6075 = vmatprep.subr.bf16.mxu0 0
  %6076 = vmatpush1.bf16.msra.mxu0 0
  %6077 = vmatprep.subr.bf16.mxu0 0
  %6078 = vmatpush1.bf16.msra.mxu0 0
  %6079 = vmatprep.mubr.bf16.mxu0 0
  %6080 = vmatmul.mubr.bf16.gmra.mrb[0].mxu0 %v6046
  %v6081 = vpop.f32.mrb[0].mxu0
  %v6082 = vadd.f32 0.0, %v6081
  %v6083 = vpop.f32.mrb[0].mxu0
  %v6084 = vadd.f32 0.0, %v6083
  %v6085 = vpop.f32.mrb[0].mxu0
  %v6086 = vpop.f32.mrb[0].mxu0
  %6087 = vdwg.mxu0
  %6088 = vmatprep.subr.bf16.mxu0 %v3955
  %6089 = vmatpush1.bf16.msra.mxu0 %v3954
  %6090 = vmatprep.subr.bf16.mxu0 %v3959
  %6091 = vmatpush1.bf16.msra.mxu0 %v3958
  %6092 = vmatprep.subr.bf16.mxu0 %v3963
  %6093 = vmatpush1.bf16.msra.mxu0 %v3962
  %6094 = vmatprep.subr.bf16.mxu0 %v3967
  %6095 = vmatpush1.bf16.msra.mxu0 %v3966
  %6096 = vmatprep.subr.bf16.mxu0 %v3971
  %6097 = vmatpush1.bf16.msra.mxu0 %v3970
  %6098 = vmatprep.subr.bf16.mxu0 %v3975
  %6099 = vmatpush1.bf16.msra.mxu0 %v3974
  %6100 = vmatprep.subr.bf16.mxu0 %v3979
  %6101 = vmatpush1.bf16.msra.mxu0 %v3978
  %6102 = vmatprep.subr.bf16.mxu0 %v3983
  %6103 = vmatpush1.bf16.msra.mxu0 %v3982
  %6104 = vmatprep.subr.bf16.mxu0 0
  %6105 = vmatpush1.bf16.msra.mxu0 0
  %6106 = vmatprep.subr.bf16.mxu0 0
  %6107 = vmatpush1.bf16.msra.mxu0 0
  %6108 = vmatprep.subr.bf16.mxu0 0
  %6109 = vmatpush1.bf16.msra.mxu0 0
  %6110 = vmatprep.subr.bf16.mxu0 0
  %6111 = vmatpush1.bf16.msra.mxu0 0
  %6112 = vmatprep.subr.bf16.mxu0 0
  %6113 = vmatpush1.bf16.msra.mxu0 0
  %6114 = vmatprep.subr.bf16.mxu0 0
  %6115 = vmatpush1.bf16.msra.mxu0 0
  %6116 = vmatprep.subr.bf16.mxu0 0
  %6117 = vmatpush1.bf16.msra.mxu0 0
  %6118 = vmatprep.subr.bf16.mxu0 0
  %6119 = vmatpush1.bf16.msra.mxu0 0
  %6120 = vmatprep.mubr.bf16.mxu0 0
  %6121 = vmatmul.mubr.bf16.gmra.mrb[0].mxu0 %v6046
  %v6122 = vpop.f32.mrb[0].mxu0
  %v6123 = vadd.f32 0.0, %v6122
  %v6124 = vpop.f32.mrb[0].mxu0
  %v6125 = vadd.f32 0.0, %v6124
  %v6126 = vpop.f32.mrb[0].mxu0
  %v6127 = vpop.f32.mrb[0].mxu0
  %6128 = vdwg.mxu0
  %v6129 = vadd.f32 %v6042, %v6082
  %v6130 = vadd.f32 %v6043, %v6084
  %v6131 = vadd.f32 %v6044, %v6123
  %v6132 = vadd.f32 %v6045, %v6125
  %v6133 = vxor.u32 %v6129, 2147483648
  %v6134 = vmul.f32 %v6133, 1.442695
  %v6135 = vpow.pop %v6134
  %v6136 = vadd.f32 %v6135, 1.0
  %v6137 = vrcp.pop %v6136
  %v6138 = vmul.f32 1.0, %v6137
  %v6139 = vxor.u32 %v6130, 2147483648
  %v6140 = vmul.f32 %v6139, 1.442695
  %v6141 = vpow.pop %v6140
  %v6142 = vadd.f32 %v6141, 1.0
  %v6143 = vrcp.pop %v6142
  %v6144 = vmul.f32 1.0, %v6143
  %v6145 = vtanh.pop %v6131
  %v6146 = vxor.u32 %v6132, 2147483648
  %v6147 = vmul.f32 %v6146, 1.442695
  %v6148 = vpow.pop %v6147
  %v6149 = vadd.f32 %v6148, 1.0
  %v6150 = vrcp.pop %v6149
  %v6151 = vmul.f32 1.0, %v6150
  %v6152 = vmul.f32 %v6144, %v6039
  %v6153 = vmul.f32 %v6138, %v6145
  %v6154 = vadd.f32 %v6152, %v6153
  %v6155 = vtanh.pop %v6154
  %v6156 = vmul.f32 %v6151, %v6155
  %v6157 = vld [vmem:[#allocation3 + $0x120] sm:$0xff]
  %v6158 = vld [vmem:[#allocation3 + $0x128] sm:$0xff]
  %v6159 = vld [vmem:[#allocation3 + $0x130] sm:$0xff]
  %v6160 = vld [vmem:[#allocation3 + $0x138] sm:$0xff]
  %v6161 = vpack.c.bf16 %v6156, %v6156
  %6162 = vmatprep.subr.bf16.mxu0 %v3953
  %6163 = vmatpush1.bf16.msra.mxu0 %v3952
  %6164 = vmatprep.subr.bf16.mxu0 %v3957
  %6165 = vmatpush1.bf16.msra.mxu0 %v3956
  %6166 = vmatprep.subr.bf16.mxu0 %v3961
  %6167 = vmatpush1.bf16.msra.mxu0 %v3960
  %6168 = vmatprep.subr.bf16.mxu0 %v3965
  %6169 = vmatpush1.bf16.msra.mxu0 %v3964
  %6170 = vmatprep.subr.bf16.mxu0 %v3969
  %6171 = vmatpush1.bf16.msra.mxu0 %v3968
  %6172 = vmatprep.subr.bf16.mxu0 %v3973
  %6173 = vmatpush1.bf16.msra.mxu0 %v3972
  %6174 = vmatprep.subr.bf16.mxu0 %v3977
  %6175 = vmatpush1.bf16.msra.mxu0 %v3976
  %6176 = vmatprep.subr.bf16.mxu0 %v3981
  %6177 = vmatpush1.bf16.msra.mxu0 %v3980
  %6178 = vmatprep.subr.bf16.mxu0 0
  %6179 = vmatpush1.bf16.msra.mxu0 0
  %6180 = vmatprep.subr.bf16.mxu0 0
  %6181 = vmatpush1.bf16.msra.mxu0 0
  %6182 = vmatprep.subr.bf16.mxu0 0
  %6183 = vmatpush1.bf16.msra.mxu0 0
  %6184 = vmatprep.subr.bf16.mxu0 0
  %6185 = vmatpush1.bf16.msra.mxu0 0
  %6186 = vmatprep.subr.bf16.mxu0 0
  %6187 = vmatpush1.bf16.msra.mxu0 0
  %6188 = vmatprep.subr.bf16.mxu0 0
  %6189 = vmatpush1.bf16.msra.mxu0 0
  %6190 = vmatprep.subr.bf16.mxu0 0
  %6191 = vmatpush1.bf16.msra.mxu0 0
  %6192 = vmatprep.subr.bf16.mxu0 0
  %6193 = vmatpush1.bf16.msra.mxu0 0
  %6194 = vmatprep.mubr.bf16.mxu0 0
  %6195 = vmatmul.mubr.bf16.gmra.mrb[0].mxu0 %v6161
  %v6196 = vpop.f32.mrb[0].mxu0
  %v6197 = vadd.f32 0.0, %v6196
  %v6198 = vpop.f32.mrb[0].mxu0
  %v6199 = vadd.f32 0.0, %v6198
  %v6200 = vpop.f32.mrb[0].mxu0
  %v6201 = vpop.f32.mrb[0].mxu0
  %6202 = vdwg.mxu0
  %6203 = vmatprep.subr.bf16.mxu0 %v3955
  %6204 = vmatpush1.bf16.msra.mxu0 %v3954
  %6205 = vmatprep.subr.bf16.mxu0 %v3959
  %6206 = vmatpush1.bf16.msra.mxu0 %v3958
  %6207 = vmatprep.subr.bf16.mxu0 %v3963
  %6208 = vmatpush1.bf16.msra.mxu0 %v3962
  %6209 = vmatprep.subr.bf16.mxu0 %v3967
  %6210 = vmatpush1.bf16.msra.mxu0 %v3966
  %6211 = vmatprep.subr.bf16.mxu0 %v3971
  %6212 = vmatpush1.bf16.msra.mxu0 %v3970
  %6213 = vmatprep.subr.bf16.mxu0 %v3975
  %6214 = vmatpush1.bf16.msra.mxu0 %v3974
  %6215 = vmatprep.subr.bf16.mxu0 %v3979
  %6216 = vmatpush1.bf16.msra.mxu0 %v3978
  %6217 = vmatprep.subr.bf16.mxu0 %v3983
  %6218 = vmatpush1.bf16.msra.mxu0 %v3982
  %6219 = vmatprep.subr.bf16.mxu0 0
  %6220 = vmatpush1.bf16.msra.mxu0 0
  %6221 = vmatprep.subr.bf16.mxu0 0
  %6222 = vmatpush1.bf16.msra.mxu0 0
  %6223 = vmatprep.subr.bf16.mxu0 0
  %6224 = vmatpush1.bf16.msra.mxu0 0
  %6225 = vmatprep.subr.bf16.mxu0 0
  %6226 = vmatpush1.bf16.msra.mxu0 0
  %6227 = vmatprep.subr.bf16.mxu0 0
  %6228 = vmatpush1.bf16.msra.mxu0 0
  %6229 = vmatprep.subr.bf16.mxu0 0
  %6230 = vmatpush1.bf16.msra.mxu0 0
  %6231 = vmatprep.subr.bf16.mxu0 0
  %6232 = vmatpush1.bf16.msra.mxu0 0
  %6233 = vmatprep.subr.bf16.mxu0 0
  %6234 = vmatpush1.bf16.msra.mxu0 0
  %6235 = vmatprep.mubr.bf16.mxu0 0
  %6236 = vmatmul.mubr.bf16.gmra.mrb[0].mxu0 %v6161
  %v6237 = vpop.f32.mrb[0].mxu0
  %v6238 = vadd.f32 0.0, %v6237
  %v6239 = vpop.f32.mrb[0].mxu0
  %v6240 = vadd.f32 0.0, %v6239
  %v6241 = vpop.f32.mrb[0].mxu0
  %v6242 = vpop.f32.mrb[0].mxu0
  %6243 = vdwg.mxu0
  %v6244 = vadd.f32 %v6157, %v6197
  %v6245 = vadd.f32 %v6158, %v6199
  %v6246 = vadd.f32 %v6159, %v6238
  %v6247 = vadd.f32 %v6160, %v6240
  %v6248 = vxor.u32 %v6244, 2147483648
  %v6249 = vmul.f32 %v6248, 1.442695
  %v6250 = vpow.pop %v6249
  %v6251 = vadd.f32 %v6250, 1.0
  %v6252 = vrcp.pop %v6251
  %v6253 = vmul.f32 1.0, %v6252
  %v6254 = vxor.u32 %v6245, 2147483648
  %v6255 = vmul.f32 %v6254, 1.442695
  %v6256 = vpow.pop %v6255
  %v6257 = vadd.f32 %v6256, 1.0
  %v6258 = vrcp.pop %v6257
  %v6259 = vmul.f32 1.0, %v6258
  %v6260 = vtanh.pop %v6246
  %v6261 = vxor.u32 %v6247, 2147483648
  %v6262 = vmul.f32 %v6261, 1.442695
  %v6263 = vpow.pop %v6262
  %v6264 = vadd.f32 %v6263, 1.0
  %v6265 = vrcp.pop %v6264
  %v6266 = vmul.f32 1.0, %v6265
  %v6267 = vmul.f32 %v6259, %v6154
  %v6268 = vmul.f32 %v6253, %v6260
  %v6269 = vadd.f32 %v6267, %v6268
  %v6270 = vtanh.pop %v6269
  %v6271 = vmul.f32 %v6266, %v6270
  %v6272 = vld [vmem:[#allocation3 + $0x140] sm:$0xff]
  %v6273 = vld [vmem:[#allocation3 + $0x148] sm:$0xff]
  %v6274 = vld [vmem:[#allocation3 + $0x150] sm:$0xff]
  %v6275 = vld [vmem:[#allocation3 + $0x158] sm:$0xff]
  %v6276 = vpack.c.bf16 %v6271, %v6271
  %6277 = vmatprep.subr.bf16.mxu0 %v3953
  %6278 = vmatpush1.bf16.msra.mxu0 %v3952
  %6279 = vmatprep.subr.bf16.mxu0 %v3957
  %6280 = vmatpush1.bf16.msra.mxu0 %v3956
  %6281 = vmatprep.subr.bf16.mxu0 %v3961
  %6282 = vmatpush1.bf16.msra.mxu0 %v3960
  %6283 = vmatprep.subr.bf16.mxu0 %v3965
  %6284 = vmatpush1.bf16.msra.mxu0 %v3964
  %6285 = vmatprep.subr.bf16.mxu0 %v3969
  %6286 = vmatpush1.bf16.msra.mxu0 %v3968
  %6287 = vmatprep.subr.bf16.mxu0 %v3973
  %6288 = vmatpush1.bf16.msra.mxu0 %v3972
  %6289 = vmatprep.subr.bf16.mxu0 %v3977
  %6290 = vmatpush1.bf16.msra.mxu0 %v3976
  %6291 = vmatprep.subr.bf16.mxu0 %v3981
  %6292 = vmatpush1.bf16.msra.mxu0 %v3980
  %6293 = vmatprep.subr.bf16.mxu0 0
  %6294 = vmatpush1.bf16.msra.mxu0 0
  %6295 = vmatprep.subr.bf16.mxu0 0
  %6296 = vmatpush1.bf16.msra.mxu0 0
  %6297 = vmatprep.subr.bf16.mxu0 0
  %6298 = vmatpush1.bf16.msra.mxu0 0
  %6299 = vmatprep.subr.bf16.mxu0 0
  %6300 = vmatpush1.bf16.msra.mxu0 0
  %6301 = vmatprep.subr.bf16.mxu0 0
  %6302 = vmatpush1.bf16.msra.mxu0 0
  %6303 = vmatprep.subr.bf16.mxu0 0
  %6304 = vmatpush1.bf16.msra.mxu0 0
  %6305 = vmatprep.subr.bf16.mxu0 0
  %6306 = vmatpush1.bf16.msra.mxu0 0
  %6307 = vmatprep.subr.bf16.mxu0 0
  %6308 = vmatpush1.bf16.msra.mxu0 0
  %6309 = vmatprep.mubr.bf16.mxu0 0
  %6310 = vmatmul.mubr.bf16.gmra.mrb[0].mxu0 %v6276
  %v6311 = vpop.f32.mrb[0].mxu0
  %v6312 = vadd.f32 0.0, %v6311
  %v6313 = vpop.f32.mrb[0].mxu0
  %v6314 = vadd.f32 0.0, %v6313
  %v6315 = vpop.f32.mrb[0].mxu0
  %v6316 = vpop.f32.mrb[0].mxu0
  %6317 = vdwg.mxu0
  %6318 = vmatprep.subr.bf16.mxu0 %v3955
  %6319 = vmatpush1.bf16.msra.mxu0 %v3954
  %6320 = vmatprep.subr.bf16.mxu0 %v3959
  %6321 = vmatpush1.bf16.msra.mxu0 %v3958
  %6322 = vmatprep.subr.bf16.mxu0 %v3963
  %6323 = vmatpush1.bf16.msra.mxu0 %v3962
  %6324 = vmatprep.subr.bf16.mxu0 %v3967
  %6325 = vmatpush1.bf16.msra.mxu0 %v3966
  %6326 = vmatprep.subr.bf16.mxu0 %v3971
  %6327 = vmatpush1.bf16.msra.mxu0 %v3970
  %6328 = vmatprep.subr.bf16.mxu0 %v3975
  %6329 = vmatpush1.bf16.msra.mxu0 %v3974
  %6330 = vmatprep.subr.bf16.mxu0 %v3979
  %6331 = vmatpush1.bf16.msra.mxu0 %v3978
  %6332 = vmatprep.subr.bf16.mxu0 %v3983
  %6333 = vmatpush1.bf16.msra.mxu0 %v3982
  %6334 = vmatprep.subr.bf16.mxu0 0
  %6335 = vmatpush1.bf16.msra.mxu0 0
  %6336 = vmatprep.subr.bf16.mxu0 0
  %6337 = vmatpush1.bf16.msra.mxu0 0
  %6338 = vmatprep.subr.bf16.mxu0 0
  %6339 = vmatpush1.bf16.msra.mxu0 0
  %6340 = vmatprep.subr.bf16.mxu0 0
  %6341 = vmatpush1.bf16.msra.mxu0 0
  %6342 = vmatprep.subr.bf16.mxu0 0
  %6343 = vmatpush1.bf16.msra.mxu0 0
  %6344 = vmatprep.subr.bf16.mxu0 0
  %6345 = vmatpush1.bf16.msra.mxu0 0
  %6346 = vmatprep.subr.bf16.mxu0 0
  %6347 = vmatpush1.bf16.msra.mxu0 0
  %6348 = vmatprep.subr.bf16.mxu0 0
  %6349 = vmatpush1.bf16.msra.mxu0 0
  %6350 = vmatprep.mubr.bf16.mxu0 0
  %6351 = vmatmul.mubr.bf16.gmra.mrb[0].mxu0 %v6276
  %v6352 = vpop.f32.mrb[0].mxu0
  %v6353 = vadd.f32 0.0, %v6352
  %v6354 = vpop.f32.mrb[0].mxu0
  %v6355 = vadd.f32 0.0, %v6354
  %v6356 = vpop.f32.mrb[0].mxu0
  %v6357 = vpop.f32.mrb[0].mxu0
  %6358 = vdwg.mxu0
  %v6359 = vadd.f32 %v6272, %v6312
  %v6360 = vadd.f32 %v6273, %v6314
  %v6361 = vadd.f32 %v6274, %v6353
  %v6362 = vadd.f32 %v6275, %v6355
  %v6363 = vxor.u32 %v6359, 2147483648
  %v6364 = vmul.f32 %v6363, 1.442695
  %v6365 = vpow.pop %v6364
  %v6366 = vadd.f32 %v6365, 1.0
  %v6367 = vrcp.pop %v6366
  %v6368 = vmul.f32 1.0, %v6367
  %v6369 = vxor.u32 %v6360, 2147483648
  %v6370 = vmul.f32 %v6369, 1.442695
  %v6371 = vpow.pop %v6370
  %v6372 = vadd.f32 %v6371, 1.0
  %v6373 = vrcp.pop %v6372
  %v6374 = vmul.f32 1.0, %v6373
  %v6375 = vtanh.pop %v6361
  %v6376 = vxor.u32 %v6362, 2147483648
  %v6377 = vmul.f32 %v6376, 1.442695
  %v6378 = vpow.pop %v6377
  %v6379 = vadd.f32 %v6378, 1.0
  %v6380 = vrcp.pop %v6379
  %v6381 = vmul.f32 1.0, %v6380
  %v6382 = vmul.f32 %v6374, %v6269
  %v6383 = vmul.f32 %v6368, %v6375
  %v6384 = vadd.f32 %v6382, %v6383
  %v6385 = vtanh.pop %v6384
  %v6386 = vmul.f32 %v6381, %v6385
  %v6387 = vld [vmem:[#allocation3 + $0x160] sm:$0xff]
  %v6388 = vld [vmem:[#allocation3 + $0x168] sm:$0xff]
  %v6389 = vld [vmem:[#allocation3 + $0x170] sm:$0xff]
  %v6390 = vld [vmem:[#allocation3 + $0x178] sm:$0xff]
  %v6391 = vpack.c.bf16 %v6386, %v6386
  %6392 = vmatprep.subr.bf16.mxu0 %v3953
  %6393 = vmatpush1.bf16.msra.mxu0 %v3952
  %6394 = vmatprep.subr.bf16.mxu0 %v3957
  %6395 = vmatpush1.bf16.msra.mxu0 %v3956
  %6396 = vmatprep.subr.bf16.mxu0 %v3961
  %6397 = vmatpush1.bf16.msra.mxu0 %v3960
  %6398 = vmatprep.subr.bf16.mxu0 %v3965
  %6399 = vmatpush1.bf16.msra.mxu0 %v3964
  %6400 = vmatprep.subr.bf16.mxu0 %v3969
  %6401 = vmatpush1.bf16.msra.mxu0 %v3968
  %6402 = vmatprep.subr.bf16.mxu0 %v3973
  %6403 = vmatpush1.bf16.msra.mxu0 %v3972
  %6404 = vmatprep.subr.bf16.mxu0 %v3977
  %6405 = vmatpush1.bf16.msra.mxu0 %v3976
  %6406 = vmatprep.subr.bf16.mxu0 %v3981
  %6407 = vmatpush1.bf16.msra.mxu0 %v3980
  %6408 = vmatprep.subr.bf16.mxu0 0
  %6409 = vmatpush1.bf16.msra.mxu0 0
  %6410 = vmatprep.subr.bf16.mxu0 0
  %6411 = vmatpush1.bf16.msra.mxu0 0
  %6412 = vmatprep.subr.bf16.mxu0 0
  %6413 = vmatpush1.bf16.msra.mxu0 0
  %6414 = vmatprep.subr.bf16.mxu0 0
  %6415 = vmatpush1.bf16.msra.mxu0 0
  %6416 = vmatprep.subr.bf16.mxu0 0
  %6417 = vmatpush1.bf16.msra.mxu0 0
  %6418 = vmatprep.subr.bf16.mxu0 0
  %6419 = vmatpush1.bf16.msra.mxu0 0
  %6420 = vmatprep.subr.bf16.mxu0 0
  %6421 = vmatpush1.bf16.msra.mxu0 0
  %6422 = vmatprep.subr.bf16.mxu0 0
  %6423 = vmatpush1.bf16.msra.mxu0 0
  %6424 = vmatprep.mubr.bf16.mxu0 0
  %6425 = vmatmul.mubr.bf16.gmra.mrb[0].mxu0 %v6391
  %v6426 = vpop.f32.mrb[0].mxu0
  %v6427 = vadd.f32 0.0, %v6426
  %v6428 = vpop.f32.mrb[0].mxu0
  %v6429 = vadd.f32 0.0, %v6428
  %v6430 = vpop.f32.mrb[0].mxu0
  %v6431 = vpop.f32.mrb[0].mxu0
  %6432 = vdwg.mxu0
  %6433 = vmatprep.subr.bf16.mxu0 %v3955
  %6434 = vmatpush1.bf16.msra.mxu0 %v3954
  %6435 = vmatprep.subr.bf16.mxu0 %v3959
  %6436 = vmatpush1.bf16.msra.mxu0 %v3958
  %6437 = vmatprep.subr.bf16.mxu0 %v3963
  %6438 = vmatpush1.bf16.msra.mxu0 %v3962
  %6439 = vmatprep.subr.bf16.mxu0 %v3967
  %6440 = vmatpush1.bf16.msra.mxu0 %v3966
  %6441 = vmatprep.subr.bf16.mxu0 %v3971
  %6442 = vmatpush1.bf16.msra.mxu0 %v3970
  %6443 = vmatprep.subr.bf16.mxu0 %v3975
  %6444 = vmatpush1.bf16.msra.mxu0 %v3974
  %6445 = vmatprep.subr.bf16.mxu0 %v3979
  %6446 = vmatpush1.bf16.msra.mxu0 %v3978
  %6447 = vmatprep.subr.bf16.mxu0 %v3983
  %6448 = vmatpush1.bf16.msra.mxu0 %v3982
  %6449 = vmatprep.subr.bf16.mxu0 0
  %6450 = vmatpush1.bf16.msra.mxu0 0
  %6451 = vmatprep.subr.bf16.mxu0 0
  %6452 = vmatpush1.bf16.msra.mxu0 0
  %6453 = vmatprep.subr.bf16.mxu0 0
  %6454 = vmatpush1.bf16.msra.mxu0 0
  %6455 = vmatprep.subr.bf16.mxu0 0
  %6456 = vmatpush1.bf16.msra.mxu0 0
  %6457 = vmatprep.subr.bf16.mxu0 0
  %6458 = vmatpush1.bf16.msra.mxu0 0
  %6459 = vmatprep.subr.bf16.mxu0 0
  %6460 = vmatpush1.bf16.msra.mxu0 0
  %6461 = vmatprep.subr.bf16.mxu0 0
  %6462 = vmatpush1.bf16.msra.mxu0 0
  %6463 = vmatprep.subr.bf16.mxu0 0
  %6464 = vmatpush1.bf16.msra.mxu0 0
  %6465 = vmatprep.mubr.bf16.mxu0 0
  %6466 = vmatmul.mubr.bf16.gmra.mrb[0].mxu0 %v6391
  %v6467 = vpop.f32.mrb[0].mxu0
  %v6468 = vadd.f32 0.0, %v6467
  %v6469 = vpop.f32.mrb[0].mxu0
  %v6470 = vadd.f32 0.0, %v6469
  %v6471 = vpop.f32.mrb[0].mxu0
  %v6472 = vpop.f32.mrb[0].mxu0
  %6473 = vdwg.mxu0
  %v6474 = vadd.f32 %v6387, %v6427
  %v6475 = vadd.f32 %v6388, %v6429
  %v6476 = vadd.f32 %v6389, %v6468
  %v6477 = vadd.f32 %v6390, %v6470
  %v6478 = vxor.u32 %v6474, 2147483648
  %v6479 = vmul.f32 %v6478, 1.442695
  %v6480 = vpow.pop %v6479
  %v6481 = vadd.f32 %v6480, 1.0
  %v6482 = vrcp.pop %v6481
  %v6483 = vmul.f32 1.0, %v6482
  %v6484 = vxor.u32 %v6475, 2147483648
  %v6485 = vmul.f32 %v6484, 1.442695
  %v6486 = vpow.pop %v6485
  %v6487 = vadd.f32 %v6486, 1.0
  %v6488 = vrcp.pop %v6487
  %v6489 = vmul.f32 1.0, %v6488
  %v6490 = vtanh.pop %v6476
  %v6491 = vxor.u32 %v6477, 2147483648
  %v6492 = vmul.f32 %v6491, 1.442695
  %v6493 = vpow.pop %v6492
  %v6494 = vadd.f32 %v6493, 1.0
  %v6495 = vrcp.pop %v6494
  %v6496 = vmul.f32 1.0, %v6495
  %v6497 = vmul.f32 %v6489, %v6384
  %v6498 = vmul.f32 %v6483, %v6490
  %v6499 = vadd.f32 %v6497, %v6498
  %v6500 = vtanh.pop %v6499
  %v6501 = vmul.f32 %v6496, %v6500
  %v6502 = vpack.c.bf16 %v6501, %v6501
  %v6503 = vpack.c.bf16 %v6017, %v6017
  %v6504 = vld [vmem:[%s8] sm:$0xf]
  %v6505 = vld [vmem:[%s8 + $0x4] sm:$0xf]
  %v6506 = vld [vmem:[%s8 + $0x8] sm:$0xf]
  %v6507 = vld [vmem:[%s8 + $0xc] sm:$0xf]
  %v6508 = vld [vmem:[%s8 + $0x10] sm:$0xf]
  %v6509 = vld [vmem:[%s8 + $0x14] sm:$0xf]
  %v6510 = vld [vmem:[%s8 + $0x18] sm:$0xf]
  %v6511 = vld [vmem:[%s8 + $0x1c] sm:$0xf]
  %v6512 = vld [vmem:[%s8 + $0x20] sm:$0xf]
  %v6513 = vld [vmem:[%s8 + $0x24] sm:$0xf]
  %v6514 = vld [vmem:[%s8 + $0x28] sm:$0xf]
  %v6515 = vld [vmem:[%s8 + $0x2c] sm:$0xf]
  %v6516 = vld [vmem:[%s8 + $0x30] sm:$0xf]
  %v6517 = vld [vmem:[%s8 + $0x34] sm:$0xf]
  %v6518 = vld [vmem:[%s8 + $0x38] sm:$0xf]
  %v6519 = vld [vmem:[%s8 + $0x3c] sm:$0xf]
  %v6520 = vld [vmem:[%s8 + $0x40] sm:$0xf]
  %v6521 = vld [vmem:[%s8 + $0x44] sm:$0xf]
  %v6522 = vld [vmem:[%s8 + $0x48] sm:$0xf]
  %v6523 = vld [vmem:[%s8 + $0x4c] sm:$0xf]
  %v6524 = vld [vmem:[%s8 + $0x50] sm:$0xf]
  %v6525 = vld [vmem:[%s8 + $0x54] sm:$0xf]
  %v6526 = vld [vmem:[%s8 + $0x58] sm:$0xf]
  %v6527 = vld [vmem:[%s8 + $0x5c] sm:$0xf]
  %v6528 = vld [vmem:[%s8 + $0x60] sm:$0xf]
  %v6529 = vld [vmem:[%s8 + $0x64] sm:$0xf]
  %v6530 = vld [vmem:[%s8 + $0x68] sm:$0xf]
  %v6531 = vld [vmem:[%s8 + $0x6c] sm:$0xf]
  %v6532 = vld [vmem:[%s8 + $0x70] sm:$0xf]
  %v6533 = vld [vmem:[%s8 + $0x74] sm:$0xf]
  %v6534 = vld [vmem:[%s8 + $0x78] sm:$0xf]
  %v6535 = vld [vmem:[%s8 + $0x7c] sm:$0xf]
  %v6536 = vld [vmem:[%s9] sm:$0x1]
  %v6538 = vlaneseq
  %v6539 = vshrl.u32 %v6538, 7
  %v6540 = vsub.s32 0, %v6539
  %v6541 = vrot.slane %v6536, %v6540
  %v6575 = vunpack.c.l.b16 %v6504
  %v6576 = vunpack.c.l.b16 %v6505
  %v6577 = vunpack.c.l.b16 %v6506
  %v6578 = vunpack.c.l.b16 %v6507
  %v6579 = vunpack.c.l.b16 %v6508
  %v6580 = vunpack.c.l.b16 %v6509
  %v6581 = vunpack.c.l.b16 %v6510
  %v6582 = vunpack.c.l.b16 %v6511
  %v6583 = vunpack.c.l.b16 %v6512
  %v6584 = vunpack.c.l.b16 %v6513
  %v6585 = vunpack.c.l.b16 %v6514
  %v6586 = vunpack.c.l.b16 %v6515
  %v6587 = vunpack.c.l.b16 %v6516
  %v6588 = vunpack.c.l.b16 %v6517
  %v6589 = vunpack.c.l.b16 %v6518
  %v6590 = vunpack.c.l.b16 %v6519
  %v6591 = vunpack.c.l.b16 %v6520
  %v6592 = vunpack.c.l.b16 %v6521
  %v6593 = vunpack.c.l.b16 %v6522
  %v6594 = vunpack.c.l.b16 %v6523
  %v6595 = vunpack.c.l.b16 %v6524
  %v6596 = vunpack.c.l.b16 %v6525
  %v6597 = vunpack.c.l.b16 %v6526
  %v6598 = vunpack.c.l.b16 %v6527
  %v6599 = vunpack.c.l.b16 %v6528
  %v6600 = vunpack.c.l.b16 %v6529
  %v6601 = vunpack.c.l.b16 %v6530
  %v6602 = vunpack.c.l.b16 %v6531
  %v6603 = vunpack.c.l.b16 %v6532
  %v6604 = vunpack.c.l.b16 %v6533
  %v6605 = vunpack.c.l.b16 %v6534
  %v6606 = vunpack.c.l.b16 %v6535
  %v6607 = vpack.c.b16 %v6576, %v6575
  %v6608 = vpack.c.b16 %v6578, %v6577
  %v6609 = vpack.c.b16 %v6580, %v6579
  %v6610 = vpack.c.b16 %v6582, %v6581
  %v6611 = vpack.c.b16 %v6584, %v6583
  %v6612 = vpack.c.b16 %v6586, %v6585
  %v6613 = vpack.c.b16 %v6588, %v6587
  %v6614 = vpack.c.b16 %v6590, %v6589
  %v6615 = vpack.c.b16 %v6592, %v6591
  %v6616 = vpack.c.b16 %v6594, %v6593
  %v6617 = vpack.c.b16 %v6596, %v6595
  %v6618 = vpack.c.b16 %v6598, %v6597
  %v6619 = vpack.c.b16 %v6600, %v6599
  %v6620 = vpack.c.b16 %v6602, %v6601
  %v6621 = vpack.c.b16 %v6604, %v6603
  %v6622 = vpack.c.b16 %v6606, %v6605
  %6639 = vmatprep.subr.bf16.mxu0 0
  %6640 = vmatpush1.bf16.msra.mxu0 %v6607
  %6641 = vmatprep.subr.bf16.mxu0 0
  %6642 = vmatpush1.bf16.msra.mxu0 %v6608
  %6643 = vmatprep.subr.bf16.mxu0 0
  %6644 = vmatpush1.bf16.msra.mxu0 %v6609
  %6645 = vmatprep.subr.bf16.mxu0 0
  %6646 = vmatpush1.bf16.msra.mxu0 %v6610
  %6647 = vmatprep.subr.bf16.mxu0 0
  %6648 = vmatpush1.bf16.msra.mxu0 %v6611
  %6649 = vmatprep.subr.bf16.mxu0 0
  %6650 = vmatpush1.bf16.msra.mxu0 %v6612
  %6651 = vmatprep.subr.bf16.mxu0 0
  %6652 = vmatpush1.bf16.msra.mxu0 %v6613
  %6653 = vmatprep.subr.bf16.mxu0 0
  %6654 = vmatpush1.bf16.msra.mxu0 %v6614
  %6655 = vmatprep.subr.bf16.mxu0 0
  %6656 = vmatpush1.bf16.msra.mxu0 %v6615
  %6657 = vmatprep.subr.bf16.mxu0 0
  %6658 = vmatpush1.bf16.msra.mxu0 %v6616
  %6659 = vmatprep.subr.bf16.mxu0 0
  %6660 = vmatpush1.bf16.msra.mxu0 %v6617
  %6661 = vmatprep.subr.bf16.mxu0 0
  %6662 = vmatpush1.bf16.msra.mxu0 %v6618
  %6663 = vmatprep.subr.bf16.mxu0 0
  %6664 = vmatpush1.bf16.msra.mxu0 %v6619
  %6665 = vmatprep.subr.bf16.mxu0 0
  %6666 = vmatpush1.bf16.msra.mxu0 %v6620
  %6667 = vmatprep.subr.bf16.mxu0 0
  %6668 = vmatpush1.bf16.msra.mxu0 %v6621
  %6669 = vmatprep.subr.bf16.mxu0 0
  %6670 = vmatpush1.bf16.msra.mxu0 %v6622
  %6671 = vmatprep.mubr.bf16.mxu0 %v6503
  %6672 = vmatmul.mubr.bf16.gmra.mrb[0].mxu0 %v6502
  %v6673 = vpop.f32.mrb[0].mxu0
  %v6674 = vadd.f32 %v6541, %v6673
  %v6675 = vpop.f32.mrb[0].mxu0
  %v6676 = vpop.f32.mrb[0].mxu0
  %v6677 = vpop.f32.mrb[0].mxu0
  %6678 = vdwg.mxu0
  %6679 = vst [vmem:[%s10] sm:$0xff] %v6674
  // Predicated region
  $region42: #{bert_lstm_forward.1} parent=0 // pred_check
    _
  $region43: #{bert_lstm_forward.1} parent=0 // pred_check_branch
    %6681 = sbr.rel (0) target = $region45
  $region44: #{bert_lstm_forward.1} parent=0 // pred_region
    _
  $region45: #{bert_lstm_forward.1} parent=0 // pred_fallthru
    _
  // Predicated region
  $region46: #{bert_lstm_forward.1} parent=0 // pred_check
    _
  $region47: #{bert_lstm_forward.1} parent=0 // pred_check_branch
    %6683 = sbr.rel (0) target = $region49
  $region48: #{bert_lstm_forward.1} parent=0 // pred_region
    _
  $region49: #{bert_lstm_forward.1} parent=0 // pred_fallthru
    _

</llo_original>
